<compile_context>
chip_gen: v5e
topology: v5e:2x2
jax: 0.10.0
libtpu: 0.0.40
codegen_flags: <defaults>
</compile_context>

<pallas_src>
import functools

import jax
import jax.numpy as jnp
from jax.experimental import pallas as pl
from jax.experimental.pallas import tpu as pltpu


def _round_up(x, m):
    return (x + m - 1) // m * m


def _device_kind():
    try:
        return jax.devices()[0].device_kind.lower()
    except Exception:
        return ""


def _default_exp_dtype():
    kind = _device_kind()
    # bf16 EUP exists on v6e/v7x (~2x exp throughput); v5e and older: keep f32.
    if "v6" in kind or "v7" in kind:
        return jnp.bfloat16
    return jnp.float32


def _default_vmem_limit_bytes():
    kind = _device_kind()
    if "v7" in kind:
        return 48 * 1024 * 1024      # 64 MiB physical on v7x -> leave headroom
    if "v5" in kind or "v6" in kind:
        return 100 * 1024 * 1024     # 128 MiB physical on v5e/v6e
    return 48 * 1024 * 1024          # conservative default elsewhere


def mha_flash_kernel(q_ref, qp_ref, kt_ref, vp_ref, wfc_ref, gamma_ref, beta_ref,
                     o_ref, m_scr, l_scr, acc_scr,
                     *, n_head, k_tile, len_k, mask_k, eps, mxu_dtype, exp_dtype):
    ki = pl.program_id(2)
    nk = pl.num_programs(2)

    @pl.when(ki == 0)
    def _init():
        m_scr[...] = jnp.full(m_scr.shape, -jnp.inf, m_scr.dtype)
        l_scr[...] = jnp.zeros(l_scr.shape, l_scr.dtype)
        acc_scr[...] = jnp.zeros(acc_scr.shape, acc_scr.dtype)

    if mask_k:
        tq = qp_ref.shape[2]
        col = ki * k_tile + jax.lax.broadcasted_iota(jnp.int32, (tq, k_tile), 1)
        col_ok = col < len_k                                     # mask padded keys

    # Per-head online-softmax update.  Q'/K'/V' are already projected, head-major and
    # (for Q') pre-scaled, so the inner loop is only: S, online-softmax, P@V.
    for h in range(n_head):
        qp_h = qp_ref[0, h]                                      # (TQ, d_k)  bf16, scaled
        kt_h = kt_ref[0, h]                                      # (d_k, TK)  bf16 (pre-transposed)
        vp_h = vp_ref[0, h]                                      # (TK, d_v)  bf16

        s = jnp.dot(qp_h, kt_h, preferred_element_type=jnp.float32)   # (TQ, TK) f32
        if mask_k:
            s = jnp.where(col_ok, s, jnp.float32(-1e30))

        m_prev = m_scr[h]
        m_new = jnp.maximum(m_prev, jnp.max(s, axis=-1, keepdims=True))
        alpha = jnp.exp(m_prev - m_new)                          # (TQ,1), f32 (cheap)
        p = jnp.exp((s - m_new).astype(exp_dtype))               # bf16 EUP on v6e/v7x, f32 on v5e
        if mask_k:
            p = jnp.where(col_ok, p, jnp.zeros((), p.dtype))     # robust even if a tile is fully masked
        l_scr[h] = alpha * l_scr[h] + jnp.sum(p.astype(jnp.float32), axis=-1, keepdims=True)
        acc_scr[h] = alpha * acc_scr[h] + jnp.dot(
            p.astype(mxu_dtype), vp_h, preferred_element_type=jnp.float32)
        m_scr[h] = m_new

    @pl.when(ki == nk - 1)
    def _finalize():
        # Scale each head by 1/l, pack heads into one lane-dense (TQ, n_head*d_v) slab
        # (one XLU relayout per q-tile) and do a single 128-deep output projection.
        heads = []
        for h in range(n_head):
            inv_l = pl.reciprocal(l_scr[h], approx=True)         # EUP slot, ~free
            heads.append((acc_scr[h] * inv_l).astype(mxu_dtype))
        concat = jnp.concatenate(heads, axis=-1)                 # (TQ, n_head*d_v)
        out = q_ref[0].astype(jnp.float32) + jnp.dot(            # residual + out-proj
            concat, wfc_ref[...], preferred_element_type=jnp.float32)
        # LayerNorm (biased variance, eps inside rsqrt), f32 math
        mean = jnp.mean(out, axis=-1, keepdims=True)
        var = jnp.mean(jnp.square(out - mean), axis=-1, keepdims=True)
        y = (out - mean) * jax.lax.rsqrt(var + eps)
        y = y * gamma_ref[...] + beta_ref[...]
        o_ref[0] = y.astype(o_ref.dtype)


def multi_head_attention(q, k, v, params, *, n_head, d_k, d_v,
                         q_tile=512, k_tile=512,
                         mxu_dtype=jnp.bfloat16, exp_dtype=None, eps=1e-6):
    """q,k,v: (B, L, d_model). Weights pre-transposed to (in, out) layout.

    512 tiles fit every generation's VMEM (incl. v7x's 64 MiB); keep B*ceil(Lq/tq) >= 2
    on v7x so both TensorCores get parallel grid work.
    """
    wq, wk, wv, wfc, gamma, beta = params
    B, Lq, d_model = q.shape
    Lk = k.shape[1]
    assert v.shape[1] == Lk
    if exp_dtype is None:
        exp_dtype = _default_exp_dtype()

    scale = d_k ** -0.5
    cast = lambda x: x.astype(mxu_dtype)

    # ---- Projections hoisted out of the kernel: full-width (d_model x n_head*d_k) GEMMs.
    qp = jnp.einsum("bld,df->blf", cast(q), cast(wq), preferred_element_type=jnp.float32)
    kp = jnp.einsum("bld,df->blf", cast(k), cast(wk), preferred_element_type=jnp.float32)
    vp = jnp.einsum("bld,df->blf", cast(v), cast(wv), preferred_element_type=jnp.float32)
    # Head-major layouts; scale folded into Q'; K' pre-transposed to (d_k, Lk) so the
    # kernel's S matmul needs no transpose and K' blocks are lane-dense.
    qp = (qp * scale).reshape(B, Lq, n_head, d_k).transpose(0, 2, 1, 3).astype(mxu_dtype)   # (B,H,Lq,dk)
    kt = kp.reshape(B, Lk, n_head, d_k).transpose(0, 2, 3, 1).astype(mxu_dtype)             # (B,H,dk,Lk)
    vp = vp.reshape(B, Lk, n_head, d_v).transpose(0, 2, 1, 3).astype(mxu_dtype)             # (B,H,Lk,dv)

    gamma2 = gamma.reshape(1, d_model).astype(jnp.float32)
    beta2 = beta.reshape(1, d_model).astype(jnp.float32)
    wfc_mx = wfc.astype(mxu_dtype)                                                          # (H*dv, d_model)

    # ---- Tile sizes (multiples of 16 for bf16 sublane packing); pad sequences.
    tq = min(q_tile, _round_up(Lq, 16))
    tk = min(k_tile, _round_up(Lk, 16))
    lq_pad = _round_up(Lq, tq)
    lk_pad = _round_up(Lk, tk)

    q_pad = jnp.pad(q, ((0, 0), (0, lq_pad - Lq), (0, 0)))
    qp_pad = jnp.pad(qp, ((0, 0), (0, 0), (0, lq_pad - Lq), (0, 0)))
    kt_pad = jnp.pad(kt, ((0, 0), (0, 0), (0, 0), (0, lk_pad - Lk)))
    vp_pad = jnp.pad(vp, ((0, 0), (0, 0), (0, lk_pad - Lk), (0, 0)))

    grid = (B, lq_pad // tq, lk_pad // tk)

    kernel = functools.partial(
        mha_flash_kernel, n_head=n_head, k_tile=tk, len_k=Lk,
        mask_k=(lk_pad != Lk), eps=eps, mxu_dtype=mxu_dtype, exp_dtype=exp_dtype)

    out = pl.pallas_call(
        kernel,
        out_shape=jax.ShapeDtypeStruct((B, lq_pad, d_model), q.dtype),
        grid_spec=pltpu.PrefetchScalarGridSpec(
            num_scalar_prefetch=0,
            grid=grid,
            in_specs=[
                pl.BlockSpec((1, tq, d_model), lambda b, qi, ki: (b, qi, 0)),        # raw q (residual)
                pl.BlockSpec((1, n_head, tq, d_k), lambda b, qi, ki: (b, 0, qi, 0)), # Q' (scaled)
                pl.BlockSpec((1, n_head, d_k, tk), lambda b, qi, ki: (b, 0, 0, ki)), # K'^T
                pl.BlockSpec((1, n_head, tk, d_v), lambda b, qi, ki: (b, 0, ki, 0)), # V'
                pl.BlockSpec((n_head * d_v, d_model), lambda b, qi, ki: (0, 0)),     # Wfc
                pl.BlockSpec((1, d_model), lambda b, qi, ki: (0, 0)),                # gamma
                pl.BlockSpec((1, d_model), lambda b, qi, ki: (0, 0)),                # beta
            ],
            out_specs=pl.BlockSpec((1, tq, d_model), lambda b, qi, ki: (b, qi, 0)),
            scratch_shapes=[
                pltpu.VMEM((n_head, tq, 1), jnp.float32),    # running max m
                pltpu.VMEM((n_head, tq, 1), jnp.float32),    # running denom l
                pltpu.VMEM((n_head, tq, d_v), jnp.float32),  # output accumulator
            ],
        ),
        compiler_params=pltpu.CompilerParams(
            dimension_semantics=("parallel", "parallel", "arbitrary"),
            vmem_limit_bytes=_default_vmem_limit_bytes(),
        ),
    )(q_pad, qp_pad, kt_pad, vp_pad, wfc_mx, gamma2, beta2)

    return out[:, :Lq, :] if lq_pad != Lq else out


def reference_mha(q, k, v, params, *, n_head, d_k, d_v,
                  matmul_dtype=jnp.float32, eps=1e-6):
    # Pure-JAX reference mirroring the PyTorch forward (pre_LN=False, mask=None,
    # dropout=identity).  With matmul_dtype=f32 this is the exact module math;
    # with bf16 it mirrors the kernel's MXU-operand cast points.
    wq, wk, wv, wfc, gamma, beta = params
    B, Lq, d_model = q.shape
    Lk = k.shape[1]
    cast = lambda x: x.astype(matmul_dtype)
    residual = q.astype(jnp.float32)

    qp = jnp.einsum("bld,df->blf", cast(q), cast(wq), preferred_element_type=jnp.float32)
    kp = jnp.einsum("bld,df->blf", cast(k), cast(wk), preferred_element_type=jnp.float32)
    vp = jnp.einsum("bld,df->blf", cast(v), cast(wv), preferred_element_type=jnp.float32)
    qp = qp.reshape(B, Lq, n_head, d_k).transpose(0, 2, 1, 3) * (d_k ** -0.5)
    kp = kp.reshape(B, Lk, n_head, d_k).transpose(0, 2, 1, 3)
    vp = vp.reshape(B, Lk, n_head, d_v).transpose(0, 2, 1, 3)

    scores = jnp.einsum("bhqd,bhkd->bhqk", cast(qp), cast(kp),
                        preferred_element_type=jnp.float32)
    attn = jax.nn.softmax(scores, axis=-1)
    out_h = jnp.einsum("bhqk,bhkd->bhqd", cast(attn), cast(vp),
                       preferred_element_type=jnp.float32)
    concat = out_h.transpose(0, 2, 1, 3).reshape(B, Lq, n_head * d_v)
    out = jnp.einsum("blf,fd->bld", cast(concat), cast(wfc),
                     preferred_element_type=jnp.float32) + residual
    mean = jnp.mean(out, axis=-1, keepdims=True)
    var = jnp.mean(jnp.square(out - mean), axis=-1, keepdims=True)
    y = (out - mean) * jax.lax.rsqrt(var + eps)
    return y * gamma.reshape(1, 1, d_model) + beta.reshape(1, 1, d_model)


if __name__ == "__main__":
    # Lane-dense d_model; seq length that is NOT a tile multiple (exercises padding +
    # key masking) and, with 128-tiles, >1 q-tile and >1 k-tile per sequence.
    B, L, d_model = 2, 200, 128
    n_head, d_k, d_v = 4, 32, 32

    key = jax.random.PRNGKey(0)
    k_q, k_k, k_v, k_wq, k_wk, k_wv, k_fc = jax.random.split(key, 7)

    q = jax.random.normal(k_q, (B, L, d_model), dtype=jnp.float32)
    k = jax.random.normal(k_k, (B, L, d_model), dtype=jnp.float32)
    v = jax.random.normal(k_v, (B, L, d_model), dtype=jnp.float32)

    # PyTorch Linear weight is (out, in); we store the transposed (in, out) form.
    s_in = 1.0 / (d_model ** 0.5)
    s_fc = 1.0 / ((n_head * d_v) ** 0.5)
    wq = jax.random.uniform(k_wq, (d_model, n_head * d_k), jnp.float32, -s_in, s_in)
    wk = jax.random.uniform(k_wk, (d_model, n_head * d_k), jnp.float32, -s_in, s_in)
    wv = jax.random.uniform(k_wv, (d_model, n_head * d_v), jnp.float32, -s_in, s_in)
    wfc = jax.random.uniform(k_fc, (n_head * d_v, d_model), jnp.float32, -s_fc, s_fc)
    gamma = jnp.ones((d_model,), jnp.float32)   # LayerNorm default affine
    beta = jnp.zeros((d_model,), jnp.float32)
    params = (wq, wk, wv, wfc, gamma, beta)

    ref_bf16 = reference_mha(q, k, v, params, n_head=n_head, d_k=d_k, d_v=d_v,
                             matmul_dtype=jnp.bfloat16)
    ref_f32 = reference_mha(q, k, v, params, n_head=n_head, d_k=d_k, d_v=d_v,
                            matmul_dtype=jnp.float32)

    # Small tiles: multi-tile grid exercises the online-softmax accumulation + masking.
    out_small = multi_head_attention(q, k, v, params, n_head=n_head, d_k=d_k, d_v=d_v,
                                     q_tile=128, k_tile=128)
    out_small = jax.block_until_ready(out_small)
    assert out_small.shape == (B, L, d_model)
    assert jnp.allclose(out_small, ref_bf16, atol=1e-2, rtol=1e-2)
    assert jnp.allclose(out_small, ref_f32, atol=3e-2, rtol=3e-2)

    # Default (large-tile) path: single tile per sequence here, tk == padded Lk.
    out_big = multi_head_attention(q, k, v, params, n_head=n_head, d_k=d_k, d_v=d_v)
    out_big = jax.block_until_ready(out_big)
    assert out_big.shape == (B, L, d_model)
    assert jnp.allclose(out_big, ref_bf16, atol=1e-2, rtol=1e-2)
    assert jnp.allclose(out_big, ref_f32, atol=3e-2, rtol=3e-2)

    # TODO(synk): nn.Dropout layers are treated as identity (inference mode) and only the
    # mask=None path of the module is implemented (matches the reference call).
    print("KERNEL_OK")
</pallas_src>

<mosaic_0001>
module attributes {stable_mosaic.version = 11 : i64} {
  func.func @mha_flash_kernel(%arg0: i32, %arg1: i32, %arg2: i32, %arg3: memref<1x128x128xf32, #tpu.memory_space<vmem>>, %arg4: memref<1x4x128x32xbf16, #tpu.memory_space<vmem>>, %arg5: memref<1x4x32x128xbf16, #tpu.memory_space<vmem>>, %arg6: memref<1x4x128x32xbf16, #tpu.memory_space<vmem>>, %arg7: memref<128x128xbf16, #tpu.memory_space<vmem>>, %arg8: memref<1x128xf32, #tpu.memory_space<vmem>>, %arg9: memref<1x128xf32, #tpu.memory_space<vmem>>, %arg10: memref<1x128x128xf32, #tpu.memory_space<vmem>>, %arg11: memref<4x128x1xf32, #tpu.memory_space<vmem>>, %arg12: memref<4x128x1xf32, #tpu.memory_space<vmem>>, %arg13: memref<4x128x32xf32, #tpu.memory_space<vmem>>) attributes {dimension_semantics = [#tpu.dimension_semantics<parallel>, #tpu.dimension_semantics<parallel>, #tpu.dimension_semantics<arbitrary>], iteration_bounds = array<i64: 2, 2, 2>, scalar_prefetch = 0 : i64, scratch_operands = 3 : i64, tpu.core_type = #tpu.core_type<tc>, window_params = [{transform_indices = @transform_0, window_bounds = array<i64: 1, 128, 128>}, {transform_indices = @transform_1, window_bounds = array<i64: 1, 4, 128, 32>}, {transform_indices = @transform_2, window_bounds = array<i64: 1, 4, 32, 128>}, {transform_indices = @transform_3, window_bounds = array<i64: 1, 4, 128, 32>}, {pipeline_mode = #tpu.pipeline_mode<synchronous>, transform_indices = @transform_4, window_bounds = array<i64: 128, 128>}, {pipeline_mode = #tpu.pipeline_mode<synchronous>, transform_indices = @transform_5, window_bounds = array<i64: 1, 128>}, {pipeline_mode = #tpu.pipeline_mode<synchronous>, transform_indices = @transform_6, window_bounds = array<i64: 1, 128>}, {transform_indices = @transform_7, window_bounds = array<i64: 1, 128, 128>}]} {
    %c0_i32 = arith.constant 0 : i32
    %0 = arith.cmpi eq, %arg2, %c0_i32 : i32
    %1 = arith.extui %0 : i1 to i32
    %c0_i32_0 = arith.constant 0 : i32
    %2 = arith.cmpi ne, %1, %c0_i32_0 : i32
    scf.if %2 {
      %cst_141 = arith.constant 0xFF800000 : f32
      %184 = vector.broadcast %cst_141 : f32 to vector<4x128x1xf32>
      %c0_142 = arith.constant 0 : index
      %c0_143 = arith.constant 0 : index
      %c0_144 = arith.constant 0 : index
      %185 = vector.load %arg11[%c0_142, %c0_143, %c0_144] : memref<4x128x1xf32, #tpu.memory_space<vmem>>, vector<4x128x1xf32>
      tpu.vector_store %arg11[%c0_142, %c0_143, %c0_144], %184 {strides = array<i32>} : memref<4x128x1xf32, #tpu.memory_space<vmem>>, vector<4x128x1xf32>,
      %cst_145 = arith.constant 0.000000e+00 : f32
      %186 = vector.broadcast %cst_145 : f32 to vector<4x128x1xf32>
      %c0_146 = arith.constant 0 : index
      %c0_147 = arith.constant 0 : index
      %c0_148 = arith.constant 0 : index
      %187 = vector.load %arg12[%c0_146, %c0_147, %c0_148] : memref<4x128x1xf32, #tpu.memory_space<vmem>>, vector<4x128x1xf32>
      tpu.vector_store %arg12[%c0_146, %c0_147, %c0_148], %186 {strides = array<i32>} : memref<4x128x1xf32, #tpu.memory_space<vmem>>, vector<4x128x1xf32>,
      %cst_149 = arith.constant 0.000000e+00 : f32
      %188 = vector.broadcast %cst_149 : f32 to vector<4x128x32xf32>
      %c0_150 = arith.constant 0 : index
      %c0_151 = arith.constant 0 : index
      %c0_152 = arith.constant 0 : index
      %189 = vector.load %arg13[%c0_150, %c0_151, %c0_152] : memref<4x128x32xf32, #tpu.memory_space<vmem>>, vector<4x128x32xf32>
      tpu.vector_store %arg13[%c0_150, %c0_151, %c0_152], %188 {strides = array<i32>} : memref<4x128x32xf32, #tpu.memory_space<vmem>>, vector<4x128x32xf32>,
    } else {
    }
    %c128_i32 = arith.constant 128 : i32
    %3 = arith.muli %arg2, %c128_i32 : i32
    %4 = tpu.iota {dimensions = array<i32: 1>} : vector<128x128xi32>
    %5 = vector.broadcast %3 : i32 to vector<128x128xi32>
    %6 = arith.addi %5, %4 : vector<128x128xi32>
    %c200_i32 = arith.constant 200 : i32
    %7 = vector.broadcast %c200_i32 : i32 to vector<128x128xi32>
    %8 = arith.cmpi slt, %6, %7 : vector<128x128xi32>
    %c0 = arith.constant 0 : index
    %c0_1 = arith.constant 0 : index
    %c0_2 = arith.constant 0 : index
    %c0_3 = arith.constant 0 : index
    %9 = vector.load %arg4[%c0, %c0_1, %c0_2, %c0_3] : memref<1x4x128x32xbf16, #tpu.memory_space<vmem>>, vector<1x1x128x32xbf16>
    %10 = vector.shape_cast %9 : vector<1x1x128x32xbf16> to vector<128x32xbf16>
    %c0_4 = arith.constant 0 : index
    %c0_5 = arith.constant 0 : index
    %c0_6 = arith.constant 0 : index
    %c0_7 = arith.constant 0 : index
    %11 = vector.load %arg5[%c0_4, %c0_5, %c0_6, %c0_7] : memref<1x4x32x128xbf16, #tpu.memory_space<vmem>>, vector<1x1x32x128xbf16>
    %12 = vector.shape_cast %11 : vector<1x1x32x128xbf16> to vector<32x128xbf16>
    %c0_8 = arith.constant 0 : index
    %c0_9 = arith.constant 0 : index
    %c0_10 = arith.constant 0 : index
    %c0_11 = arith.constant 0 : index
    %13 = vector.load %arg6[%c0_8, %c0_9, %c0_10, %c0_11] : memref<1x4x128x32xbf16, #tpu.memory_space<vmem>>, vector<1x1x128x32xbf16>
    %14 = vector.shape_cast %13 : vector<1x1x128x32xbf16> to vector<128x32xbf16>
    %cst = arith.constant dense<0.000000e+00> : vector<128x128xf32>
    %15 = tpu.matmul %10, %12, %cst {dimension_numbers = #tpu.dot_dimension_numbers<[1], [0], [0], [1], [0, 0, 1, 1], [], []>} : vector<128x32xbf16>, vector<32x128xbf16>, vector<128x128xf32> -> vector<128x128xf32>
    %cst_12 = arith.constant -1.000000e+30 : f32
    %16 = vector.broadcast %cst_12 : f32 to vector<128x128xf32>
    %17 = arith.select %8, %15, %16 : vector<128x128xi1>, vector<128x128xf32>
    %c0_13 = arith.constant 0 : index
    %c0_14 = arith.constant 0 : index
    %c0_15 = arith.constant 0 : index
    %18 = vector.load %arg11[%c0_13, %c0_14, %c0_15] : memref<4x128x1xf32, #tpu.memory_space<vmem>>, vector<1x128x1xf32>
    %19 = vector.shape_cast %18 : vector<1x128x1xf32> to vector<128x1xf32>
    %cst_16 = arith.constant dense<0xFF800000> : vector<128xf32>
    %20 = vector.multi_reduction <maximumf>, %17, %cst_16 [1] : vector<128x128xf32> to vector<128xf32>
    %21 = vector.shape_cast %20 : vector<128xf32> to vector<128x1xf32>
    %22 = arith.maximumf %19, %21 : vector<128x1xf32>
    %23 = arith.subf %19, %22 : vector<128x1xf32>
    %24 = math.exp %23 : vector<128x1xf32>
    %25 = vector.broadcast %22 : vector<128x1xf32> to vector<128x128xf32>
    %26 = arith.subf %17, %25 : vector<128x128xf32>
    %27 = math.exp %26 : vector<128x128xf32>
    %cst_17 = arith.constant 0.000000e+00 : f32
    %28 = vector.broadcast %cst_17 : f32 to vector<128x128xf32>
    %29 = arith.select %8, %27, %28 : vector<128x128xi1>, vector<128x128xf32>
    %c0_18 = arith.constant 0 : index
    %c0_19 = arith.constant 0 : index
    %c0_20 = arith.constant 0 : index
    %30 = vector.load %arg12[%c0_18, %c0_19, %c0_20] : memref<4x128x1xf32, #tpu.memory_space<vmem>>, vector<1x128x1xf32>
    %31 = vector.shape_cast %30 : vector<1x128x1xf32> to vector<128x1xf32>
    %32 = arith.mulf %24, %31 : vector<128x1xf32>
    %cst_21 = arith.constant dense<0.000000e+00> : vector<128xf32>
    %33 = vector.multi_reduction <add>, %29, %cst_21 [1] : vector<128x128xf32> to vector<128xf32>
    %34 = vector.shape_cast %33 : vector<128xf32> to vector<128x1xf32>
    %35 = arith.addf %32, %34 : vector<128x1xf32>
    %c0_22 = arith.constant 0 : index
    %c0_23 = arith.constant 0 : index
    %c0_24 = arith.constant 0 : index
    %36 = vector.load %arg12[%c0_22, %c0_23, %c0_24] : memref<4x128x1xf32, #tpu.memory_space<vmem>>, vector<1x128x1xf32>
    %37 = vector.shape_cast %36 : vector<1x128x1xf32> to vector<128x1xf32>
    %38 = vector.shape_cast %35 : vector<128x1xf32> to vector<1x128x1xf32>
    tpu.vector_store %arg12[%c0_22, %c0_23, %c0_24], %38 {strides = array<i32>} : memref<4x128x1xf32, #tpu.memory_space<vmem>>, vector<1x128x1xf32>,
    %c0_25 = arith.constant 0 : index
    %c0_26 = arith.constant 0 : index
    %c0_27 = arith.constant 0 : index
    %39 = vector.load %arg13[%c0_25, %c0_26, %c0_27] : memref<4x128x32xf32, #tpu.memory_space<vmem>>, vector<1x128x32xf32>
    %40 = vector.shape_cast %39 : vector<1x128x32xf32> to vector<128x32xf32>
    %41 = vector.broadcast %24 : vector<128x1xf32> to vector<128x32xf32>
    %42 = arith.mulf %41, %40 : vector<128x32xf32>
    %43 = arith.truncf %29 : vector<128x128xf32> to vector<128x128xbf16>
    %cst_28 = arith.constant dense<0.000000e+00> : vector<128x32xf32>
    %44 = tpu.matmul %43, %14, %cst_28 {dimension_numbers = #tpu.dot_dimension_numbers<[1], [0], [0], [1], [0, 0, 1, 1], [], []>} : vector<128x128xbf16>, vector<128x32xbf16>, vector<128x32xf32> -> vector<128x32xf32>
    %45 = arith.addf %42, %44 : vector<128x32xf32>
    %c0_29 = arith.constant 0 : index
    %c0_30 = arith.constant 0 : index
    %c0_31 = arith.constant 0 : index
    %46 = vector.load %arg13[%c0_29, %c0_30, %c0_31] : memref<4x128x32xf32, #tpu.memory_space<vmem>>, vector<1x128x32xf32>
    %47 = vector.shape_cast %46 : vector<1x128x32xf32> to vector<128x32xf32>
    %48 = vector.shape_cast %45 : vector<128x32xf32> to vector<1x128x32xf32>
    tpu.vector_store %arg13[%c0_29, %c0_30, %c0_31], %48 {strides = array<i32>} : memref<4x128x32xf32, #tpu.memory_space<vmem>>, vector<1x128x32xf32>,
    %c0_32 = arith.constant 0 : index
    %c0_33 = arith.constant 0 : index
    %c0_34 = arith.constant 0 : index
    %49 = vector.load %arg11[%c0_32, %c0_33, %c0_34] : memref<4x128x1xf32, #tpu.memory_space<vmem>>, vector<1x128x1xf32>
    %50 = vector.shape_cast %49 : vector<1x128x1xf32> to vector<128x1xf32>
    %51 = vector.shape_cast %22 : vector<128x1xf32> to vector<1x128x1xf32>
    tpu.vector_store %arg11[%c0_32, %c0_33, %c0_34], %51 {strides = array<i32>} : memref<4x128x1xf32, #tpu.memory_space<vmem>>, vector<1x128x1xf32>,
    %c0_35 = arith.constant 0 : index
    %c1 = arith.constant 1 : index
    %c0_36 = arith.constant 0 : index
    %c0_37 = arith.constant 0 : index
    %52 = vector.load %arg4[%c0_35, %c1, %c0_36, %c0_37] : memref<1x4x128x32xbf16, #tpu.memory_space<vmem>>, vector<1x1x128x32xbf16>
    %53 = vector.shape_cast %52 : vector<1x1x128x32xbf16> to vector<128x32xbf16>
    %c0_38 = arith.constant 0 : index
    %c1_39 = arith.constant 1 : index
    %c0_40 = arith.constant 0 : index
    %c0_41 = arith.constant 0 : index
    %54 = vector.load %arg5[%c0_38, %c1_39, %c0_40, %c0_41] : memref<1x4x32x128xbf16, #tpu.memory_space<vmem>>, vector<1x1x32x128xbf16>
    %55 = vector.shape_cast %54 : vector<1x1x32x128xbf16> to vector<32x128xbf16>
    %c0_42 = arith.constant 0 : index
    %c1_43 = arith.constant 1 : index
    %c0_44 = arith.constant 0 : index
    %c0_45 = arith.constant 0 : index
    %56 = vector.load %arg6[%c0_42, %c1_43, %c0_44, %c0_45] : memref<1x4x128x32xbf16, #tpu.memory_space<vmem>>, vector<1x1x128x32xbf16>
    %57 = vector.shape_cast %56 : vector<1x1x128x32xbf16> to vector<128x32xbf16>
    %cst_46 = arith.constant dense<0.000000e+00> : vector<128x128xf32>
    %58 = tpu.matmul %53, %55, %cst_46 {dimension_numbers = #tpu.dot_dimension_numbers<[1], [0], [0], [1], [0, 0, 1, 1], [], []>} : vector<128x32xbf16>, vector<32x128xbf16>, vector<128x128xf32> -> vector<128x128xf32>
    %cst_47 = arith.constant -1.000000e+30 : f32
    %59 = vector.broadcast %cst_47 : f32 to vector<128x128xf32>
    %60 = arith.select %8, %58, %59 : vector<128x128xi1>, vector<128x128xf32>
    %c1_48 = arith.constant 1 : index
    %c0_49 = arith.constant 0 : index
    %c0_50 = arith.constant 0 : index
    %61 = vector.load %arg11[%c1_48, %c0_49, %c0_50] : memref<4x128x1xf32, #tpu.memory_space<vmem>>, vector<1x128x1xf32>
    %62 = vector.shape_cast %61 : vector<1x128x1xf32> to vector<128x1xf32>
    %cst_51 = arith.constant dense<0xFF800000> : vector<128xf32>
    %63 = vector.multi_reduction <maximumf>, %60, %cst_51 [1] : vector<128x128xf32> to vector<128xf32>
    %64 = vector.shape_cast %63 : vector<128xf32> to vector<128x1xf32>
    %65 = arith.maximumf %62, %64 : vector<128x1xf32>
    %66 = arith.subf %62, %65 : vector<128x1xf32>
    %67 = math.exp %66 : vector<128x1xf32>
    %68 = vector.broadcast %65 : vector<128x1xf32> to vector<128x128xf32>
    %69 = arith.subf %60, %68 : vector<128x128xf32>
    %70 = math.exp %69 : vector<128x128xf32>
    %cst_52 = arith.constant 0.000000e+00 : f32
    %71 = vector.broadcast %cst_52 : f32 to vector<128x128xf32>
    %72 = arith.select %8, %70, %71 : vector<128x128xi1>, vector<128x128xf32>
    %c1_53 = arith.constant 1 : index
    %c0_54 = arith.constant 0 : index
    %c0_55 = arith.constant 0 : index
    %73 = vector.load %arg12[%c1_53, %c0_54, %c0_55] : memref<4x128x1xf32, #tpu.memory_space<vmem>>, vector<1x128x1xf32>
    %74 = vector.shape_cast %73 : vector<1x128x1xf32> to vector<128x1xf32>
    %75 = arith.mulf %67, %74 : vector<128x1xf32>
    %cst_56 = arith.constant dense<0.000000e+00> : vector<128xf32>
    %76 = vector.multi_reduction <add>, %72, %cst_56 [1] : vector<128x128xf32> to vector<128xf32>
    %77 = vector.shape_cast %76 : vector<128xf32> to vector<128x1xf32>
    %78 = arith.addf %75, %77 : vector<128x1xf32>
    %c1_57 = arith.constant 1 : index
    %c0_58 = arith.constant 0 : index
    %c0_59 = arith.constant 0 : index
    %79 = vector.load %arg12[%c1_57, %c0_58, %c0_59] : memref<4x128x1xf32, #tpu.memory_space<vmem>>, vector<1x128x1xf32>
    %80 = vector.shape_cast %79 : vector<1x128x1xf32> to vector<128x1xf32>
    %81 = vector.shape_cast %78 : vector<128x1xf32> to vector<1x128x1xf32>
    tpu.vector_store %arg12[%c1_57, %c0_58, %c0_59], %81 {strides = array<i32>} : memref<4x128x1xf32, #tpu.memory_space<vmem>>, vector<1x128x1xf32>,
    %c1_60 = arith.constant 1 : index
    %c0_61 = arith.constant 0 : index
    %c0_62 = arith.constant 0 : index
    %82 = vector.load %arg13[%c1_60, %c0_61, %c0_62] : memref<4x128x32xf32, #tpu.memory_space<vmem>>, vector<1x128x32xf32>
    %83 = vector.shape_cast %82 : vector<1x128x32xf32> to vector<128x32xf32>
    %84 = vector.broadcast %67 : vector<128x1xf32> to vector<128x32xf32>
    %85 = arith.mulf %84, %83 : vector<128x32xf32>
    %86 = arith.truncf %72 : vector<128x128xf32> to vector<128x128xbf16>
    %cst_63 = arith.constant dense<0.000000e+00> : vector<128x32xf32>
    %87 = tpu.matmul %86, %57, %cst_63 {dimension_numbers = #tpu.dot_dimension_numbers<[1], [0], [0], [1], [0, 0, 1, 1], [], []>} : vector<128x128xbf16>, vector<128x32xbf16>, vector<128x32xf32> -> vector<128x32xf32>
    %88 = arith.addf %85, %87 : vector<128x32xf32>
    %c1_64 = arith.constant 1 : index
    %c0_65 = arith.constant 0 : index
    %c0_66 = arith.constant 0 : index
    %89 = vector.load %arg13[%c1_64, %c0_65, %c0_66] : memref<4x128x32xf32, #tpu.memory_space<vmem>>, vector<1x128x32xf32>
    %90 = vector.shape_cast %89 : vector<1x128x32xf32> to vector<128x32xf32>
    %91 = vector.shape_cast %88 : vector<128x32xf32> to vector<1x128x32xf32>
    tpu.vector_store %arg13[%c1_64, %c0_65, %c0_66], %91 {strides = array<i32>} : memref<4x128x32xf32, #tpu.memory_space<vmem>>, vector<1x128x32xf32>,
    %c1_67 = arith.constant 1 : index
    %c0_68 = arith.constant 0 : index
    %c0_69 = arith.constant 0 : index
    %92 = vector.load %arg11[%c1_67, %c0_68, %c0_69] : memref<4x128x1xf32, #tpu.memory_space<vmem>>, vector<1x128x1xf32>
    %93 = vector.shape_cast %92 : vector<1x128x1xf32> to vector<128x1xf32>
    %94 = vector.shape_cast %65 : vector<128x1xf32> to vector<1x128x1xf32>
    tpu.vector_store %arg11[%c1_67, %c0_68, %c0_69], %94 {strides = array<i32>} : memref<4x128x1xf32, #tpu.memory_space<vmem>>, vector<1x128x1xf32>,
    %c0_70 = arith.constant 0 : index
    %c2 = arith.constant 2 : index
    %c0_71 = arith.constant 0 : index
    %c0_72 = arith.constant 0 : index
    %95 = vector.load %arg4[%c0_70, %c2, %c0_71, %c0_72] : memref<1x4x128x32xbf16, #tpu.memory_space<vmem>>, vector<1x1x128x32xbf16>
    %96 = vector.shape_cast %95 : vector<1x1x128x32xbf16> to vector<128x32xbf16>
    %c0_73 = arith.constant 0 : index
    %c2_74 = arith.constant 2 : index
    %c0_75 = arith.constant 0 : index
    %c0_76 = arith.constant 0 : index
    %97 = vector.load %arg5[%c0_73, %c2_74, %c0_75, %c0_76] : memref<1x4x32x128xbf16, #tpu.memory_space<vmem>>, vector<1x1x32x128xbf16>
    %98 = vector.shape_cast %97 : vector<1x1x32x128xbf16> to vector<32x128xbf16>
    %c0_77 = arith.constant 0 : index
    %c2_78 = arith.constant 2 : index
    %c0_79 = arith.constant 0 : index
    %c0_80 = arith.constant 0 : index
    %99 = vector.load %arg6[%c0_77, %c2_78, %c0_79, %c0_80] : memref<1x4x128x32xbf16, #tpu.memory_space<vmem>>, vector<1x1x128x32xbf16>
    %100 = vector.shape_cast %99 : vector<1x1x128x32xbf16> to vector<128x32xbf16>
    %cst_81 = arith.constant dense<0.000000e+00> : vector<128x128xf32>
    %101 = tpu.matmul %96, %98, %cst_81 {dimension_numbers = #tpu.dot_dimension_numbers<[1], [0], [0], [1], [0, 0, 1, 1], [], []>} : vector<128x32xbf16>, vector<32x128xbf16>, vector<128x128xf32> -> vector<128x128xf32>
    %cst_82 = arith.constant -1.000000e+30 : f32
    %102 = vector.broadcast %cst_82 : f32 to vector<128x128xf32>
    %103 = arith.select %8, %101, %102 : vector<128x128xi1>, vector<128x128xf32>
    %c2_83 = arith.constant 2 : index
    %c0_84 = arith.constant 0 : index
    %c0_85 = arith.constant 0 : index
    %104 = vector.load %arg11[%c2_83, %c0_84, %c0_85] : memref<4x128x1xf32, #tpu.memory_space<vmem>>, vector<1x128x1xf32>
    %105 = vector.shape_cast %104 : vector<1x128x1xf32> to vector<128x1xf32>
    %cst_86 = arith.constant dense<0xFF800000> : vector<128xf32>
    %106 = vector.multi_reduction <maximumf>, %103, %cst_86 [1] : vector<128x128xf32> to vector<128xf32>
    %107 = vector.shape_cast %106 : vector<128xf32> to vector<128x1xf32>
    %108 = arith.maximumf %105, %107 : vector<128x1xf32>
    %109 = arith.subf %105, %108 : vector<128x1xf32>
    %110 = math.exp %109 : vector<128x1xf32>
    %111 = vector.broadcast %108 : vector<128x1xf32> to vector<128x128xf32>
    %112 = arith.subf %103, %111 : vector<128x128xf32>
    %113 = math.exp %112 : vector<128x128xf32>
    %cst_87 = arith.constant 0.000000e+00 : f32
    %114 = vector.broadcast %cst_87 : f32 to vector<128x128xf32>
    %115 = arith.select %8, %113, %114 : vector<128x128xi1>, vector<128x128xf32>
    %c2_88 = arith.constant 2 : index
    %c0_89 = arith.constant 0 : index
    %c0_90 = arith.constant 0 : index
    %116 = vector.load %arg12[%c2_88, %c0_89, %c0_90] : memref<4x128x1xf32, #tpu.memory_space<vmem>>, vector<1x128x1xf32>
    %117 = vector.shape_cast %116 : vector<1x128x1xf32> to vector<128x1xf32>
    %118 = arith.mulf %110, %117 : vector<128x1xf32>
    %cst_91 = arith.constant dense<0.000000e+00> : vector<128xf32>
    %119 = vector.multi_reduction <add>, %115, %cst_91 [1] : vector<128x128xf32> to vector<128xf32>
    %120 = vector.shape_cast %119 : vector<128xf32> to vector<128x1xf32>
    %121 = arith.addf %118, %120 : vector<128x1xf32>
    %c2_92 = arith.constant 2 : index
    %c0_93 = arith.constant 0 : index
    %c0_94 = arith.constant 0 : index
    %122 = vector.load %arg12[%c2_92, %c0_93, %c0_94] : memref<4x128x1xf32, #tpu.memory_space<vmem>>, vector<1x128x1xf32>
    %123 = vector.shape_cast %122 : vector<1x128x1xf32> to vector<128x1xf32>
    %124 = vector.shape_cast %121 : vector<128x1xf32> to vector<1x128x1xf32>
    tpu.vector_store %arg12[%c2_92, %c0_93, %c0_94], %124 {strides = array<i32>} : memref<4x128x1xf32, #tpu.memory_space<vmem>>, vector<1x128x1xf32>,
    %c2_95 = arith.constant 2 : index
    %c0_96 = arith.constant 0 : index
    %c0_97 = arith.constant 0 : index
    %125 = vector.load %arg13[%c2_95, %c0_96, %c0_97] : memref<4x128x32xf32, #tpu.memory_space<vmem>>, vector<1x128x32xf32>
    %126 = vector.shape_cast %125 : vector<1x128x32xf32> to vector<128x32xf32>
    %127 = vector.broadcast %110 : vector<128x1xf32> to vector<128x32xf32>
    %128 = arith.mulf %127, %126 : vector<128x32xf32>
    %129 = arith.truncf %115 : vector<128x128xf32> to vector<128x128xbf16>
    %cst_98 = arith.constant dense<0.000000e+00> : vector<128x32xf32>
    %130 = tpu.matmul %129, %100, %cst_98 {dimension_numbers = #tpu.dot_dimension_numbers<[1], [0], [0], [1], [0, 0, 1, 1], [], []>} : vector<128x128xbf16>, vector<128x32xbf16>, vector<128x32xf32> -> vector<128x32xf32>
    %131 = arith.addf %128, %130 : vector<128x32xf32>
    %c2_99 = arith.constant 2 : index
    %c0_100 = arith.constant 0 : index
    %c0_101 = arith.constant 0 : index
    %132 = vector.load %arg13[%c2_99, %c0_100, %c0_101] : memref<4x128x32xf32, #tpu.memory_space<vmem>>, vector<1x128x32xf32>
    %133 = vector.shape_cast %132 : vector<1x128x32xf32> to vector<128x32xf32>
    %134 = vector.shape_cast %131 : vector<128x32xf32> to vector<1x128x32xf32>
    tpu.vector_store %arg13[%c2_99, %c0_100, %c0_101], %134 {strides = array<i32>} : memref<4x128x32xf32, #tpu.memory_space<vmem>>, vector<1x128x32xf32>,
    %c2_102 = arith.constant 2 : index
    %c0_103 = arith.constant 0 : index
    %c0_104 = arith.constant 0 : index
    %135 = vector.load %arg11[%c2_102, %c0_103, %c0_104] : memref<4x128x1xf32, #tpu.memory_space<vmem>>, vector<1x128x1xf32>
    %136 = vector.shape_cast %135 : vector<1x128x1xf32> to vector<128x1xf32>
    %137 = vector.shape_cast %108 : vector<128x1xf32> to vector<1x128x1xf32>
    tpu.vector_store %arg11[%c2_102, %c0_103, %c0_104], %137 {strides = array<i32>} : memref<4x128x1xf32, #tpu.memory_space<vmem>>, vector<1x128x1xf32>,
    %c0_105 = arith.constant 0 : index
    %c3 = arith.constant 3 : index
    %c0_106 = arith.constant 0 : index
    %c0_107 = arith.constant 0 : index
    %138 = vector.load %arg4[%c0_105, %c3, %c0_106, %c0_107] : memref<1x4x128x32xbf16, #tpu.memory_space<vmem>>, vector<1x1x128x32xbf16>
    %139 = vector.shape_cast %138 : vector<1x1x128x32xbf16> to vector<128x32xbf16>
    %c0_108 = arith.constant 0 : index
    %c3_109 = arith.constant 3 : index
    %c0_110 = arith.constant 0 : index
    %c0_111 = arith.constant 0 : index
    %140 = vector.load %arg5[%c0_108, %c3_109, %c0_110, %c0_111] : memref<1x4x32x128xbf16, #tpu.memory_space<vmem>>, vector<1x1x32x128xbf16>
    %141 = vector.shape_cast %140 : vector<1x1x32x128xbf16> to vector<32x128xbf16>
    %c0_112 = arith.constant 0 : index
    %c3_113 = arith.constant 3 : index
    %c0_114 = arith.constant 0 : index
    %c0_115 = arith.constant 0 : index
    %142 = vector.load %arg6[%c0_112, %c3_113, %c0_114, %c0_115] : memref<1x4x128x32xbf16, #tpu.memory_space<vmem>>, vector<1x1x128x32xbf16>
    %143 = vector.shape_cast %142 : vector<1x1x128x32xbf16> to vector<128x32xbf16>
    %cst_116 = arith.constant dense<0.000000e+00> : vector<128x128xf32>
    %144 = tpu.matmul %139, %141, %cst_116 {dimension_numbers = #tpu.dot_dimension_numbers<[1], [0], [0], [1], [0, 0, 1, 1], [], []>} : vector<128x32xbf16>, vector<32x128xbf16>, vector<128x128xf32> -> vector<128x128xf32>
    %cst_117 = arith.constant -1.000000e+30 : f32
    %145 = vector.broadcast %cst_117 : f32 to vector<128x128xf32>
    %146 = arith.select %8, %144, %145 : vector<128x128xi1>, vector<128x128xf32>
    %c3_118 = arith.constant 3 : index
    %c0_119 = arith.constant 0 : index
    %c0_120 = arith.constant 0 : index
    %147 = vector.load %arg11[%c3_118, %c0_119, %c0_120] : memref<4x128x1xf32, #tpu.memory_space<vmem>>, vector<1x128x1xf32>
    %148 = vector.shape_cast %147 : vector<1x128x1xf32> to vector<128x1xf32>
    %cst_121 = arith.constant dense<0xFF800000> : vector<128xf32>
    %149 = vector.multi_reduction <maximumf>, %146, %cst_121 [1] : vector<128x128xf32> to vector<128xf32>
    %150 = vector.shape_cast %149 : vector<128xf32> to vector<128x1xf32>
    %151 = arith.maximumf %148, %150 : vector<128x1xf32>
    %152 = arith.subf %148, %151 : vector<128x1xf32>
    %153 = math.exp %152 : vector<128x1xf32>
    %154 = vector.broadcast %151 : vector<128x1xf32> to vector<128x128xf32>
    %155 = arith.subf %146, %154 : vector<128x128xf32>
    %156 = math.exp %155 : vector<128x128xf32>
    %cst_122 = arith.constant 0.000000e+00 : f32
    %157 = vector.broadcast %cst_122 : f32 to vector<128x128xf32>
    %158 = arith.select %8, %156, %157 : vector<128x128xi1>, vector<128x128xf32>
    %c3_123 = arith.constant 3 : index
    %c0_124 = arith.constant 0 : index
    %c0_125 = arith.constant 0 : index
    %159 = vector.load %arg12[%c3_123, %c0_124, %c0_125] : memref<4x128x1xf32, #tpu.memory_space<vmem>>, vector<1x128x1xf32>
    %160 = vector.shape_cast %159 : vector<1x128x1xf32> to vector<128x1xf32>
    %161 = arith.mulf %153, %160 : vector<128x1xf32>
    %cst_126 = arith.constant dense<0.000000e+00> : vector<128xf32>
    %162 = vector.multi_reduction <add>, %158, %cst_126 [1] : vector<128x128xf32> to vector<128xf32>
    %163 = vector.shape_cast %162 : vector<128xf32> to vector<128x1xf32>
    %164 = arith.addf %161, %163 : vector<128x1xf32>
    %c3_127 = arith.constant 3 : index
    %c0_128 = arith.constant 0 : index
    %c0_129 = arith.constant 0 : index
    %165 = vector.load %arg12[%c3_127, %c0_128, %c0_129] : memref<4x128x1xf32, #tpu.memory_space<vmem>>, vector<1x128x1xf32>
    %166 = vector.shape_cast %165 : vector<1x128x1xf32> to vector<128x1xf32>
    %167 = vector.shape_cast %164 : vector<128x1xf32> to vector<1x128x1xf32>
    tpu.vector_store %arg12[%c3_127, %c0_128, %c0_129], %167 {strides = array<i32>} : memref<4x128x1xf32, #tpu.memory_space<vmem>>, vector<1x128x1xf32>,
    %c3_130 = arith.constant 3 : index
    %c0_131 = arith.constant 0 : index
    %c0_132 = arith.constant 0 : index
    %168 = vector.load %arg13[%c3_130, %c0_131, %c0_132] : memref<4x128x32xf32, #tpu.memory_space<vmem>>, vector<1x128x32xf32>
    %169 = vector.shape_cast %168 : vector<1x128x32xf32> to vector<128x32xf32>
    %170 = vector.broadcast %153 : vector<128x1xf32> to vector<128x32xf32>
    %171 = arith.mulf %170, %169 : vector<128x32xf32>
    %172 = arith.truncf %158 : vector<128x128xf32> to vector<128x128xbf16>
    %cst_133 = arith.constant dense<0.000000e+00> : vector<128x32xf32>
    %173 = tpu.matmul %172, %143, %cst_133 {dimension_numbers = #tpu.dot_dimension_numbers<[1], [0], [0], [1], [0, 0, 1, 1], [], []>} : vector<128x128xbf16>, vector<128x32xbf16>, vector<128x32xf32> -> vector<128x32xf32>
    %174 = arith.addf %171, %173 : vector<128x32xf32>
    %c3_134 = arith.constant 3 : index
    %c0_135 = arith.constant 0 : index
    %c0_136 = arith.constant 0 : index
    %175 = vector.load %arg13[%c3_134, %c0_135, %c0_136] : memref<4x128x32xf32, #tpu.memory_space<vmem>>, vector<1x128x32xf32>
    %176 = vector.shape_cast %175 : vector<1x128x32xf32> to vector<128x32xf32>
    %177 = vector.shape_cast %174 : vector<128x32xf32> to vector<1x128x32xf32>
    tpu.vector_store %arg13[%c3_134, %c0_135, %c0_136], %177 {strides = array<i32>} : memref<4x128x32xf32, #tpu.memory_space<vmem>>, vector<1x128x32xf32>,
    %c3_137 = arith.constant 3 : index
    %c0_138 = arith.constant 0 : index
    %c0_139 = arith.constant 0 : index
    %178 = vector.load %arg11[%c3_137, %c0_138, %c0_139] : memref<4x128x1xf32, #tpu.memory_space<vmem>>, vector<1x128x1xf32>
    %179 = vector.shape_cast %178 : vector<1x128x1xf32> to vector<128x1xf32>
    %180 = vector.shape_cast %151 : vector<128x1xf32> to vector<1x128x1xf32>
    tpu.vector_store %arg11[%c3_137, %c0_138, %c0_139], %180 {strides = array<i32>} : memref<4x128x1xf32, #tpu.memory_space<vmem>>, vector<1x128x1xf32>,
    %c1_i32 = arith.constant 1 : i32
    %181 = arith.cmpi eq, %arg2, %c1_i32 : i32
    %182 = arith.extui %181 : i1 to i32
    %c0_i32_140 = arith.constant 0 : i32
    %183 = arith.cmpi ne, %182, %c0_i32_140 : i32
    scf.if %183 {
      %c0_141 = arith.constant 0 : index
      %c0_142 = arith.constant 0 : index
      %c0_143 = arith.constant 0 : index
      %184 = vector.load %arg12[%c0_141, %c0_142, %c0_143] : memref<4x128x1xf32, #tpu.memory_space<vmem>>, vector<1x128x1xf32>
      %185 = vector.shape_cast %184 : vector<1x128x1xf32> to vector<128x1xf32>
      %186 = tpu.reciprocal %185 {approx = true} : vector<128x1xf32> -> vector<128x1xf32>
      %c0_144 = arith.constant 0 : index
      %c0_145 = arith.constant 0 : index
      %c0_146 = arith.constant 0 : index
      %187 = vector.load %arg13[%c0_144, %c0_145, %c0_146] : memref<4x128x32xf32, #tpu.memory_space<vmem>>, vector<1x128x32xf32>
      %188 = vector.shape_cast %187 : vector<1x128x32xf32> to vector<128x32xf32>
      %189 = vector.broadcast %186 : vector<128x1xf32> to vector<128x32xf32>
      %190 = arith.mulf %188, %189 : vector<128x32xf32>
      %191 = arith.truncf %190 : vector<128x32xf32> to vector<128x32xbf16>
      %c1_147 = arith.constant 1 : index
      %c0_148 = arith.constant 0 : index
      %c0_149 = arith.constant 0 : index
      %192 = vector.load %arg12[%c1_147, %c0_148, %c0_149] : memref<4x128x1xf32, #tpu.memory_space<vmem>>, vector<1x128x1xf32>
      %193 = vector.shape_cast %192 : vector<1x128x1xf32> to vector<128x1xf32>
      %194 = tpu.reciprocal %193 {approx = true} : vector<128x1xf32> -> vector<128x1xf32>
      %c1_150 = arith.constant 1 : index
      %c0_151 = arith.constant 0 : index
      %c0_152 = arith.constant 0 : index
      %195 = vector.load %arg13[%c1_150, %c0_151, %c0_152] : memref<4x128x32xf32, #tpu.memory_space<vmem>>, vector<1x128x32xf32>
      %196 = vector.shape_cast %195 : vector<1x128x32xf32> to vector<128x32xf32>
      %197 = vector.broadcast %194 : vector<128x1xf32> to vector<128x32xf32>
      %198 = arith.mulf %196, %197 : vector<128x32xf32>
      %199 = arith.truncf %198 : vector<128x32xf32> to vector<128x32xbf16>
      %c2_153 = arith.constant 2 : index
      %c0_154 = arith.constant 0 : index
      %c0_155 = arith.constant 0 : index
      %200 = vector.load %arg12[%c2_153, %c0_154, %c0_155] : memref<4x128x1xf32, #tpu.memory_space<vmem>>, vector<1x128x1xf32>
      %201 = vector.shape_cast %200 : vector<1x128x1xf32> to vector<128x1xf32>
      %202 = tpu.reciprocal %201 {approx = true} : vector<128x1xf32> -> vector<128x1xf32>
      %c2_156 = arith.constant 2 : index
      %c0_157 = arith.constant 0 : index
      %c0_158 = arith.constant 0 : index
      %203 = vector.load %arg13[%c2_156, %c0_157, %c0_158] : memref<4x128x32xf32, #tpu.memory_space<vmem>>, vector<1x128x32xf32>
      %204 = vector.shape_cast %203 : vector<1x128x32xf32> to vector<128x32xf32>
      %205 = vector.broadcast %202 : vector<128x1xf32> to vector<128x32xf32>
      %206 = arith.mulf %204, %205 : vector<128x32xf32>
      %207 = arith.truncf %206 : vector<128x32xf32> to vector<128x32xbf16>
      %c3_159 = arith.constant 3 : index
      %c0_160 = arith.constant 0 : index
      %c0_161 = arith.constant 0 : index
      %208 = vector.load %arg12[%c3_159, %c0_160, %c0_161] : memref<4x128x1xf32, #tpu.memory_space<vmem>>, vector<1x128x1xf32>
      %209 = vector.shape_cast %208 : vector<1x128x1xf32> to vector<128x1xf32>
      %210 = tpu.reciprocal %209 {approx = true} : vector<128x1xf32> -> vector<128x1xf32>
      %c3_162 = arith.constant 3 : index
      %c0_163 = arith.constant 0 : index
      %c0_164 = arith.constant 0 : index
      %211 = vector.load %arg13[%c3_162, %c0_163, %c0_164] : memref<4x128x32xf32, #tpu.memory_space<vmem>>, vector<1x128x32xf32>
      %212 = vector.shape_cast %211 : vector<1x128x32xf32> to vector<128x32xf32>
      %213 = vector.broadcast %210 : vector<128x1xf32> to vector<128x32xf32>
      %214 = arith.mulf %212, %213 : vector<128x32xf32>
      %215 = arith.truncf %214 : vector<128x32xf32> to vector<128x32xbf16>
      %216 = tpu.concatenate %191, %199, %207, %215 in 1 : vector<128x32xbf16>, vector<128x32xbf16>, vector<128x32xbf16>, vector<128x32xbf16> -> vector<128x128xbf16>
      %c0_165 = arith.constant 0 : index
      %c0_166 = arith.constant 0 : index
      %c0_167 = arith.constant 0 : index
      %217 = vector.load %arg3[%c0_165, %c0_166, %c0_167] : memref<1x128x128xf32, #tpu.memory_space<vmem>>, vector<1x128x128xf32>
      %218 = vector.shape_cast %217 : vector<1x128x128xf32> to vector<128x128xf32>
      %c0_168 = arith.constant 0 : index
      %c0_169 = arith.constant 0 : index
      %219 = vector.load %arg7[%c0_168, %c0_169] : memref<128x128xbf16, #tpu.memory_space<vmem>>, vector<128x128xbf16>
      %cst_170 = arith.constant dense<0.000000e+00> : vector<128x128xf32>
      %220 = tpu.matmul %216, %219, %cst_170 {dimension_numbers = #tpu.dot_dimension_numbers<[1], [0], [0], [1], [0, 0, 1, 1], [], []>} : vector<128x128xbf16>, vector<128x128xbf16>, vector<128x128xf32> -> vector<128x128xf32>
      %221 = arith.addf %218, %220 : vector<128x128xf32>
      %cst_171 = arith.constant dense<0.000000e+00> : vector<128xf32>
      %222 = vector.multi_reduction <add>, %221, %cst_171 [1] : vector<128x128xf32> to vector<128xf32>
      %223 = vector.shape_cast %222 : vector<128xf32> to vector<128x1xf32>
      %cst_172 = arith.constant 1.280000e+02 : f32
      %224 = vector.broadcast %cst_172 : f32 to vector<128x1xf32>
      %225 = arith.divf %223, %224 : vector<128x1xf32>
      %226 = vector.broadcast %225 : vector<128x1xf32> to vector<128x128xf32>
      %227 = arith.subf %221, %226 : vector<128x128xf32>
      %228 = arith.mulf %227, %227 : vector<128x128xf32>
      %cst_173 = arith.constant dense<0.000000e+00> : vector<128xf32>
      %229 = vector.multi_reduction <add>, %228, %cst_173 [1] : vector<128x128xf32> to vector<128xf32>
      %230 = vector.shape_cast %229 : vector<128xf32> to vector<128x1xf32>
      %cst_174 = arith.constant 1.280000e+02 : f32
      %231 = vector.broadcast %cst_174 : f32 to vector<128x1xf32>
      %232 = arith.divf %230, %231 : vector<128x1xf32>
      %233 = vector.broadcast %225 : vector<128x1xf32> to vector<128x128xf32>
      %234 = arith.subf %221, %233 : vector<128x128xf32>
      %cst_175 = arith.constant 9.99999997E-7 : f32
      %235 = vector.broadcast %cst_175 : f32 to vector<128x1xf32>
      %236 = arith.addf %232, %235 : vector<128x1xf32>
      %237 = math.rsqrt %236 : vector<128x1xf32>
      %238 = vector.broadcast %237 : vector<128x1xf32> to vector<128x128xf32>
      %239 = arith.mulf %234, %238 : vector<128x128xf32>
      %c0_176 = arith.constant 0 : index
      %c0_177 = arith.constant 0 : index
      %240 = vector.load %arg8[%c0_176, %c0_177] : memref<1x128xf32, #tpu.memory_space<vmem>>, vector<1x128xf32>
      %241 = vector.broadcast %240 : vector<1x128xf32> to vector<128x128xf32>
      %242 = arith.mulf %239, %241 : vector<128x128xf32>
      %c0_178 = arith.constant 0 : index
      %c0_179 = arith.constant 0 : index
      %243 = vector.load %arg9[%c0_178, %c0_179] : memref<1x128xf32, #tpu.memory_space<vmem>>, vector<1x128xf32>
      %244 = vector.broadcast %243 : vector<1x128xf32> to vector<128x128xf32>
      %245 = arith.addf %242, %244 : vector<128x128xf32>
      %c0_180 = arith.constant 0 : index
      %c0_181 = arith.constant 0 : index
      %c0_182 = arith.constant 0 : index
      %246 = vector.load %arg10[%c0_180, %c0_181, %c0_182] : memref<1x128x128xf32, #tpu.memory_space<vmem>>, vector<1x128x128xf32>
      %247 = vector.shape_cast %246 : vector<1x128x128xf32> to vector<128x128xf32>
      %248 = vector.shape_cast %245 : vector<128x128xf32> to vector<1x128x128xf32>
      tpu.vector_store %arg10[%c0_180, %c0_181, %c0_182], %248 {strides = array<i32>} : memref<1x128x128xf32, #tpu.memory_space<vmem>>, vector<1x128x128xf32>,
    } else {
    }
    return
  }
  func.func @transform_0(%arg0: i32, %arg1: i32, %arg2: i32) -> (i32, i32, i32) {
    %c0_i32 = arith.constant 0 : i32
    %c0_i32_0 = arith.constant 0 : i32
    return %arg0, %arg1, %c0_i32 : i32, i32, i32
  }
  func.func @transform_1(%arg0: i32, %arg1: i32, %arg2: i32) -> (i32, i32, i32, i32) {
    %c0_i32 = arith.constant 0 : i32
    %c0_i32_0 = arith.constant 0 : i32
    %c0_i32_1 = arith.constant 0 : i32
    return %arg0, %c0_i32, %arg1, %c0_i32_0 : i32, i32, i32, i32
  }
  func.func @transform_2(%arg0: i32, %arg1: i32, %arg2: i32) -> (i32, i32, i32, i32) {
    %c0_i32 = arith.constant 0 : i32
    %c0_i32_0 = arith.constant 0 : i32
    %c0_i32_1 = arith.constant 0 : i32
    return %arg0, %c0_i32, %c0_i32_0, %arg2 : i32, i32, i32, i32
  }
  func.func @transform_3(%arg0: i32, %arg1: i32, %arg2: i32) -> (i32, i32, i32, i32) {
    %c0_i32 = arith.constant 0 : i32
    %c0_i32_0 = arith.constant 0 : i32
    %c0_i32_1 = arith.constant 0 : i32
    return %arg0, %c0_i32, %arg2, %c0_i32_0 : i32, i32, i32, i32
  }
  func.func @transform_4(%arg0: i32, %arg1: i32, %arg2: i32) -> (i32, i32) {
    %c0_i32 = arith.constant 0 : i32
    %c0_i32_0 = arith.constant 0 : i32
    %c0_i32_1 = arith.constant 0 : i32
    return %c0_i32, %c0_i32_0 : i32, i32
  }
  func.func @transform_5(%arg0: i32, %arg1: i32, %arg2: i32) -> (i32, i32) {
    %c0_i32 = arith.constant 0 : i32
    %c0_i32_0 = arith.constant 0 : i32
    %c0_i32_1 = arith.constant 0 : i32
    return %c0_i32, %c0_i32_0 : i32, i32
  }
  func.func @transform_6(%arg0: i32, %arg1: i32, %arg2: i32) -> (i32, i32) {
    %c0_i32 = arith.constant 0 : i32
    %c0_i32_0 = arith.constant 0 : i32
    %c0_i32_1 = arith.constant 0 : i32
    return %c0_i32, %c0_i32_0 : i32, i32
  }
  func.func @transform_7(%arg0: i32, %arg1: i32, %arg2: i32) -> (i32, i32, i32) {
    %c0_i32 = arith.constant 0 : i32
    %c0_i32_0 = arith.constant 0 : i32
    return %arg0, %arg1, %c0_i32 : i32, i32, i32
  }
}

</mosaic_0001>

<llo_original>
// kernel: tpu_custom_call.1
$region0: #{tpu_custom_call.1}
  #allocation0 [shape = 'u32[]', space=smem, size = 0x4, offset = 0x4, fixed_abs, tag = 'smem constant byte address 0x4 - core index']
  #allocation1 [shape = 'u32[72,128]{1,0:T(1,128)}', space=vmem, size = 0x9000, scoped, tag = 'internal scratch']
  #allocation2 [shape = 'f32[4,128,1]{2,1,0:T(8,128)}', space=vmem, size = 0x40000, scoped, tag = 'scratch operand']
  #allocation3 [shape = 'f32[4,128,1]{2,1,0:T(8,128)}', space=vmem, size = 0x40000, scoped, tag = 'scratch operand']
  #allocation4 [shape = 'f32[4,128,32]{2,1,0:T(8,128)}', space=vmem, size = 0x40000, scoped, tag = 'scratch operand']
  %s0 = inlined_call_operand.vmem [shape: f32[2,256,128], index: 0, kind: input, shape index: {}]
  %s1 = inlined_call_operand.vmem [shape: bf16[2,4,256,32], index: 1, kind: input, shape index: {}]
  %s2 = inlined_call_operand.vmem [shape: bf16[2,4,32,256], index: 2, kind: input, shape index: {}]
  %s3 = inlined_call_operand.vmem [shape: bf16[2,4,256,32], index: 3, kind: input, shape index: {}]
  %s4 = inlined_call_operand.vmem [shape: bf16[128,128], index: 4, kind: input, shape index: {}]
  %s5 = inlined_call_operand.vmem [shape: f32[1,128], index: 5, kind: input, shape index: {}]
  %s6 = inlined_call_operand.vmem [shape: f32[1,128], index: 6, kind: input, shape index: {}]
  %s7 = inlined_call_operand.hbm [shape: f32[2,256,128], index: 7, kind: output, shape index: {}]
  %s8 = sld [smem:[#allocation0]]
  $region192: #{tpu_custom_call.1} parent=0
    _
  %s10 = ssub.s32 1, %s8
  %s11 = scalar_select 0, %s10, %s8
  $region1: #{tpu_custom_call.1} parent=0
    #allocation5 [shape = 'u8[262144]{0}', space=vmem, size = 0x40000, scoped, tag = 'input window, operand 1']
    #allocation6 [shape = 'u8[65536]{0}', space=vmem, size = 0x10000, scoped, tag = 'input window, operand 2']
    #allocation7 [shape = 'u8[262144]{0}', space=vmem, size = 0x40000, scoped, tag = 'input window, operand 3']
    #allocation8 [shape = 'u8[131072]{0}', space=vmem, size = 0x20000, scoped, tag = 'output window, operand 0']
    #allocation9 [shape = 's32[2]{0}', space=sflag, size = 0x8, scoped, tag = 'scoped memory for tpu_custom_call.1']
    %12 = vsyncpa [#allocation9], 0
    %s13 = scalar_lea.sflag [#allocation9], 1
    %14 = vsyncpa %s13, 0
    loop: start=0, step=1, limit=10
    $region2: #{tpu_custom_call.1} parent=1 // loop_pre_header
      _
    $region3: #{tpu_custom_call.1} parent=1 // loop_header
      %s16 = sphi 0, %s20
      %p17 = scmp.ge.s32.totalorder %s16, 10
      %s23 = sphi 0, %s42
      %s24 = sphi 0, %s38
      %s25 = sphi 0, %s34
      %s26 = sphi 0, %s23
      %s27 = sphi 0, %s24
      %s28 = sphi 0, %s25
      %s29 = sphi 0, %s26
      %s30 = sphi 0, %s27
      %s31 = sphi 0, %s28
      %s47 = sphi 0, %s49
      %s50 = sphi 0, %s47
      %s51 = sphi 0, %s50
      %s67 = sphi 0, %s51
      %s75 = sphi 0, %s77
      %s78 = sphi 0, %s75
      %s79 = sphi 0, %s78
      %s95 = sphi 0, %s79
      %s103 = sphi 0, %s105
      %s106 = sphi 0, %s103
      %s107 = sphi 0, %s106
      %s123 = sphi 0, %s107
      %s131 = sphi 0, %s133
      %s134 = sphi 0, %s131
      %s135 = sphi 0, %s134
      %s151 = sphi 0, %s135
      %s155 = sphi 0, %s155
      %s157 = sphi 0, %s155
      %s158 = sphi 0, %s157
      %s172 = sphi 0, %s158
      %s176 = sphi 0, %s176
      %s178 = sphi 0, %s176
      %s179 = sphi 0, %s178
      %s193 = sphi 0, %s179
      %s197 = sphi 0, %s197
      %s199 = sphi 0, %s197
      %s200 = sphi 0, %s199
      %s214 = sphi 0, %s200
      %s222 = sphi 0, %s224
      %s225 = sphi 0, %s222
      %s226 = sphi 0, %s225
      %s242 = sphi 0, %s226
    $region4: #{tpu_custom_call.1} parent=1 // loop_header_branch
      %19 = sbr.rel (%p17) target = $region8
    $region5: #{tpu_custom_call.1} parent=1 // loop_body
      %s21 = ssub.s32 %s16, 1
      %s22 = ssub.s32 %s16, 2
      %s32 = sadd.s32 1, %s25
      %p33 = scmp.ge.s32.totalorder %s32, 2
      %s34 = scalar_select %p33, 0, %s32
      %s35 = sadd.s32 1, %s24
      %s36 = scalar_select %p33, %s35, %s24
      %p37 = scmp.ge.s32.totalorder %s36, 2
      %s38 = scalar_select %p37, 0, %s36
      %s39 = sadd.s32 1, %s23
      %s40 = scalar_select %p37, %s39, %s23
      %p41 = scmp.ge.s32.totalorder %s40, 2
      %s42 = scalar_select %p41, 0, %s40
      %s43 = ssub.s32 %s23, %s42
      %s44 = ssub.s32 %s24, %s38
      %s45 = sor.u32 %s43, %s44
      %p46 = scmp.eq.s32.totalorder %s45, 0
      %s48 = sadd.s32 %s47, 1
      %s49 = scalar_select %p46, %s47, %s48
      %p52 = pneg %p46
      %p53 = scmp.eq.s32.totalorder %s16, 7
      %p54 = por %p52, %p53
      %p55 = scmp.ne.s32.totalorder %s47, %s50
      %p56 = scmp.eq.s32.totalorder %s16, 0
      %p57 = por %p55, %p56
      %p58 = scmp.ne.s32.totalorder %s47, %s50
      %p59 = scmp.eq.s32.totalorder %s21, 7
      %p60 = por %p58, %p59
      %p61 = scmp.ne.s32.totalorder %s50, %s51
      %p62 = scmp.eq.s32.totalorder %s21, 0
      %p63 = por %p61, %p62
      %p64 = scmp.ne.s32.totalorder %s50, %s51
      %p65 = scmp.eq.s32.totalorder %s22, 7
      %p66 = por %p64, %p65
      %p68 = scmp.ne.s32.totalorder %s51, %s67
      %p69 = scmp.eq.s32.totalorder %s22, 0
      %p70 = por %p68, %p69
      %s71 = ssub.s32 %s23, %s42
      %s72 = ssub.s32 %s24, %s38
      %s73 = sor.u32 %s71, %s72
      %p74 = scmp.eq.s32.totalorder %s73, 0
      %s76 = sadd.s32 %s75, 1
      %s77 = scalar_select %p74, %s75, %s76
      %p80 = pneg %p74
      %p81 = scmp.eq.s32.totalorder %s16, 7
      %p82 = por %p80, %p81
      %p83 = scmp.ne.s32.totalorder %s75, %s78
      %p84 = scmp.eq.s32.totalorder %s16, 0
      %p85 = por %p83, %p84
      %p86 = scmp.ne.s32.totalorder %s75, %s78
      %p87 = scmp.eq.s32.totalorder %s21, 7
      %p88 = por %p86, %p87
      %p89 = scmp.ne.s32.totalorder %s78, %s79
      %p90 = scmp.eq.s32.totalorder %s21, 0
      %p91 = por %p89, %p90
      %p92 = scmp.ne.s32.totalorder %s78, %s79
      %p93 = scmp.eq.s32.totalorder %s22, 7
      %p94 = por %p92, %p93
      %p96 = scmp.ne.s32.totalorder %s79, %s95
      %p97 = scmp.eq.s32.totalorder %s22, 0
      %p98 = por %p96, %p97
      %s99 = ssub.s32 %s23, %s42
      %s100 = ssub.s32 %s25, %s34
      %s101 = sor.u32 %s99, %s100
      %p102 = scmp.eq.s32.totalorder %s101, 0
      %s104 = sadd.s32 %s103, 1
      %s105 = scalar_select %p102, %s103, %s104
      %p108 = pneg %p102
      %p109 = scmp.eq.s32.totalorder %s16, 7
      %p110 = por %p108, %p109
      %p111 = scmp.ne.s32.totalorder %s103, %s106
      %p112 = scmp.eq.s32.totalorder %s16, 0
      %p113 = por %p111, %p112
      %p114 = scmp.ne.s32.totalorder %s103, %s106
      %p115 = scmp.eq.s32.totalorder %s21, 7
      %p116 = por %p114, %p115
      %p117 = scmp.ne.s32.totalorder %s106, %s107
      %p118 = scmp.eq.s32.totalorder %s21, 0
      %p119 = por %p117, %p118
      %p120 = scmp.ne.s32.totalorder %s106, %s107
      %p121 = scmp.eq.s32.totalorder %s22, 7
      %p122 = por %p120, %p121
      %p124 = scmp.ne.s32.totalorder %s107, %s123
      %p125 = scmp.eq.s32.totalorder %s22, 0
      %p126 = por %p124, %p125
      %s127 = ssub.s32 %s23, %s42
      %s128 = ssub.s32 %s25, %s34
      %s129 = sor.u32 %s127, %s128
      %p130 = scmp.eq.s32.totalorder %s129, 0
      %s132 = sadd.s32 %s131, 1
      %s133 = scalar_select %p130, %s131, %s132
      %p136 = pneg %p130
      %p137 = scmp.eq.s32.totalorder %s16, 7
      %p138 = por %p136, %p137
      %p139 = scmp.ne.s32.totalorder %s131, %s134
      %p140 = scmp.eq.s32.totalorder %s16, 0
      %p141 = por %p139, %p140
      %p142 = scmp.ne.s32.totalorder %s131, %s134
      %p143 = scmp.eq.s32.totalorder %s21, 7
      %p144 = por %p142, %p143
      %p145 = scmp.ne.s32.totalorder %s134, %s135
      %p146 = scmp.eq.s32.totalorder %s21, 0
      %p147 = por %p145, %p146
      %p148 = scmp.ne.s32.totalorder %s134, %s135
      %p149 = scmp.eq.s32.totalorder %s22, 7
      %p150 = por %p148, %p149
      %p152 = scmp.ne.s32.totalorder %s135, %s151
      %p153 = scmp.eq.s32.totalorder %s22, 0
      %p154 = por %p152, %p153
      %s156 = sadd.s32 %s155, 1
      %p159 = scmp.eq.s32.totalorder %s16, 7
      %p160 = scmp.ne.s32.totalorder %s155, %s157
      %p161 = scmp.eq.s32.totalorder %s16, 0
      %p162 = por %p160, %p161
      %p163 = scmp.ne.s32.totalorder %s155, %s157
      %p164 = scmp.eq.s32.totalorder %s21, 7
      %p165 = por %p163, %p164
      %p166 = scmp.ne.s32.totalorder %s157, %s158
      %p167 = scmp.eq.s32.totalorder %s21, 0
      %p168 = por %p166, %p167
      %p169 = scmp.ne.s32.totalorder %s157, %s158
      %p170 = scmp.eq.s32.totalorder %s22, 7
      %p171 = por %p169, %p170
      %p173 = scmp.ne.s32.totalorder %s158, %s172
      %p174 = scmp.eq.s32.totalorder %s22, 0
      %p175 = por %p173, %p174
      %s177 = sadd.s32 %s176, 1
      %p180 = scmp.eq.s32.totalorder %s16, 7
      %p181 = scmp.ne.s32.totalorder %s176, %s178
      %p182 = scmp.eq.s32.totalorder %s16, 0
      %p183 = por %p181, %p182
      %p184 = scmp.ne.s32.totalorder %s176, %s178
      %p185 = scmp.eq.s32.totalorder %s21, 7
      %p186 = por %p184, %p185
      %p187 = scmp.ne.s32.totalorder %s178, %s179
      %p188 = scmp.eq.s32.totalorder %s21, 0
      %p189 = por %p187, %p188
      %p190 = scmp.ne.s32.totalorder %s178, %s179
      %p191 = scmp.eq.s32.totalorder %s22, 7
      %p192 = por %p190, %p191
      %p194 = scmp.ne.s32.totalorder %s179, %s193
      %p195 = scmp.eq.s32.totalorder %s22, 0
      %p196 = por %p194, %p195
      %s198 = sadd.s32 %s197, 1
      %p201 = scmp.eq.s32.totalorder %s16, 7
      %p202 = scmp.ne.s32.totalorder %s197, %s199
      %p203 = scmp.eq.s32.totalorder %s16, 0
      %p204 = por %p202, %p203
      %p205 = scmp.ne.s32.totalorder %s197, %s199
      %p206 = scmp.eq.s32.totalorder %s21, 7
      %p207 = por %p205, %p206
      %p208 = scmp.ne.s32.totalorder %s199, %s200
      %p209 = scmp.eq.s32.totalorder %s21, 0
      %p210 = por %p208, %p209
      %p211 = scmp.ne.s32.totalorder %s199, %s200
      %p212 = scmp.eq.s32.totalorder %s22, 7
      %p213 = por %p211, %p212
      %p215 = scmp.ne.s32.totalorder %s200, %s214
      %p216 = scmp.eq.s32.totalorder %s22, 0
      %p217 = por %p215, %p216
      %s218 = ssub.s32 %s23, %s42
      %s219 = ssub.s32 %s24, %s38
      %s220 = sor.u32 %s218, %s219
      %p221 = scmp.eq.s32.totalorder %s220, 0
      %s223 = sadd.s32 %s222, 1
      %s224 = scalar_select %p221, %s222, %s223
      %p227 = pneg %p221
      %p228 = scmp.eq.s32.totalorder %s16, 7
      %p229 = por %p227, %p228
      %p230 = scmp.ne.s32.totalorder %s222, %s225
      %p231 = scmp.eq.s32.totalorder %s16, 0
      %p232 = por %p230, %p231
      %p233 = scmp.ne.s32.totalorder %s222, %s225
      %p234 = scmp.eq.s32.totalorder %s21, 7
      %p235 = por %p233, %p234
      %p236 = scmp.ne.s32.totalorder %s225, %s226
      %p237 = scmp.eq.s32.totalorder %s21, 0
      %p238 = por %p236, %p237
      %p239 = scmp.ne.s32.totalorder %s225, %s226
      %p240 = scmp.eq.s32.totalorder %s22, 7
      %p241 = por %p239, %p240
      %p243 = scmp.ne.s32.totalorder %s226, %s242
      %p244 = scmp.eq.s32.totalorder %s22, 0
      %p245 = por %p243, %p244
      %p246 = scmp.le.s32.totalorder 1, %s16
      %p247 = scmp.lt.s32.totalorder %s16, 9
      %p248 = pnand %p246, %p247
      %p249 = pneg %p248
      // Predicated region
      $region9: #{tpu_custom_call.1} parent=5 // pred_check
        _
      $region10: #{tpu_custom_call.1} parent=5 // pred_check_branch
        %251 = sbr.rel (%p248) target = $region12
      $region11: #{tpu_custom_call.1} parent=5 // pred_region
        %s252 = ssub.s32 %s16, 1
        // Predicated region
        $region13: #{tpu_custom_call.1} parent=11 // pred_check
          %p253 = pneg %p168
        $region14: #{tpu_custom_call.1} parent=11 // pred_check_branch
          %255 = sbr.rel (%p253) target = $region16
        $region15: #{tpu_custom_call.1} parent=11 // pred_region
          _
        $region16: #{tpu_custom_call.1} parent=11 // pred_fallthru
          _
        // Predicated region
        $region17: #{tpu_custom_call.1} parent=11 // pred_check
          %p256 = pneg %p189
        $region18: #{tpu_custom_call.1} parent=11 // pred_check_branch
          %258 = sbr.rel (%p256) target = $region20
        $region19: #{tpu_custom_call.1} parent=11 // pred_region
          _
        $region20: #{tpu_custom_call.1} parent=11 // pred_fallthru
          _
        // Predicated region
        $region21: #{tpu_custom_call.1} parent=11 // pred_check
          %p259 = pneg %p210
        $region22: #{tpu_custom_call.1} parent=11 // pred_check_branch
          %261 = sbr.rel (%p259) target = $region24
        $region23: #{tpu_custom_call.1} parent=11 // pred_region
          _
        $region24: #{tpu_custom_call.1} parent=11 // pred_fallthru
          _
      $region12: #{tpu_custom_call.1} parent=5 // pred_fallthru
        _
      %p262 = scmp.lt.s32.totalorder %s16, 8
      // Predicated region
      $region25: #{tpu_custom_call.1} parent=5 // pred_check
        %p263 = pneg %p262
      $region26: #{tpu_custom_call.1} parent=5 // pred_check_branch
        %265 = sbr.rel (%p263) target = $region28
      $region27: #{tpu_custom_call.1} parent=5 // pred_region
        // Predicated region
        $region29: #{tpu_custom_call.1} parent=27 // pred_check
          %p266 = pneg %p57
        $region30: #{tpu_custom_call.1} parent=27 // pred_check_branch
          %268 = sbr.rel (%p266) target = $region32
        $region31: #{tpu_custom_call.1} parent=27 // pred_region
          %s269 = smul.u32 16, %s24
          %p270 = scmp.lt.s32.totalorder %s23, 1
          %s271 = scalar_select %p270, %s23, 1
          %p272 = scmp.lt.s32.totalorder %s269, 31
          %s273 = scalar_select %p272, %s269, 31
          %s274 = smul.addr %s271, 32
          %s275 = sadd.s32 %s273, %s274
          %s276 = smul.addr %s275, 8
          %s277 = scalar_lea.vmem %s0, %s276
          %s278 = smul.u32 16, %s24
        $region32: #{tpu_custom_call.1} parent=27 // pred_fallthru
          _
        // Predicated region
        $region33: #{tpu_custom_call.1} parent=27 // pred_check
          %p279 = pneg %p85
        $region34: #{tpu_custom_call.1} parent=27 // pred_check_branch
          %281 = sbr.rel (%p279) target = $region36
        $region35: #{tpu_custom_call.1} parent=27 // pred_region
          %s282 = sand.u32 %s75, 1
          %s283 = sand.u32 %s75, 1
          %s284 = smul.addr %s283, 256
          %s285 = scalar_lea.vmem [#allocation5], %s284
          %s286 = smul.u32 16, %s24
          %s287 = smul.addr %s23, 128
          %s288 = sadd.s32 %s286, %s287
          %s289 = smul.addr %s288, 4
          %s290 = scalar_lea.vmem %s1, %s289
          // Predicated region
          $region37: #{tpu_custom_call.1} parent=35 // pred_check
            _
          $region38: #{tpu_custom_call.1} parent=35 // pred_check_branch
            %292 = sbr.rel (0) target = $region40
          $region39: #{tpu_custom_call.1} parent=35 // pred_region
            // Predicated region
            $region41: #{tpu_custom_call.1} parent=39 // pred_check
              _
            $region42: #{tpu_custom_call.1} parent=39 // pred_check_branch
              %294 = sbr.rel target = $region44
            $region43: #{tpu_custom_call.1} parent=39 // pred_region
              // Predicated region
              $region56: #{tpu_custom_call.1} parent=43 // pred_check
                _
              $region57: #{tpu_custom_call.1} parent=43 // pred_check_branch
                %436 = sbr.rel (0) target = $region59
              $region58: #{tpu_custom_call.1} parent=43 // pred_region
                loop: start=0, step=1, limit=1
                $region60: #{tpu_custom_call.1} parent=58 // loop_pre_header
                  _
                $region61: #{tpu_custom_call.1} parent=58 // loop_header
                  %s438 = sphi 0, %s442
                  %p439 = scmp.ge.s32.totalorder %s438, 1
                  %s443 = sphi %s290, %s290
                  %s444 = sphi %s285, %s285
                $region62: #{tpu_custom_call.1} parent=58 // loop_header_branch
                  %441 = sbr.rel (%p439) target = $region66
                $region63: #{tpu_custom_call.1} parent=58 // loop_body
                  _
                $region64: #{tpu_custom_call.1} parent=58 // loop_footer
                  %s442 = sadd.s32 1, %s438
                $region65: #{tpu_custom_call.1} parent=58 // loop_footer_branch
                  %437 = sbr.rel target = $region61
                $region66: #{tpu_custom_call.1} parent=58 // loop_exit
                  _
                %s446 = ssub.s32 16, 1
                loop: start=0, step=1, limit=1
                $region67: #{tpu_custom_call.1} parent=58 // loop_pre_header
                  _
                $region68: #{tpu_custom_call.1} parent=58 // loop_header
                  %s448 = sphi 0, %s452
                  %p449 = scmp.ge.s32.totalorder %s448, 1
                  %s453 = sphi %s290, %s290
                  %s454 = sphi %s285, %s285
                $region69: #{tpu_custom_call.1} parent=58 // loop_header_branch
                  %451 = sbr.rel (%p449) target = $region73
                $region70: #{tpu_custom_call.1} parent=58 // loop_body
                  %v455 = vld [vmem:[%s453] sm:%s446]
                  %456 = vst [vmem:[%s454] sm:%s446] %v455
                  %v457 = vld [vmem:[%s453 + $0x4] sm:%s446]
                  %458 = vst [vmem:[%s454 + $0x4] sm:%s446] %v457
                  %v459 = vld [vmem:[%s453 + $0x8] sm:%s446]
                  %460 = vst [vmem:[%s454 + $0x8] sm:%s446] %v459
                  %v461 = vld [vmem:[%s453 + $0xc] sm:%s446]
                  %462 = vst [vmem:[%s454 + $0xc] sm:%s446] %v461
                  %v463 = vld [vmem:[%s453 + $0x10] sm:%s446]
                  %464 = vst [vmem:[%s454 + $0x10] sm:%s446] %v463
                  %v465 = vld [vmem:[%s453 + $0x14] sm:%s446]
                  %466 = vst [vmem:[%s454 + $0x14] sm:%s446] %v465
                  %v467 = vld [vmem:[%s453 + $0x18] sm:%s446]
                  %468 = vst [vmem:[%s454 + $0x18] sm:%s446] %v467
                  %v469 = vld [vmem:[%s453 + $0x1c] sm:%s446]
                  %470 = vst [vmem:[%s454 + $0x1c] sm:%s446] %v469
                  %v471 = vld [vmem:[%s453 + $0x20] sm:%s446]
                  %472 = vst [vmem:[%s454 + $0x20] sm:%s446] %v471
                  %v473 = vld [vmem:[%s453 + $0x24] sm:%s446]
                  %474 = vst [vmem:[%s454 + $0x24] sm:%s446] %v473
                  %v475 = vld [vmem:[%s453 + $0x28] sm:%s446]
                  %476 = vst [vmem:[%s454 + $0x28] sm:%s446] %v475
                  %v477 = vld [vmem:[%s453 + $0x2c] sm:%s446]
                  %478 = vst [vmem:[%s454 + $0x2c] sm:%s446] %v477
                  %v479 = vld [vmem:[%s453 + $0x30] sm:%s446]
                  %480 = vst [vmem:[%s454 + $0x30] sm:%s446] %v479
                  %v481 = vld [vmem:[%s453 + $0x34] sm:%s446]
                  %482 = vst [vmem:[%s454 + $0x34] sm:%s446] %v481
                  %v483 = vld [vmem:[%s453 + $0x38] sm:%s446]
                  %484 = vst [vmem:[%s454 + $0x38] sm:%s446] %v483
                  %v485 = vld [vmem:[%s453 + $0x3c] sm:%s446]
                  %486 = vst [vmem:[%s454 + $0x3c] sm:%s446] %v485
                  %v487 = vld [vmem:[%s453 + $0x80] sm:%s446]
                  %488 = vst [vmem:[%s454 + $0x40] sm:%s446] %v487
                  %v489 = vld [vmem:[%s453 + $0x84] sm:%s446]
                  %490 = vst [vmem:[%s454 + $0x44] sm:%s446] %v489
                  %v491 = vld [vmem:[%s453 + $0x88] sm:%s446]
                  %492 = vst [vmem:[%s454 + $0x48] sm:%s446] %v491
                  %v493 = vld [vmem:[%s453 + $0x8c] sm:%s446]
                  %494 = vst [vmem:[%s454 + $0x4c] sm:%s446] %v493
                  %v495 = vld [vmem:[%s453 + $0x90] sm:%s446]
                  %496 = vst [vmem:[%s454 + $0x50] sm:%s446] %v495
                  %v497 = vld [vmem:[%s453 + $0x94] sm:%s446]
                  %498 = vst [vmem:[%s454 + $0x54] sm:%s446] %v497
                  %v499 = vld [vmem:[%s453 + $0x98] sm:%s446]
                  %500 = vst [vmem:[%s454 + $0x58] sm:%s446] %v499
                  %v501 = vld [vmem:[%s453 + $0x9c] sm:%s446]
                  %502 = vst [vmem:[%s454 + $0x5c] sm:%s446] %v501
                  %v503 = vld [vmem:[%s453 + $0xa0] sm:%s446]
                  %504 = vst [vmem:[%s454 + $0x60] sm:%s446] %v503
                  %v505 = vld [vmem:[%s453 + $0xa4] sm:%s446]
                  %506 = vst [vmem:[%s454 + $0x64] sm:%s446] %v505
                  %v507 = vld [vmem:[%s453 + $0xa8] sm:%s446]
                  %508 = vst [vmem:[%s454 + $0x68] sm:%s446] %v507
                  %v509 = vld [vmem:[%s453 + $0xac] sm:%s446]
                  %510 = vst [vmem:[%s454 + $0x6c] sm:%s446] %v509
                  %v511 = vld [vmem:[%s453 + $0xb0] sm:%s446]
                  %512 = vst [vmem:[%s454 + $0x70] sm:%s446] %v511
                  %v513 = vld [vmem:[%s453 + $0xb4] sm:%s446]
                  %514 = vst [vmem:[%s454 + $0x74] sm:%s446] %v513
                  %v515 = vld [vmem:[%s453 + $0xb8] sm:%s446]
                  %516 = vst [vmem:[%s454 + $0x78] sm:%s446] %v515
                  %v517 = vld [vmem:[%s453 + $0xbc] sm:%s446]
                  %518 = vst [vmem:[%s454 + $0x7c] sm:%s446] %v517
                  %v519 = vld [vmem:[%s453 + $0x100] sm:%s446]
                  %520 = vst [vmem:[%s454 + $0x80] sm:%s446] %v519
                  %v521 = vld [vmem:[%s453 + $0x104] sm:%s446]
                  %522 = vst [vmem:[%s454 + $0x84] sm:%s446] %v521
                  %v523 = vld [vmem:[%s453 + $0x108] sm:%s446]
                  %524 = vst [vmem:[%s454 + $0x88] sm:%s446] %v523
                  %v525 = vld [vmem:[%s453 + $0x10c] sm:%s446]
                  %526 = vst [vmem:[%s454 + $0x8c] sm:%s446] %v525
                  %v527 = vld [vmem:[%s453 + $0x110] sm:%s446]
                  %528 = vst [vmem:[%s454 + $0x90] sm:%s446] %v527
                  %v529 = vld [vmem:[%s453 + $0x114] sm:%s446]
                  %530 = vst [vmem:[%s454 + $0x94] sm:%s446] %v529
                  %v531 = vld [vmem:[%s453 + $0x118] sm:%s446]
                  %532 = vst [vmem:[%s454 + $0x98] sm:%s446] %v531
                  %v533 = vld [vmem:[%s453 + $0x11c] sm:%s446]
                  %534 = vst [vmem:[%s454 + $0x9c] sm:%s446] %v533
                  %v535 = vld [vmem:[%s453 + $0x120] sm:%s446]
                  %536 = vst [vmem:[%s454 + $0xa0] sm:%s446] %v535
                  %v537 = vld [vmem:[%s453 + $0x124] sm:%s446]
                  %538 = vst [vmem:[%s454 + $0xa4] sm:%s446] %v537
                  %v539 = vld [vmem:[%s453 + $0x128] sm:%s446]
                  %540 = vst [vmem:[%s454 + $0xa8] sm:%s446] %v539
                  %v541 = vld [vmem:[%s453 + $0x12c] sm:%s446]
                  %542 = vst [vmem:[%s454 + $0xac] sm:%s446] %v541
                  %v543 = vld [vmem:[%s453 + $0x130] sm:%s446]
                  %544 = vst [vmem:[%s454 + $0xb0] sm:%s446] %v543
                  %v545 = vld [vmem:[%s453 + $0x134] sm:%s446]
                  %546 = vst [vmem:[%s454 + $0xb4] sm:%s446] %v545
                  %v547 = vld [vmem:[%s453 + $0x138] sm:%s446]
                  %548 = vst [vmem:[%s454 + $0xb8] sm:%s446] %v547
                  %v549 = vld [vmem:[%s453 + $0x13c] sm:%s446]
                  %550 = vst [vmem:[%s454 + $0xbc] sm:%s446] %v549
                  %v551 = vld [vmem:[%s453 + $0x180] sm:%s446]
                  %552 = vst [vmem:[%s454 + $0xc0] sm:%s446] %v551
                  %v553 = vld [vmem:[%s453 + $0x184] sm:%s446]
                  %554 = vst [vmem:[%s454 + $0xc4] sm:%s446] %v553
                  %v555 = vld [vmem:[%s453 + $0x188] sm:%s446]
                  %556 = vst [vmem:[%s454 + $0xc8] sm:%s446] %v555
                  %v557 = vld [vmem:[%s453 + $0x18c] sm:%s446]
                  %558 = vst [vmem:[%s454 + $0xcc] sm:%s446] %v557
                  %v559 = vld [vmem:[%s453 + $0x190] sm:%s446]
                  %560 = vst [vmem:[%s454 + $0xd0] sm:%s446] %v559
                  %v561 = vld [vmem:[%s453 + $0x194] sm:%s446]
                  %562 = vst [vmem:[%s454 + $0xd4] sm:%s446] %v561
                  %v563 = vld [vmem:[%s453 + $0x198] sm:%s446]
                  %564 = vst [vmem:[%s454 + $0xd8] sm:%s446] %v563
                  %v565 = vld [vmem:[%s453 + $0x19c] sm:%s446]
                  %566 = vst [vmem:[%s454 + $0xdc] sm:%s446] %v565
                  %v567 = vld [vmem:[%s453 + $0x1a0] sm:%s446]
                  %568 = vst [vmem:[%s454 + $0xe0] sm:%s446] %v567
                  %v569 = vld [vmem:[%s453 + $0x1a4] sm:%s446]
                  %570 = vst [vmem:[%s454 + $0xe4] sm:%s446] %v569
                  %v571 = vld [vmem:[%s453 + $0x1a8] sm:%s446]
                  %572 = vst [vmem:[%s454 + $0xe8] sm:%s446] %v571
                  %v573 = vld [vmem:[%s453 + $0x1ac] sm:%s446]
                  %574 = vst [vmem:[%s454 + $0xec] sm:%s446] %v573
                  %v575 = vld [vmem:[%s453 + $0x1b0] sm:%s446]
                  %576 = vst [vmem:[%s454 + $0xf0] sm:%s446] %v575
                  %v577 = vld [vmem:[%s453 + $0x1b4] sm:%s446]
                  %578 = vst [vmem:[%s454 + $0xf4] sm:%s446] %v577
                  %v579 = vld [vmem:[%s453 + $0x1b8] sm:%s446]
                  %580 = vst [vmem:[%s454 + $0xf8] sm:%s446] %v579
                  %v581 = vld [vmem:[%s453 + $0x1bc] sm:%s446]
                  %582 = vst [vmem:[%s454 + $0xfc] sm:%s446] %v581
                $region71: #{tpu_custom_call.1} parent=58 // loop_footer
                  %s452 = sadd.s32 1, %s448
                $region72: #{tpu_custom_call.1} parent=58 // loop_footer_branch
                  %447 = sbr.rel target = $region68
                $region73: #{tpu_custom_call.1} parent=58 // loop_exit
                  _
              $region59: #{tpu_custom_call.1} parent=43 // pred_fallthru
                _
            $region44: #{tpu_custom_call.1} parent=39 // pred_fallthru
              _
            // Predicated region
            $region45: #{tpu_custom_call.1} parent=39 // pred_check
              _
            $region46: #{tpu_custom_call.1} parent=39 // pred_check_branch
              %296 = sbr.rel (0) target = $region48
            $region47: #{tpu_custom_call.1} parent=39 // pred_region
              %s298 = ssub.s32 16, 1
              loop: start=0, step=1, limit=1
              $region49: #{tpu_custom_call.1} parent=47 // loop_pre_header
                _
              $region50: #{tpu_custom_call.1} parent=47 // loop_header
                %s300 = sphi 0, %s304
                %p301 = scmp.ge.s32.totalorder %s300, 1
                %s305 = sphi %s290, %s290
                %s306 = sphi %s285, %s285
              $region51: #{tpu_custom_call.1} parent=47 // loop_header_branch
                %303 = sbr.rel (%p301) target = $region55
              $region52: #{tpu_custom_call.1} parent=47 // loop_body
                %v307 = vld [vmem:[%s305] sm:%s298]
                %308 = vst [vmem:[%s306] sm:%s298] %v307
                %v309 = vld [vmem:[%s305 + $0x4] sm:%s298]
                %310 = vst [vmem:[%s306 + $0x4] sm:%s298] %v309
                %v311 = vld [vmem:[%s305 + $0x8] sm:%s298]
                %312 = vst [vmem:[%s306 + $0x8] sm:%s298] %v311
                %v313 = vld [vmem:[%s305 + $0xc] sm:%s298]
                %314 = vst [vmem:[%s306 + $0xc] sm:%s298] %v313
                %v315 = vld [vmem:[%s305 + $0x10] sm:%s298]
                %316 = vst [vmem:[%s306 + $0x10] sm:%s298] %v315
                %v317 = vld [vmem:[%s305 + $0x14] sm:%s298]
                %318 = vst [vmem:[%s306 + $0x14] sm:%s298] %v317
                %v319 = vld [vmem:[%s305 + $0x18] sm:%s298]
                %320 = vst [vmem:[%s306 + $0x18] sm:%s298] %v319
                %v321 = vld [vmem:[%s305 + $0x1c] sm:%s298]
                %322 = vst [vmem:[%s306 + $0x1c] sm:%s298] %v321
                %v323 = vld [vmem:[%s305 + $0x20] sm:%s298]
                %324 = vst [vmem:[%s306 + $0x20] sm:%s298] %v323
                %v325 = vld [vmem:[%s305 + $0x24] sm:%s298]
                %326 = vst [vmem:[%s306 + $0x24] sm:%s298] %v325
                %v327 = vld [vmem:[%s305 + $0x28] sm:%s298]
                %328 = vst [vmem:[%s306 + $0x28] sm:%s298] %v327
                %v329 = vld [vmem:[%s305 + $0x2c] sm:%s298]
                %330 = vst [vmem:[%s306 + $0x2c] sm:%s298] %v329
                %v331 = vld [vmem:[%s305 + $0x30] sm:%s298]
                %332 = vst [vmem:[%s306 + $0x30] sm:%s298] %v331
                %v333 = vld [vmem:[%s305 + $0x34] sm:%s298]
                %334 = vst [vmem:[%s306 + $0x34] sm:%s298] %v333
                %v335 = vld [vmem:[%s305 + $0x38] sm:%s298]
                %336 = vst [vmem:[%s306 + $0x38] sm:%s298] %v335
                %v337 = vld [vmem:[%s305 + $0x3c] sm:%s298]
                %338 = vst [vmem:[%s306 + $0x3c] sm:%s298] %v337
                %v339 = vld [vmem:[%s305 + $0x80] sm:%s298]
                %340 = vst [vmem:[%s306 + $0x40] sm:%s298] %v339
                %v341 = vld [vmem:[%s305 + $0x84] sm:%s298]
                %342 = vst [vmem:[%s306 + $0x44] sm:%s298] %v341
                %v343 = vld [vmem:[%s305 + $0x88] sm:%s298]
                %344 = vst [vmem:[%s306 + $0x48] sm:%s298] %v343
                %v345 = vld [vmem:[%s305 + $0x8c] sm:%s298]
                %346 = vst [vmem:[%s306 + $0x4c] sm:%s298] %v345
                %v347 = vld [vmem:[%s305 + $0x90] sm:%s298]
                %348 = vst [vmem:[%s306 + $0x50] sm:%s298] %v347
                %v349 = vld [vmem:[%s305 + $0x94] sm:%s298]
                %350 = vst [vmem:[%s306 + $0x54] sm:%s298] %v349
                %v351 = vld [vmem:[%s305 + $0x98] sm:%s298]
                %352 = vst [vmem:[%s306 + $0x58] sm:%s298] %v351
                %v353 = vld [vmem:[%s305 + $0x9c] sm:%s298]
                %354 = vst [vmem:[%s306 + $0x5c] sm:%s298] %v353
                %v355 = vld [vmem:[%s305 + $0xa0] sm:%s298]
                %356 = vst [vmem:[%s306 + $0x60] sm:%s298] %v355
                %v357 = vld [vmem:[%s305 + $0xa4] sm:%s298]
                %358 = vst [vmem:[%s306 + $0x64] sm:%s298] %v357
                %v359 = vld [vmem:[%s305 + $0xa8] sm:%s298]
                %360 = vst [vmem:[%s306 + $0x68] sm:%s298] %v359
                %v361 = vld [vmem:[%s305 + $0xac] sm:%s298]
                %362 = vst [vmem:[%s306 + $0x6c] sm:%s298] %v361
                %v363 = vld [vmem:[%s305 + $0xb0] sm:%s298]
                %364 = vst [vmem:[%s306 + $0x70] sm:%s298] %v363
                %v365 = vld [vmem:[%s305 + $0xb4] sm:%s298]
                %366 = vst [vmem:[%s306 + $0x74] sm:%s298] %v365
                %v367 = vld [vmem:[%s305 + $0xb8] sm:%s298]
                %368 = vst [vmem:[%s306 + $0x78] sm:%s298] %v367
                %v369 = vld [vmem:[%s305 + $0xbc] sm:%s298]
                %370 = vst [vmem:[%s306 + $0x7c] sm:%s298] %v369
                %v371 = vld [vmem:[%s305 + $0x100] sm:%s298]
                %372 = vst [vmem:[%s306 + $0x80] sm:%s298] %v371
                %v373 = vld [vmem:[%s305 + $0x104] sm:%s298]
                %374 = vst [vmem:[%s306 + $0x84] sm:%s298] %v373
                %v375 = vld [vmem:[%s305 + $0x108] sm:%s298]
                %376 = vst [vmem:[%s306 + $0x88] sm:%s298] %v375
                %v377 = vld [vmem:[%s305 + $0x10c] sm:%s298]
                %378 = vst [vmem:[%s306 + $0x8c] sm:%s298] %v377
                %v379 = vld [vmem:[%s305 + $0x110] sm:%s298]
                %380 = vst [vmem:[%s306 + $0x90] sm:%s298] %v379
                %v381 = vld [vmem:[%s305 + $0x114] sm:%s298]
                %382 = vst [vmem:[%s306 + $0x94] sm:%s298] %v381
                %v383 = vld [vmem:[%s305 + $0x118] sm:%s298]
                %384 = vst [vmem:[%s306 + $0x98] sm:%s298] %v383
                %v385 = vld [vmem:[%s305 + $0x11c] sm:%s298]
                %386 = vst [vmem:[%s306 + $0x9c] sm:%s298] %v385
                %v387 = vld [vmem:[%s305 + $0x120] sm:%s298]
                %388 = vst [vmem:[%s306 + $0xa0] sm:%s298] %v387
                %v389 = vld [vmem:[%s305 + $0x124] sm:%s298]
                %390 = vst [vmem:[%s306 + $0xa4] sm:%s298] %v389
                %v391 = vld [vmem:[%s305 + $0x128] sm:%s298]
                %392 = vst [vmem:[%s306 + $0xa8] sm:%s298] %v391
                %v393 = vld [vmem:[%s305 + $0x12c] sm:%s298]
                %394 = vst [vmem:[%s306 + $0xac] sm:%s298] %v393
                %v395 = vld [vmem:[%s305 + $0x130] sm:%s298]
                %396 = vst [vmem:[%s306 + $0xb0] sm:%s298] %v395
                %v397 = vld [vmem:[%s305 + $0x134] sm:%s298]
                %398 = vst [vmem:[%s306 + $0xb4] sm:%s298] %v397
                %v399 = vld [vmem:[%s305 + $0x138] sm:%s298]
                %400 = vst [vmem:[%s306 + $0xb8] sm:%s298] %v399
                %v401 = vld [vmem:[%s305 + $0x13c] sm:%s298]
                %402 = vst [vmem:[%s306 + $0xbc] sm:%s298] %v401
                %v403 = vld [vmem:[%s305 + $0x180] sm:%s298]
                %404 = vst [vmem:[%s306 + $0xc0] sm:%s298] %v403
                %v405 = vld [vmem:[%s305 + $0x184] sm:%s298]
                %406 = vst [vmem:[%s306 + $0xc4] sm:%s298] %v405
                %v407 = vld [vmem:[%s305 + $0x188] sm:%s298]
                %408 = vst [vmem:[%s306 + $0xc8] sm:%s298] %v407
                %v409 = vld [vmem:[%s305 + $0x18c] sm:%s298]
                %410 = vst [vmem:[%s306 + $0xcc] sm:%s298] %v409
                %v411 = vld [vmem:[%s305 + $0x190] sm:%s298]
                %412 = vst [vmem:[%s306 + $0xd0] sm:%s298] %v411
                %v413 = vld [vmem:[%s305 + $0x194] sm:%s298]
                %414 = vst [vmem:[%s306 + $0xd4] sm:%s298] %v413
                %v415 = vld [vmem:[%s305 + $0x198] sm:%s298]
                %416 = vst [vmem:[%s306 + $0xd8] sm:%s298] %v415
                %v417 = vld [vmem:[%s305 + $0x19c] sm:%s298]
                %418 = vst [vmem:[%s306 + $0xdc] sm:%s298] %v417
                %v419 = vld [vmem:[%s305 + $0x1a0] sm:%s298]
                %420 = vst [vmem:[%s306 + $0xe0] sm:%s298] %v419
                %v421 = vld [vmem:[%s305 + $0x1a4] sm:%s298]
                %422 = vst [vmem:[%s306 + $0xe4] sm:%s298] %v421
                %v423 = vld [vmem:[%s305 + $0x1a8] sm:%s298]
                %424 = vst [vmem:[%s306 + $0xe8] sm:%s298] %v423
                %v425 = vld [vmem:[%s305 + $0x1ac] sm:%s298]
                %426 = vst [vmem:[%s306 + $0xec] sm:%s298] %v425
                %v427 = vld [vmem:[%s305 + $0x1b0] sm:%s298]
                %428 = vst [vmem:[%s306 + $0xf0] sm:%s298] %v427
                %v429 = vld [vmem:[%s305 + $0x1b4] sm:%s298]
                %430 = vst [vmem:[%s306 + $0xf4] sm:%s298] %v429
                %v431 = vld [vmem:[%s305 + $0x1b8] sm:%s298]
                %432 = vst [vmem:[%s306 + $0xf8] sm:%s298] %v431
                %v433 = vld [vmem:[%s305 + $0x1bc] sm:%s298]
                %434 = vst [vmem:[%s306 + $0xfc] sm:%s298] %v433
              $region53: #{tpu_custom_call.1} parent=47 // loop_footer
                %s304 = sadd.s32 1, %s300
              $region54: #{tpu_custom_call.1} parent=47 // loop_footer_branch
                %299 = sbr.rel target = $region50
              $region55: #{tpu_custom_call.1} parent=47 // loop_exit
                _
            $region48: #{tpu_custom_call.1} parent=39 // pred_fallthru
              _
          $region40: #{tpu_custom_call.1} parent=35 // pred_fallthru
            _
          %583 = vnop
        $region36: #{tpu_custom_call.1} parent=27 // pred_fallthru
          _
        // Predicated region
        $region74: #{tpu_custom_call.1} parent=27 // pred_check
          %p584 = pneg %p113
        $region75: #{tpu_custom_call.1} parent=27 // pred_check_branch
          %586 = sbr.rel (%p584) target = $region77
        $region76: #{tpu_custom_call.1} parent=27 // pred_region
          %s587 = sand.u32 %s103, 1
          %s588 = sand.u32 %s103, 1
          %s589 = smul.addr %s588, 64
          %s590 = scalar_lea.vmem [#allocation6], %s589
          %s591 = smul.addr %s23, 32
          %s592 = sadd.s32 %s25, %s591
          %s593 = smul.addr %s592, 4
          %s594 = scalar_lea.vmem %s2, %s593
          // Predicated region
          $region78: #{tpu_custom_call.1} parent=76 // pred_check
            _
          $region79: #{tpu_custom_call.1} parent=76 // pred_check_branch
            %596 = sbr.rel (0) target = $region81
          $region80: #{tpu_custom_call.1} parent=76 // pred_region
            // Predicated region
            $region82: #{tpu_custom_call.1} parent=80 // pred_check
              _
            $region83: #{tpu_custom_call.1} parent=80 // pred_check_branch
              %598 = sbr.rel target = $region85
            $region84: #{tpu_custom_call.1} parent=80 // pred_region
              // Predicated region
              $region97: #{tpu_custom_call.1} parent=84 // pred_check
                _
              $region98: #{tpu_custom_call.1} parent=84 // pred_check_branch
                %644 = sbr.rel (0) target = $region100
              $region99: #{tpu_custom_call.1} parent=84 // pred_region
                loop: start=0, step=1, limit=1
                $region101: #{tpu_custom_call.1} parent=99 // loop_pre_header
                  _
                $region102: #{tpu_custom_call.1} parent=99 // loop_header
                  %s646 = sphi 0, %s650
                  %p647 = scmp.ge.s32.totalorder %s646, 1
                  %s651 = sphi %s594, %s594
                  %s652 = sphi %s590, %s590
                $region103: #{tpu_custom_call.1} parent=99 // loop_header_branch
                  %649 = sbr.rel (%p647) target = $region107
                $region104: #{tpu_custom_call.1} parent=99 // loop_body
                  _
                $region105: #{tpu_custom_call.1} parent=99 // loop_footer
                  %s650 = sadd.s32 1, %s646
                $region106: #{tpu_custom_call.1} parent=99 // loop_footer_branch
                  %645 = sbr.rel target = $region102
                $region107: #{tpu_custom_call.1} parent=99 // loop_exit
                  _
                %s654 = ssub.s32 16, 1
                loop: start=0, step=1, limit=1
                $region108: #{tpu_custom_call.1} parent=99 // loop_pre_header
                  _
                $region109: #{tpu_custom_call.1} parent=99 // loop_header
                  %s656 = sphi 0, %s660
                  %p657 = scmp.ge.s32.totalorder %s656, 1
                  %s661 = sphi %s594, %s594
                  %s662 = sphi %s590, %s590
                $region110: #{tpu_custom_call.1} parent=99 // loop_header_branch
                  %659 = sbr.rel (%p657) target = $region114
                $region111: #{tpu_custom_call.1} parent=99 // loop_body
                  %v663 = vld [vmem:[%s661] sm:%s654]
                  %664 = vst [vmem:[%s662] sm:%s654] %v663
                  %v665 = vld [vmem:[%s661 + $0x8] sm:%s654]
                  %666 = vst [vmem:[%s662 + $0x4] sm:%s654] %v665
                  %v667 = vld [vmem:[%s661 + $0x10] sm:%s654]
                  %668 = vst [vmem:[%s662 + $0x8] sm:%s654] %v667
                  %v669 = vld [vmem:[%s661 + $0x18] sm:%s654]
                  %670 = vst [vmem:[%s662 + $0xc] sm:%s654] %v669
                  %v671 = vld [vmem:[%s661 + $0x20] sm:%s654]
                  %672 = vst [vmem:[%s662 + $0x10] sm:%s654] %v671
                  %v673 = vld [vmem:[%s661 + $0x28] sm:%s654]
                  %674 = vst [vmem:[%s662 + $0x14] sm:%s654] %v673
                  %v675 = vld [vmem:[%s661 + $0x30] sm:%s654]
                  %676 = vst [vmem:[%s662 + $0x18] sm:%s654] %v675
                  %v677 = vld [vmem:[%s661 + $0x38] sm:%s654]
                  %678 = vst [vmem:[%s662 + $0x1c] sm:%s654] %v677
                  %v679 = vld [vmem:[%s661 + $0x40] sm:%s654]
                  %680 = vst [vmem:[%s662 + $0x20] sm:%s654] %v679
                  %v681 = vld [vmem:[%s661 + $0x48] sm:%s654]
                  %682 = vst [vmem:[%s662 + $0x24] sm:%s654] %v681
                  %v683 = vld [vmem:[%s661 + $0x50] sm:%s654]
                  %684 = vst [vmem:[%s662 + $0x28] sm:%s654] %v683
                  %v685 = vld [vmem:[%s661 + $0x58] sm:%s654]
                  %686 = vst [vmem:[%s662 + $0x2c] sm:%s654] %v685
                  %v687 = vld [vmem:[%s661 + $0x60] sm:%s654]
                  %688 = vst [vmem:[%s662 + $0x30] sm:%s654] %v687
                  %v689 = vld [vmem:[%s661 + $0x68] sm:%s654]
                  %690 = vst [vmem:[%s662 + $0x34] sm:%s654] %v689
                  %v691 = vld [vmem:[%s661 + $0x70] sm:%s654]
                  %692 = vst [vmem:[%s662 + $0x38] sm:%s654] %v691
                  %v693 = vld [vmem:[%s661 + $0x78] sm:%s654]
                  %694 = vst [vmem:[%s662 + $0x3c] sm:%s654] %v693
                $region112: #{tpu_custom_call.1} parent=99 // loop_footer
                  %s660 = sadd.s32 1, %s656
                $region113: #{tpu_custom_call.1} parent=99 // loop_footer_branch
                  %655 = sbr.rel target = $region109
                $region114: #{tpu_custom_call.1} parent=99 // loop_exit
                  _
              $region100: #{tpu_custom_call.1} parent=84 // pred_fallthru
                _
            $region85: #{tpu_custom_call.1} parent=80 // pred_fallthru
              _
            // Predicated region
            $region86: #{tpu_custom_call.1} parent=80 // pred_check
              _
            $region87: #{tpu_custom_call.1} parent=80 // pred_check_branch
              %600 = sbr.rel (0) target = $region89
            $region88: #{tpu_custom_call.1} parent=80 // pred_region
              %s602 = ssub.s32 16, 1
              loop: start=0, step=1, limit=1
              $region90: #{tpu_custom_call.1} parent=88 // loop_pre_header
                _
              $region91: #{tpu_custom_call.1} parent=88 // loop_header
                %s604 = sphi 0, %s608
                %p605 = scmp.ge.s32.totalorder %s604, 1
                %s609 = sphi %s594, %s594
                %s610 = sphi %s590, %s590
              $region92: #{tpu_custom_call.1} parent=88 // loop_header_branch
                %607 = sbr.rel (%p605) target = $region96
              $region93: #{tpu_custom_call.1} parent=88 // loop_body
                %v611 = vld [vmem:[%s609] sm:%s602]
                %612 = vst [vmem:[%s610] sm:%s602] %v611
                %v613 = vld [vmem:[%s609 + $0x8] sm:%s602]
                %614 = vst [vmem:[%s610 + $0x4] sm:%s602] %v613
                %v615 = vld [vmem:[%s609 + $0x10] sm:%s602]
                %616 = vst [vmem:[%s610 + $0x8] sm:%s602] %v615
                %v617 = vld [vmem:[%s609 + $0x18] sm:%s602]
                %618 = vst [vmem:[%s610 + $0xc] sm:%s602] %v617
                %v619 = vld [vmem:[%s609 + $0x20] sm:%s602]
                %620 = vst [vmem:[%s610 + $0x10] sm:%s602] %v619
                %v621 = vld [vmem:[%s609 + $0x28] sm:%s602]
                %622 = vst [vmem:[%s610 + $0x14] sm:%s602] %v621
                %v623 = vld [vmem:[%s609 + $0x30] sm:%s602]
                %624 = vst [vmem:[%s610 + $0x18] sm:%s602] %v623
                %v625 = vld [vmem:[%s609 + $0x38] sm:%s602]
                %626 = vst [vmem:[%s610 + $0x1c] sm:%s602] %v625
                %v627 = vld [vmem:[%s609 + $0x40] sm:%s602]
                %628 = vst [vmem:[%s610 + $0x20] sm:%s602] %v627
                %v629 = vld [vmem:[%s609 + $0x48] sm:%s602]
                %630 = vst [vmem:[%s610 + $0x24] sm:%s602] %v629
                %v631 = vld [vmem:[%s609 + $0x50] sm:%s602]
                %632 = vst [vmem:[%s610 + $0x28] sm:%s602] %v631
                %v633 = vld [vmem:[%s609 + $0x58] sm:%s602]
                %634 = vst [vmem:[%s610 + $0x2c] sm:%s602] %v633
                %v635 = vld [vmem:[%s609 + $0x60] sm:%s602]
                %636 = vst [vmem:[%s610 + $0x30] sm:%s602] %v635
                %v637 = vld [vmem:[%s609 + $0x68] sm:%s602]
                %638 = vst [vmem:[%s610 + $0x34] sm:%s602] %v637
                %v639 = vld [vmem:[%s609 + $0x70] sm:%s602]
                %640 = vst [vmem:[%s610 + $0x38] sm:%s602] %v639
                %v641 = vld [vmem:[%s609 + $0x78] sm:%s602]
                %642 = vst [vmem:[%s610 + $0x3c] sm:%s602] %v641
              $region94: #{tpu_custom_call.1} parent=88 // loop_footer
                %s608 = sadd.s32 1, %s604
              $region95: #{tpu_custom_call.1} parent=88 // loop_footer_branch
                %603 = sbr.rel target = $region91
              $region96: #{tpu_custom_call.1} parent=88 // loop_exit
                _
            $region89: #{tpu_custom_call.1} parent=80 // pred_fallthru
              _
          $region81: #{tpu_custom_call.1} parent=76 // pred_fallthru
            _
          %695 = vnop
        $region77: #{tpu_custom_call.1} parent=27 // pred_fallthru
          _
        // Predicated region
        $region115: #{tpu_custom_call.1} parent=27 // pred_check
          %p696 = pneg %p141
        $region116: #{tpu_custom_call.1} parent=27 // pred_check_branch
          %698 = sbr.rel (%p696) target = $region118
        $region117: #{tpu_custom_call.1} parent=27 // pred_region
          %s699 = sand.u32 %s131, 1
          %s700 = sand.u32 %s131, 1
          %s701 = smul.addr %s700, 256
          %s702 = scalar_lea.vmem [#allocation7], %s701
          %s703 = smul.u32 16, %s25
          %s704 = smul.addr %s23, 128
          %s705 = sadd.s32 %s703, %s704
          %s706 = smul.addr %s705, 4
          %s707 = scalar_lea.vmem %s3, %s706
          // Predicated region
          $region119: #{tpu_custom_call.1} parent=117 // pred_check
            _
          $region120: #{tpu_custom_call.1} parent=117 // pred_check_branch
            %709 = sbr.rel (0) target = $region122
          $region121: #{tpu_custom_call.1} parent=117 // pred_region
            // Predicated region
            $region123: #{tpu_custom_call.1} parent=121 // pred_check
              _
            $region124: #{tpu_custom_call.1} parent=121 // pred_check_branch
              %711 = sbr.rel target = $region126
            $region125: #{tpu_custom_call.1} parent=121 // pred_region
              // Predicated region
              $region138: #{tpu_custom_call.1} parent=125 // pred_check
                _
              $region139: #{tpu_custom_call.1} parent=125 // pred_check_branch
                %853 = sbr.rel (0) target = $region141
              $region140: #{tpu_custom_call.1} parent=125 // pred_region
                loop: start=0, step=1, limit=1
                $region142: #{tpu_custom_call.1} parent=140 // loop_pre_header
                  _
                $region143: #{tpu_custom_call.1} parent=140 // loop_header
                  %s855 = sphi 0, %s859
                  %p856 = scmp.ge.s32.totalorder %s855, 1
                  %s860 = sphi %s707, %s707
                  %s861 = sphi %s702, %s702
                $region144: #{tpu_custom_call.1} parent=140 // loop_header_branch
                  %858 = sbr.rel (%p856) target = $region148
                $region145: #{tpu_custom_call.1} parent=140 // loop_body
                  _
                $region146: #{tpu_custom_call.1} parent=140 // loop_footer
                  %s859 = sadd.s32 1, %s855
                $region147: #{tpu_custom_call.1} parent=140 // loop_footer_branch
                  %854 = sbr.rel target = $region143
                $region148: #{tpu_custom_call.1} parent=140 // loop_exit
                  _
                %s863 = ssub.s32 16, 1
                loop: start=0, step=1, limit=1
                $region149: #{tpu_custom_call.1} parent=140 // loop_pre_header
                  _
                $region150: #{tpu_custom_call.1} parent=140 // loop_header
                  %s865 = sphi 0, %s869
                  %p866 = scmp.ge.s32.totalorder %s865, 1
                  %s870 = sphi %s707, %s707
                  %s871 = sphi %s702, %s702
                $region151: #{tpu_custom_call.1} parent=140 // loop_header_branch
                  %868 = sbr.rel (%p866) target = $region155
                $region152: #{tpu_custom_call.1} parent=140 // loop_body
                  %v872 = vld [vmem:[%s870] sm:%s863]
                  %873 = vst [vmem:[%s871] sm:%s863] %v872
                  %v874 = vld [vmem:[%s870 + $0x4] sm:%s863]
                  %875 = vst [vmem:[%s871 + $0x4] sm:%s863] %v874
                  %v876 = vld [vmem:[%s870 + $0x8] sm:%s863]
                  %877 = vst [vmem:[%s871 + $0x8] sm:%s863] %v876
                  %v878 = vld [vmem:[%s870 + $0xc] sm:%s863]
                  %879 = vst [vmem:[%s871 + $0xc] sm:%s863] %v878
                  %v880 = vld [vmem:[%s870 + $0x10] sm:%s863]
                  %881 = vst [vmem:[%s871 + $0x10] sm:%s863] %v880
                  %v882 = vld [vmem:[%s870 + $0x14] sm:%s863]
                  %883 = vst [vmem:[%s871 + $0x14] sm:%s863] %v882
                  %v884 = vld [vmem:[%s870 + $0x18] sm:%s863]
                  %885 = vst [vmem:[%s871 + $0x18] sm:%s863] %v884
                  %v886 = vld [vmem:[%s870 + $0x1c] sm:%s863]
                  %887 = vst [vmem:[%s871 + $0x1c] sm:%s863] %v886
                  %v888 = vld [vmem:[%s870 + $0x20] sm:%s863]
                  %889 = vst [vmem:[%s871 + $0x20] sm:%s863] %v888
                  %v890 = vld [vmem:[%s870 + $0x24] sm:%s863]
                  %891 = vst [vmem:[%s871 + $0x24] sm:%s863] %v890
                  %v892 = vld [vmem:[%s870 + $0x28] sm:%s863]
                  %893 = vst [vmem:[%s871 + $0x28] sm:%s863] %v892
                  %v894 = vld [vmem:[%s870 + $0x2c] sm:%s863]
                  %895 = vst [vmem:[%s871 + $0x2c] sm:%s863] %v894
                  %v896 = vld [vmem:[%s870 + $0x30] sm:%s863]
                  %897 = vst [vmem:[%s871 + $0x30] sm:%s863] %v896
                  %v898 = vld [vmem:[%s870 + $0x34] sm:%s863]
                  %899 = vst [vmem:[%s871 + $0x34] sm:%s863] %v898
                  %v900 = vld [vmem:[%s870 + $0x38] sm:%s863]
                  %901 = vst [vmem:[%s871 + $0x38] sm:%s863] %v900
                  %v902 = vld [vmem:[%s870 + $0x3c] sm:%s863]
                  %903 = vst [vmem:[%s871 + $0x3c] sm:%s863] %v902
                  %v904 = vld [vmem:[%s870 + $0x80] sm:%s863]
                  %905 = vst [vmem:[%s871 + $0x40] sm:%s863] %v904
                  %v906 = vld [vmem:[%s870 + $0x84] sm:%s863]
                  %907 = vst [vmem:[%s871 + $0x44] sm:%s863] %v906
                  %v908 = vld [vmem:[%s870 + $0x88] sm:%s863]
                  %909 = vst [vmem:[%s871 + $0x48] sm:%s863] %v908
                  %v910 = vld [vmem:[%s870 + $0x8c] sm:%s863]
                  %911 = vst [vmem:[%s871 + $0x4c] sm:%s863] %v910
                  %v912 = vld [vmem:[%s870 + $0x90] sm:%s863]
                  %913 = vst [vmem:[%s871 + $0x50] sm:%s863] %v912
                  %v914 = vld [vmem:[%s870 + $0x94] sm:%s863]
                  %915 = vst [vmem:[%s871 + $0x54] sm:%s863] %v914
                  %v916 = vld [vmem:[%s870 + $0x98] sm:%s863]
                  %917 = vst [vmem:[%s871 + $0x58] sm:%s863] %v916
                  %v918 = vld [vmem:[%s870 + $0x9c] sm:%s863]
                  %919 = vst [vmem:[%s871 + $0x5c] sm:%s863] %v918
                  %v920 = vld [vmem:[%s870 + $0xa0] sm:%s863]
                  %921 = vst [vmem:[%s871 + $0x60] sm:%s863] %v920
                  %v922 = vld [vmem:[%s870 + $0xa4] sm:%s863]
                  %923 = vst [vmem:[%s871 + $0x64] sm:%s863] %v922
                  %v924 = vld [vmem:[%s870 + $0xa8] sm:%s863]
                  %925 = vst [vmem:[%s871 + $0x68] sm:%s863] %v924
                  %v926 = vld [vmem:[%s870 + $0xac] sm:%s863]
                  %927 = vst [vmem:[%s871 + $0x6c] sm:%s863] %v926
                  %v928 = vld [vmem:[%s870 + $0xb0] sm:%s863]
                  %929 = vst [vmem:[%s871 + $0x70] sm:%s863] %v928
                  %v930 = vld [vmem:[%s870 + $0xb4] sm:%s863]
                  %931 = vst [vmem:[%s871 + $0x74] sm:%s863] %v930
                  %v932 = vld [vmem:[%s870 + $0xb8] sm:%s863]
                  %933 = vst [vmem:[%s871 + $0x78] sm:%s863] %v932
                  %v934 = vld [vmem:[%s870 + $0xbc] sm:%s863]
                  %935 = vst [vmem:[%s871 + $0x7c] sm:%s863] %v934
                  %v936 = vld [vmem:[%s870 + $0x100] sm:%s863]
                  %937 = vst [vmem:[%s871 + $0x80] sm:%s863] %v936
                  %v938 = vld [vmem:[%s870 + $0x104] sm:%s863]
                  %939 = vst [vmem:[%s871 + $0x84] sm:%s863] %v938
                  %v940 = vld [vmem:[%s870 + $0x108] sm:%s863]
                  %941 = vst [vmem:[%s871 + $0x88] sm:%s863] %v940
                  %v942 = vld [vmem:[%s870 + $0x10c] sm:%s863]
                  %943 = vst [vmem:[%s871 + $0x8c] sm:%s863] %v942
                  %v944 = vld [vmem:[%s870 + $0x110] sm:%s863]
                  %945 = vst [vmem:[%s871 + $0x90] sm:%s863] %v944
                  %v946 = vld [vmem:[%s870 + $0x114] sm:%s863]
                  %947 = vst [vmem:[%s871 + $0x94] sm:%s863] %v946
                  %v948 = vld [vmem:[%s870 + $0x118] sm:%s863]
                  %949 = vst [vmem:[%s871 + $0x98] sm:%s863] %v948
                  %v950 = vld [vmem:[%s870 + $0x11c] sm:%s863]
                  %951 = vst [vmem:[%s871 + $0x9c] sm:%s863] %v950
                  %v952 = vld [vmem:[%s870 + $0x120] sm:%s863]
                  %953 = vst [vmem:[%s871 + $0xa0] sm:%s863] %v952
                  %v954 = vld [vmem:[%s870 + $0x124] sm:%s863]
                  %955 = vst [vmem:[%s871 + $0xa4] sm:%s863] %v954
                  %v956 = vld [vmem:[%s870 + $0x128] sm:%s863]
                  %957 = vst [vmem:[%s871 + $0xa8] sm:%s863] %v956
                  %v958 = vld [vmem:[%s870 + $0x12c] sm:%s863]
                  %959 = vst [vmem:[%s871 + $0xac] sm:%s863] %v958
                  %v960 = vld [vmem:[%s870 + $0x130] sm:%s863]
                  %961 = vst [vmem:[%s871 + $0xb0] sm:%s863] %v960
                  %v962 = vld [vmem:[%s870 + $0x134] sm:%s863]
                  %963 = vst [vmem:[%s871 + $0xb4] sm:%s863] %v962
                  %v964 = vld [vmem:[%s870 + $0x138] sm:%s863]
                  %965 = vst [vmem:[%s871 + $0xb8] sm:%s863] %v964
                  %v966 = vld [vmem:[%s870 + $0x13c] sm:%s863]
                  %967 = vst [vmem:[%s871 + $0xbc] sm:%s863] %v966
                  %v968 = vld [vmem:[%s870 + $0x180] sm:%s863]
                  %969 = vst [vmem:[%s871 + $0xc0] sm:%s863] %v968
                  %v970 = vld [vmem:[%s870 + $0x184] sm:%s863]
                  %971 = vst [vmem:[%s871 + $0xc4] sm:%s863] %v970
                  %v972 = vld [vmem:[%s870 + $0x188] sm:%s863]
                  %973 = vst [vmem:[%s871 + $0xc8] sm:%s863] %v972
                  %v974 = vld [vmem:[%s870 + $0x18c] sm:%s863]
                  %975 = vst [vmem:[%s871 + $0xcc] sm:%s863] %v974
                  %v976 = vld [vmem:[%s870 + $0x190] sm:%s863]
                  %977 = vst [vmem:[%s871 + $0xd0] sm:%s863] %v976
                  %v978 = vld [vmem:[%s870 + $0x194] sm:%s863]
                  %979 = vst [vmem:[%s871 + $0xd4] sm:%s863] %v978
                  %v980 = vld [vmem:[%s870 + $0x198] sm:%s863]
                  %981 = vst [vmem:[%s871 + $0xd8] sm:%s863] %v980
                  %v982 = vld [vmem:[%s870 + $0x19c] sm:%s863]
                  %983 = vst [vmem:[%s871 + $0xdc] sm:%s863] %v982
                  %v984 = vld [vmem:[%s870 + $0x1a0] sm:%s863]
                  %985 = vst [vmem:[%s871 + $0xe0] sm:%s863] %v984
                  %v986 = vld [vmem:[%s870 + $0x1a4] sm:%s863]
                  %987 = vst [vmem:[%s871 + $0xe4] sm:%s863] %v986
                  %v988 = vld [vmem:[%s870 + $0x1a8] sm:%s863]
                  %989 = vst [vmem:[%s871 + $0xe8] sm:%s863] %v988
                  %v990 = vld [vmem:[%s870 + $0x1ac] sm:%s863]
                  %991 = vst [vmem:[%s871 + $0xec] sm:%s863] %v990
                  %v992 = vld [vmem:[%s870 + $0x1b0] sm:%s863]
                  %993 = vst [vmem:[%s871 + $0xf0] sm:%s863] %v992
                  %v994 = vld [vmem:[%s870 + $0x1b4] sm:%s863]
                  %995 = vst [vmem:[%s871 + $0xf4] sm:%s863] %v994
                  %v996 = vld [vmem:[%s870 + $0x1b8] sm:%s863]
                  %997 = vst [vmem:[%s871 + $0xf8] sm:%s863] %v996
                  %v998 = vld [vmem:[%s870 + $0x1bc] sm:%s863]
                  %999 = vst [vmem:[%s871 + $0xfc] sm:%s863] %v998
                $region153: #{tpu_custom_call.1} parent=140 // loop_footer
                  %s869 = sadd.s32 1, %s865
                $region154: #{tpu_custom_call.1} parent=140 // loop_footer_branch
                  %864 = sbr.rel target = $region150
                $region155: #{tpu_custom_call.1} parent=140 // loop_exit
                  _
              $region141: #{tpu_custom_call.1} parent=125 // pred_fallthru
                _
            $region126: #{tpu_custom_call.1} parent=121 // pred_fallthru
              _
            // Predicated region
            $region127: #{tpu_custom_call.1} parent=121 // pred_check
              _
            $region128: #{tpu_custom_call.1} parent=121 // pred_check_branch
              %713 = sbr.rel (0) target = $region130
            $region129: #{tpu_custom_call.1} parent=121 // pred_region
              %s715 = ssub.s32 16, 1
              loop: start=0, step=1, limit=1
              $region131: #{tpu_custom_call.1} parent=129 // loop_pre_header
                _
              $region132: #{tpu_custom_call.1} parent=129 // loop_header
                %s717 = sphi 0, %s721
                %p718 = scmp.ge.s32.totalorder %s717, 1
                %s722 = sphi %s707, %s707
                %s723 = sphi %s702, %s702
              $region133: #{tpu_custom_call.1} parent=129 // loop_header_branch
                %720 = sbr.rel (%p718) target = $region137
              $region134: #{tpu_custom_call.1} parent=129 // loop_body
                %v724 = vld [vmem:[%s722] sm:%s715]
                %725 = vst [vmem:[%s723] sm:%s715] %v724
                %v726 = vld [vmem:[%s722 + $0x4] sm:%s715]
                %727 = vst [vmem:[%s723 + $0x4] sm:%s715] %v726
                %v728 = vld [vmem:[%s722 + $0x8] sm:%s715]
                %729 = vst [vmem:[%s723 + $0x8] sm:%s715] %v728
                %v730 = vld [vmem:[%s722 + $0xc] sm:%s715]
                %731 = vst [vmem:[%s723 + $0xc] sm:%s715] %v730
                %v732 = vld [vmem:[%s722 + $0x10] sm:%s715]
                %733 = vst [vmem:[%s723 + $0x10] sm:%s715] %v732
                %v734 = vld [vmem:[%s722 + $0x14] sm:%s715]
                %735 = vst [vmem:[%s723 + $0x14] sm:%s715] %v734
                %v736 = vld [vmem:[%s722 + $0x18] sm:%s715]
                %737 = vst [vmem:[%s723 + $0x18] sm:%s715] %v736
                %v738 = vld [vmem:[%s722 + $0x1c] sm:%s715]
                %739 = vst [vmem:[%s723 + $0x1c] sm:%s715] %v738
                %v740 = vld [vmem:[%s722 + $0x20] sm:%s715]
                %741 = vst [vmem:[%s723 + $0x20] sm:%s715] %v740
                %v742 = vld [vmem:[%s722 + $0x24] sm:%s715]
                %743 = vst [vmem:[%s723 + $0x24] sm:%s715] %v742
                %v744 = vld [vmem:[%s722 + $0x28] sm:%s715]
                %745 = vst [vmem:[%s723 + $0x28] sm:%s715] %v744
                %v746 = vld [vmem:[%s722 + $0x2c] sm:%s715]
                %747 = vst [vmem:[%s723 + $0x2c] sm:%s715] %v746
                %v748 = vld [vmem:[%s722 + $0x30] sm:%s715]
                %749 = vst [vmem:[%s723 + $0x30] sm:%s715] %v748
                %v750 = vld [vmem:[%s722 + $0x34] sm:%s715]
                %751 = vst [vmem:[%s723 + $0x34] sm:%s715] %v750
                %v752 = vld [vmem:[%s722 + $0x38] sm:%s715]
                %753 = vst [vmem:[%s723 + $0x38] sm:%s715] %v752
                %v754 = vld [vmem:[%s722 + $0x3c] sm:%s715]
                %755 = vst [vmem:[%s723 + $0x3c] sm:%s715] %v754
                %v756 = vld [vmem:[%s722 + $0x80] sm:%s715]
                %757 = vst [vmem:[%s723 + $0x40] sm:%s715] %v756
                %v758 = vld [vmem:[%s722 + $0x84] sm:%s715]
                %759 = vst [vmem:[%s723 + $0x44] sm:%s715] %v758
                %v760 = vld [vmem:[%s722 + $0x88] sm:%s715]
                %761 = vst [vmem:[%s723 + $0x48] sm:%s715] %v760
                %v762 = vld [vmem:[%s722 + $0x8c] sm:%s715]
                %763 = vst [vmem:[%s723 + $0x4c] sm:%s715] %v762
                %v764 = vld [vmem:[%s722 + $0x90] sm:%s715]
                %765 = vst [vmem:[%s723 + $0x50] sm:%s715] %v764
                %v766 = vld [vmem:[%s722 + $0x94] sm:%s715]
                %767 = vst [vmem:[%s723 + $0x54] sm:%s715] %v766
                %v768 = vld [vmem:[%s722 + $0x98] sm:%s715]
                %769 = vst [vmem:[%s723 + $0x58] sm:%s715] %v768
                %v770 = vld [vmem:[%s722 + $0x9c] sm:%s715]
                %771 = vst [vmem:[%s723 + $0x5c] sm:%s715] %v770
                %v772 = vld [vmem:[%s722 + $0xa0] sm:%s715]
                %773 = vst [vmem:[%s723 + $0x60] sm:%s715] %v772
                %v774 = vld [vmem:[%s722 + $0xa4] sm:%s715]
                %775 = vst [vmem:[%s723 + $0x64] sm:%s715] %v774
                %v776 = vld [vmem:[%s722 + $0xa8] sm:%s715]
                %777 = vst [vmem:[%s723 + $0x68] sm:%s715] %v776
                %v778 = vld [vmem:[%s722 + $0xac] sm:%s715]
                %779 = vst [vmem:[%s723 + $0x6c] sm:%s715] %v778
                %v780 = vld [vmem:[%s722 + $0xb0] sm:%s715]
                %781 = vst [vmem:[%s723 + $0x70] sm:%s715] %v780
                %v782 = vld [vmem:[%s722 + $0xb4] sm:%s715]
                %783 = vst [vmem:[%s723 + $0x74] sm:%s715] %v782
                %v784 = vld [vmem:[%s722 + $0xb8] sm:%s715]
                %785 = vst [vmem:[%s723 + $0x78] sm:%s715] %v784
                %v786 = vld [vmem:[%s722 + $0xbc] sm:%s715]
                %787 = vst [vmem:[%s723 + $0x7c] sm:%s715] %v786
                %v788 = vld [vmem:[%s722 + $0x100] sm:%s715]
                %789 = vst [vmem:[%s723 + $0x80] sm:%s715] %v788
                %v790 = vld [vmem:[%s722 + $0x104] sm:%s715]
                %791 = vst [vmem:[%s723 + $0x84] sm:%s715] %v790
                %v792 = vld [vmem:[%s722 + $0x108] sm:%s715]
                %793 = vst [vmem:[%s723 + $0x88] sm:%s715] %v792
                %v794 = vld [vmem:[%s722 + $0x10c] sm:%s715]
                %795 = vst [vmem:[%s723 + $0x8c] sm:%s715] %v794
                %v796 = vld [vmem:[%s722 + $0x110] sm:%s715]
                %797 = vst [vmem:[%s723 + $0x90] sm:%s715] %v796
                %v798 = vld [vmem:[%s722 + $0x114] sm:%s715]
                %799 = vst [vmem:[%s723 + $0x94] sm:%s715] %v798
                %v800 = vld [vmem:[%s722 + $0x118] sm:%s715]
                %801 = vst [vmem:[%s723 + $0x98] sm:%s715] %v800
                %v802 = vld [vmem:[%s722 + $0x11c] sm:%s715]
                %803 = vst [vmem:[%s723 + $0x9c] sm:%s715] %v802
                %v804 = vld [vmem:[%s722 + $0x120] sm:%s715]
                %805 = vst [vmem:[%s723 + $0xa0] sm:%s715] %v804
                %v806 = vld [vmem:[%s722 + $0x124] sm:%s715]
                %807 = vst [vmem:[%s723 + $0xa4] sm:%s715] %v806
                %v808 = vld [vmem:[%s722 + $0x128] sm:%s715]
                %809 = vst [vmem:[%s723 + $0xa8] sm:%s715] %v808
                %v810 = vld [vmem:[%s722 + $0x12c] sm:%s715]
                %811 = vst [vmem:[%s723 + $0xac] sm:%s715] %v810
                %v812 = vld [vmem:[%s722 + $0x130] sm:%s715]
                %813 = vst [vmem:[%s723 + $0xb0] sm:%s715] %v812
                %v814 = vld [vmem:[%s722 + $0x134] sm:%s715]
                %815 = vst [vmem:[%s723 + $0xb4] sm:%s715] %v814
                %v816 = vld [vmem:[%s722 + $0x138] sm:%s715]
                %817 = vst [vmem:[%s723 + $0xb8] sm:%s715] %v816
                %v818 = vld [vmem:[%s722 + $0x13c] sm:%s715]
                %819 = vst [vmem:[%s723 + $0xbc] sm:%s715] %v818
                %v820 = vld [vmem:[%s722 + $0x180] sm:%s715]
                %821 = vst [vmem:[%s723 + $0xc0] sm:%s715] %v820
                %v822 = vld [vmem:[%s722 + $0x184] sm:%s715]
                %823 = vst [vmem:[%s723 + $0xc4] sm:%s715] %v822
                %v824 = vld [vmem:[%s722 + $0x188] sm:%s715]
                %825 = vst [vmem:[%s723 + $0xc8] sm:%s715] %v824
                %v826 = vld [vmem:[%s722 + $0x18c] sm:%s715]
                %827 = vst [vmem:[%s723 + $0xcc] sm:%s715] %v826
                %v828 = vld [vmem:[%s722 + $0x190] sm:%s715]
                %829 = vst [vmem:[%s723 + $0xd0] sm:%s715] %v828
                %v830 = vld [vmem:[%s722 + $0x194] sm:%s715]
                %831 = vst [vmem:[%s723 + $0xd4] sm:%s715] %v830
                %v832 = vld [vmem:[%s722 + $0x198] sm:%s715]
                %833 = vst [vmem:[%s723 + $0xd8] sm:%s715] %v832
                %v834 = vld [vmem:[%s722 + $0x19c] sm:%s715]
                %835 = vst [vmem:[%s723 + $0xdc] sm:%s715] %v834
                %v836 = vld [vmem:[%s722 + $0x1a0] sm:%s715]
                %837 = vst [vmem:[%s723 + $0xe0] sm:%s715] %v836
                %v838 = vld [vmem:[%s722 + $0x1a4] sm:%s715]
                %839 = vst [vmem:[%s723 + $0xe4] sm:%s715] %v838
                %v840 = vld [vmem:[%s722 + $0x1a8] sm:%s715]
                %841 = vst [vmem:[%s723 + $0xe8] sm:%s715] %v840
                %v842 = vld [vmem:[%s722 + $0x1ac] sm:%s715]
                %843 = vst [vmem:[%s723 + $0xec] sm:%s715] %v842
                %v844 = vld [vmem:[%s722 + $0x1b0] sm:%s715]
                %845 = vst [vmem:[%s723 + $0xf0] sm:%s715] %v844
                %v846 = vld [vmem:[%s722 + $0x1b4] sm:%s715]
                %847 = vst [vmem:[%s723 + $0xf4] sm:%s715] %v846
                %v848 = vld [vmem:[%s722 + $0x1b8] sm:%s715]
                %849 = vst [vmem:[%s723 + $0xf8] sm:%s715] %v848
                %v850 = vld [vmem:[%s722 + $0x1bc] sm:%s715]
                %851 = vst [vmem:[%s723 + $0xfc] sm:%s715] %v850
              $region135: #{tpu_custom_call.1} parent=129 // loop_footer
                %s721 = sadd.s32 1, %s717
              $region136: #{tpu_custom_call.1} parent=129 // loop_footer_branch
                %716 = sbr.rel target = $region132
              $region137: #{tpu_custom_call.1} parent=129 // loop_exit
                _
            $region130: #{tpu_custom_call.1} parent=121 // pred_fallthru
              _
          $region122: #{tpu_custom_call.1} parent=117 // pred_fallthru
            _
          %1000 = vnop
        $region118: #{tpu_custom_call.1} parent=27 // pred_fallthru
          _
      $region28: #{tpu_custom_call.1} parent=5 // pred_fallthru
        _
      %p1001 = scmp.le.s32.totalorder 1, %s16
      %p1002 = scmp.lt.s32.totalorder %s16, 9
      %p1003 = pnand %p1001, %p1002
      %p1004 = pneg %p1003
      // Predicated region
      $region156: #{tpu_custom_call.1} parent=5 // pred_check
        _
      $region157: #{tpu_custom_call.1} parent=5 // pred_check_branch
        %1006 = sbr.rel (%p1003) target = $region159
      $region158: #{tpu_custom_call.1} parent=5 // pred_region
        %s1007 = ssub.s32 %s16, 1
        %s1008 = sand.u32 %s78, 1
        %s1009 = sand.u32 %s78, 1
        %s1010 = smul.addr %s1009, 256
        %s1011 = scalar_lea.vmem [#allocation5], %s1010
        // Predicated region
        $region160: #{tpu_custom_call.1} parent=158 // pred_check
          %p1012 = pneg %p91
        $region161: #{tpu_custom_call.1} parent=158 // pred_check_branch
          %1014 = sbr.rel (%p1012) target = $region163
        $region162: #{tpu_custom_call.1} parent=158 // pred_region
          _
        $region163: #{tpu_custom_call.1} parent=158 // pred_fallthru
          _
        %s1015 = sand.u32 %s106, 1
        %s1016 = sand.u32 %s106, 1
        %s1017 = smul.addr %s1016, 64
        %s1018 = scalar_lea.vmem [#allocation6], %s1017
        // Predicated region
        $region164: #{tpu_custom_call.1} parent=158 // pred_check
          %p1019 = pneg %p119
        $region165: #{tpu_custom_call.1} parent=158 // pred_check_branch
          %1021 = sbr.rel (%p1019) target = $region167
        $region166: #{tpu_custom_call.1} parent=158 // pred_region
          _
        $region167: #{tpu_custom_call.1} parent=158 // pred_fallthru
          _
        %s1022 = sand.u32 %s134, 1
        %s1023 = sand.u32 %s134, 1
        %s1024 = smul.addr %s1023, 256
        %s1025 = scalar_lea.vmem [#allocation7], %s1024
        // Predicated region
        $region168: #{tpu_custom_call.1} parent=158 // pred_check
          %p1026 = pneg %p147
        $region169: #{tpu_custom_call.1} parent=158 // pred_check_branch
          %1028 = sbr.rel (%p1026) target = $region171
        $region170: #{tpu_custom_call.1} parent=158 // pred_region
          _
        $region171: #{tpu_custom_call.1} parent=158 // pred_fallthru
          _
        %s1029 = smul.u32 16, %s27
        %p1030 = scmp.lt.s32.totalorder %s26, 1
        %s1031 = scalar_select %p1030, %s26, 1
        %p1032 = scmp.lt.s32.totalorder %s1029, 31
        %s1033 = scalar_select %p1032, %s1029, 31
        %s1034 = smul.addr %s1031, 32
        %s1035 = sadd.s32 %s1033, %s1034
        %s1036 = smul.addr %s1035, 8
        %s1037 = scalar_lea.vmem %s0, %s1036
        %p1038 = pneg %p63
        %p1039 = pneg %p60
        %s1040 = sand.u32 %s78, 1
        %s1041 = sand.u32 %s78, 1
        %s1042 = smul.addr %s1041, 256
        %s1043 = scalar_lea.vmem [#allocation5], %s1042
        %p1044 = pneg %p91
        %p1045 = pneg %p88
        %s1046 = sand.u32 %s106, 1
        %s1047 = sand.u32 %s106, 1
        %s1048 = smul.addr %s1047, 64
        %s1049 = scalar_lea.vmem [#allocation6], %s1048
        %p1050 = pneg %p119
        %p1051 = pneg %p116
        %s1052 = sand.u32 %s134, 1
        %s1053 = sand.u32 %s134, 1
        %s1054 = smul.addr %s1053, 256
        %s1055 = scalar_lea.vmem [#allocation7], %s1054
        %p1056 = pneg %p147
        %p1057 = pneg %p144
        %p1058 = pneg %p168
        %p1059 = pneg %p165
        %p1060 = pneg %p189
        %p1061 = pneg %p186
        %p1062 = pneg %p210
        %p1063 = pneg %p207
        %p1064 = pneg %p238
        %p1065 = pneg %p235
        %s1066 = sand.u32 %s225, 1
        %s1067 = scalar_lea.sflag [#allocation9], %s1066
        %s1068 = sand.u32 %s225, 1
        %s1069 = smul.addr %s1068, 128
        %s1070 = scalar_lea.vmem [#allocation8], %s1069
        %s1071 = smul.u32 16, %s27
        %p1072 = scmp.lt.s32.totalorder %s26, 1
        %s1073 = scalar_select %p1072, %s26, 1
        %p1074 = scmp.lt.s32.totalorder %s1071, 31
        %s1075 = scalar_select %p1074, %s1071, 31
        %s1076 = smul.addr %s1073, 32
        %s1077 = sadd.s32 %s1075, %s1076
        %s1078 = smul.addr %s1077, 8
        %s1079 = scalar_lea.vmem %s0, %s1078
        %s1080 = smul.u32 16, %s27
        %s1081 = smul.u32 16, %s27
        %s1082 = smul.u32 16, %s28
        %s1083 = smul.u32 16, %s27
        %p1085 = scmp.eq.s32.totalorder %s28, 0
        // Predicated region
        $region172: #{tpu_custom_call.1} parent=158 // pred_check
          %p1086 = pneg %p1085
        $region173: #{tpu_custom_call.1} parent=158 // pred_check_branch
          %1088 = sbr.rel (%p1086) target = $region175
        $region174: #{tpu_custom_call.1} parent=158 // pred_region
          %vm1089 = vcmask 7168
          %1090 = vst.msk [vmem:[#allocation2] sm:$0xff] %vm1089, -inf
          %1091 = vst.msk [vmem:[#allocation2 + $0x8] sm:$0xff] %vm1089, -inf
          %1092 = vst.msk [vmem:[#allocation2 + $0x10] sm:$0xff] %vm1089, -inf
          %1093 = vst.msk [vmem:[#allocation2 + $0x18] sm:$0xff] %vm1089, -inf
          %1094 = vst.msk [vmem:[#allocation2 + $0x20] sm:$0xff] %vm1089, -inf
          %1095 = vst.msk [vmem:[#allocation2 + $0x28] sm:$0xff] %vm1089, -inf
          %1096 = vst.msk [vmem:[#allocation2 + $0x30] sm:$0xff] %vm1089, -inf
          %1097 = vst.msk [vmem:[#allocation2 + $0x38] sm:$0xff] %vm1089, -inf
          %1098 = vst.msk [vmem:[#allocation2 + $0x40] sm:$0xff] %vm1089, -inf
          %1099 = vst.msk [vmem:[#allocation2 + $0x48] sm:$0xff] %vm1089, -inf
          %1100 = vst.msk [vmem:[#allocation2 + $0x50] sm:$0xff] %vm1089, -inf
          %1101 = vst.msk [vmem:[#allocation2 + $0x58] sm:$0xff] %vm1089, -inf
          %1102 = vst.msk [vmem:[#allocation2 + $0x60] sm:$0xff] %vm1089, -inf
          %1103 = vst.msk [vmem:[#allocation2 + $0x68] sm:$0xff] %vm1089, -inf
          %1104 = vst.msk [vmem:[#allocation2 + $0x70] sm:$0xff] %vm1089, -inf
          %1105 = vst.msk [vmem:[#allocation2 + $0x78] sm:$0xff] %vm1089, -inf
          %1106 = vst.msk [vmem:[#allocation2 + $0x80] sm:$0xff] %vm1089, -inf
          %1107 = vst.msk [vmem:[#allocation2 + $0x88] sm:$0xff] %vm1089, -inf
          %1108 = vst.msk [vmem:[#allocation2 + $0x90] sm:$0xff] %vm1089, -inf
          %1109 = vst.msk [vmem:[#allocation2 + $0x98] sm:$0xff] %vm1089, -inf
          %1110 = vst.msk [vmem:[#allocation2 + $0xa0] sm:$0xff] %vm1089, -inf
          %1111 = vst.msk [vmem:[#allocation2 + $0xa8] sm:$0xff] %vm1089, -inf
          %1112 = vst.msk [vmem:[#allocation2 + $0xb0] sm:$0xff] %vm1089, -inf
          %1113 = vst.msk [vmem:[#allocation2 + $0xb8] sm:$0xff] %vm1089, -inf
          %1114 = vst.msk [vmem:[#allocation2 + $0xc0] sm:$0xff] %vm1089, -inf
          %1115 = vst.msk [vmem:[#allocation2 + $0xc8] sm:$0xff] %vm1089, -inf
          %1116 = vst.msk [vmem:[#allocation2 + $0xd0] sm:$0xff] %vm1089, -inf
          %1117 = vst.msk [vmem:[#allocation2 + $0xd8] sm:$0xff] %vm1089, -inf
          %1118 = vst.msk [vmem:[#allocation2 + $0xe0] sm:$0xff] %vm1089, -inf
          %1119 = vst.msk [vmem:[#allocation2 + $0xe8] sm:$0xff] %vm1089, -inf
          %1120 = vst.msk [vmem:[#allocation2 + $0xf0] sm:$0xff] %vm1089, -inf
          %1121 = vst.msk [vmem:[#allocation2 + $0xf8] sm:$0xff] %vm1089, -inf
          %1122 = vst.msk [vmem:[#allocation2 + $0x100] sm:$0xff] %vm1089, -inf
          %1123 = vst.msk [vmem:[#allocation2 + $0x108] sm:$0xff] %vm1089, -inf
          %1124 = vst.msk [vmem:[#allocation2 + $0x110] sm:$0xff] %vm1089, -inf
          %1125 = vst.msk [vmem:[#allocation2 + $0x118] sm:$0xff] %vm1089, -inf
          %1126 = vst.msk [vmem:[#allocation2 + $0x120] sm:$0xff] %vm1089, -inf
          %1127 = vst.msk [vmem:[#allocation2 + $0x128] sm:$0xff] %vm1089, -inf
          %1128 = vst.msk [vmem:[#allocation2 + $0x130] sm:$0xff] %vm1089, -inf
          %1129 = vst.msk [vmem:[#allocation2 + $0x138] sm:$0xff] %vm1089, -inf
          %1130 = vst.msk [vmem:[#allocation2 + $0x140] sm:$0xff] %vm1089, -inf
          %1131 = vst.msk [vmem:[#allocation2 + $0x148] sm:$0xff] %vm1089, -inf
          %1132 = vst.msk [vmem:[#allocation2 + $0x150] sm:$0xff] %vm1089, -inf
          %1133 = vst.msk [vmem:[#allocation2 + $0x158] sm:$0xff] %vm1089, -inf
          %1134 = vst.msk [vmem:[#allocation2 + $0x160] sm:$0xff] %vm1089, -inf
          %1135 = vst.msk [vmem:[#allocation2 + $0x168] sm:$0xff] %vm1089, -inf
          %1136 = vst.msk [vmem:[#allocation2 + $0x170] sm:$0xff] %vm1089, -inf
          %1137 = vst.msk [vmem:[#allocation2 + $0x178] sm:$0xff] %vm1089, -inf
          %1138 = vst.msk [vmem:[#allocation2 + $0x180] sm:$0xff] %vm1089, -inf
          %1139 = vst.msk [vmem:[#allocation2 + $0x188] sm:$0xff] %vm1089, -inf
          %1140 = vst.msk [vmem:[#allocation2 + $0x190] sm:$0xff] %vm1089, -inf
          %1141 = vst.msk [vmem:[#allocation2 + $0x198] sm:$0xff] %vm1089, -inf
          %1142 = vst.msk [vmem:[#allocation2 + $0x1a0] sm:$0xff] %vm1089, -inf
          %1143 = vst.msk [vmem:[#allocation2 + $0x1a8] sm:$0xff] %vm1089, -inf
          %1144 = vst.msk [vmem:[#allocation2 + $0x1b0] sm:$0xff] %vm1089, -inf
          %1145 = vst.msk [vmem:[#allocation2 + $0x1b8] sm:$0xff] %vm1089, -inf
          %1146 = vst.msk [vmem:[#allocation2 + $0x1c0] sm:$0xff] %vm1089, -inf
          %1147 = vst.msk [vmem:[#allocation2 + $0x1c8] sm:$0xff] %vm1089, -inf
          %1148 = vst.msk [vmem:[#allocation2 + $0x1d0] sm:$0xff] %vm1089, -inf
          %1149 = vst.msk [vmem:[#allocation2 + $0x1d8] sm:$0xff] %vm1089, -inf
          %1150 = vst.msk [vmem:[#allocation2 + $0x1e0] sm:$0xff] %vm1089, -inf
          %1151 = vst.msk [vmem:[#allocation2 + $0x1e8] sm:$0xff] %vm1089, -inf
          %1152 = vst.msk [vmem:[#allocation2 + $0x1f0] sm:$0xff] %vm1089, -inf
          %1153 = vst.msk [vmem:[#allocation2 + $0x1f8] sm:$0xff] %vm1089, -inf
          %1154 = vst.msk [vmem:[#allocation3] sm:$0xff] %vm1089, 0.0
          %1155 = vst.msk [vmem:[#allocation3 + $0x8] sm:$0xff] %vm1089, 0.0
          %1156 = vst.msk [vmem:[#allocation3 + $0x10] sm:$0xff] %vm1089, 0.0
          %1157 = vst.msk [vmem:[#allocation3 + $0x18] sm:$0xff] %vm1089, 0.0
          %1158 = vst.msk [vmem:[#allocation3 + $0x20] sm:$0xff] %vm1089, 0.0
          %1159 = vst.msk [vmem:[#allocation3 + $0x28] sm:$0xff] %vm1089, 0.0
          %1160 = vst.msk [vmem:[#allocation3 + $0x30] sm:$0xff] %vm1089, 0.0
          %1161 = vst.msk [vmem:[#allocation3 + $0x38] sm:$0xff] %vm1089, 0.0
          %1162 = vst.msk [vmem:[#allocation3 + $0x40] sm:$0xff] %vm1089, 0.0
          %1163 = vst.msk [vmem:[#allocation3 + $0x48] sm:$0xff] %vm1089, 0.0
          %1164 = vst.msk [vmem:[#allocation3 + $0x50] sm:$0xff] %vm1089, 0.0
          %1165 = vst.msk [vmem:[#allocation3 + $0x58] sm:$0xff] %vm1089, 0.0
          %1166 = vst.msk [vmem:[#allocation3 + $0x60] sm:$0xff] %vm1089, 0.0
          %1167 = vst.msk [vmem:[#allocation3 + $0x68] sm:$0xff] %vm1089, 0.0
          %1168 = vst.msk [vmem:[#allocation3 + $0x70] sm:$0xff] %vm1089, 0.0
          %1169 = vst.msk [vmem:[#allocation3 + $0x78] sm:$0xff] %vm1089, 0.0
          %1170 = vst.msk [vmem:[#allocation3 + $0x80] sm:$0xff] %vm1089, 0.0
          %1171 = vst.msk [vmem:[#allocation3 + $0x88] sm:$0xff] %vm1089, 0.0
          %1172 = vst.msk [vmem:[#allocation3 + $0x90] sm:$0xff] %vm1089, 0.0
          %1173 = vst.msk [vmem:[#allocation3 + $0x98] sm:$0xff] %vm1089, 0.0
          %1174 = vst.msk [vmem:[#allocation3 + $0xa0] sm:$0xff] %vm1089, 0.0
          %1175 = vst.msk [vmem:[#allocation3 + $0xa8] sm:$0xff] %vm1089, 0.0
          %1176 = vst.msk [vmem:[#allocation3 + $0xb0] sm:$0xff] %vm1089, 0.0
          %1177 = vst.msk [vmem:[#allocation3 + $0xb8] sm:$0xff] %vm1089, 0.0
          %1178 = vst.msk [vmem:[#allocation3 + $0xc0] sm:$0xff] %vm1089, 0.0
          %1179 = vst.msk [vmem:[#allocation3 + $0xc8] sm:$0xff] %vm1089, 0.0
          %1180 = vst.msk [vmem:[#allocation3 + $0xd0] sm:$0xff] %vm1089, 0.0
          %1181 = vst.msk [vmem:[#allocation3 + $0xd8] sm:$0xff] %vm1089, 0.0
          %1182 = vst.msk [vmem:[#allocation3 + $0xe0] sm:$0xff] %vm1089, 0.0
          %1183 = vst.msk [vmem:[#allocation3 + $0xe8] sm:$0xff] %vm1089, 0.0
          %1184 = vst.msk [vmem:[#allocation3 + $0xf0] sm:$0xff] %vm1089, 0.0
          %1185 = vst.msk [vmem:[#allocation3 + $0xf8] sm:$0xff] %vm1089, 0.0
          %1186 = vst.msk [vmem:[#allocation3 + $0x100] sm:$0xff] %vm1089, 0.0
          %1187 = vst.msk [vmem:[#allocation3 + $0x108] sm:$0xff] %vm1089, 0.0
          %1188 = vst.msk [vmem:[#allocation3 + $0x110] sm:$0xff] %vm1089, 0.0
          %1189 = vst.msk [vmem:[#allocation3 + $0x118] sm:$0xff] %vm1089, 0.0
          %1190 = vst.msk [vmem:[#allocation3 + $0x120] sm:$0xff] %vm1089, 0.0
          %1191 = vst.msk [vmem:[#allocation3 + $0x128] sm:$0xff] %vm1089, 0.0
          %1192 = vst.msk [vmem:[#allocation3 + $0x130] sm:$0xff] %vm1089, 0.0
          %1193 = vst.msk [vmem:[#allocation3 + $0x138] sm:$0xff] %vm1089, 0.0
          %1194 = vst.msk [vmem:[#allocation3 + $0x140] sm:$0xff] %vm1089, 0.0
          %1195 = vst.msk [vmem:[#allocation3 + $0x148] sm:$0xff] %vm1089, 0.0
          %1196 = vst.msk [vmem:[#allocation3 + $0x150] sm:$0xff] %vm1089, 0.0
          %1197 = vst.msk [vmem:[#allocation3 + $0x158] sm:$0xff] %vm1089, 0.0
          %1198 = vst.msk [vmem:[#allocation3 + $0x160] sm:$0xff] %vm1089, 0.0
          %1199 = vst.msk [vmem:[#allocation3 + $0x168] sm:$0xff] %vm1089, 0.0
          %1200 = vst.msk [vmem:[#allocation3 + $0x170] sm:$0xff] %vm1089, 0.0
          %1201 = vst.msk [vmem:[#allocation3 + $0x178] sm:$0xff] %vm1089, 0.0
          %1202 = vst.msk [vmem:[#allocation3 + $0x180] sm:$0xff] %vm1089, 0.0
          %1203 = vst.msk [vmem:[#allocation3 + $0x188] sm:$0xff] %vm1089, 0.0
          %1204 = vst.msk [vmem:[#allocation3 + $0x190] sm:$0xff] %vm1089, 0.0
          %1205 = vst.msk [vmem:[#allocation3 + $0x198] sm:$0xff] %vm1089, 0.0
          %1206 = vst.msk [vmem:[#allocation3 + $0x1a0] sm:$0xff] %vm1089, 0.0
          %1207 = vst.msk [vmem:[#allocation3 + $0x1a8] sm:$0xff] %vm1089, 0.0
          %1208 = vst.msk [vmem:[#allocation3 + $0x1b0] sm:$0xff] %vm1089, 0.0
          %1209 = vst.msk [vmem:[#allocation3 + $0x1b8] sm:$0xff] %vm1089, 0.0
          %1210 = vst.msk [vmem:[#allocation3 + $0x1c0] sm:$0xff] %vm1089, 0.0
          %1211 = vst.msk [vmem:[#allocation3 + $0x1c8] sm:$0xff] %vm1089, 0.0
          %1212 = vst.msk [vmem:[#allocation3 + $0x1d0] sm:$0xff] %vm1089, 0.0
          %1213 = vst.msk [vmem:[#allocation3 + $0x1d8] sm:$0xff] %vm1089, 0.0
          %1214 = vst.msk [vmem:[#allocation3 + $0x1e0] sm:$0xff] %vm1089, 0.0
          %1215 = vst.msk [vmem:[#allocation3 + $0x1e8] sm:$0xff] %vm1089, 0.0
          %1216 = vst.msk [vmem:[#allocation3 + $0x1f0] sm:$0xff] %vm1089, 0.0
          %1217 = vst.msk [vmem:[#allocation3 + $0x1f8] sm:$0xff] %vm1089, 0.0
          %vm1218 = vcmask 261120
          %1219 = vst.msk [vmem:[#allocation4] sm:$0xff] %vm1218, 0.0
          %1220 = vst.msk [vmem:[#allocation4 + $0x8] sm:$0xff] %vm1218, 0.0
          %1221 = vst.msk [vmem:[#allocation4 + $0x10] sm:$0xff] %vm1218, 0.0
          %1222 = vst.msk [vmem:[#allocation4 + $0x18] sm:$0xff] %vm1218, 0.0
          %1223 = vst.msk [vmem:[#allocation4 + $0x20] sm:$0xff] %vm1218, 0.0
          %1224 = vst.msk [vmem:[#allocation4 + $0x28] sm:$0xff] %vm1218, 0.0
          %1225 = vst.msk [vmem:[#allocation4 + $0x30] sm:$0xff] %vm1218, 0.0
          %1226 = vst.msk [vmem:[#allocation4 + $0x38] sm:$0xff] %vm1218, 0.0
          %1227 = vst.msk [vmem:[#allocation4 + $0x40] sm:$0xff] %vm1218, 0.0
          %1228 = vst.msk [vmem:[#allocation4 + $0x48] sm:$0xff] %vm1218, 0.0
          %1229 = vst.msk [vmem:[#allocation4 + $0x50] sm:$0xff] %vm1218, 0.0
          %1230 = vst.msk [vmem:[#allocation4 + $0x58] sm:$0xff] %vm1218, 0.0
          %1231 = vst.msk [vmem:[#allocation4 + $0x60] sm:$0xff] %vm1218, 0.0
          %1232 = vst.msk [vmem:[#allocation4 + $0x68] sm:$0xff] %vm1218, 0.0
          %1233 = vst.msk [vmem:[#allocation4 + $0x70] sm:$0xff] %vm1218, 0.0
          %1234 = vst.msk [vmem:[#allocation4 + $0x78] sm:$0xff] %vm1218, 0.0
          %1235 = vst.msk [vmem:[#allocation4 + $0x80] sm:$0xff] %vm1218, 0.0
          %1236 = vst.msk [vmem:[#allocation4 + $0x88] sm:$0xff] %vm1218, 0.0
          %1237 = vst.msk [vmem:[#allocation4 + $0x90] sm:$0xff] %vm1218, 0.0
          %1238 = vst.msk [vmem:[#allocation4 + $0x98] sm:$0xff] %vm1218, 0.0
          %1239 = vst.msk [vmem:[#allocation4 + $0xa0] sm:$0xff] %vm1218, 0.0
          %1240 = vst.msk [vmem:[#allocation4 + $0xa8] sm:$0xff] %vm1218, 0.0
          %1241 = vst.msk [vmem:[#allocation4 + $0xb0] sm:$0xff] %vm1218, 0.0
          %1242 = vst.msk [vmem:[#allocation4 + $0xb8] sm:$0xff] %vm1218, 0.0
          %1243 = vst.msk [vmem:[#allocation4 + $0xc0] sm:$0xff] %vm1218, 0.0
          %1244 = vst.msk [vmem:[#allocation4 + $0xc8] sm:$0xff] %vm1218, 0.0
          %1245 = vst.msk [vmem:[#allocation4 + $0xd0] sm:$0xff] %vm1218, 0.0
          %1246 = vst.msk [vmem:[#allocation4 + $0xd8] sm:$0xff] %vm1218, 0.0
          %1247 = vst.msk [vmem:[#allocation4 + $0xe0] sm:$0xff] %vm1218, 0.0
          %1248 = vst.msk [vmem:[#allocation4 + $0xe8] sm:$0xff] %vm1218, 0.0
          %1249 = vst.msk [vmem:[#allocation4 + $0xf0] sm:$0xff] %vm1218, 0.0
          %1250 = vst.msk [vmem:[#allocation4 + $0xf8] sm:$0xff] %vm1218, 0.0
          %1251 = vst.msk [vmem:[#allocation4 + $0x100] sm:$0xff] %vm1218, 0.0
          %1252 = vst.msk [vmem:[#allocation4 + $0x108] sm:$0xff] %vm1218, 0.0
          %1253 = vst.msk [vmem:[#allocation4 + $0x110] sm:$0xff] %vm1218, 0.0
          %1254 = vst.msk [vmem:[#allocation4 + $0x118] sm:$0xff] %vm1218, 0.0
          %1255 = vst.msk [vmem:[#allocation4 + $0x120] sm:$0xff] %vm1218, 0.0
          %1256 = vst.msk [vmem:[#allocation4 + $0x128] sm:$0xff] %vm1218, 0.0
          %1257 = vst.msk [vmem:[#allocation4 + $0x130] sm:$0xff] %vm1218, 0.0
          %1258 = vst.msk [vmem:[#allocation4 + $0x138] sm:$0xff] %vm1218, 0.0
          %1259 = vst.msk [vmem:[#allocation4 + $0x140] sm:$0xff] %vm1218, 0.0
          %1260 = vst.msk [vmem:[#allocation4 + $0x148] sm:$0xff] %vm1218, 0.0
          %1261 = vst.msk [vmem:[#allocation4 + $0x150] sm:$0xff] %vm1218, 0.0
          %1262 = vst.msk [vmem:[#allocation4 + $0x158] sm:$0xff] %vm1218, 0.0
          %1263 = vst.msk [vmem:[#allocation4 + $0x160] sm:$0xff] %vm1218, 0.0
          %1264 = vst.msk [vmem:[#allocation4 + $0x168] sm:$0xff] %vm1218, 0.0
          %1265 = vst.msk [vmem:[#allocation4 + $0x170] sm:$0xff] %vm1218, 0.0
          %1266 = vst.msk [vmem:[#allocation4 + $0x178] sm:$0xff] %vm1218, 0.0
          %1267 = vst.msk [vmem:[#allocation4 + $0x180] sm:$0xff] %vm1218, 0.0
          %1268 = vst.msk [vmem:[#allocation4 + $0x188] sm:$0xff] %vm1218, 0.0
          %1269 = vst.msk [vmem:[#allocation4 + $0x190] sm:$0xff] %vm1218, 0.0
          %1270 = vst.msk [vmem:[#allocation4 + $0x198] sm:$0xff] %vm1218, 0.0
          %1271 = vst.msk [vmem:[#allocation4 + $0x1a0] sm:$0xff] %vm1218, 0.0
          %1272 = vst.msk [vmem:[#allocation4 + $0x1a8] sm:$0xff] %vm1218, 0.0
          %1273 = vst.msk [vmem:[#allocation4 + $0x1b0] sm:$0xff] %vm1218, 0.0
          %1274 = vst.msk [vmem:[#allocation4 + $0x1b8] sm:$0xff] %vm1218, 0.0
          %1275 = vst.msk [vmem:[#allocation4 + $0x1c0] sm:$0xff] %vm1218, 0.0
          %1276 = vst.msk [vmem:[#allocation4 + $0x1c8] sm:$0xff] %vm1218, 0.0
          %1277 = vst.msk [vmem:[#allocation4 + $0x1d0] sm:$0xff] %vm1218, 0.0
          %1278 = vst.msk [vmem:[#allocation4 + $0x1d8] sm:$0xff] %vm1218, 0.0
          %1279 = vst.msk [vmem:[#allocation4 + $0x1e0] sm:$0xff] %vm1218, 0.0
          %1280 = vst.msk [vmem:[#allocation4 + $0x1e8] sm:$0xff] %vm1218, 0.0
          %1281 = vst.msk [vmem:[#allocation4 + $0x1f0] sm:$0xff] %vm1218, 0.0
          %1282 = vst.msk [vmem:[#allocation4 + $0x1f8] sm:$0xff] %vm1218, 0.0
        $region175: #{tpu_custom_call.1} parent=158 // pred_fallthru
          _
        %s1283 = smul.u32 %s28, 128
        %v1284 = vlaneseq
        %v1285 = vand.u32 %v1284, 127
        %v1286 = vstv %s1283
        %v1287 = vadd.s32 %v1286, %v1285
        %vm1288 = vcmp.lt.s32.totalorder %v1287, 200
        %v1289 = vld [vmem:[%s1011] sm:$0xf]
        %v1290 = vld [vmem:[%s1011 + $0x4] sm:$0xf]
        %v1291 = vld [vmem:[%s1011 + $0x8] sm:$0xf]
        %v1292 = vld [vmem:[%s1011 + $0xc] sm:$0xf]
        %v1293 = vld [vmem:[%s1011 + $0x10] sm:$0xf]
        %v1294 = vld [vmem:[%s1011 + $0x14] sm:$0xf]
        %v1295 = vld [vmem:[%s1011 + $0x18] sm:$0xf]
        %v1296 = vld [vmem:[%s1011 + $0x1c] sm:$0xf]
        %v1297 = vld [vmem:[%s1011 + $0x20] sm:$0xf]
        %v1298 = vld [vmem:[%s1011 + $0x24] sm:$0xf]
        %v1299 = vld [vmem:[%s1011 + $0x28] sm:$0xf]
        %v1300 = vld [vmem:[%s1011 + $0x2c] sm:$0xf]
        %v1301 = vld [vmem:[%s1011 + $0x30] sm:$0xf]
        %v1302 = vld [vmem:[%s1011 + $0x34] sm:$0xf]
        %v1303 = vld [vmem:[%s1011 + $0x38] sm:$0xf]
        %v1304 = vld [vmem:[%s1011 + $0x3c] sm:$0xf]
        %v1305 = vld [vmem:[%s1018] sm:$0xf]
        %v1306 = vld [vmem:[%s1018 + $0x4] sm:$0xf]
        %v1307 = vld [vmem:[%s1018 + $0x8] sm:$0xf]
        %v1308 = vld [vmem:[%s1018 + $0xc] sm:$0xf]
        %v1309 = vld [vmem:[%s1025] sm:$0xf]
        %v1310 = vld [vmem:[%s1025 + $0x4] sm:$0xf]
        %v1311 = vld [vmem:[%s1025 + $0x8] sm:$0xf]
        %v1312 = vld [vmem:[%s1025 + $0xc] sm:$0xf]
        %v1313 = vld [vmem:[%s1025 + $0x10] sm:$0xf]
        %v1314 = vld [vmem:[%s1025 + $0x14] sm:$0xf]
        %v1315 = vld [vmem:[%s1025 + $0x18] sm:$0xf]
        %v1316 = vld [vmem:[%s1025 + $0x1c] sm:$0xf]
        %v1317 = vld [vmem:[%s1025 + $0x20] sm:$0xf]
        %v1318 = vld [vmem:[%s1025 + $0x24] sm:$0xf]
        %v1319 = vld [vmem:[%s1025 + $0x28] sm:$0xf]
        %v1320 = vld [vmem:[%s1025 + $0x2c] sm:$0xf]
        %v1321 = vld [vmem:[%s1025 + $0x30] sm:$0xf]
        %v1322 = vld [vmem:[%s1025 + $0x34] sm:$0xf]
        %v1323 = vld [vmem:[%s1025 + $0x38] sm:$0xf]
        %v1324 = vld [vmem:[%s1025 + $0x3c] sm:$0xf]
        %v1341 = vunpack.c.l.b16 %v1289
        %v1342 = vunpack.c.l.b16 %v1290
        %v1343 = vunpack.c.l.b16 %v1291
        %v1344 = vunpack.c.l.b16 %v1292
        %v1345 = vunpack.c.l.b16 %v1293
        %v1346 = vunpack.c.l.b16 %v1294
        %v1347 = vunpack.c.l.b16 %v1295
        %v1348 = vunpack.c.l.b16 %v1296
        %v1349 = vunpack.c.l.b16 %v1297
        %v1350 = vunpack.c.l.b16 %v1298
        %v1351 = vunpack.c.l.b16 %v1299
        %v1352 = vunpack.c.l.b16 %v1300
        %v1353 = vunpack.c.l.b16 %v1301
        %v1354 = vunpack.c.l.b16 %v1302
        %v1355 = vunpack.c.l.b16 %v1303
        %v1356 = vunpack.c.l.b16 %v1304
        %v1357 = vpack.c.b16 %v1342, %v1341
        %v1358 = vpack.c.b16 %v1344, %v1343
        %v1359 = vpack.c.b16 %v1346, %v1345
        %v1360 = vpack.c.b16 %v1348, %v1347
        %v1361 = vpack.c.b16 %v1350, %v1349
        %v1362 = vpack.c.b16 %v1352, %v1351
        %v1363 = vpack.c.b16 %v1354, %v1353
        %v1364 = vpack.c.b16 %v1356, %v1355
        %v1369 = vunpack.c.l.b16 %v1305
        %v1370 = vunpack.c.l.b16 %v1306
        %v1371 = vunpack.c.l.b16 %v1307
        %v1372 = vunpack.c.l.b16 %v1308
        %v1373 = vpack.c.b16 %v1370, %v1369
        %v1374 = vpack.c.b16 %v1372, %v1371
        %vm1377 = vcmask 261120
        %v1379 = vsel %vm1377, %v1357, 0
        %v1382 = vsel %vm1377, %v1358, 0
        %v1385 = vsel %vm1377, %v1359, 0
        %v1388 = vsel %vm1377, %v1360, 0
        %v1391 = vsel %vm1377, %v1361, 0
        %v1394 = vsel %vm1377, %v1362, 0
        %v1397 = vsel %vm1377, %v1363, 0
        %v1400 = vsel %vm1377, %v1364, 0
        %1402 = vmatpush.bf16.msra.mxu0 0
        %1403 = vmatpush.bf16.msra.mxu0 0
        %1404 = vmatpush.bf16.msra.mxu0 0
        %1405 = vmatpush.bf16.msra.mxu0 0
        %1406 = vmatpush.bf16.msra.mxu0 0
        %1407 = vmatpush.bf16.msra.mxu0 0
        %1408 = vmatpush.bf16.msra.mxu0 %v1374
        %1409 = vmatpush.bf16.msra.mxu0 %v1373
        %1410 = vmatmul.bf16.gmra.mxu0 %v1379
        %v1411 = vpop.f32.mrf.mxu0
        %v1412 = vadd.f32 0.0, %v1411
        %v1413 = vpop.f32.mrf.mxu0
        %v1414 = vadd.f32 0.0, %v1413
        %1415 = vmatmul.bf16.gmra.mxu0 %v1382
        %v1416 = vpop.f32.mrf.mxu0
        %v1417 = vadd.f32 0.0, %v1416
        %v1418 = vpop.f32.mrf.mxu0
        %v1419 = vadd.f32 0.0, %v1418
        %1420 = vmatmul.bf16.gmra.mxu0 %v1385
        %v1421 = vpop.f32.mrf.mxu0
        %v1422 = vadd.f32 0.0, %v1421
        %v1423 = vpop.f32.mrf.mxu0
        %v1424 = vadd.f32 0.0, %v1423
        %1425 = vmatmul.bf16.gmra.mxu0 %v1388
        %v1426 = vpop.f32.mrf.mxu0
        %v1427 = vadd.f32 0.0, %v1426
        %v1428 = vpop.f32.mrf.mxu0
        %v1429 = vadd.f32 0.0, %v1428
        %1430 = vmatmul.bf16.gmra.mxu0 %v1391
        %v1431 = vpop.f32.mrf.mxu0
        %v1432 = vadd.f32 0.0, %v1431
        %v1433 = vpop.f32.mrf.mxu0
        %v1434 = vadd.f32 0.0, %v1433
        %1435 = vmatmul.bf16.gmra.mxu0 %v1394
        %v1436 = vpop.f32.mrf.mxu0
        %v1437 = vadd.f32 0.0, %v1436
        %v1438 = vpop.f32.mrf.mxu0
        %v1439 = vadd.f32 0.0, %v1438
        %1440 = vmatmul.bf16.gmra.mxu0 %v1397
        %v1441 = vpop.f32.mrf.mxu0
        %v1442 = vadd.f32 0.0, %v1441
        %v1443 = vpop.f32.mrf.mxu0
        %v1444 = vadd.f32 0.0, %v1443
        %1445 = vmatmul.bf16.gmra.mxu0 %v1400
        %v1446 = vpop.f32.mrf.mxu0
        %v1447 = vadd.f32 0.0, %v1446
        %v1448 = vpop.f32.mrf.mxu0
        %v1449 = vadd.f32 0.0, %v1448
        %1450 = vdwg.mxu0
        %v1451 = vsel %vm1288, %v1412, -1e+30
        %v1452 = vsel %vm1288, %v1414, -1e+30
        %v1453 = vsel %vm1288, %v1417, -1e+30
        %v1454 = vsel %vm1288, %v1419, -1e+30
        %v1455 = vsel %vm1288, %v1422, -1e+30
        %v1456 = vsel %vm1288, %v1424, -1e+30
        %v1457 = vsel %vm1288, %v1427, -1e+30
        %v1458 = vsel %vm1288, %v1429, -1e+30
        %v1459 = vsel %vm1288, %v1432, -1e+30
        %v1460 = vsel %vm1288, %v1434, -1e+30
        %v1461 = vsel %vm1288, %v1437, -1e+30
        %v1462 = vsel %vm1288, %v1439, -1e+30
        %v1463 = vsel %vm1288, %v1442, -1e+30
        %v1464 = vsel %vm1288, %v1444, -1e+30
        %v1465 = vsel %vm1288, %v1447, -1e+30
        %v1466 = vsel %vm1288, %v1449, -1e+30
        %v1467 = vld [vmem:[#allocation2] sm:$0xff]
        %v1468 = vld [vmem:[#allocation2 + $0x8] sm:$0xff]
        %v1469 = vld [vmem:[#allocation2 + $0x10] sm:$0xff]
        %v1470 = vld [vmem:[#allocation2 + $0x18] sm:$0xff]
        %v1471 = vld [vmem:[#allocation2 + $0x20] sm:$0xff]
        %v1472 = vld [vmem:[#allocation2 + $0x28] sm:$0xff]
        %v1473 = vld [vmem:[#allocation2 + $0x30] sm:$0xff]
        %v1474 = vld [vmem:[#allocation2 + $0x38] sm:$0xff]
        %v1475 = vld [vmem:[#allocation2 + $0x40] sm:$0xff]
        %v1476 = vld [vmem:[#allocation2 + $0x48] sm:$0xff]
        %v1477 = vld [vmem:[#allocation2 + $0x50] sm:$0xff]
        %v1478 = vld [vmem:[#allocation2 + $0x58] sm:$0xff]
        %v1479 = vld [vmem:[#allocation2 + $0x60] sm:$0xff]
        %v1480 = vld [vmem:[#allocation2 + $0x68] sm:$0xff]
        %v1481 = vld [vmem:[#allocation2 + $0x70] sm:$0xff]
        %v1482 = vld [vmem:[#allocation2 + $0x78] sm:$0xff]
        %1483 = vmax.xlane.f32.xlu0 %v1451
        %v1484 = vpop.xlane.xlu0 %1483
        %1485 = vmax.xlane.f32.xlu0 %v1452
        %v1486 = vpop.xlane.xlu0 %1485
        %1487 = vmax.xlane.f32.xlu0 %v1453
        %v1488 = vpop.xlane.xlu0 %1487
        %1489 = vmax.xlane.f32.xlu0 %v1454
        %v1490 = vpop.xlane.xlu0 %1489
        %1491 = vmax.xlane.f32.xlu0 %v1455
        %v1492 = vpop.xlane.xlu0 %1491
        %1493 = vmax.xlane.f32.xlu0 %v1456
        %v1494 = vpop.xlane.xlu0 %1493
        %1495 = vmax.xlane.f32.xlu0 %v1457
        %v1496 = vpop.xlane.xlu0 %1495
        %1497 = vmax.xlane.f32.xlu0 %v1458
        %v1498 = vpop.xlane.xlu0 %1497
        %1499 = vmax.xlane.f32.xlu0 %v1459
        %v1500 = vpop.xlane.xlu0 %1499
        %1501 = vmax.xlane.f32.xlu0 %v1460
        %v1502 = vpop.xlane.xlu0 %1501
        %1503 = vmax.xlane.f32.xlu0 %v1461
        %v1504 = vpop.xlane.xlu0 %1503
        %1505 = vmax.xlane.f32.xlu0 %v1462
        %v1506 = vpop.xlane.xlu0 %1505
        %1507 = vmax.xlane.f32.xlu0 %v1463
        %v1508 = vpop.xlane.xlu0 %1507
        %1509 = vmax.xlane.f32.xlu0 %v1464
        %v1510 = vpop.xlane.xlu0 %1509
        %1511 = vmax.xlane.f32.xlu0 %v1465
        %v1512 = vpop.xlane.xlu0 %1511
        %1513 = vmax.xlane.f32.xlu0 %v1466
        %v1514 = vpop.xlane.xlu0 %1513
        %v1515 = vmax.f32 %v1467, %v1484
        %v1516 = vmax.f32 %v1468, %v1486
        %v1517 = vmax.f32 %v1469, %v1488
        %v1518 = vmax.f32 %v1470, %v1490
        %v1519 = vmax.f32 %v1471, %v1492
        %v1520 = vmax.f32 %v1472, %v1494
        %v1521 = vmax.f32 %v1473, %v1496
        %v1522 = vmax.f32 %v1474, %v1498
        %v1523 = vmax.f32 %v1475, %v1500
        %v1524 = vmax.f32 %v1476, %v1502
        %v1525 = vmax.f32 %v1477, %v1504
        %v1526 = vmax.f32 %v1478, %v1506
        %v1527 = vmax.f32 %v1479, %v1508
        %v1528 = vmax.f32 %v1480, %v1510
        %v1529 = vmax.f32 %v1481, %v1512
        %v1530 = vmax.f32 %v1482, %v1514
        %v1531 = vsub.f32 %v1467, %v1515
        %v1532 = vsub.f32 %v1468, %v1516
        %v1533 = vsub.f32 %v1469, %v1517
        %v1534 = vsub.f32 %v1470, %v1518
        %v1535 = vsub.f32 %v1471, %v1519
        %v1536 = vsub.f32 %v1472, %v1520
        %v1537 = vsub.f32 %v1473, %v1521
        %v1538 = vsub.f32 %v1474, %v1522
        %v1539 = vsub.f32 %v1475, %v1523
        %v1540 = vsub.f32 %v1476, %v1524
        %v1541 = vsub.f32 %v1477, %v1525
        %v1542 = vsub.f32 %v1478, %v1526
        %v1543 = vsub.f32 %v1479, %v1527
        %v1544 = vsub.f32 %v1480, %v1528
        %v1545 = vsub.f32 %v1481, %v1529
        %v1546 = vsub.f32 %v1482, %v1530
        %v1547 = vmul.f32 %v1531, 1.442695
        %v1548 = vpow.pop %v1547
        %v1549 = vmul.f32 %v1532, 1.442695
        %v1550 = vpow.pop %v1549
        %v1551 = vmul.f32 %v1533, 1.442695
        %v1552 = vpow.pop %v1551
        %v1553 = vmul.f32 %v1534, 1.442695
        %v1554 = vpow.pop %v1553
        %v1555 = vmul.f32 %v1535, 1.442695
        %v1556 = vpow.pop %v1555
        %v1557 = vmul.f32 %v1536, 1.442695
        %v1558 = vpow.pop %v1557
        %v1559 = vmul.f32 %v1537, 1.442695
        %v1560 = vpow.pop %v1559
        %v1561 = vmul.f32 %v1538, 1.442695
        %v1562 = vpow.pop %v1561
        %v1563 = vmul.f32 %v1539, 1.442695
        %v1564 = vpow.pop %v1563
        %v1565 = vmul.f32 %v1540, 1.442695
        %v1566 = vpow.pop %v1565
        %v1567 = vmul.f32 %v1541, 1.442695
        %v1568 = vpow.pop %v1567
        %v1569 = vmul.f32 %v1542, 1.442695
        %v1570 = vpow.pop %v1569
        %v1571 = vmul.f32 %v1543, 1.442695
        %v1572 = vpow.pop %v1571
        %v1573 = vmul.f32 %v1544, 1.442695
        %v1574 = vpow.pop %v1573
        %v1575 = vmul.f32 %v1545, 1.442695
        %v1576 = vpow.pop %v1575
        %v1577 = vmul.f32 %v1546, 1.442695
        %v1578 = vpow.pop %v1577
        %1580 = vset.pattern.permute.xlu0 0
        %1581 = vperm.xlu0 %1580, %v1515
        %v1582 = vpop.permute.xlu0 %1581
        %1585 = vset.pattern.permute.xlu0 0
        %1586 = vperm.xlu0 %1585, %v1516
        %v1587 = vpop.permute.xlu0 %1586
        %1590 = vset.pattern.permute.xlu0 0
        %1591 = vperm.xlu0 %1590, %v1517
        %v1592 = vpop.permute.xlu0 %1591
        %1595 = vset.pattern.permute.xlu0 0
        %1596 = vperm.xlu0 %1595, %v1518
        %v1597 = vpop.permute.xlu0 %1596
        %1600 = vset.pattern.permute.xlu0 0
        %1601 = vperm.xlu0 %1600, %v1519
        %v1602 = vpop.permute.xlu0 %1601
        %1605 = vset.pattern.permute.xlu0 0
        %1606 = vperm.xlu0 %1605, %v1520
        %v1607 = vpop.permute.xlu0 %1606
        %1610 = vset.pattern.permute.xlu0 0
        %1611 = vperm.xlu0 %1610, %v1521
        %v1612 = vpop.permute.xlu0 %1611
        %1615 = vset.pattern.permute.xlu0 0
        %1616 = vperm.xlu0 %1615, %v1522
        %v1617 = vpop.permute.xlu0 %1616
        %1620 = vset.pattern.permute.xlu0 0
        %1621 = vperm.xlu0 %1620, %v1523
        %v1622 = vpop.permute.xlu0 %1621
        %1625 = vset.pattern.permute.xlu0 0
        %1626 = vperm.xlu0 %1625, %v1524
        %v1627 = vpop.permute.xlu0 %1626
        %1630 = vset.pattern.permute.xlu0 0
        %1631 = vperm.xlu0 %1630, %v1525
        %v1632 = vpop.permute.xlu0 %1631
        %1635 = vset.pattern.permute.xlu0 0
        %1636 = vperm.xlu0 %1635, %v1526
        %v1637 = vpop.permute.xlu0 %1636
        %1640 = vset.pattern.permute.xlu0 0
        %1641 = vperm.xlu0 %1640, %v1527
        %v1642 = vpop.permute.xlu0 %1641
        %1645 = vset.pattern.permute.xlu0 0
        %1646 = vperm.xlu0 %1645, %v1528
        %v1647 = vpop.permute.xlu0 %1646
        %1650 = vset.pattern.permute.xlu0 0
        %1651 = vperm.xlu0 %1650, %v1529
        %v1652 = vpop.permute.xlu0 %1651
        %1655 = vset.pattern.permute.xlu0 0
        %1656 = vperm.xlu0 %1655, %v1530
        %v1657 = vpop.permute.xlu0 %1656
        %v1659 = vsub.f32 %v1451, %v1582
        %v1660 = vsub.f32 %v1452, %v1587
        %v1661 = vsub.f32 %v1453, %v1592
        %v1662 = vsub.f32 %v1454, %v1597
        %v1663 = vsub.f32 %v1455, %v1602
        %v1664 = vsub.f32 %v1456, %v1607
        %v1665 = vsub.f32 %v1457, %v1612
        %v1666 = vsub.f32 %v1458, %v1617
        %v1667 = vsub.f32 %v1459, %v1622
        %v1668 = vsub.f32 %v1460, %v1627
        %v1669 = vsub.f32 %v1461, %v1632
        %v1670 = vsub.f32 %v1462, %v1637
        %v1671 = vsub.f32 %v1463, %v1642
        %v1672 = vsub.f32 %v1464, %v1647
        %v1673 = vsub.f32 %v1465, %v1652
        %v1674 = vsub.f32 %v1466, %v1657
        %v1675 = vmul.f32 %v1659, 1.442695
        %v1676 = vpow.pop %v1675
        %v1677 = vmul.f32 %v1660, 1.442695
        %v1678 = vpow.pop %v1677
        %v1679 = vmul.f32 %v1661, 1.442695
        %v1680 = vpow.pop %v1679
        %v1681 = vmul.f32 %v1662, 1.442695
        %v1682 = vpow.pop %v1681
        %v1683 = vmul.f32 %v1663, 1.442695
        %v1684 = vpow.pop %v1683
        %v1685 = vmul.f32 %v1664, 1.442695
        %v1686 = vpow.pop %v1685
        %v1687 = vmul.f32 %v1665, 1.442695
        %v1688 = vpow.pop %v1687
        %v1689 = vmul.f32 %v1666, 1.442695
        %v1690 = vpow.pop %v1689
        %v1691 = vmul.f32 %v1667, 1.442695
        %v1692 = vpow.pop %v1691
        %v1693 = vmul.f32 %v1668, 1.442695
        %v1694 = vpow.pop %v1693
        %v1695 = vmul.f32 %v1669, 1.442695
        %v1696 = vpow.pop %v1695
        %v1697 = vmul.f32 %v1670, 1.442695
        %v1698 = vpow.pop %v1697
        %v1699 = vmul.f32 %v1671, 1.442695
        %v1700 = vpow.pop %v1699
        %v1701 = vmul.f32 %v1672, 1.442695
        %v1702 = vpow.pop %v1701
        %v1703 = vmul.f32 %v1673, 1.442695
        %v1704 = vpow.pop %v1703
        %v1705 = vmul.f32 %v1674, 1.442695
        %v1706 = vpow.pop %v1705
        %v1707 = vsel %vm1288, %v1676, 0.0
        %v1708 = vsel %vm1288, %v1678, 0.0
        %v1709 = vsel %vm1288, %v1680, 0.0
        %v1710 = vsel %vm1288, %v1682, 0.0
        %v1711 = vsel %vm1288, %v1684, 0.0
        %v1712 = vsel %vm1288, %v1686, 0.0
        %v1713 = vsel %vm1288, %v1688, 0.0
        %v1714 = vsel %vm1288, %v1690, 0.0
        %v1715 = vsel %vm1288, %v1692, 0.0
        %v1716 = vsel %vm1288, %v1694, 0.0
        %v1717 = vsel %vm1288, %v1696, 0.0
        %v1718 = vsel %vm1288, %v1698, 0.0
        %v1719 = vsel %vm1288, %v1700, 0.0
        %v1720 = vsel %vm1288, %v1702, 0.0
        %v1721 = vsel %vm1288, %v1704, 0.0
        %v1722 = vsel %vm1288, %v1706, 0.0
        %v1723 = vld [vmem:[#allocation3] sm:$0xff]
        %v1724 = vld [vmem:[#allocation3 + $0x8] sm:$0xff]
        %v1725 = vld [vmem:[#allocation3 + $0x10] sm:$0xff]
        %v1726 = vld [vmem:[#allocation3 + $0x18] sm:$0xff]
        %v1727 = vld [vmem:[#allocation3 + $0x20] sm:$0xff]
        %v1728 = vld [vmem:[#allocation3 + $0x28] sm:$0xff]
        %v1729 = vld [vmem:[#allocation3 + $0x30] sm:$0xff]
        %v1730 = vld [vmem:[#allocation3 + $0x38] sm:$0xff]
        %v1731 = vld [vmem:[#allocation3 + $0x40] sm:$0xff]
        %v1732 = vld [vmem:[#allocation3 + $0x48] sm:$0xff]
        %v1733 = vld [vmem:[#allocation3 + $0x50] sm:$0xff]
        %v1734 = vld [vmem:[#allocation3 + $0x58] sm:$0xff]
        %v1735 = vld [vmem:[#allocation3 + $0x60] sm:$0xff]
        %v1736 = vld [vmem:[#allocation3 + $0x68] sm:$0xff]
        %v1737 = vld [vmem:[#allocation3 + $0x70] sm:$0xff]
        %v1738 = vld [vmem:[#allocation3 + $0x78] sm:$0xff]
        %v1739 = vmul.f32 %v1548, %v1723
        %v1740 = vmul.f32 %v1550, %v1724
        %v1741 = vmul.f32 %v1552, %v1725
        %v1742 = vmul.f32 %v1554, %v1726
        %v1743 = vmul.f32 %v1556, %v1727
        %v1744 = vmul.f32 %v1558, %v1728
        %v1745 = vmul.f32 %v1560, %v1729
        %v1746 = vmul.f32 %v1562, %v1730
        %v1747 = vmul.f32 %v1564, %v1731
        %v1748 = vmul.f32 %v1566, %v1732
        %v1749 = vmul.f32 %v1568, %v1733
        %v1750 = vmul.f32 %v1570, %v1734
        %v1751 = vmul.f32 %v1572, %v1735
        %v1752 = vmul.f32 %v1574, %v1736
        %v1753 = vmul.f32 %v1576, %v1737
        %v1754 = vmul.f32 %v1578, %v1738
        %1755 = vadd.xlane.f32.xlu0 %v1707
        %v1756 = vpop.xlane.xlu0 %1755
        %1757 = vadd.xlane.f32.xlu0 %v1708
        %v1758 = vpop.xlane.xlu0 %1757
        %1759 = vadd.xlane.f32.xlu0 %v1709
        %v1760 = vpop.xlane.xlu0 %1759
        %1761 = vadd.xlane.f32.xlu0 %v1710
        %v1762 = vpop.xlane.xlu0 %1761
        %1763 = vadd.xlane.f32.xlu0 %v1711
        %v1764 = vpop.xlane.xlu0 %1763
        %1765 = vadd.xlane.f32.xlu0 %v1712
        %v1766 = vpop.xlane.xlu0 %1765
        %1767 = vadd.xlane.f32.xlu0 %v1713
        %v1768 = vpop.xlane.xlu0 %1767
        %1769 = vadd.xlane.f32.xlu0 %v1714
        %v1770 = vpop.xlane.xlu0 %1769
        %1771 = vadd.xlane.f32.xlu0 %v1715
        %v1772 = vpop.xlane.xlu0 %1771
        %1773 = vadd.xlane.f32.xlu0 %v1716
        %v1774 = vpop.xlane.xlu0 %1773
        %1775 = vadd.xlane.f32.xlu0 %v1717
        %v1776 = vpop.xlane.xlu0 %1775
        %1777 = vadd.xlane.f32.xlu0 %v1718
        %v1778 = vpop.xlane.xlu0 %1777
        %1779 = vadd.xlane.f32.xlu0 %v1719
        %v1780 = vpop.xlane.xlu0 %1779
        %1781 = vadd.xlane.f32.xlu0 %v1720
        %v1782 = vpop.xlane.xlu0 %1781
        %1783 = vadd.xlane.f32.xlu0 %v1721
        %v1784 = vpop.xlane.xlu0 %1783
        %1785 = vadd.xlane.f32.xlu0 %v1722
        %v1786 = vpop.xlane.xlu0 %1785
        %v1787 = vadd.f32 %v1739, %v1756
        %v1788 = vadd.f32 %v1740, %v1758
        %v1789 = vadd.f32 %v1741, %v1760
        %v1790 = vadd.f32 %v1742, %v1762
        %v1791 = vadd.f32 %v1743, %v1764
        %v1792 = vadd.f32 %v1744, %v1766
        %v1793 = vadd.f32 %v1745, %v1768
        %v1794 = vadd.f32 %v1746, %v1770
        %v1795 = vadd.f32 %v1747, %v1772
        %v1796 = vadd.f32 %v1748, %v1774
        %v1797 = vadd.f32 %v1749, %v1776
        %v1798 = vadd.f32 %v1750, %v1778
        %v1799 = vadd.f32 %v1751, %v1780
        %v1800 = vadd.f32 %v1752, %v1782
        %v1801 = vadd.f32 %v1753, %v1784
        %v1802 = vadd.f32 %v1754, %v1786
        %vm1803 = vcmask 7168
        %1804 = vst.msk [vmem:[#allocation3] sm:$0xff] %vm1803, %v1787
        %1805 = vst.msk [vmem:[#allocation3 + $0x8] sm:$0xff] %vm1803, %v1788
        %1806 = vst.msk [vmem:[#allocation3 + $0x10] sm:$0xff] %vm1803, %v1789
        %1807 = vst.msk [vmem:[#allocation3 + $0x18] sm:$0xff] %vm1803, %v1790
        %1808 = vst.msk [vmem:[#allocation3 + $0x20] sm:$0xff] %vm1803, %v1791
        %1809 = vst.msk [vmem:[#allocation3 + $0x28] sm:$0xff] %vm1803, %v1792
        %1810 = vst.msk [vmem:[#allocation3 + $0x30] sm:$0xff] %vm1803, %v1793
        %1811 = vst.msk [vmem:[#allocation3 + $0x38] sm:$0xff] %vm1803, %v1794
        %1812 = vst.msk [vmem:[#allocation3 + $0x40] sm:$0xff] %vm1803, %v1795
        %1813 = vst.msk [vmem:[#allocation3 + $0x48] sm:$0xff] %vm1803, %v1796
        %1814 = vst.msk [vmem:[#allocation3 + $0x50] sm:$0xff] %vm1803, %v1797
        %1815 = vst.msk [vmem:[#allocation3 + $0x58] sm:$0xff] %vm1803, %v1798
        %1816 = vst.msk [vmem:[#allocation3 + $0x60] sm:$0xff] %vm1803, %v1799
        %1817 = vst.msk [vmem:[#allocation3 + $0x68] sm:$0xff] %vm1803, %v1800
        %1818 = vst.msk [vmem:[#allocation3 + $0x70] sm:$0xff] %vm1803, %v1801
        %1819 = vst.msk [vmem:[#allocation3 + $0x78] sm:$0xff] %vm1803, %v1802
        %v1820 = vld [vmem:[#allocation4] sm:$0xff]
        %v1821 = vld [vmem:[#allocation4 + $0x8] sm:$0xff]
        %v1822 = vld [vmem:[#allocation4 + $0x10] sm:$0xff]
        %v1823 = vld [vmem:[#allocation4 + $0x18] sm:$0xff]
        %v1824 = vld [vmem:[#allocation4 + $0x20] sm:$0xff]
        %v1825 = vld [vmem:[#allocation4 + $0x28] sm:$0xff]
        %v1826 = vld [vmem:[#allocation4 + $0x30] sm:$0xff]
        %v1827 = vld [vmem:[#allocation4 + $0x38] sm:$0xff]
        %v1828 = vld [vmem:[#allocation4 + $0x40] sm:$0xff]
        %v1829 = vld [vmem:[#allocation4 + $0x48] sm:$0xff]
        %v1830 = vld [vmem:[#allocation4 + $0x50] sm:$0xff]
        %v1831 = vld [vmem:[#allocation4 + $0x58] sm:$0xff]
        %v1832 = vld [vmem:[#allocation4 + $0x60] sm:$0xff]
        %v1833 = vld [vmem:[#allocation4 + $0x68] sm:$0xff]
        %v1834 = vld [vmem:[#allocation4 + $0x70] sm:$0xff]
        %v1835 = vld [vmem:[#allocation4 + $0x78] sm:$0xff]
        %1837 = vset.pattern.permute.xlu0 0
        %1838 = vperm.xlu0 %1837, %v1548
        %v1839 = vpop.permute.xlu0 %1838
        %1842 = vset.pattern.permute.xlu0 0
        %1843 = vperm.xlu0 %1842, %v1550
        %v1844 = vpop.permute.xlu0 %1843
        %1847 = vset.pattern.permute.xlu0 0
        %1848 = vperm.xlu0 %1847, %v1552
        %v1849 = vpop.permute.xlu0 %1848
        %1852 = vset.pattern.permute.xlu0 0
        %1853 = vperm.xlu0 %1852, %v1554
        %v1854 = vpop.permute.xlu0 %1853
        %1857 = vset.pattern.permute.xlu0 0
        %1858 = vperm.xlu0 %1857, %v1556
        %v1859 = vpop.permute.xlu0 %1858
        %1862 = vset.pattern.permute.xlu0 0
        %1863 = vperm.xlu0 %1862, %v1558
        %v1864 = vpop.permute.xlu0 %1863
        %1867 = vset.pattern.permute.xlu0 0
        %1868 = vperm.xlu0 %1867, %v1560
        %v1869 = vpop.permute.xlu0 %1868
        %1872 = vset.pattern.permute.xlu0 0
        %1873 = vperm.xlu0 %1872, %v1562
        %v1874 = vpop.permute.xlu0 %1873
        %1877 = vset.pattern.permute.xlu0 0
        %1878 = vperm.xlu0 %1877, %v1564
        %v1879 = vpop.permute.xlu0 %1878
        %1882 = vset.pattern.permute.xlu0 0
        %1883 = vperm.xlu0 %1882, %v1566
        %v1884 = vpop.permute.xlu0 %1883
        %1887 = vset.pattern.permute.xlu0 0
        %1888 = vperm.xlu0 %1887, %v1568
        %v1889 = vpop.permute.xlu0 %1888
        %1892 = vset.pattern.permute.xlu0 0
        %1893 = vperm.xlu0 %1892, %v1570
        %v1894 = vpop.permute.xlu0 %1893
        %1897 = vset.pattern.permute.xlu0 0
        %1898 = vperm.xlu0 %1897, %v1572
        %v1899 = vpop.permute.xlu0 %1898
        %1902 = vset.pattern.permute.xlu0 0
        %1903 = vperm.xlu0 %1902, %v1574
        %v1904 = vpop.permute.xlu0 %1903
        %1907 = vset.pattern.permute.xlu0 0
        %1908 = vperm.xlu0 %1907, %v1576
        %v1909 = vpop.permute.xlu0 %1908
        %1912 = vset.pattern.permute.xlu0 0
        %1913 = vperm.xlu0 %1912, %v1578
        %v1914 = vpop.permute.xlu0 %1913
        %v1916 = vmul.f32 %v1839, %v1820
        %v1917 = vmul.f32 %v1844, %v1821
        %v1918 = vmul.f32 %v1849, %v1822
        %v1919 = vmul.f32 %v1854, %v1823
        %v1920 = vmul.f32 %v1859, %v1824
        %v1921 = vmul.f32 %v1864, %v1825
        %v1922 = vmul.f32 %v1869, %v1826
        %v1923 = vmul.f32 %v1874, %v1827
        %v1924 = vmul.f32 %v1879, %v1828
        %v1925 = vmul.f32 %v1884, %v1829
        %v1926 = vmul.f32 %v1889, %v1830
        %v1927 = vmul.f32 %v1894, %v1831
        %v1928 = vmul.f32 %v1899, %v1832
        %v1929 = vmul.f32 %v1904, %v1833
        %v1930 = vmul.f32 %v1909, %v1834
        %v1931 = vmul.f32 %v1914, %v1835
        %v1932 = vpack.c.bf16 %v1708, %v1707
        %v1933 = vpack.c.bf16 %v1710, %v1709
        %v1934 = vpack.c.bf16 %v1712, %v1711
        %v1935 = vpack.c.bf16 %v1714, %v1713
        %v1936 = vpack.c.bf16 %v1716, %v1715
        %v1937 = vpack.c.bf16 %v1718, %v1717
        %v1938 = vpack.c.bf16 %v1720, %v1719
        %v1939 = vpack.c.bf16 %v1722, %v1721
        %v1956 = vunpack.c.l.b16 %v1309
        %v1957 = vunpack.c.l.b16 %v1310
        %v1958 = vunpack.c.l.b16 %v1311
        %v1959 = vunpack.c.l.b16 %v1312
        %v1960 = vunpack.c.l.b16 %v1313
        %v1961 = vunpack.c.l.b16 %v1314
        %v1962 = vunpack.c.l.b16 %v1315
        %v1963 = vunpack.c.l.b16 %v1316
        %v1964 = vunpack.c.l.b16 %v1317
        %v1965 = vunpack.c.l.b16 %v1318
        %v1966 = vunpack.c.l.b16 %v1319
        %v1967 = vunpack.c.l.b16 %v1320
        %v1968 = vunpack.c.l.b16 %v1321
        %v1969 = vunpack.c.l.b16 %v1322
        %v1970 = vunpack.c.l.b16 %v1323
        %v1971 = vunpack.c.l.b16 %v1324
        %v1972 = vpack.c.b16 %v1957, %v1956
        %v1973 = vpack.c.b16 %v1959, %v1958
        %v1974 = vpack.c.b16 %v1961, %v1960
        %v1975 = vpack.c.b16 %v1963, %v1962
        %v1976 = vpack.c.b16 %v1965, %v1964
        %v1977 = vpack.c.b16 %v1967, %v1966
        %v1978 = vpack.c.b16 %v1969, %v1968
        %v1979 = vpack.c.b16 %v1971, %v1970
        %1988 = vmatpush.bf16.msra.mxu0 %v1979
        %1989 = vmatpush.bf16.msra.mxu0 %v1978
        %1990 = vmatpush.bf16.msra.mxu0 %v1977
        %1991 = vmatpush.bf16.msra.mxu0 %v1976
        %1992 = vmatpush.bf16.msra.mxu0 %v1975
        %1993 = vmatpush.bf16.msra.mxu0 %v1974
        %1994 = vmatpush.bf16.msra.mxu0 %v1973
        %1995 = vmatpush.bf16.msra.mxu0 %v1972
        %1996 = vmatmul.bf16.gmra.mxu0 %v1932
        %v1997 = vpop.f32.mrf.mxu0
        %v1998 = vadd.f32 0.0, %v1997
        %v1999 = vpop.f32.mrf.mxu0
        %v2000 = vadd.f32 0.0, %v1999
        %2001 = vmatmul.bf16.gmra.mxu0 %v1933
        %v2002 = vpop.f32.mrf.mxu0
        %v2003 = vadd.f32 0.0, %v2002
        %v2004 = vpop.f32.mrf.mxu0
        %v2005 = vadd.f32 0.0, %v2004
        %2006 = vmatmul.bf16.gmra.mxu0 %v1934
        %v2007 = vpop.f32.mrf.mxu0
        %v2008 = vadd.f32 0.0, %v2007
        %v2009 = vpop.f32.mrf.mxu0
        %v2010 = vadd.f32 0.0, %v2009
        %2011 = vmatmul.bf16.gmra.mxu0 %v1935
        %v2012 = vpop.f32.mrf.mxu0
        %v2013 = vadd.f32 0.0, %v2012
        %v2014 = vpop.f32.mrf.mxu0
        %v2015 = vadd.f32 0.0, %v2014
        %2016 = vmatmul.bf16.gmra.mxu0 %v1936
        %v2017 = vpop.f32.mrf.mxu0
        %v2018 = vadd.f32 0.0, %v2017
        %v2019 = vpop.f32.mrf.mxu0
        %v2020 = vadd.f32 0.0, %v2019
        %2021 = vmatmul.bf16.gmra.mxu0 %v1937
        %v2022 = vpop.f32.mrf.mxu0
        %v2023 = vadd.f32 0.0, %v2022
        %v2024 = vpop.f32.mrf.mxu0
        %v2025 = vadd.f32 0.0, %v2024
        %2026 = vmatmul.bf16.gmra.mxu0 %v1938
        %v2027 = vpop.f32.mrf.mxu0
        %v2028 = vadd.f32 0.0, %v2027
        %v2029 = vpop.f32.mrf.mxu0
        %v2030 = vadd.f32 0.0, %v2029
        %2031 = vmatmul.bf16.gmra.mxu0 %v1939
        %v2032 = vpop.f32.mrf.mxu0
        %v2033 = vadd.f32 0.0, %v2032
        %v2034 = vpop.f32.mrf.mxu0
        %v2035 = vadd.f32 0.0, %v2034
        %2036 = vdwg.mxu0
        %v2037 = vadd.f32 %v1916, %v1998
        %v2038 = vadd.f32 %v1917, %v2000
        %v2039 = vadd.f32 %v1918, %v2003
        %v2040 = vadd.f32 %v1919, %v2005
        %v2041 = vadd.f32 %v1920, %v2008
        %v2042 = vadd.f32 %v1921, %v2010
        %v2043 = vadd.f32 %v1922, %v2013
        %v2044 = vadd.f32 %v1923, %v2015
        %v2045 = vadd.f32 %v1924, %v2018
        %v2046 = vadd.f32 %v1925, %v2020
        %v2047 = vadd.f32 %v1926, %v2023
        %v2048 = vadd.f32 %v1927, %v2025
        %v2049 = vadd.f32 %v1928, %v2028
        %v2050 = vadd.f32 %v1929, %v2030
        %v2051 = vadd.f32 %v1930, %v2033
        %v2052 = vadd.f32 %v1931, %v2035
        %2053 = vst.msk [vmem:[#allocation4] sm:$0xff] %vm1377, %v2037
        %2054 = vst.msk [vmem:[#allocation4 + $0x8] sm:$0xff] %vm1377, %v2038
        %2055 = vst.msk [vmem:[#allocation4 + $0x10] sm:$0xff] %vm1377, %v2039
        %2056 = vst.msk [vmem:[#allocation4 + $0x18] sm:$0xff] %vm1377, %v2040
        %2057 = vst.msk [vmem:[#allocation4 + $0x20] sm:$0xff] %vm1377, %v2041
        %2058 = vst.msk [vmem:[#allocation4 + $0x28] sm:$0xff] %vm1377, %v2042
        %2059 = vst.msk [vmem:[#allocation4 + $0x30] sm:$0xff] %vm1377, %v2043
        %2060 = vst.msk [vmem:[#allocation4 + $0x38] sm:$0xff] %vm1377, %v2044
        %2061 = vst.msk [vmem:[#allocation4 + $0x40] sm:$0xff] %vm1377, %v2045
        %2062 = vst.msk [vmem:[#allocation4 + $0x48] sm:$0xff] %vm1377, %v2046
        %2063 = vst.msk [vmem:[#allocation4 + $0x50] sm:$0xff] %vm1377, %v2047
        %2064 = vst.msk [vmem:[#allocation4 + $0x58] sm:$0xff] %vm1377, %v2048
        %2065 = vst.msk [vmem:[#allocation4 + $0x60] sm:$0xff] %vm1377, %v2049
        %2066 = vst.msk [vmem:[#allocation4 + $0x68] sm:$0xff] %vm1377, %v2050
        %2067 = vst.msk [vmem:[#allocation4 + $0x70] sm:$0xff] %vm1377, %v2051
        %2068 = vst.msk [vmem:[#allocation4 + $0x78] sm:$0xff] %vm1377, %v2052
        %2069 = vst.msk [vmem:[#allocation2] sm:$0xff] %vm1803, %v1515
        %2070 = vst.msk [vmem:[#allocation2 + $0x8] sm:$0xff] %vm1803, %v1516
        %2071 = vst.msk [vmem:[#allocation2 + $0x10] sm:$0xff] %vm1803, %v1517
        %2072 = vst.msk [vmem:[#allocation2 + $0x18] sm:$0xff] %vm1803, %v1518
        %2073 = vst.msk [vmem:[#allocation2 + $0x20] sm:$0xff] %vm1803, %v1519
        %2074 = vst.msk [vmem:[#allocation2 + $0x28] sm:$0xff] %vm1803, %v1520
        %2075 = vst.msk [vmem:[#allocation2 + $0x30] sm:$0xff] %vm1803, %v1521
        %2076 = vst.msk [vmem:[#allocation2 + $0x38] sm:$0xff] %vm1803, %v1522
        %2077 = vst.msk [vmem:[#allocation2 + $0x40] sm:$0xff] %vm1803, %v1523
        %2078 = vst.msk [vmem:[#allocation2 + $0x48] sm:$0xff] %vm1803, %v1524
        %2079 = vst.msk [vmem:[#allocation2 + $0x50] sm:$0xff] %vm1803, %v1525
        %2080 = vst.msk [vmem:[#allocation2 + $0x58] sm:$0xff] %vm1803, %v1526
        %2081 = vst.msk [vmem:[#allocation2 + $0x60] sm:$0xff] %vm1803, %v1527
        %2082 = vst.msk [vmem:[#allocation2 + $0x68] sm:$0xff] %vm1803, %v1528
        %2083 = vst.msk [vmem:[#allocation2 + $0x70] sm:$0xff] %vm1803, %v1529
        %2084 = vst.msk [vmem:[#allocation2 + $0x78] sm:$0xff] %vm1803, %v1530
        %s2085 = scalar_lea.vmem %s1011, 64 [#allocation5]
        %v2086 = vld [vmem:[%s2085] sm:$0xf]
        %v2087 = vld [vmem:[%s2085 + $0x4] sm:$0xf]
        %v2088 = vld [vmem:[%s2085 + $0x8] sm:$0xf]
        %v2089 = vld [vmem:[%s2085 + $0xc] sm:$0xf]
        %v2090 = vld [vmem:[%s2085 + $0x10] sm:$0xf]
        %v2091 = vld [vmem:[%s2085 + $0x14] sm:$0xf]
        %v2092 = vld [vmem:[%s2085 + $0x18] sm:$0xf]
        %v2093 = vld [vmem:[%s2085 + $0x1c] sm:$0xf]
        %v2094 = vld [vmem:[%s2085 + $0x20] sm:$0xf]
        %v2095 = vld [vmem:[%s2085 + $0x24] sm:$0xf]
        %v2096 = vld [vmem:[%s2085 + $0x28] sm:$0xf]
        %v2097 = vld [vmem:[%s2085 + $0x2c] sm:$0xf]
        %v2098 = vld [vmem:[%s2085 + $0x30] sm:$0xf]
        %v2099 = vld [vmem:[%s2085 + $0x34] sm:$0xf]
        %v2100 = vld [vmem:[%s2085 + $0x38] sm:$0xf]
        %v2101 = vld [vmem:[%s2085 + $0x3c] sm:$0xf]
        %s2102 = scalar_lea.vmem %s1018, 16 [#allocation6]
        %v2103 = vld [vmem:[%s2102] sm:$0xf]
        %v2104 = vld [vmem:[%s2102 + $0x4] sm:$0xf]
        %v2105 = vld [vmem:[%s2102 + $0x8] sm:$0xf]
        %v2106 = vld [vmem:[%s2102 + $0xc] sm:$0xf]
        %s2107 = scalar_lea.vmem %s1025, 64 [#allocation7]
        %v2108 = vld [vmem:[%s2107] sm:$0xf]
        %v2109 = vld [vmem:[%s2107 + $0x4] sm:$0xf]
        %v2110 = vld [vmem:[%s2107 + $0x8] sm:$0xf]
        %v2111 = vld [vmem:[%s2107 + $0xc] sm:$0xf]
        %v2112 = vld [vmem:[%s2107 + $0x10] sm:$0xf]
        %v2113 = vld [vmem:[%s2107 + $0x14] sm:$0xf]
        %v2114 = vld [vmem:[%s2107 + $0x18] sm:$0xf]
        %v2115 = vld [vmem:[%s2107 + $0x1c] sm:$0xf]
        %v2116 = vld [vmem:[%s2107 + $0x20] sm:$0xf]
        %v2117 = vld [vmem:[%s2107 + $0x24] sm:$0xf]
        %v2118 = vld [vmem:[%s2107 + $0x28] sm:$0xf]
        %v2119 = vld [vmem:[%s2107 + $0x2c] sm:$0xf]
        %v2120 = vld [vmem:[%s2107 + $0x30] sm:$0xf]
        %v2121 = vld [vmem:[%s2107 + $0x34] sm:$0xf]
        %v2122 = vld [vmem:[%s2107 + $0x38] sm:$0xf]
        %v2123 = vld [vmem:[%s2107 + $0x3c] sm:$0xf]
        %v2140 = vunpack.c.l.b16 %v2086
        %v2141 = vunpack.c.l.b16 %v2087
        %v2142 = vunpack.c.l.b16 %v2088
        %v2143 = vunpack.c.l.b16 %v2089
        %v2144 = vunpack.c.l.b16 %v2090
        %v2145 = vunpack.c.l.b16 %v2091
        %v2146 = vunpack.c.l.b16 %v2092
        %v2147 = vunpack.c.l.b16 %v2093
        %v2148 = vunpack.c.l.b16 %v2094
        %v2149 = vunpack.c.l.b16 %v2095
        %v2150 = vunpack.c.l.b16 %v2096
        %v2151 = vunpack.c.l.b16 %v2097
        %v2152 = vunpack.c.l.b16 %v2098
        %v2153 = vunpack.c.l.b16 %v2099
        %v2154 = vunpack.c.l.b16 %v2100
        %v2155 = vunpack.c.l.b16 %v2101
        %v2156 = vpack.c.b16 %v2141, %v2140
        %v2157 = vpack.c.b16 %v2143, %v2142
        %v2158 = vpack.c.b16 %v2145, %v2144
        %v2159 = vpack.c.b16 %v2147, %v2146
        %v2160 = vpack.c.b16 %v2149, %v2148
        %v2161 = vpack.c.b16 %v2151, %v2150
        %v2162 = vpack.c.b16 %v2153, %v2152
        %v2163 = vpack.c.b16 %v2155, %v2154
        %v2168 = vunpack.c.l.b16 %v2103
        %v2169 = vunpack.c.l.b16 %v2104
        %v2170 = vunpack.c.l.b16 %v2105
        %v2171 = vunpack.c.l.b16 %v2106
        %v2172 = vpack.c.b16 %v2169, %v2168
        %v2173 = vpack.c.b16 %v2171, %v2170
        %v2177 = vsel %vm1377, %v2156, 0
        %v2180 = vsel %vm1377, %v2157, 0
        %v2183 = vsel %vm1377, %v2158, 0
        %v2186 = vsel %vm1377, %v2159, 0
        %v2189 = vsel %vm1377, %v2160, 0
        %v2192 = vsel %vm1377, %v2161, 0
        %v2195 = vsel %vm1377, %v2162, 0
        %v2198 = vsel %vm1377, %v2163, 0
        %2200 = vmatpush.bf16.msra.mxu0 0
        %2201 = vmatpush.bf16.msra.mxu0 0
        %2202 = vmatpush.bf16.msra.mxu0 0
        %2203 = vmatpush.bf16.msra.mxu0 0
        %2204 = vmatpush.bf16.msra.mxu0 0
        %2205 = vmatpush.bf16.msra.mxu0 0
        %2206 = vmatpush.bf16.msra.mxu0 %v2173
        %2207 = vmatpush.bf16.msra.mxu0 %v2172
        %2208 = vmatmul.bf16.gmra.mxu0 %v2177
        %v2209 = vpop.f32.mrf.mxu0
        %v2210 = vadd.f32 0.0, %v2209
        %v2211 = vpop.f32.mrf.mxu0
        %v2212 = vadd.f32 0.0, %v2211
        %2213 = vmatmul.bf16.gmra.mxu0 %v2180
        %v2214 = vpop.f32.mrf.mxu0
        %v2215 = vadd.f32 0.0, %v2214
        %v2216 = vpop.f32.mrf.mxu0
        %v2217 = vadd.f32 0.0, %v2216
        %2218 = vmatmul.bf16.gmra.mxu0 %v2183
        %v2219 = vpop.f32.mrf.mxu0
        %v2220 = vadd.f32 0.0, %v2219
        %v2221 = vpop.f32.mrf.mxu0
        %v2222 = vadd.f32 0.0, %v2221
        %2223 = vmatmul.bf16.gmra.mxu0 %v2186
        %v2224 = vpop.f32.mrf.mxu0
        %v2225 = vadd.f32 0.0, %v2224
        %v2226 = vpop.f32.mrf.mxu0
        %v2227 = vadd.f32 0.0, %v2226
        %2228 = vmatmul.bf16.gmra.mxu0 %v2189
        %v2229 = vpop.f32.mrf.mxu0
        %v2230 = vadd.f32 0.0, %v2229
        %v2231 = vpop.f32.mrf.mxu0
        %v2232 = vadd.f32 0.0, %v2231
        %2233 = vmatmul.bf16.gmra.mxu0 %v2192
        %v2234 = vpop.f32.mrf.mxu0
        %v2235 = vadd.f32 0.0, %v2234
        %v2236 = vpop.f32.mrf.mxu0
        %v2237 = vadd.f32 0.0, %v2236
        %2238 = vmatmul.bf16.gmra.mxu0 %v2195
        %v2239 = vpop.f32.mrf.mxu0
        %v2240 = vadd.f32 0.0, %v2239
        %v2241 = vpop.f32.mrf.mxu0
        %v2242 = vadd.f32 0.0, %v2241
        %2243 = vmatmul.bf16.gmra.mxu0 %v2198
        %v2244 = vpop.f32.mrf.mxu0
        %v2245 = vadd.f32 0.0, %v2244
        %v2246 = vpop.f32.mrf.mxu0
        %v2247 = vadd.f32 0.0, %v2246
        %2248 = vdwg.mxu0
        %v2249 = vsel %vm1288, %v2210, -1e+30
        %v2250 = vsel %vm1288, %v2212, -1e+30
        %v2251 = vsel %vm1288, %v2215, -1e+30
        %v2252 = vsel %vm1288, %v2217, -1e+30
        %v2253 = vsel %vm1288, %v2220, -1e+30
        %v2254 = vsel %vm1288, %v2222, -1e+30
        %v2255 = vsel %vm1288, %v2225, -1e+30
        %v2256 = vsel %vm1288, %v2227, -1e+30
        %v2257 = vsel %vm1288, %v2230, -1e+30
        %v2258 = vsel %vm1288, %v2232, -1e+30
        %v2259 = vsel %vm1288, %v2235, -1e+30
        %v2260 = vsel %vm1288, %v2237, -1e+30
        %v2261 = vsel %vm1288, %v2240, -1e+30
        %v2262 = vsel %vm1288, %v2242, -1e+30
        %v2263 = vsel %vm1288, %v2245, -1e+30
        %v2264 = vsel %vm1288, %v2247, -1e+30
        %s2265 = scalar_lea.vmem [#allocation2], 128
        %v2266 = vld [vmem:[%s2265] sm:$0xff]
        %v2267 = vld [vmem:[%s2265 + $0x8] sm:$0xff]
        %v2268 = vld [vmem:[%s2265 + $0x10] sm:$0xff]
        %v2269 = vld [vmem:[%s2265 + $0x18] sm:$0xff]
        %v2270 = vld [vmem:[%s2265 + $0x20] sm:$0xff]
        %v2271 = vld [vmem:[%s2265 + $0x28] sm:$0xff]
        %v2272 = vld [vmem:[%s2265 + $0x30] sm:$0xff]
        %v2273 = vld [vmem:[%s2265 + $0x38] sm:$0xff]
        %v2274 = vld [vmem:[%s2265 + $0x40] sm:$0xff]
        %v2275 = vld [vmem:[%s2265 + $0x48] sm:$0xff]
        %v2276 = vld [vmem:[%s2265 + $0x50] sm:$0xff]
        %v2277 = vld [vmem:[%s2265 + $0x58] sm:$0xff]
        %v2278 = vld [vmem:[%s2265 + $0x60] sm:$0xff]
        %v2279 = vld [vmem:[%s2265 + $0x68] sm:$0xff]
        %v2280 = vld [vmem:[%s2265 + $0x70] sm:$0xff]
        %v2281 = vld [vmem:[%s2265 + $0x78] sm:$0xff]
        %2282 = vmax.xlane.f32.xlu0 %v2249
        %v2283 = vpop.xlane.xlu0 %2282
        %2284 = vmax.xlane.f32.xlu0 %v2250
        %v2285 = vpop.xlane.xlu0 %2284
        %2286 = vmax.xlane.f32.xlu0 %v2251
        %v2287 = vpop.xlane.xlu0 %2286
        %2288 = vmax.xlane.f32.xlu0 %v2252
        %v2289 = vpop.xlane.xlu0 %2288
        %2290 = vmax.xlane.f32.xlu0 %v2253
        %v2291 = vpop.xlane.xlu0 %2290
        %2292 = vmax.xlane.f32.xlu0 %v2254
        %v2293 = vpop.xlane.xlu0 %2292
        %2294 = vmax.xlane.f32.xlu0 %v2255
        %v2295 = vpop.xlane.xlu0 %2294
        %2296 = vmax.xlane.f32.xlu0 %v2256
        %v2297 = vpop.xlane.xlu0 %2296
        %2298 = vmax.xlane.f32.xlu0 %v2257
        %v2299 = vpop.xlane.xlu0 %2298
        %2300 = vmax.xlane.f32.xlu0 %v2258
        %v2301 = vpop.xlane.xlu0 %2300
        %2302 = vmax.xlane.f32.xlu0 %v2259
        %v2303 = vpop.xlane.xlu0 %2302
        %2304 = vmax.xlane.f32.xlu0 %v2260
        %v2305 = vpop.xlane.xlu0 %2304
        %2306 = vmax.xlane.f32.xlu0 %v2261
        %v2307 = vpop.xlane.xlu0 %2306
        %2308 = vmax.xlane.f32.xlu0 %v2262
        %v2309 = vpop.xlane.xlu0 %2308
        %2310 = vmax.xlane.f32.xlu0 %v2263
        %v2311 = vpop.xlane.xlu0 %2310
        %2312 = vmax.xlane.f32.xlu0 %v2264
        %v2313 = vpop.xlane.xlu0 %2312
        %v2314 = vmax.f32 %v2266, %v2283
        %v2315 = vmax.f32 %v2267, %v2285
        %v2316 = vmax.f32 %v2268, %v2287
        %v2317 = vmax.f32 %v2269, %v2289
        %v2318 = vmax.f32 %v2270, %v2291
        %v2319 = vmax.f32 %v2271, %v2293
        %v2320 = vmax.f32 %v2272, %v2295
        %v2321 = vmax.f32 %v2273, %v2297
        %v2322 = vmax.f32 %v2274, %v2299
        %v2323 = vmax.f32 %v2275, %v2301
        %v2324 = vmax.f32 %v2276, %v2303
        %v2325 = vmax.f32 %v2277, %v2305
        %v2326 = vmax.f32 %v2278, %v2307
        %v2327 = vmax.f32 %v2279, %v2309
        %v2328 = vmax.f32 %v2280, %v2311
        %v2329 = vmax.f32 %v2281, %v2313
        %v2330 = vsub.f32 %v2266, %v2314
        %v2331 = vsub.f32 %v2267, %v2315
        %v2332 = vsub.f32 %v2268, %v2316
        %v2333 = vsub.f32 %v2269, %v2317
        %v2334 = vsub.f32 %v2270, %v2318
        %v2335 = vsub.f32 %v2271, %v2319
        %v2336 = vsub.f32 %v2272, %v2320
        %v2337 = vsub.f32 %v2273, %v2321
        %v2338 = vsub.f32 %v2274, %v2322
        %v2339 = vsub.f32 %v2275, %v2323
        %v2340 = vsub.f32 %v2276, %v2324
        %v2341 = vsub.f32 %v2277, %v2325
        %v2342 = vsub.f32 %v2278, %v2326
        %v2343 = vsub.f32 %v2279, %v2327
        %v2344 = vsub.f32 %v2280, %v2328
        %v2345 = vsub.f32 %v2281, %v2329
        %v2346 = vmul.f32 %v2330, 1.442695
        %v2347 = vpow.pop %v2346
        %v2348 = vmul.f32 %v2331, 1.442695
        %v2349 = vpow.pop %v2348
        %v2350 = vmul.f32 %v2332, 1.442695
        %v2351 = vpow.pop %v2350
        %v2352 = vmul.f32 %v2333, 1.442695
        %v2353 = vpow.pop %v2352
        %v2354 = vmul.f32 %v2334, 1.442695
        %v2355 = vpow.pop %v2354
        %v2356 = vmul.f32 %v2335, 1.442695
        %v2357 = vpow.pop %v2356
        %v2358 = vmul.f32 %v2336, 1.442695
        %v2359 = vpow.pop %v2358
        %v2360 = vmul.f32 %v2337, 1.442695
        %v2361 = vpow.pop %v2360
        %v2362 = vmul.f32 %v2338, 1.442695
        %v2363 = vpow.pop %v2362
        %v2364 = vmul.f32 %v2339, 1.442695
        %v2365 = vpow.pop %v2364
        %v2366 = vmul.f32 %v2340, 1.442695
        %v2367 = vpow.pop %v2366
        %v2368 = vmul.f32 %v2341, 1.442695
        %v2369 = vpow.pop %v2368
        %v2370 = vmul.f32 %v2342, 1.442695
        %v2371 = vpow.pop %v2370
        %v2372 = vmul.f32 %v2343, 1.442695
        %v2373 = vpow.pop %v2372
        %v2374 = vmul.f32 %v2344, 1.442695
        %v2375 = vpow.pop %v2374
        %v2376 = vmul.f32 %v2345, 1.442695
        %v2377 = vpow.pop %v2376
        %2379 = vset.pattern.permute.xlu0 0
        %2380 = vperm.xlu0 %2379, %v2314
        %v2381 = vpop.permute.xlu0 %2380
        %2384 = vset.pattern.permute.xlu0 0
        %2385 = vperm.xlu0 %2384, %v2315
        %v2386 = vpop.permute.xlu0 %2385
        %2389 = vset.pattern.permute.xlu0 0
        %2390 = vperm.xlu0 %2389, %v2316
        %v2391 = vpop.permute.xlu0 %2390
        %2394 = vset.pattern.permute.xlu0 0
        %2395 = vperm.xlu0 %2394, %v2317
        %v2396 = vpop.permute.xlu0 %2395
        %2399 = vset.pattern.permute.xlu0 0
        %2400 = vperm.xlu0 %2399, %v2318
        %v2401 = vpop.permute.xlu0 %2400
        %2404 = vset.pattern.permute.xlu0 0
        %2405 = vperm.xlu0 %2404, %v2319
        %v2406 = vpop.permute.xlu0 %2405
        %2409 = vset.pattern.permute.xlu0 0
        %2410 = vperm.xlu0 %2409, %v2320
        %v2411 = vpop.permute.xlu0 %2410
        %2414 = vset.pattern.permute.xlu0 0
        %2415 = vperm.xlu0 %2414, %v2321
        %v2416 = vpop.permute.xlu0 %2415
        %2419 = vset.pattern.permute.xlu0 0
        %2420 = vperm.xlu0 %2419, %v2322
        %v2421 = vpop.permute.xlu0 %2420
        %2424 = vset.pattern.permute.xlu0 0
        %2425 = vperm.xlu0 %2424, %v2323
        %v2426 = vpop.permute.xlu0 %2425
        %2429 = vset.pattern.permute.xlu0 0
        %2430 = vperm.xlu0 %2429, %v2324
        %v2431 = vpop.permute.xlu0 %2430
        %2434 = vset.pattern.permute.xlu0 0
        %2435 = vperm.xlu0 %2434, %v2325
        %v2436 = vpop.permute.xlu0 %2435
        %2439 = vset.pattern.permute.xlu0 0
        %2440 = vperm.xlu0 %2439, %v2326
        %v2441 = vpop.permute.xlu0 %2440
        %2444 = vset.pattern.permute.xlu0 0
        %2445 = vperm.xlu0 %2444, %v2327
        %v2446 = vpop.permute.xlu0 %2445
        %2449 = vset.pattern.permute.xlu0 0
        %2450 = vperm.xlu0 %2449, %v2328
        %v2451 = vpop.permute.xlu0 %2450
        %2454 = vset.pattern.permute.xlu0 0
        %2455 = vperm.xlu0 %2454, %v2329
        %v2456 = vpop.permute.xlu0 %2455
        %v2458 = vsub.f32 %v2249, %v2381
        %v2459 = vsub.f32 %v2250, %v2386
        %v2460 = vsub.f32 %v2251, %v2391
        %v2461 = vsub.f32 %v2252, %v2396
        %v2462 = vsub.f32 %v2253, %v2401
        %v2463 = vsub.f32 %v2254, %v2406
        %v2464 = vsub.f32 %v2255, %v2411
        %v2465 = vsub.f32 %v2256, %v2416
        %v2466 = vsub.f32 %v2257, %v2421
        %v2467 = vsub.f32 %v2258, %v2426
        %v2468 = vsub.f32 %v2259, %v2431
        %v2469 = vsub.f32 %v2260, %v2436
        %v2470 = vsub.f32 %v2261, %v2441
        %v2471 = vsub.f32 %v2262, %v2446
        %v2472 = vsub.f32 %v2263, %v2451
        %v2473 = vsub.f32 %v2264, %v2456
        %v2474 = vmul.f32 %v2458, 1.442695
        %v2475 = vpow.pop %v2474
        %v2476 = vmul.f32 %v2459, 1.442695
        %v2477 = vpow.pop %v2476
        %v2478 = vmul.f32 %v2460, 1.442695
        %v2479 = vpow.pop %v2478
        %v2480 = vmul.f32 %v2461, 1.442695
        %v2481 = vpow.pop %v2480
        %v2482 = vmul.f32 %v2462, 1.442695
        %v2483 = vpow.pop %v2482
        %v2484 = vmul.f32 %v2463, 1.442695
        %v2485 = vpow.pop %v2484
        %v2486 = vmul.f32 %v2464, 1.442695
        %v2487 = vpow.pop %v2486
        %v2488 = vmul.f32 %v2465, 1.442695
        %v2489 = vpow.pop %v2488
        %v2490 = vmul.f32 %v2466, 1.442695
        %v2491 = vpow.pop %v2490
        %v2492 = vmul.f32 %v2467, 1.442695
        %v2493 = vpow.pop %v2492
        %v2494 = vmul.f32 %v2468, 1.442695
        %v2495 = vpow.pop %v2494
        %v2496 = vmul.f32 %v2469, 1.442695
        %v2497 = vpow.pop %v2496
        %v2498 = vmul.f32 %v2470, 1.442695
        %v2499 = vpow.pop %v2498
        %v2500 = vmul.f32 %v2471, 1.442695
        %v2501 = vpow.pop %v2500
        %v2502 = vmul.f32 %v2472, 1.442695
        %v2503 = vpow.pop %v2502
        %v2504 = vmul.f32 %v2473, 1.442695
        %v2505 = vpow.pop %v2504
        %v2506 = vsel %vm1288, %v2475, 0.0
        %v2507 = vsel %vm1288, %v2477, 0.0
        %v2508 = vsel %vm1288, %v2479, 0.0
        %v2509 = vsel %vm1288, %v2481, 0.0
        %v2510 = vsel %vm1288, %v2483, 0.0
        %v2511 = vsel %vm1288, %v2485, 0.0
        %v2512 = vsel %vm1288, %v2487, 0.0
        %v2513 = vsel %vm1288, %v2489, 0.0
        %v2514 = vsel %vm1288, %v2491, 0.0
        %v2515 = vsel %vm1288, %v2493, 0.0
        %v2516 = vsel %vm1288, %v2495, 0.0
        %v2517 = vsel %vm1288, %v2497, 0.0
        %v2518 = vsel %vm1288, %v2499, 0.0
        %v2519 = vsel %vm1288, %v2501, 0.0
        %v2520 = vsel %vm1288, %v2503, 0.0
        %v2521 = vsel %vm1288, %v2505, 0.0
        %s2522 = scalar_lea.vmem [#allocation3], 128
        %v2523 = vld [vmem:[%s2522] sm:$0xff]
        %v2524 = vld [vmem:[%s2522 + $0x8] sm:$0xff]
        %v2525 = vld [vmem:[%s2522 + $0x10] sm:$0xff]
        %v2526 = vld [vmem:[%s2522 + $0x18] sm:$0xff]
        %v2527 = vld [vmem:[%s2522 + $0x20] sm:$0xff]
        %v2528 = vld [vmem:[%s2522 + $0x28] sm:$0xff]
        %v2529 = vld [vmem:[%s2522 + $0x30] sm:$0xff]
        %v2530 = vld [vmem:[%s2522 + $0x38] sm:$0xff]
        %v2531 = vld [vmem:[%s2522 + $0x40] sm:$0xff]
        %v2532 = vld [vmem:[%s2522 + $0x48] sm:$0xff]
        %v2533 = vld [vmem:[%s2522 + $0x50] sm:$0xff]
        %v2534 = vld [vmem:[%s2522 + $0x58] sm:$0xff]
        %v2535 = vld [vmem:[%s2522 + $0x60] sm:$0xff]
        %v2536 = vld [vmem:[%s2522 + $0x68] sm:$0xff]
        %v2537 = vld [vmem:[%s2522 + $0x70] sm:$0xff]
        %v2538 = vld [vmem:[%s2522 + $0x78] sm:$0xff]
        %v2539 = vmul.f32 %v2347, %v2523
        %v2540 = vmul.f32 %v2349, %v2524
        %v2541 = vmul.f32 %v2351, %v2525
        %v2542 = vmul.f32 %v2353, %v2526
        %v2543 = vmul.f32 %v2355, %v2527
        %v2544 = vmul.f32 %v2357, %v2528
        %v2545 = vmul.f32 %v2359, %v2529
        %v2546 = vmul.f32 %v2361, %v2530
        %v2547 = vmul.f32 %v2363, %v2531
        %v2548 = vmul.f32 %v2365, %v2532
        %v2549 = vmul.f32 %v2367, %v2533
        %v2550 = vmul.f32 %v2369, %v2534
        %v2551 = vmul.f32 %v2371, %v2535
        %v2552 = vmul.f32 %v2373, %v2536
        %v2553 = vmul.f32 %v2375, %v2537
        %v2554 = vmul.f32 %v2377, %v2538
        %2555 = vadd.xlane.f32.xlu0 %v2506
        %v2556 = vpop.xlane.xlu0 %2555
        %2557 = vadd.xlane.f32.xlu0 %v2507
        %v2558 = vpop.xlane.xlu0 %2557
        %2559 = vadd.xlane.f32.xlu0 %v2508
        %v2560 = vpop.xlane.xlu0 %2559
        %2561 = vadd.xlane.f32.xlu0 %v2509
        %v2562 = vpop.xlane.xlu0 %2561
        %2563 = vadd.xlane.f32.xlu0 %v2510
        %v2564 = vpop.xlane.xlu0 %2563
        %2565 = vadd.xlane.f32.xlu0 %v2511
        %v2566 = vpop.xlane.xlu0 %2565
        %2567 = vadd.xlane.f32.xlu0 %v2512
        %v2568 = vpop.xlane.xlu0 %2567
        %2569 = vadd.xlane.f32.xlu0 %v2513
        %v2570 = vpop.xlane.xlu0 %2569
        %2571 = vadd.xlane.f32.xlu0 %v2514
        %v2572 = vpop.xlane.xlu0 %2571
        %2573 = vadd.xlane.f32.xlu0 %v2515
        %v2574 = vpop.xlane.xlu0 %2573
        %2575 = vadd.xlane.f32.xlu0 %v2516
        %v2576 = vpop.xlane.xlu0 %2575
        %2577 = vadd.xlane.f32.xlu0 %v2517
        %v2578 = vpop.xlane.xlu0 %2577
        %2579 = vadd.xlane.f32.xlu0 %v2518
        %v2580 = vpop.xlane.xlu0 %2579
        %2581 = vadd.xlane.f32.xlu0 %v2519
        %v2582 = vpop.xlane.xlu0 %2581
        %2583 = vadd.xlane.f32.xlu0 %v2520
        %v2584 = vpop.xlane.xlu0 %2583
        %2585 = vadd.xlane.f32.xlu0 %v2521
        %v2586 = vpop.xlane.xlu0 %2585
        %v2587 = vadd.f32 %v2539, %v2556
        %v2588 = vadd.f32 %v2540, %v2558
        %v2589 = vadd.f32 %v2541, %v2560
        %v2590 = vadd.f32 %v2542, %v2562
        %v2591 = vadd.f32 %v2543, %v2564
        %v2592 = vadd.f32 %v2544, %v2566
        %v2593 = vadd.f32 %v2545, %v2568
        %v2594 = vadd.f32 %v2546, %v2570
        %v2595 = vadd.f32 %v2547, %v2572
        %v2596 = vadd.f32 %v2548, %v2574
        %v2597 = vadd.f32 %v2549, %v2576
        %v2598 = vadd.f32 %v2550, %v2578
        %v2599 = vadd.f32 %v2551, %v2580
        %v2600 = vadd.f32 %v2552, %v2582
        %v2601 = vadd.f32 %v2553, %v2584
        %v2602 = vadd.f32 %v2554, %v2586
        %2603 = vst.msk [vmem:[%s2522] sm:$0xff] %vm1803, %v2587
        %2604 = vst.msk [vmem:[%s2522 + $0x8] sm:$0xff] %vm1803, %v2588
        %2605 = vst.msk [vmem:[%s2522 + $0x10] sm:$0xff] %vm1803, %v2589
        %2606 = vst.msk [vmem:[%s2522 + $0x18] sm:$0xff] %vm1803, %v2590
        %2607 = vst.msk [vmem:[%s2522 + $0x20] sm:$0xff] %vm1803, %v2591
        %2608 = vst.msk [vmem:[%s2522 + $0x28] sm:$0xff] %vm1803, %v2592
        %2609 = vst.msk [vmem:[%s2522 + $0x30] sm:$0xff] %vm1803, %v2593
        %2610 = vst.msk [vmem:[%s2522 + $0x38] sm:$0xff] %vm1803, %v2594
        %2611 = vst.msk [vmem:[%s2522 + $0x40] sm:$0xff] %vm1803, %v2595
        %2612 = vst.msk [vmem:[%s2522 + $0x48] sm:$0xff] %vm1803, %v2596
        %2613 = vst.msk [vmem:[%s2522 + $0x50] sm:$0xff] %vm1803, %v2597
        %2614 = vst.msk [vmem:[%s2522 + $0x58] sm:$0xff] %vm1803, %v2598
        %2615 = vst.msk [vmem:[%s2522 + $0x60] sm:$0xff] %vm1803, %v2599
        %2616 = vst.msk [vmem:[%s2522 + $0x68] sm:$0xff] %vm1803, %v2600
        %2617 = vst.msk [vmem:[%s2522 + $0x70] sm:$0xff] %vm1803, %v2601
        %2618 = vst.msk [vmem:[%s2522 + $0x78] sm:$0xff] %vm1803, %v2602
        %s2619 = scalar_lea.vmem [#allocation4], 128
        %v2620 = vld [vmem:[%s2619] sm:$0xff]
        %v2621 = vld [vmem:[%s2619 + $0x8] sm:$0xff]
        %v2622 = vld [vmem:[%s2619 + $0x10] sm:$0xff]
        %v2623 = vld [vmem:[%s2619 + $0x18] sm:$0xff]
        %v2624 = vld [vmem:[%s2619 + $0x20] sm:$0xff]
        %v2625 = vld [vmem:[%s2619 + $0x28] sm:$0xff]
        %v2626 = vld [vmem:[%s2619 + $0x30] sm:$0xff]
        %v2627 = vld [vmem:[%s2619 + $0x38] sm:$0xff]
        %v2628 = vld [vmem:[%s2619 + $0x40] sm:$0xff]
        %v2629 = vld [vmem:[%s2619 + $0x48] sm:$0xff]
        %v2630 = vld [vmem:[%s2619 + $0x50] sm:$0xff]
        %v2631 = vld [vmem:[%s2619 + $0x58] sm:$0xff]
        %v2632 = vld [vmem:[%s2619 + $0x60] sm:$0xff]
        %v2633 = vld [vmem:[%s2619 + $0x68] sm:$0xff]
        %v2634 = vld [vmem:[%s2619 + $0x70] sm:$0xff]
        %v2635 = vld [vmem:[%s2619 + $0x78] sm:$0xff]
        %2637 = vset.pattern.permute.xlu0 0
        %2638 = vperm.xlu0 %2637, %v2347
        %v2639 = vpop.permute.xlu0 %2638
        %2642 = vset.pattern.permute.xlu0 0
        %2643 = vperm.xlu0 %2642, %v2349
        %v2644 = vpop.permute.xlu0 %2643
        %2647 = vset.pattern.permute.xlu0 0
        %2648 = vperm.xlu0 %2647, %v2351
        %v2649 = vpop.permute.xlu0 %2648
        %2652 = vset.pattern.permute.xlu0 0
        %2653 = vperm.xlu0 %2652, %v2353
        %v2654 = vpop.permute.xlu0 %2653
        %2657 = vset.pattern.permute.xlu0 0
        %2658 = vperm.xlu0 %2657, %v2355
        %v2659 = vpop.permute.xlu0 %2658
        %2662 = vset.pattern.permute.xlu0 0
        %2663 = vperm.xlu0 %2662, %v2357
        %v2664 = vpop.permute.xlu0 %2663
        %2667 = vset.pattern.permute.xlu0 0
        %2668 = vperm.xlu0 %2667, %v2359
        %v2669 = vpop.permute.xlu0 %2668
        %2672 = vset.pattern.permute.xlu0 0
        %2673 = vperm.xlu0 %2672, %v2361
        %v2674 = vpop.permute.xlu0 %2673
        %2677 = vset.pattern.permute.xlu0 0
        %2678 = vperm.xlu0 %2677, %v2363
        %v2679 = vpop.permute.xlu0 %2678
        %2682 = vset.pattern.permute.xlu0 0
        %2683 = vperm.xlu0 %2682, %v2365
        %v2684 = vpop.permute.xlu0 %2683
        %2687 = vset.pattern.permute.xlu0 0
        %2688 = vperm.xlu0 %2687, %v2367
        %v2689 = vpop.permute.xlu0 %2688
        %2692 = vset.pattern.permute.xlu0 0
        %2693 = vperm.xlu0 %2692, %v2369
        %v2694 = vpop.permute.xlu0 %2693
        %2697 = vset.pattern.permute.xlu0 0
        %2698 = vperm.xlu0 %2697, %v2371
        %v2699 = vpop.permute.xlu0 %2698
        %2702 = vset.pattern.permute.xlu0 0
        %2703 = vperm.xlu0 %2702, %v2373
        %v2704 = vpop.permute.xlu0 %2703
        %2707 = vset.pattern.permute.xlu0 0
        %2708 = vperm.xlu0 %2707, %v2375
        %v2709 = vpop.permute.xlu0 %2708
        %2712 = vset.pattern.permute.xlu0 0
        %2713 = vperm.xlu0 %2712, %v2377
        %v2714 = vpop.permute.xlu0 %2713
        %v2716 = vmul.f32 %v2639, %v2620
        %v2717 = vmul.f32 %v2644, %v2621
        %v2718 = vmul.f32 %v2649, %v2622
        %v2719 = vmul.f32 %v2654, %v2623
        %v2720 = vmul.f32 %v2659, %v2624
        %v2721 = vmul.f32 %v2664, %v2625
        %v2722 = vmul.f32 %v2669, %v2626
        %v2723 = vmul.f32 %v2674, %v2627
        %v2724 = vmul.f32 %v2679, %v2628
        %v2725 = vmul.f32 %v2684, %v2629
        %v2726 = vmul.f32 %v2689, %v2630
        %v2727 = vmul.f32 %v2694, %v2631
        %v2728 = vmul.f32 %v2699, %v2632
        %v2729 = vmul.f32 %v2704, %v2633
        %v2730 = vmul.f32 %v2709, %v2634
        %v2731 = vmul.f32 %v2714, %v2635
        %v2732 = vpack.c.bf16 %v2507, %v2506
        %v2733 = vpack.c.bf16 %v2509, %v2508
        %v2734 = vpack.c.bf16 %v2511, %v2510
        %v2735 = vpack.c.bf16 %v2513, %v2512
        %v2736 = vpack.c.bf16 %v2515, %v2514
        %v2737 = vpack.c.bf16 %v2517, %v2516
        %v2738 = vpack.c.bf16 %v2519, %v2518
        %v2739 = vpack.c.bf16 %v2521, %v2520
        %v2756 = vunpack.c.l.b16 %v2108
        %v2757 = vunpack.c.l.b16 %v2109
        %v2758 = vunpack.c.l.b16 %v2110
        %v2759 = vunpack.c.l.b16 %v2111
        %v2760 = vunpack.c.l.b16 %v2112
        %v2761 = vunpack.c.l.b16 %v2113
        %v2762 = vunpack.c.l.b16 %v2114
        %v2763 = vunpack.c.l.b16 %v2115
        %v2764 = vunpack.c.l.b16 %v2116
        %v2765 = vunpack.c.l.b16 %v2117
        %v2766 = vunpack.c.l.b16 %v2118
        %v2767 = vunpack.c.l.b16 %v2119
        %v2768 = vunpack.c.l.b16 %v2120
        %v2769 = vunpack.c.l.b16 %v2121
        %v2770 = vunpack.c.l.b16 %v2122
        %v2771 = vunpack.c.l.b16 %v2123
        %v2772 = vpack.c.b16 %v2757, %v2756
        %v2773 = vpack.c.b16 %v2759, %v2758
        %v2774 = vpack.c.b16 %v2761, %v2760
        %v2775 = vpack.c.b16 %v2763, %v2762
        %v2776 = vpack.c.b16 %v2765, %v2764
        %v2777 = vpack.c.b16 %v2767, %v2766
        %v2778 = vpack.c.b16 %v2769, %v2768
        %v2779 = vpack.c.b16 %v2771, %v2770
        %2788 = vmatpush.bf16.msra.mxu0 %v2779
        %2789 = vmatpush.bf16.msra.mxu0 %v2778
        %2790 = vmatpush.bf16.msra.mxu0 %v2777
        %2791 = vmatpush.bf16.msra.mxu0 %v2776
        %2792 = vmatpush.bf16.msra.mxu0 %v2775
        %2793 = vmatpush.bf16.msra.mxu0 %v2774
        %2794 = vmatpush.bf16.msra.mxu0 %v2773
        %2795 = vmatpush.bf16.msra.mxu0 %v2772
        %2796 = vmatmul.bf16.gmra.mxu0 %v2732
        %v2797 = vpop.f32.mrf.mxu0
        %v2798 = vadd.f32 0.0, %v2797
        %v2799 = vpop.f32.mrf.mxu0
        %v2800 = vadd.f32 0.0, %v2799
        %2801 = vmatmul.bf16.gmra.mxu0 %v2733
        %v2802 = vpop.f32.mrf.mxu0
        %v2803 = vadd.f32 0.0, %v2802
        %v2804 = vpop.f32.mrf.mxu0
        %v2805 = vadd.f32 0.0, %v2804
        %2806 = vmatmul.bf16.gmra.mxu0 %v2734
        %v2807 = vpop.f32.mrf.mxu0
        %v2808 = vadd.f32 0.0, %v2807
        %v2809 = vpop.f32.mrf.mxu0
        %v2810 = vadd.f32 0.0, %v2809
        %2811 = vmatmul.bf16.gmra.mxu0 %v2735
        %v2812 = vpop.f32.mrf.mxu0
        %v2813 = vadd.f32 0.0, %v2812
        %v2814 = vpop.f32.mrf.mxu0
        %v2815 = vadd.f32 0.0, %v2814
        %2816 = vmatmul.bf16.gmra.mxu0 %v2736
        %v2817 = vpop.f32.mrf.mxu0
        %v2818 = vadd.f32 0.0, %v2817
        %v2819 = vpop.f32.mrf.mxu0
        %v2820 = vadd.f32 0.0, %v2819
        %2821 = vmatmul.bf16.gmra.mxu0 %v2737
        %v2822 = vpop.f32.mrf.mxu0
        %v2823 = vadd.f32 0.0, %v2822
        %v2824 = vpop.f32.mrf.mxu0
        %v2825 = vadd.f32 0.0, %v2824
        %2826 = vmatmul.bf16.gmra.mxu0 %v2738
        %v2827 = vpop.f32.mrf.mxu0
        %v2828 = vadd.f32 0.0, %v2827
        %v2829 = vpop.f32.mrf.mxu0
        %v2830 = vadd.f32 0.0, %v2829
        %2831 = vmatmul.bf16.gmra.mxu0 %v2739
        %v2832 = vpop.f32.mrf.mxu0
        %v2833 = vadd.f32 0.0, %v2832
        %v2834 = vpop.f32.mrf.mxu0
        %v2835 = vadd.f32 0.0, %v2834
        %2836 = vdwg.mxu0
        %v2837 = vadd.f32 %v2716, %v2798
        %v2838 = vadd.f32 %v2717, %v2800
        %v2839 = vadd.f32 %v2718, %v2803
        %v2840 = vadd.f32 %v2719, %v2805
        %v2841 = vadd.f32 %v2720, %v2808
        %v2842 = vadd.f32 %v2721, %v2810
        %v2843 = vadd.f32 %v2722, %v2813
        %v2844 = vadd.f32 %v2723, %v2815
        %v2845 = vadd.f32 %v2724, %v2818
        %v2846 = vadd.f32 %v2725, %v2820
        %v2847 = vadd.f32 %v2726, %v2823
        %v2848 = vadd.f32 %v2727, %v2825
        %v2849 = vadd.f32 %v2728, %v2828
        %v2850 = vadd.f32 %v2729, %v2830
        %v2851 = vadd.f32 %v2730, %v2833
        %v2852 = vadd.f32 %v2731, %v2835
        %2853 = vst.msk [vmem:[%s2619] sm:$0xff] %vm1377, %v2837
        %2854 = vst.msk [vmem:[%s2619 + $0x8] sm:$0xff] %vm1377, %v2838
        %2855 = vst.msk [vmem:[%s2619 + $0x10] sm:$0xff] %vm1377, %v2839
        %2856 = vst.msk [vmem:[%s2619 + $0x18] sm:$0xff] %vm1377, %v2840
        %2857 = vst.msk [vmem:[%s2619 + $0x20] sm:$0xff] %vm1377, %v2841
        %2858 = vst.msk [vmem:[%s2619 + $0x28] sm:$0xff] %vm1377, %v2842
        %2859 = vst.msk [vmem:[%s2619 + $0x30] sm:$0xff] %vm1377, %v2843
        %2860 = vst.msk [vmem:[%s2619 + $0x38] sm:$0xff] %vm1377, %v2844
        %2861 = vst.msk [vmem:[%s2619 + $0x40] sm:$0xff] %vm1377, %v2845
        %2862 = vst.msk [vmem:[%s2619 + $0x48] sm:$0xff] %vm1377, %v2846
        %2863 = vst.msk [vmem:[%s2619 + $0x50] sm:$0xff] %vm1377, %v2847
        %2864 = vst.msk [vmem:[%s2619 + $0x58] sm:$0xff] %vm1377, %v2848
        %2865 = vst.msk [vmem:[%s2619 + $0x60] sm:$0xff] %vm1377, %v2849
        %2866 = vst.msk [vmem:[%s2619 + $0x68] sm:$0xff] %vm1377, %v2850
        %2867 = vst.msk [vmem:[%s2619 + $0x70] sm:$0xff] %vm1377, %v2851
        %2868 = vst.msk [vmem:[%s2619 + $0x78] sm:$0xff] %vm1377, %v2852
        %2869 = vst.msk [vmem:[%s2265] sm:$0xff] %vm1803, %v2314
        %2870 = vst.msk [vmem:[%s2265 + $0x8] sm:$0xff] %vm1803, %v2315
        %2871 = vst.msk [vmem:[%s2265 + $0x10] sm:$0xff] %vm1803, %v2316
        %2872 = vst.msk [vmem:[%s2265 + $0x18] sm:$0xff] %vm1803, %v2317
        %2873 = vst.msk [vmem:[%s2265 + $0x20] sm:$0xff] %vm1803, %v2318
        %2874 = vst.msk [vmem:[%s2265 + $0x28] sm:$0xff] %vm1803, %v2319
        %2875 = vst.msk [vmem:[%s2265 + $0x30] sm:$0xff] %vm1803, %v2320
        %2876 = vst.msk [vmem:[%s2265 + $0x38] sm:$0xff] %vm1803, %v2321
        %2877 = vst.msk [vmem:[%s2265 + $0x40] sm:$0xff] %vm1803, %v2322
        %2878 = vst.msk [vmem:[%s2265 + $0x48] sm:$0xff] %vm1803, %v2323
        %2879 = vst.msk [vmem:[%s2265 + $0x50] sm:$0xff] %vm1803, %v2324
        %2880 = vst.msk [vmem:[%s2265 + $0x58] sm:$0xff] %vm1803, %v2325
        %2881 = vst.msk [vmem:[%s2265 + $0x60] sm:$0xff] %vm1803, %v2326
        %2882 = vst.msk [vmem:[%s2265 + $0x68] sm:$0xff] %vm1803, %v2327
        %2883 = vst.msk [vmem:[%s2265 + $0x70] sm:$0xff] %vm1803, %v2328
        %2884 = vst.msk [vmem:[%s2265 + $0x78] sm:$0xff] %vm1803, %v2329
        %s2885 = scalar_lea.vmem %s1011, 128 [#allocation5]
        %v2886 = vld [vmem:[%s2885] sm:$0xf]
        %v2887 = vld [vmem:[%s2885 + $0x4] sm:$0xf]
        %v2888 = vld [vmem:[%s2885 + $0x8] sm:$0xf]
        %v2889 = vld [vmem:[%s2885 + $0xc] sm:$0xf]
        %v2890 = vld [vmem:[%s2885 + $0x10] sm:$0xf]
        %v2891 = vld [vmem:[%s2885 + $0x14] sm:$0xf]
        %v2892 = vld [vmem:[%s2885 + $0x18] sm:$0xf]
        %v2893 = vld [vmem:[%s2885 + $0x1c] sm:$0xf]
        %v2894 = vld [vmem:[%s2885 + $0x20] sm:$0xf]
        %v2895 = vld [vmem:[%s2885 + $0x24] sm:$0xf]
        %v2896 = vld [vmem:[%s2885 + $0x28] sm:$0xf]
        %v2897 = vld [vmem:[%s2885 + $0x2c] sm:$0xf]
        %v2898 = vld [vmem:[%s2885 + $0x30] sm:$0xf]
        %v2899 = vld [vmem:[%s2885 + $0x34] sm:$0xf]
        %v2900 = vld [vmem:[%s2885 + $0x38] sm:$0xf]
        %v2901 = vld [vmem:[%s2885 + $0x3c] sm:$0xf]
        %s2902 = scalar_lea.vmem %s1018, 32 [#allocation6]
        %v2903 = vld [vmem:[%s2902] sm:$0xf]
        %v2904 = vld [vmem:[%s2902 + $0x4] sm:$0xf]
        %v2905 = vld [vmem:[%s2902 + $0x8] sm:$0xf]
        %v2906 = vld [vmem:[%s2902 + $0xc] sm:$0xf]
        %s2907 = scalar_lea.vmem %s1025, 128 [#allocation7]
        %v2908 = vld [vmem:[%s2907] sm:$0xf]
        %v2909 = vld [vmem:[%s2907 + $0x4] sm:$0xf]
        %v2910 = vld [vmem:[%s2907 + $0x8] sm:$0xf]
        %v2911 = vld [vmem:[%s2907 + $0xc] sm:$0xf]
        %v2912 = vld [vmem:[%s2907 + $0x10] sm:$0xf]
        %v2913 = vld [vmem:[%s2907 + $0x14] sm:$0xf]
        %v2914 = vld [vmem:[%s2907 + $0x18] sm:$0xf]
        %v2915 = vld [vmem:[%s2907 + $0x1c] sm:$0xf]
        %v2916 = vld [vmem:[%s2907 + $0x20] sm:$0xf]
        %v2917 = vld [vmem:[%s2907 + $0x24] sm:$0xf]
        %v2918 = vld [vmem:[%s2907 + $0x28] sm:$0xf]
        %v2919 = vld [vmem:[%s2907 + $0x2c] sm:$0xf]
        %v2920 = vld [vmem:[%s2907 + $0x30] sm:$0xf]
        %v2921 = vld [vmem:[%s2907 + $0x34] sm:$0xf]
        %v2922 = vld [vmem:[%s2907 + $0x38] sm:$0xf]
        %v2923 = vld [vmem:[%s2907 + $0x3c] sm:$0xf]
        %v2940 = vunpack.c.l.b16 %v2886
        %v2941 = vunpack.c.l.b16 %v2887
        %v2942 = vunpack.c.l.b16 %v2888
        %v2943 = vunpack.c.l.b16 %v2889
        %v2944 = vunpack.c.l.b16 %v2890
        %v2945 = vunpack.c.l.b16 %v2891
        %v2946 = vunpack.c.l.b16 %v2892
        %v2947 = vunpack.c.l.b16 %v2893
        %v2948 = vunpack.c.l.b16 %v2894
        %v2949 = vunpack.c.l.b16 %v2895
        %v2950 = vunpack.c.l.b16 %v2896
        %v2951 = vunpack.c.l.b16 %v2897
        %v2952 = vunpack.c.l.b16 %v2898
        %v2953 = vunpack.c.l.b16 %v2899
        %v2954 = vunpack.c.l.b16 %v2900
        %v2955 = vunpack.c.l.b16 %v2901
        %v2956 = vpack.c.b16 %v2941, %v2940
        %v2957 = vpack.c.b16 %v2943, %v2942
        %v2958 = vpack.c.b16 %v2945, %v2944
        %v2959 = vpack.c.b16 %v2947, %v2946
        %v2960 = vpack.c.b16 %v2949, %v2948
        %v2961 = vpack.c.b16 %v2951, %v2950
        %v2962 = vpack.c.b16 %v2953, %v2952
        %v2963 = vpack.c.b16 %v2955, %v2954
        %v2968 = vunpack.c.l.b16 %v2903
        %v2969 = vunpack.c.l.b16 %v2904
        %v2970 = vunpack.c.l.b16 %v2905
        %v2971 = vunpack.c.l.b16 %v2906
        %v2972 = vpack.c.b16 %v2969, %v2968
        %v2973 = vpack.c.b16 %v2971, %v2970
        %v2977 = vsel %vm1377, %v2956, 0
        %v2980 = vsel %vm1377, %v2957, 0
        %v2983 = vsel %vm1377, %v2958, 0
        %v2986 = vsel %vm1377, %v2959, 0
        %v2989 = vsel %vm1377, %v2960, 0
        %v2992 = vsel %vm1377, %v2961, 0
        %v2995 = vsel %vm1377, %v2962, 0
        %v2998 = vsel %vm1377, %v2963, 0
        %3000 = vmatpush.bf16.msra.mxu0 0
        %3001 = vmatpush.bf16.msra.mxu0 0
        %3002 = vmatpush.bf16.msra.mxu0 0
        %3003 = vmatpush.bf16.msra.mxu0 0
        %3004 = vmatpush.bf16.msra.mxu0 0
        %3005 = vmatpush.bf16.msra.mxu0 0
        %3006 = vmatpush.bf16.msra.mxu0 %v2973
        %3007 = vmatpush.bf16.msra.mxu0 %v2972
        %3008 = vmatmul.bf16.gmra.mxu0 %v2977
        %v3009 = vpop.f32.mrf.mxu0
        %v3010 = vadd.f32 0.0, %v3009
        %v3011 = vpop.f32.mrf.mxu0
        %v3012 = vadd.f32 0.0, %v3011
        %3013 = vmatmul.bf16.gmra.mxu0 %v2980
        %v3014 = vpop.f32.mrf.mxu0
        %v3015 = vadd.f32 0.0, %v3014
        %v3016 = vpop.f32.mrf.mxu0
        %v3017 = vadd.f32 0.0, %v3016
        %3018 = vmatmul.bf16.gmra.mxu0 %v2983
        %v3019 = vpop.f32.mrf.mxu0
        %v3020 = vadd.f32 0.0, %v3019
        %v3021 = vpop.f32.mrf.mxu0
        %v3022 = vadd.f32 0.0, %v3021
        %3023 = vmatmul.bf16.gmra.mxu0 %v2986
        %v3024 = vpop.f32.mrf.mxu0
        %v3025 = vadd.f32 0.0, %v3024
        %v3026 = vpop.f32.mrf.mxu0
        %v3027 = vadd.f32 0.0, %v3026
        %3028 = vmatmul.bf16.gmra.mxu0 %v2989
        %v3029 = vpop.f32.mrf.mxu0
        %v3030 = vadd.f32 0.0, %v3029
        %v3031 = vpop.f32.mrf.mxu0
        %v3032 = vadd.f32 0.0, %v3031
        %3033 = vmatmul.bf16.gmra.mxu0 %v2992
        %v3034 = vpop.f32.mrf.mxu0
        %v3035 = vadd.f32 0.0, %v3034
        %v3036 = vpop.f32.mrf.mxu0
        %v3037 = vadd.f32 0.0, %v3036
        %3038 = vmatmul.bf16.gmra.mxu0 %v2995
        %v3039 = vpop.f32.mrf.mxu0
        %v3040 = vadd.f32 0.0, %v3039
        %v3041 = vpop.f32.mrf.mxu0
        %v3042 = vadd.f32 0.0, %v3041
        %3043 = vmatmul.bf16.gmra.mxu0 %v2998
        %v3044 = vpop.f32.mrf.mxu0
        %v3045 = vadd.f32 0.0, %v3044
        %v3046 = vpop.f32.mrf.mxu0
        %v3047 = vadd.f32 0.0, %v3046
        %3048 = vdwg.mxu0
        %v3049 = vsel %vm1288, %v3010, -1e+30
        %v3050 = vsel %vm1288, %v3012, -1e+30
        %v3051 = vsel %vm1288, %v3015, -1e+30
        %v3052 = vsel %vm1288, %v3017, -1e+30
        %v3053 = vsel %vm1288, %v3020, -1e+30
        %v3054 = vsel %vm1288, %v3022, -1e+30
        %v3055 = vsel %vm1288, %v3025, -1e+30
        %v3056 = vsel %vm1288, %v3027, -1e+30
        %v3057 = vsel %vm1288, %v3030, -1e+30
        %v3058 = vsel %vm1288, %v3032, -1e+30
        %v3059 = vsel %vm1288, %v3035, -1e+30
        %v3060 = vsel %vm1288, %v3037, -1e+30
        %v3061 = vsel %vm1288, %v3040, -1e+30
        %v3062 = vsel %vm1288, %v3042, -1e+30
        %v3063 = vsel %vm1288, %v3045, -1e+30
        %v3064 = vsel %vm1288, %v3047, -1e+30
        %s3065 = scalar_lea.vmem [#allocation2], 256
        %v3066 = vld [vmem:[%s3065] sm:$0xff]
        %v3067 = vld [vmem:[%s3065 + $0x8] sm:$0xff]
        %v3068 = vld [vmem:[%s3065 + $0x10] sm:$0xff]
        %v3069 = vld [vmem:[%s3065 + $0x18] sm:$0xff]
        %v3070 = vld [vmem:[%s3065 + $0x20] sm:$0xff]
        %v3071 = vld [vmem:[%s3065 + $0x28] sm:$0xff]
        %v3072 = vld [vmem:[%s3065 + $0x30] sm:$0xff]
        %v3073 = vld [vmem:[%s3065 + $0x38] sm:$0xff]
        %v3074 = vld [vmem:[%s3065 + $0x40] sm:$0xff]
        %v3075 = vld [vmem:[%s3065 + $0x48] sm:$0xff]
        %v3076 = vld [vmem:[%s3065 + $0x50] sm:$0xff]
        %v3077 = vld [vmem:[%s3065 + $0x58] sm:$0xff]
        %v3078 = vld [vmem:[%s3065 + $0x60] sm:$0xff]
        %v3079 = vld [vmem:[%s3065 + $0x68] sm:$0xff]
        %v3080 = vld [vmem:[%s3065 + $0x70] sm:$0xff]
        %v3081 = vld [vmem:[%s3065 + $0x78] sm:$0xff]
        %3082 = vmax.xlane.f32.xlu0 %v3049
        %v3083 = vpop.xlane.xlu0 %3082
        %3084 = vmax.xlane.f32.xlu0 %v3050
        %v3085 = vpop.xlane.xlu0 %3084
        %3086 = vmax.xlane.f32.xlu0 %v3051
        %v3087 = vpop.xlane.xlu0 %3086
        %3088 = vmax.xlane.f32.xlu0 %v3052
        %v3089 = vpop.xlane.xlu0 %3088
        %3090 = vmax.xlane.f32.xlu0 %v3053
        %v3091 = vpop.xlane.xlu0 %3090
        %3092 = vmax.xlane.f32.xlu0 %v3054
        %v3093 = vpop.xlane.xlu0 %3092
        %3094 = vmax.xlane.f32.xlu0 %v3055
        %v3095 = vpop.xlane.xlu0 %3094
        %3096 = vmax.xlane.f32.xlu0 %v3056
        %v3097 = vpop.xlane.xlu0 %3096
        %3098 = vmax.xlane.f32.xlu0 %v3057
        %v3099 = vpop.xlane.xlu0 %3098
        %3100 = vmax.xlane.f32.xlu0 %v3058
        %v3101 = vpop.xlane.xlu0 %3100
        %3102 = vmax.xlane.f32.xlu0 %v3059
        %v3103 = vpop.xlane.xlu0 %3102
        %3104 = vmax.xlane.f32.xlu0 %v3060
        %v3105 = vpop.xlane.xlu0 %3104
        %3106 = vmax.xlane.f32.xlu0 %v3061
        %v3107 = vpop.xlane.xlu0 %3106
        %3108 = vmax.xlane.f32.xlu0 %v3062
        %v3109 = vpop.xlane.xlu0 %3108
        %3110 = vmax.xlane.f32.xlu0 %v3063
        %v3111 = vpop.xlane.xlu0 %3110
        %3112 = vmax.xlane.f32.xlu0 %v3064
        %v3113 = vpop.xlane.xlu0 %3112
        %v3114 = vmax.f32 %v3066, %v3083
        %v3115 = vmax.f32 %v3067, %v3085
        %v3116 = vmax.f32 %v3068, %v3087
        %v3117 = vmax.f32 %v3069, %v3089
        %v3118 = vmax.f32 %v3070, %v3091
        %v3119 = vmax.f32 %v3071, %v3093
        %v3120 = vmax.f32 %v3072, %v3095
        %v3121 = vmax.f32 %v3073, %v3097
        %v3122 = vmax.f32 %v3074, %v3099
        %v3123 = vmax.f32 %v3075, %v3101
        %v3124 = vmax.f32 %v3076, %v3103
        %v3125 = vmax.f32 %v3077, %v3105
        %v3126 = vmax.f32 %v3078, %v3107
        %v3127 = vmax.f32 %v3079, %v3109
        %v3128 = vmax.f32 %v3080, %v3111
        %v3129 = vmax.f32 %v3081, %v3113
        %v3130 = vsub.f32 %v3066, %v3114
        %v3131 = vsub.f32 %v3067, %v3115
        %v3132 = vsub.f32 %v3068, %v3116
        %v3133 = vsub.f32 %v3069, %v3117
        %v3134 = vsub.f32 %v3070, %v3118
        %v3135 = vsub.f32 %v3071, %v3119
        %v3136 = vsub.f32 %v3072, %v3120
        %v3137 = vsub.f32 %v3073, %v3121
        %v3138 = vsub.f32 %v3074, %v3122
        %v3139 = vsub.f32 %v3075, %v3123
        %v3140 = vsub.f32 %v3076, %v3124
        %v3141 = vsub.f32 %v3077, %v3125
        %v3142 = vsub.f32 %v3078, %v3126
        %v3143 = vsub.f32 %v3079, %v3127
        %v3144 = vsub.f32 %v3080, %v3128
        %v3145 = vsub.f32 %v3081, %v3129
        %v3146 = vmul.f32 %v3130, 1.442695
        %v3147 = vpow.pop %v3146
        %v3148 = vmul.f32 %v3131, 1.442695
        %v3149 = vpow.pop %v3148
        %v3150 = vmul.f32 %v3132, 1.442695
        %v3151 = vpow.pop %v3150
        %v3152 = vmul.f32 %v3133, 1.442695
        %v3153 = vpow.pop %v3152
        %v3154 = vmul.f32 %v3134, 1.442695
        %v3155 = vpow.pop %v3154
        %v3156 = vmul.f32 %v3135, 1.442695
        %v3157 = vpow.pop %v3156
        %v3158 = vmul.f32 %v3136, 1.442695
        %v3159 = vpow.pop %v3158
        %v3160 = vmul.f32 %v3137, 1.442695
        %v3161 = vpow.pop %v3160
        %v3162 = vmul.f32 %v3138, 1.442695
        %v3163 = vpow.pop %v3162
        %v3164 = vmul.f32 %v3139, 1.442695
        %v3165 = vpow.pop %v3164
        %v3166 = vmul.f32 %v3140, 1.442695
        %v3167 = vpow.pop %v3166
        %v3168 = vmul.f32 %v3141, 1.442695
        %v3169 = vpow.pop %v3168
        %v3170 = vmul.f32 %v3142, 1.442695
        %v3171 = vpow.pop %v3170
        %v3172 = vmul.f32 %v3143, 1.442695
        %v3173 = vpow.pop %v3172
        %v3174 = vmul.f32 %v3144, 1.442695
        %v3175 = vpow.pop %v3174
        %v3176 = vmul.f32 %v3145, 1.442695
        %v3177 = vpow.pop %v3176
        %3179 = vset.pattern.permute.xlu0 0
        %3180 = vperm.xlu0 %3179, %v3114
        %v3181 = vpop.permute.xlu0 %3180
        %3184 = vset.pattern.permute.xlu0 0
        %3185 = vperm.xlu0 %3184, %v3115
        %v3186 = vpop.permute.xlu0 %3185
        %3189 = vset.pattern.permute.xlu0 0
        %3190 = vperm.xlu0 %3189, %v3116
        %v3191 = vpop.permute.xlu0 %3190
        %3194 = vset.pattern.permute.xlu0 0
        %3195 = vperm.xlu0 %3194, %v3117
        %v3196 = vpop.permute.xlu0 %3195
        %3199 = vset.pattern.permute.xlu0 0
        %3200 = vperm.xlu0 %3199, %v3118
        %v3201 = vpop.permute.xlu0 %3200
        %3204 = vset.pattern.permute.xlu0 0
        %3205 = vperm.xlu0 %3204, %v3119
        %v3206 = vpop.permute.xlu0 %3205
        %3209 = vset.pattern.permute.xlu0 0
        %3210 = vperm.xlu0 %3209, %v3120
        %v3211 = vpop.permute.xlu0 %3210
        %3214 = vset.pattern.permute.xlu0 0
        %3215 = vperm.xlu0 %3214, %v3121
        %v3216 = vpop.permute.xlu0 %3215
        %3219 = vset.pattern.permute.xlu0 0
        %3220 = vperm.xlu0 %3219, %v3122
        %v3221 = vpop.permute.xlu0 %3220
        %3224 = vset.pattern.permute.xlu0 0
        %3225 = vperm.xlu0 %3224, %v3123
        %v3226 = vpop.permute.xlu0 %3225
        %3229 = vset.pattern.permute.xlu0 0
        %3230 = vperm.xlu0 %3229, %v3124
        %v3231 = vpop.permute.xlu0 %3230
        %3234 = vset.pattern.permute.xlu0 0
        %3235 = vperm.xlu0 %3234, %v3125
        %v3236 = vpop.permute.xlu0 %3235
        %3239 = vset.pattern.permute.xlu0 0
        %3240 = vperm.xlu0 %3239, %v3126
        %v3241 = vpop.permute.xlu0 %3240
        %3244 = vset.pattern.permute.xlu0 0
        %3245 = vperm.xlu0 %3244, %v3127
        %v3246 = vpop.permute.xlu0 %3245
        %3249 = vset.pattern.permute.xlu0 0
        %3250 = vperm.xlu0 %3249, %v3128
        %v3251 = vpop.permute.xlu0 %3250
        %3254 = vset.pattern.permute.xlu0 0
        %3255 = vperm.xlu0 %3254, %v3129
        %v3256 = vpop.permute.xlu0 %3255
        %v3258 = vsub.f32 %v3049, %v3181
        %v3259 = vsub.f32 %v3050, %v3186
        %v3260 = vsub.f32 %v3051, %v3191
        %v3261 = vsub.f32 %v3052, %v3196
        %v3262 = vsub.f32 %v3053, %v3201
        %v3263 = vsub.f32 %v3054, %v3206
        %v3264 = vsub.f32 %v3055, %v3211
        %v3265 = vsub.f32 %v3056, %v3216
        %v3266 = vsub.f32 %v3057, %v3221
        %v3267 = vsub.f32 %v3058, %v3226
        %v3268 = vsub.f32 %v3059, %v3231
        %v3269 = vsub.f32 %v3060, %v3236
        %v3270 = vsub.f32 %v3061, %v3241
        %v3271 = vsub.f32 %v3062, %v3246
        %v3272 = vsub.f32 %v3063, %v3251
        %v3273 = vsub.f32 %v3064, %v3256
        %v3274 = vmul.f32 %v3258, 1.442695
        %v3275 = vpow.pop %v3274
        %v3276 = vmul.f32 %v3259, 1.442695
        %v3277 = vpow.pop %v3276
        %v3278 = vmul.f32 %v3260, 1.442695
        %v3279 = vpow.pop %v3278
        %v3280 = vmul.f32 %v3261, 1.442695
        %v3281 = vpow.pop %v3280
        %v3282 = vmul.f32 %v3262, 1.442695
        %v3283 = vpow.pop %v3282
        %v3284 = vmul.f32 %v3263, 1.442695
        %v3285 = vpow.pop %v3284
        %v3286 = vmul.f32 %v3264, 1.442695
        %v3287 = vpow.pop %v3286
        %v3288 = vmul.f32 %v3265, 1.442695
        %v3289 = vpow.pop %v3288
        %v3290 = vmul.f32 %v3266, 1.442695
        %v3291 = vpow.pop %v3290
        %v3292 = vmul.f32 %v3267, 1.442695
        %v3293 = vpow.pop %v3292
        %v3294 = vmul.f32 %v3268, 1.442695
        %v3295 = vpow.pop %v3294
        %v3296 = vmul.f32 %v3269, 1.442695
        %v3297 = vpow.pop %v3296
        %v3298 = vmul.f32 %v3270, 1.442695
        %v3299 = vpow.pop %v3298
        %v3300 = vmul.f32 %v3271, 1.442695
        %v3301 = vpow.pop %v3300
        %v3302 = vmul.f32 %v3272, 1.442695
        %v3303 = vpow.pop %v3302
        %v3304 = vmul.f32 %v3273, 1.442695
        %v3305 = vpow.pop %v3304
        %v3306 = vsel %vm1288, %v3275, 0.0
        %v3307 = vsel %vm1288, %v3277, 0.0
        %v3308 = vsel %vm1288, %v3279, 0.0
        %v3309 = vsel %vm1288, %v3281, 0.0
        %v3310 = vsel %vm1288, %v3283, 0.0
        %v3311 = vsel %vm1288, %v3285, 0.0
        %v3312 = vsel %vm1288, %v3287, 0.0
        %v3313 = vsel %vm1288, %v3289, 0.0
        %v3314 = vsel %vm1288, %v3291, 0.0
        %v3315 = vsel %vm1288, %v3293, 0.0
        %v3316 = vsel %vm1288, %v3295, 0.0
        %v3317 = vsel %vm1288, %v3297, 0.0
        %v3318 = vsel %vm1288, %v3299, 0.0
        %v3319 = vsel %vm1288, %v3301, 0.0
        %v3320 = vsel %vm1288, %v3303, 0.0
        %v3321 = vsel %vm1288, %v3305, 0.0
        %s3322 = scalar_lea.vmem [#allocation3], 256
        %v3323 = vld [vmem:[%s3322] sm:$0xff]
        %v3324 = vld [vmem:[%s3322 + $0x8] sm:$0xff]
        %v3325 = vld [vmem:[%s3322 + $0x10] sm:$0xff]
        %v3326 = vld [vmem:[%s3322 + $0x18] sm:$0xff]
        %v3327 = vld [vmem:[%s3322 + $0x20] sm:$0xff]
        %v3328 = vld [vmem:[%s3322 + $0x28] sm:$0xff]
        %v3329 = vld [vmem:[%s3322 + $0x30] sm:$0xff]
        %v3330 = vld [vmem:[%s3322 + $0x38] sm:$0xff]
        %v3331 = vld [vmem:[%s3322 + $0x40] sm:$0xff]
        %v3332 = vld [vmem:[%s3322 + $0x48] sm:$0xff]
        %v3333 = vld [vmem:[%s3322 + $0x50] sm:$0xff]
        %v3334 = vld [vmem:[%s3322 + $0x58] sm:$0xff]
        %v3335 = vld [vmem:[%s3322 + $0x60] sm:$0xff]
        %v3336 = vld [vmem:[%s3322 + $0x68] sm:$0xff]
        %v3337 = vld [vmem:[%s3322 + $0x70] sm:$0xff]
        %v3338 = vld [vmem:[%s3322 + $0x78] sm:$0xff]
        %v3339 = vmul.f32 %v3147, %v3323
        %v3340 = vmul.f32 %v3149, %v3324
        %v3341 = vmul.f32 %v3151, %v3325
        %v3342 = vmul.f32 %v3153, %v3326
        %v3343 = vmul.f32 %v3155, %v3327
        %v3344 = vmul.f32 %v3157, %v3328
        %v3345 = vmul.f32 %v3159, %v3329
        %v3346 = vmul.f32 %v3161, %v3330
        %v3347 = vmul.f32 %v3163, %v3331
        %v3348 = vmul.f32 %v3165, %v3332
        %v3349 = vmul.f32 %v3167, %v3333
        %v3350 = vmul.f32 %v3169, %v3334
        %v3351 = vmul.f32 %v3171, %v3335
        %v3352 = vmul.f32 %v3173, %v3336
        %v3353 = vmul.f32 %v3175, %v3337
        %v3354 = vmul.f32 %v3177, %v3338
        %3355 = vadd.xlane.f32.xlu0 %v3306
        %v3356 = vpop.xlane.xlu0 %3355
        %3357 = vadd.xlane.f32.xlu0 %v3307
        %v3358 = vpop.xlane.xlu0 %3357
        %3359 = vadd.xlane.f32.xlu0 %v3308
        %v3360 = vpop.xlane.xlu0 %3359
        %3361 = vadd.xlane.f32.xlu0 %v3309
        %v3362 = vpop.xlane.xlu0 %3361
        %3363 = vadd.xlane.f32.xlu0 %v3310
        %v3364 = vpop.xlane.xlu0 %3363
        %3365 = vadd.xlane.f32.xlu0 %v3311
        %v3366 = vpop.xlane.xlu0 %3365
        %3367 = vadd.xlane.f32.xlu0 %v3312
        %v3368 = vpop.xlane.xlu0 %3367
        %3369 = vadd.xlane.f32.xlu0 %v3313
        %v3370 = vpop.xlane.xlu0 %3369
        %3371 = vadd.xlane.f32.xlu0 %v3314
        %v3372 = vpop.xlane.xlu0 %3371
        %3373 = vadd.xlane.f32.xlu0 %v3315
        %v3374 = vpop.xlane.xlu0 %3373
        %3375 = vadd.xlane.f32.xlu0 %v3316
        %v3376 = vpop.xlane.xlu0 %3375
        %3377 = vadd.xlane.f32.xlu0 %v3317
        %v3378 = vpop.xlane.xlu0 %3377
        %3379 = vadd.xlane.f32.xlu0 %v3318
        %v3380 = vpop.xlane.xlu0 %3379
        %3381 = vadd.xlane.f32.xlu0 %v3319
        %v3382 = vpop.xlane.xlu0 %3381
        %3383 = vadd.xlane.f32.xlu0 %v3320
        %v3384 = vpop.xlane.xlu0 %3383
        %3385 = vadd.xlane.f32.xlu0 %v3321
        %v3386 = vpop.xlane.xlu0 %3385
        %v3387 = vadd.f32 %v3339, %v3356
        %v3388 = vadd.f32 %v3340, %v3358
        %v3389 = vadd.f32 %v3341, %v3360
        %v3390 = vadd.f32 %v3342, %v3362
        %v3391 = vadd.f32 %v3343, %v3364
        %v3392 = vadd.f32 %v3344, %v3366
        %v3393 = vadd.f32 %v3345, %v3368
        %v3394 = vadd.f32 %v3346, %v3370
        %v3395 = vadd.f32 %v3347, %v3372
        %v3396 = vadd.f32 %v3348, %v3374
        %v3397 = vadd.f32 %v3349, %v3376
        %v3398 = vadd.f32 %v3350, %v3378
        %v3399 = vadd.f32 %v3351, %v3380
        %v3400 = vadd.f32 %v3352, %v3382
        %v3401 = vadd.f32 %v3353, %v3384
        %v3402 = vadd.f32 %v3354, %v3386
        %3403 = vst.msk [vmem:[%s3322] sm:$0xff] %vm1803, %v3387
        %3404 = vst.msk [vmem:[%s3322 + $0x8] sm:$0xff] %vm1803, %v3388
        %3405 = vst.msk [vmem:[%s3322 + $0x10] sm:$0xff] %vm1803, %v3389
        %3406 = vst.msk [vmem:[%s3322 + $0x18] sm:$0xff] %vm1803, %v3390
        %3407 = vst.msk [vmem:[%s3322 + $0x20] sm:$0xff] %vm1803, %v3391
        %3408 = vst.msk [vmem:[%s3322 + $0x28] sm:$0xff] %vm1803, %v3392
        %3409 = vst.msk [vmem:[%s3322 + $0x30] sm:$0xff] %vm1803, %v3393
        %3410 = vst.msk [vmem:[%s3322 + $0x38] sm:$0xff] %vm1803, %v3394
        %3411 = vst.msk [vmem:[%s3322 + $0x40] sm:$0xff] %vm1803, %v3395
        %3412 = vst.msk [vmem:[%s3322 + $0x48] sm:$0xff] %vm1803, %v3396
        %3413 = vst.msk [vmem:[%s3322 + $0x50] sm:$0xff] %vm1803, %v3397
        %3414 = vst.msk [vmem:[%s3322 + $0x58] sm:$0xff] %vm1803, %v3398
        %3415 = vst.msk [vmem:[%s3322 + $0x60] sm:$0xff] %vm1803, %v3399
        %3416 = vst.msk [vmem:[%s3322 + $0x68] sm:$0xff] %vm1803, %v3400
        %3417 = vst.msk [vmem:[%s3322 + $0x70] sm:$0xff] %vm1803, %v3401
        %3418 = vst.msk [vmem:[%s3322 + $0x78] sm:$0xff] %vm1803, %v3402
        %s3419 = scalar_lea.vmem [#allocation4], 256
        %v3420 = vld [vmem:[%s3419] sm:$0xff]
        %v3421 = vld [vmem:[%s3419 + $0x8] sm:$0xff]
        %v3422 = vld [vmem:[%s3419 + $0x10] sm:$0xff]
        %v3423 = vld [vmem:[%s3419 + $0x18] sm:$0xff]
        %v3424 = vld [vmem:[%s3419 + $0x20] sm:$0xff]
        %v3425 = vld [vmem:[%s3419 + $0x28] sm:$0xff]
        %v3426 = vld [vmem:[%s3419 + $0x30] sm:$0xff]
        %v3427 = vld [vmem:[%s3419 + $0x38] sm:$0xff]
        %v3428 = vld [vmem:[%s3419 + $0x40] sm:$0xff]
        %v3429 = vld [vmem:[%s3419 + $0x48] sm:$0xff]
        %v3430 = vld [vmem:[%s3419 + $0x50] sm:$0xff]
        %v3431 = vld [vmem:[%s3419 + $0x58] sm:$0xff]
        %v3432 = vld [vmem:[%s3419 + $0x60] sm:$0xff]
        %v3433 = vld [vmem:[%s3419 + $0x68] sm:$0xff]
        %v3434 = vld [vmem:[%s3419 + $0x70] sm:$0xff]
        %v3435 = vld [vmem:[%s3419 + $0x78] sm:$0xff]
        %3437 = vset.pattern.permute.xlu0 0
        %3438 = vperm.xlu0 %3437, %v3147
        %v3439 = vpop.permute.xlu0 %3438
        %3442 = vset.pattern.permute.xlu0 0
        %3443 = vperm.xlu0 %3442, %v3149
        %v3444 = vpop.permute.xlu0 %3443
        %3447 = vset.pattern.permute.xlu0 0
        %3448 = vperm.xlu0 %3447, %v3151
        %v3449 = vpop.permute.xlu0 %3448
        %3452 = vset.pattern.permute.xlu0 0
        %3453 = vperm.xlu0 %3452, %v3153
        %v3454 = vpop.permute.xlu0 %3453
        %3457 = vset.pattern.permute.xlu0 0
        %3458 = vperm.xlu0 %3457, %v3155
        %v3459 = vpop.permute.xlu0 %3458
        %3462 = vset.pattern.permute.xlu0 0
        %3463 = vperm.xlu0 %3462, %v3157
        %v3464 = vpop.permute.xlu0 %3463
        %3467 = vset.pattern.permute.xlu0 0
        %3468 = vperm.xlu0 %3467, %v3159
        %v3469 = vpop.permute.xlu0 %3468
        %3472 = vset.pattern.permute.xlu0 0
        %3473 = vperm.xlu0 %3472, %v3161
        %v3474 = vpop.permute.xlu0 %3473
        %3477 = vset.pattern.permute.xlu0 0
        %3478 = vperm.xlu0 %3477, %v3163
        %v3479 = vpop.permute.xlu0 %3478
        %3482 = vset.pattern.permute.xlu0 0
        %3483 = vperm.xlu0 %3482, %v3165
        %v3484 = vpop.permute.xlu0 %3483
        %3487 = vset.pattern.permute.xlu0 0
        %3488 = vperm.xlu0 %3487, %v3167
        %v3489 = vpop.permute.xlu0 %3488
        %3492 = vset.pattern.permute.xlu0 0
        %3493 = vperm.xlu0 %3492, %v3169
        %v3494 = vpop.permute.xlu0 %3493
        %3497 = vset.pattern.permute.xlu0 0
        %3498 = vperm.xlu0 %3497, %v3171
        %v3499 = vpop.permute.xlu0 %3498
        %3502 = vset.pattern.permute.xlu0 0
        %3503 = vperm.xlu0 %3502, %v3173
        %v3504 = vpop.permute.xlu0 %3503
        %3507 = vset.pattern.permute.xlu0 0
        %3508 = vperm.xlu0 %3507, %v3175
        %v3509 = vpop.permute.xlu0 %3508
        %3512 = vset.pattern.permute.xlu0 0
        %3513 = vperm.xlu0 %3512, %v3177
        %v3514 = vpop.permute.xlu0 %3513
        %v3516 = vmul.f32 %v3439, %v3420
        %v3517 = vmul.f32 %v3444, %v3421
        %v3518 = vmul.f32 %v3449, %v3422
        %v3519 = vmul.f32 %v3454, %v3423
        %v3520 = vmul.f32 %v3459, %v3424
        %v3521 = vmul.f32 %v3464, %v3425
        %v3522 = vmul.f32 %v3469, %v3426
        %v3523 = vmul.f32 %v3474, %v3427
        %v3524 = vmul.f32 %v3479, %v3428
        %v3525 = vmul.f32 %v3484, %v3429
        %v3526 = vmul.f32 %v3489, %v3430
        %v3527 = vmul.f32 %v3494, %v3431
        %v3528 = vmul.f32 %v3499, %v3432
        %v3529 = vmul.f32 %v3504, %v3433
        %v3530 = vmul.f32 %v3509, %v3434
        %v3531 = vmul.f32 %v3514, %v3435
        %v3532 = vpack.c.bf16 %v3307, %v3306
        %v3533 = vpack.c.bf16 %v3309, %v3308
        %v3534 = vpack.c.bf16 %v3311, %v3310
        %v3535 = vpack.c.bf16 %v3313, %v3312
        %v3536 = vpack.c.bf16 %v3315, %v3314
        %v3537 = vpack.c.bf16 %v3317, %v3316
        %v3538 = vpack.c.bf16 %v3319, %v3318
        %v3539 = vpack.c.bf16 %v3321, %v3320
        %v3556 = vunpack.c.l.b16 %v2908
        %v3557 = vunpack.c.l.b16 %v2909
        %v3558 = vunpack.c.l.b16 %v2910
        %v3559 = vunpack.c.l.b16 %v2911
        %v3560 = vunpack.c.l.b16 %v2912
        %v3561 = vunpack.c.l.b16 %v2913
        %v3562 = vunpack.c.l.b16 %v2914
        %v3563 = vunpack.c.l.b16 %v2915
        %v3564 = vunpack.c.l.b16 %v2916
        %v3565 = vunpack.c.l.b16 %v2917
        %v3566 = vunpack.c.l.b16 %v2918
        %v3567 = vunpack.c.l.b16 %v2919
        %v3568 = vunpack.c.l.b16 %v2920
        %v3569 = vunpack.c.l.b16 %v2921
        %v3570 = vunpack.c.l.b16 %v2922
        %v3571 = vunpack.c.l.b16 %v2923
        %v3572 = vpack.c.b16 %v3557, %v3556
        %v3573 = vpack.c.b16 %v3559, %v3558
        %v3574 = vpack.c.b16 %v3561, %v3560
        %v3575 = vpack.c.b16 %v3563, %v3562
        %v3576 = vpack.c.b16 %v3565, %v3564
        %v3577 = vpack.c.b16 %v3567, %v3566
        %v3578 = vpack.c.b16 %v3569, %v3568
        %v3579 = vpack.c.b16 %v3571, %v3570
        %3588 = vmatpush.bf16.msra.mxu0 %v3579
        %3589 = vmatpush.bf16.msra.mxu0 %v3578
        %3590 = vmatpush.bf16.msra.mxu0 %v3577
        %3591 = vmatpush.bf16.msra.mxu0 %v3576
        %3592 = vmatpush.bf16.msra.mxu0 %v3575
        %3593 = vmatpush.bf16.msra.mxu0 %v3574
        %3594 = vmatpush.bf16.msra.mxu0 %v3573
        %3595 = vmatpush.bf16.msra.mxu0 %v3572
        %3596 = vmatmul.bf16.gmra.mxu0 %v3532
        %v3597 = vpop.f32.mrf.mxu0
        %v3598 = vadd.f32 0.0, %v3597
        %v3599 = vpop.f32.mrf.mxu0
        %v3600 = vadd.f32 0.0, %v3599
        %3601 = vmatmul.bf16.gmra.mxu0 %v3533
        %v3602 = vpop.f32.mrf.mxu0
        %v3603 = vadd.f32 0.0, %v3602
        %v3604 = vpop.f32.mrf.mxu0
        %v3605 = vadd.f32 0.0, %v3604
        %3606 = vmatmul.bf16.gmra.mxu0 %v3534
        %v3607 = vpop.f32.mrf.mxu0
        %v3608 = vadd.f32 0.0, %v3607
        %v3609 = vpop.f32.mrf.mxu0
        %v3610 = vadd.f32 0.0, %v3609
        %3611 = vmatmul.bf16.gmra.mxu0 %v3535
        %v3612 = vpop.f32.mrf.mxu0
        %v3613 = vadd.f32 0.0, %v3612
        %v3614 = vpop.f32.mrf.mxu0
        %v3615 = vadd.f32 0.0, %v3614
        %3616 = vmatmul.bf16.gmra.mxu0 %v3536
        %v3617 = vpop.f32.mrf.mxu0
        %v3618 = vadd.f32 0.0, %v3617
        %v3619 = vpop.f32.mrf.mxu0
        %v3620 = vadd.f32 0.0, %v3619
        %3621 = vmatmul.bf16.gmra.mxu0 %v3537
        %v3622 = vpop.f32.mrf.mxu0
        %v3623 = vadd.f32 0.0, %v3622
        %v3624 = vpop.f32.mrf.mxu0
        %v3625 = vadd.f32 0.0, %v3624
        %3626 = vmatmul.bf16.gmra.mxu0 %v3538
        %v3627 = vpop.f32.mrf.mxu0
        %v3628 = vadd.f32 0.0, %v3627
        %v3629 = vpop.f32.mrf.mxu0
        %v3630 = vadd.f32 0.0, %v3629
        %3631 = vmatmul.bf16.gmra.mxu0 %v3539
        %v3632 = vpop.f32.mrf.mxu0
        %v3633 = vadd.f32 0.0, %v3632
        %v3634 = vpop.f32.mrf.mxu0
        %v3635 = vadd.f32 0.0, %v3634
        %3636 = vdwg.mxu0
        %v3637 = vadd.f32 %v3516, %v3598
        %v3638 = vadd.f32 %v3517, %v3600
        %v3639 = vadd.f32 %v3518, %v3603
        %v3640 = vadd.f32 %v3519, %v3605
        %v3641 = vadd.f32 %v3520, %v3608
        %v3642 = vadd.f32 %v3521, %v3610
        %v3643 = vadd.f32 %v3522, %v3613
        %v3644 = vadd.f32 %v3523, %v3615
        %v3645 = vadd.f32 %v3524, %v3618
        %v3646 = vadd.f32 %v3525, %v3620
        %v3647 = vadd.f32 %v3526, %v3623
        %v3648 = vadd.f32 %v3527, %v3625
        %v3649 = vadd.f32 %v3528, %v3628
        %v3650 = vadd.f32 %v3529, %v3630
        %v3651 = vadd.f32 %v3530, %v3633
        %v3652 = vadd.f32 %v3531, %v3635
        %3653 = vst.msk [vmem:[%s3419] sm:$0xff] %vm1377, %v3637
        %3654 = vst.msk [vmem:[%s3419 + $0x8] sm:$0xff] %vm1377, %v3638
        %3655 = vst.msk [vmem:[%s3419 + $0x10] sm:$0xff] %vm1377, %v3639
        %3656 = vst.msk [vmem:[%s3419 + $0x18] sm:$0xff] %vm1377, %v3640
        %3657 = vst.msk [vmem:[%s3419 + $0x20] sm:$0xff] %vm1377, %v3641
        %3658 = vst.msk [vmem:[%s3419 + $0x28] sm:$0xff] %vm1377, %v3642
        %3659 = vst.msk [vmem:[%s3419 + $0x30] sm:$0xff] %vm1377, %v3643
        %3660 = vst.msk [vmem:[%s3419 + $0x38] sm:$0xff] %vm1377, %v3644
        %3661 = vst.msk [vmem:[%s3419 + $0x40] sm:$0xff] %vm1377, %v3645
        %3662 = vst.msk [vmem:[%s3419 + $0x48] sm:$0xff] %vm1377, %v3646
        %3663 = vst.msk [vmem:[%s3419 + $0x50] sm:$0xff] %vm1377, %v3647
        %3664 = vst.msk [vmem:[%s3419 + $0x58] sm:$0xff] %vm1377, %v3648
        %3665 = vst.msk [vmem:[%s3419 + $0x60] sm:$0xff] %vm1377, %v3649
        %3666 = vst.msk [vmem:[%s3419 + $0x68] sm:$0xff] %vm1377, %v3650
        %3667 = vst.msk [vmem:[%s3419 + $0x70] sm:$0xff] %vm1377, %v3651
        %3668 = vst.msk [vmem:[%s3419 + $0x78] sm:$0xff] %vm1377, %v3652
        %3669 = vst.msk [vmem:[%s3065] sm:$0xff] %vm1803, %v3114
        %3670 = vst.msk [vmem:[%s3065 + $0x8] sm:$0xff] %vm1803, %v3115
        %3671 = vst.msk [vmem:[%s3065 + $0x10] sm:$0xff] %vm1803, %v3116
        %3672 = vst.msk [vmem:[%s3065 + $0x18] sm:$0xff] %vm1803, %v3117
        %3673 = vst.msk [vmem:[%s3065 + $0x20] sm:$0xff] %vm1803, %v3118
        %3674 = vst.msk [vmem:[%s3065 + $0x28] sm:$0xff] %vm1803, %v3119
        %3675 = vst.msk [vmem:[%s3065 + $0x30] sm:$0xff] %vm1803, %v3120
        %3676 = vst.msk [vmem:[%s3065 + $0x38] sm:$0xff] %vm1803, %v3121
        %3677 = vst.msk [vmem:[%s3065 + $0x40] sm:$0xff] %vm1803, %v3122
        %3678 = vst.msk [vmem:[%s3065 + $0x48] sm:$0xff] %vm1803, %v3123
        %3679 = vst.msk [vmem:[%s3065 + $0x50] sm:$0xff] %vm1803, %v3124
        %3680 = vst.msk [vmem:[%s3065 + $0x58] sm:$0xff] %vm1803, %v3125
        %3681 = vst.msk [vmem:[%s3065 + $0x60] sm:$0xff] %vm1803, %v3126
        %3682 = vst.msk [vmem:[%s3065 + $0x68] sm:$0xff] %vm1803, %v3127
        %3683 = vst.msk [vmem:[%s3065 + $0x70] sm:$0xff] %vm1803, %v3128
        %3684 = vst.msk [vmem:[%s3065 + $0x78] sm:$0xff] %vm1803, %v3129
        %s3685 = scalar_lea.vmem %s1011, 192 [#allocation5]
        %v3686 = vld [vmem:[%s3685] sm:$0xf]
        %v3687 = vld [vmem:[%s3685 + $0x4] sm:$0xf]
        %v3688 = vld [vmem:[%s3685 + $0x8] sm:$0xf]
        %v3689 = vld [vmem:[%s3685 + $0xc] sm:$0xf]
        %v3690 = vld [vmem:[%s3685 + $0x10] sm:$0xf]
        %v3691 = vld [vmem:[%s3685 + $0x14] sm:$0xf]
        %v3692 = vld [vmem:[%s3685 + $0x18] sm:$0xf]
        %v3693 = vld [vmem:[%s3685 + $0x1c] sm:$0xf]
        %v3694 = vld [vmem:[%s3685 + $0x20] sm:$0xf]
        %v3695 = vld [vmem:[%s3685 + $0x24] sm:$0xf]
        %v3696 = vld [vmem:[%s3685 + $0x28] sm:$0xf]
        %v3697 = vld [vmem:[%s3685 + $0x2c] sm:$0xf]
        %v3698 = vld [vmem:[%s3685 + $0x30] sm:$0xf]
        %v3699 = vld [vmem:[%s3685 + $0x34] sm:$0xf]
        %v3700 = vld [vmem:[%s3685 + $0x38] sm:$0xf]
        %v3701 = vld [vmem:[%s3685 + $0x3c] sm:$0xf]
        %s3702 = scalar_lea.vmem %s1018, 48 [#allocation6]
        %v3703 = vld [vmem:[%s3702] sm:$0xf]
        %v3704 = vld [vmem:[%s3702 + $0x4] sm:$0xf]
        %v3705 = vld [vmem:[%s3702 + $0x8] sm:$0xf]
        %v3706 = vld [vmem:[%s3702 + $0xc] sm:$0xf]
        %s3707 = scalar_lea.vmem %s1025, 192 [#allocation7]
        %v3708 = vld [vmem:[%s3707] sm:$0xf]
        %v3709 = vld [vmem:[%s3707 + $0x4] sm:$0xf]
        %v3710 = vld [vmem:[%s3707 + $0x8] sm:$0xf]
        %v3711 = vld [vmem:[%s3707 + $0xc] sm:$0xf]
        %v3712 = vld [vmem:[%s3707 + $0x10] sm:$0xf]
        %v3713 = vld [vmem:[%s3707 + $0x14] sm:$0xf]
        %v3714 = vld [vmem:[%s3707 + $0x18] sm:$0xf]
        %v3715 = vld [vmem:[%s3707 + $0x1c] sm:$0xf]
        %v3716 = vld [vmem:[%s3707 + $0x20] sm:$0xf]
        %v3717 = vld [vmem:[%s3707 + $0x24] sm:$0xf]
        %v3718 = vld [vmem:[%s3707 + $0x28] sm:$0xf]
        %v3719 = vld [vmem:[%s3707 + $0x2c] sm:$0xf]
        %v3720 = vld [vmem:[%s3707 + $0x30] sm:$0xf]
        %v3721 = vld [vmem:[%s3707 + $0x34] sm:$0xf]
        %v3722 = vld [vmem:[%s3707 + $0x38] sm:$0xf]
        %v3723 = vld [vmem:[%s3707 + $0x3c] sm:$0xf]
        %v3740 = vunpack.c.l.b16 %v3686
        %v3741 = vunpack.c.l.b16 %v3687
        %v3742 = vunpack.c.l.b16 %v3688
        %v3743 = vunpack.c.l.b16 %v3689
        %v3744 = vunpack.c.l.b16 %v3690
        %v3745 = vunpack.c.l.b16 %v3691
        %v3746 = vunpack.c.l.b16 %v3692
        %v3747 = vunpack.c.l.b16 %v3693
        %v3748 = vunpack.c.l.b16 %v3694
        %v3749 = vunpack.c.l.b16 %v3695
        %v3750 = vunpack.c.l.b16 %v3696
        %v3751 = vunpack.c.l.b16 %v3697
        %v3752 = vunpack.c.l.b16 %v3698
        %v3753 = vunpack.c.l.b16 %v3699
        %v3754 = vunpack.c.l.b16 %v3700
        %v3755 = vunpack.c.l.b16 %v3701
        %v3756 = vpack.c.b16 %v3741, %v3740
        %v3757 = vpack.c.b16 %v3743, %v3742
        %v3758 = vpack.c.b16 %v3745, %v3744
        %v3759 = vpack.c.b16 %v3747, %v3746
        %v3760 = vpack.c.b16 %v3749, %v3748
        %v3761 = vpack.c.b16 %v3751, %v3750
        %v3762 = vpack.c.b16 %v3753, %v3752
        %v3763 = vpack.c.b16 %v3755, %v3754
        %v3768 = vunpack.c.l.b16 %v3703
        %v3769 = vunpack.c.l.b16 %v3704
        %v3770 = vunpack.c.l.b16 %v3705
        %v3771 = vunpack.c.l.b16 %v3706
        %v3772 = vpack.c.b16 %v3769, %v3768
        %v3773 = vpack.c.b16 %v3771, %v3770
        %v3777 = vsel %vm1377, %v3756, 0
        %v3780 = vsel %vm1377, %v3757, 0
        %v3783 = vsel %vm1377, %v3758, 0
        %v3786 = vsel %vm1377, %v3759, 0
        %v3789 = vsel %vm1377, %v3760, 0
        %v3792 = vsel %vm1377, %v3761, 0
        %v3795 = vsel %vm1377, %v3762, 0
        %v3798 = vsel %vm1377, %v3763, 0
        %3800 = vmatpush.bf16.msra.mxu0 0
        %3801 = vmatpush.bf16.msra.mxu0 0
        %3802 = vmatpush.bf16.msra.mxu0 0
        %3803 = vmatpush.bf16.msra.mxu0 0
        %3804 = vmatpush.bf16.msra.mxu0 0
        %3805 = vmatpush.bf16.msra.mxu0 0
        %3806 = vmatpush.bf16.msra.mxu0 %v3773
        %3807 = vmatpush.bf16.msra.mxu0 %v3772
        %3808 = vmatmul.bf16.gmra.mxu0 %v3777
        %v3809 = vpop.f32.mrf.mxu0
        %v3810 = vadd.f32 0.0, %v3809
        %v3811 = vpop.f32.mrf.mxu0
        %v3812 = vadd.f32 0.0, %v3811
        %3813 = vmatmul.bf16.gmra.mxu0 %v3780
        %v3814 = vpop.f32.mrf.mxu0
        %v3815 = vadd.f32 0.0, %v3814
        %v3816 = vpop.f32.mrf.mxu0
        %v3817 = vadd.f32 0.0, %v3816
        %3818 = vmatmul.bf16.gmra.mxu0 %v3783
        %v3819 = vpop.f32.mrf.mxu0
        %v3820 = vadd.f32 0.0, %v3819
        %v3821 = vpop.f32.mrf.mxu0
        %v3822 = vadd.f32 0.0, %v3821
        %3823 = vmatmul.bf16.gmra.mxu0 %v3786
        %v3824 = vpop.f32.mrf.mxu0
        %v3825 = vadd.f32 0.0, %v3824
        %v3826 = vpop.f32.mrf.mxu0
        %v3827 = vadd.f32 0.0, %v3826
        %3828 = vmatmul.bf16.gmra.mxu0 %v3789
        %v3829 = vpop.f32.mrf.mxu0
        %v3830 = vadd.f32 0.0, %v3829
        %v3831 = vpop.f32.mrf.mxu0
        %v3832 = vadd.f32 0.0, %v3831
        %3833 = vmatmul.bf16.gmra.mxu0 %v3792
        %v3834 = vpop.f32.mrf.mxu0
        %v3835 = vadd.f32 0.0, %v3834
        %v3836 = vpop.f32.mrf.mxu0
        %v3837 = vadd.f32 0.0, %v3836
        %3838 = vmatmul.bf16.gmra.mxu0 %v3795
        %v3839 = vpop.f32.mrf.mxu0
        %v3840 = vadd.f32 0.0, %v3839
        %v3841 = vpop.f32.mrf.mxu0
        %v3842 = vadd.f32 0.0, %v3841
        %3843 = vmatmul.bf16.gmra.mxu0 %v3798
        %v3844 = vpop.f32.mrf.mxu0
        %v3845 = vadd.f32 0.0, %v3844
        %v3846 = vpop.f32.mrf.mxu0
        %v3847 = vadd.f32 0.0, %v3846
        %3848 = vdwg.mxu0
        %v3849 = vsel %vm1288, %v3810, -1e+30
        %v3850 = vsel %vm1288, %v3812, -1e+30
        %v3851 = vsel %vm1288, %v3815, -1e+30
        %v3852 = vsel %vm1288, %v3817, -1e+30
        %v3853 = vsel %vm1288, %v3820, -1e+30
        %v3854 = vsel %vm1288, %v3822, -1e+30
        %v3855 = vsel %vm1288, %v3825, -1e+30
        %v3856 = vsel %vm1288, %v3827, -1e+30
        %v3857 = vsel %vm1288, %v3830, -1e+30
        %v3858 = vsel %vm1288, %v3832, -1e+30
        %v3859 = vsel %vm1288, %v3835, -1e+30
        %v3860 = vsel %vm1288, %v3837, -1e+30
        %v3861 = vsel %vm1288, %v3840, -1e+30
        %v3862 = vsel %vm1288, %v3842, -1e+30
        %v3863 = vsel %vm1288, %v3845, -1e+30
        %v3864 = vsel %vm1288, %v3847, -1e+30
        %s3865 = scalar_lea.vmem [#allocation2], 384
        %v3866 = vld [vmem:[%s3865] sm:$0xff]
        %v3867 = vld [vmem:[%s3865 + $0x8] sm:$0xff]
        %v3868 = vld [vmem:[%s3865 + $0x10] sm:$0xff]
        %v3869 = vld [vmem:[%s3865 + $0x18] sm:$0xff]
        %v3870 = vld [vmem:[%s3865 + $0x20] sm:$0xff]
        %v3871 = vld [vmem:[%s3865 + $0x28] sm:$0xff]
        %v3872 = vld [vmem:[%s3865 + $0x30] sm:$0xff]
        %v3873 = vld [vmem:[%s3865 + $0x38] sm:$0xff]
        %v3874 = vld [vmem:[%s3865 + $0x40] sm:$0xff]
        %v3875 = vld [vmem:[%s3865 + $0x48] sm:$0xff]
        %v3876 = vld [vmem:[%s3865 + $0x50] sm:$0xff]
        %v3877 = vld [vmem:[%s3865 + $0x58] sm:$0xff]
        %v3878 = vld [vmem:[%s3865 + $0x60] sm:$0xff]
        %v3879 = vld [vmem:[%s3865 + $0x68] sm:$0xff]
        %v3880 = vld [vmem:[%s3865 + $0x70] sm:$0xff]
        %v3881 = vld [vmem:[%s3865 + $0x78] sm:$0xff]
        %3882 = vmax.xlane.f32.xlu0 %v3849
        %v3883 = vpop.xlane.xlu0 %3882
        %3884 = vmax.xlane.f32.xlu0 %v3850
        %v3885 = vpop.xlane.xlu0 %3884
        %3886 = vmax.xlane.f32.xlu0 %v3851
        %v3887 = vpop.xlane.xlu0 %3886
        %3888 = vmax.xlane.f32.xlu0 %v3852
        %v3889 = vpop.xlane.xlu0 %3888
        %3890 = vmax.xlane.f32.xlu0 %v3853
        %v3891 = vpop.xlane.xlu0 %3890
        %3892 = vmax.xlane.f32.xlu0 %v3854
        %v3893 = vpop.xlane.xlu0 %3892
        %3894 = vmax.xlane.f32.xlu0 %v3855
        %v3895 = vpop.xlane.xlu0 %3894
        %3896 = vmax.xlane.f32.xlu0 %v3856
        %v3897 = vpop.xlane.xlu0 %3896
        %3898 = vmax.xlane.f32.xlu0 %v3857
        %v3899 = vpop.xlane.xlu0 %3898
        %3900 = vmax.xlane.f32.xlu0 %v3858
        %v3901 = vpop.xlane.xlu0 %3900
        %3902 = vmax.xlane.f32.xlu0 %v3859
        %v3903 = vpop.xlane.xlu0 %3902
        %3904 = vmax.xlane.f32.xlu0 %v3860
        %v3905 = vpop.xlane.xlu0 %3904
        %3906 = vmax.xlane.f32.xlu0 %v3861
        %v3907 = vpop.xlane.xlu0 %3906
        %3908 = vmax.xlane.f32.xlu0 %v3862
        %v3909 = vpop.xlane.xlu0 %3908
        %3910 = vmax.xlane.f32.xlu0 %v3863
        %v3911 = vpop.xlane.xlu0 %3910
        %3912 = vmax.xlane.f32.xlu0 %v3864
        %v3913 = vpop.xlane.xlu0 %3912
        %v3914 = vmax.f32 %v3866, %v3883
        %v3915 = vmax.f32 %v3867, %v3885
        %v3916 = vmax.f32 %v3868, %v3887
        %v3917 = vmax.f32 %v3869, %v3889
        %v3918 = vmax.f32 %v3870, %v3891
        %v3919 = vmax.f32 %v3871, %v3893
        %v3920 = vmax.f32 %v3872, %v3895
        %v3921 = vmax.f32 %v3873, %v3897
        %v3922 = vmax.f32 %v3874, %v3899
        %v3923 = vmax.f32 %v3875, %v3901
        %v3924 = vmax.f32 %v3876, %v3903
        %v3925 = vmax.f32 %v3877, %v3905
        %v3926 = vmax.f32 %v3878, %v3907
        %v3927 = vmax.f32 %v3879, %v3909
        %v3928 = vmax.f32 %v3880, %v3911
        %v3929 = vmax.f32 %v3881, %v3913
        %v3930 = vsub.f32 %v3866, %v3914
        %v3931 = vsub.f32 %v3867, %v3915
        %v3932 = vsub.f32 %v3868, %v3916
        %v3933 = vsub.f32 %v3869, %v3917
        %v3934 = vsub.f32 %v3870, %v3918
        %v3935 = vsub.f32 %v3871, %v3919
        %v3936 = vsub.f32 %v3872, %v3920
        %v3937 = vsub.f32 %v3873, %v3921
        %v3938 = vsub.f32 %v3874, %v3922
        %v3939 = vsub.f32 %v3875, %v3923
        %v3940 = vsub.f32 %v3876, %v3924
        %v3941 = vsub.f32 %v3877, %v3925
        %v3942 = vsub.f32 %v3878, %v3926
        %v3943 = vsub.f32 %v3879, %v3927
        %v3944 = vsub.f32 %v3880, %v3928
        %v3945 = vsub.f32 %v3881, %v3929
        %v3946 = vmul.f32 %v3930, 1.442695
        %v3947 = vpow.pop %v3946
        %v3948 = vmul.f32 %v3931, 1.442695
        %v3949 = vpow.pop %v3948
        %v3950 = vmul.f32 %v3932, 1.442695
        %v3951 = vpow.pop %v3950
        %v3952 = vmul.f32 %v3933, 1.442695
        %v3953 = vpow.pop %v3952
        %v3954 = vmul.f32 %v3934, 1.442695
        %v3955 = vpow.pop %v3954
        %v3956 = vmul.f32 %v3935, 1.442695
        %v3957 = vpow.pop %v3956
        %v3958 = vmul.f32 %v3936, 1.442695
        %v3959 = vpow.pop %v3958
        %v3960 = vmul.f32 %v3937, 1.442695
        %v3961 = vpow.pop %v3960
        %v3962 = vmul.f32 %v3938, 1.442695
        %v3963 = vpow.pop %v3962
        %v3964 = vmul.f32 %v3939, 1.442695
        %v3965 = vpow.pop %v3964
        %v3966 = vmul.f32 %v3940, 1.442695
        %v3967 = vpow.pop %v3966
        %v3968 = vmul.f32 %v3941, 1.442695
        %v3969 = vpow.pop %v3968
        %v3970 = vmul.f32 %v3942, 1.442695
        %v3971 = vpow.pop %v3970
        %v3972 = vmul.f32 %v3943, 1.442695
        %v3973 = vpow.pop %v3972
        %v3974 = vmul.f32 %v3944, 1.442695
        %v3975 = vpow.pop %v3974
        %v3976 = vmul.f32 %v3945, 1.442695
        %v3977 = vpow.pop %v3976
        %3979 = vset.pattern.permute.xlu0 0
        %3980 = vperm.xlu0 %3979, %v3914
        %v3981 = vpop.permute.xlu0 %3980
        %3984 = vset.pattern.permute.xlu0 0
        %3985 = vperm.xlu0 %3984, %v3915
        %v3986 = vpop.permute.xlu0 %3985
        %3989 = vset.pattern.permute.xlu0 0
        %3990 = vperm.xlu0 %3989, %v3916
        %v3991 = vpop.permute.xlu0 %3990
        %3994 = vset.pattern.permute.xlu0 0
        %3995 = vperm.xlu0 %3994, %v3917
        %v3996 = vpop.permute.xlu0 %3995
        %3999 = vset.pattern.permute.xlu0 0
        %4000 = vperm.xlu0 %3999, %v3918
        %v4001 = vpop.permute.xlu0 %4000
        %4004 = vset.pattern.permute.xlu0 0
        %4005 = vperm.xlu0 %4004, %v3919
        %v4006 = vpop.permute.xlu0 %4005
        %4009 = vset.pattern.permute.xlu0 0
        %4010 = vperm.xlu0 %4009, %v3920
        %v4011 = vpop.permute.xlu0 %4010
        %4014 = vset.pattern.permute.xlu0 0
        %4015 = vperm.xlu0 %4014, %v3921
        %v4016 = vpop.permute.xlu0 %4015
        %4019 = vset.pattern.permute.xlu0 0
        %4020 = vperm.xlu0 %4019, %v3922
        %v4021 = vpop.permute.xlu0 %4020
        %4024 = vset.pattern.permute.xlu0 0
        %4025 = vperm.xlu0 %4024, %v3923
        %v4026 = vpop.permute.xlu0 %4025
        %4029 = vset.pattern.permute.xlu0 0
        %4030 = vperm.xlu0 %4029, %v3924
        %v4031 = vpop.permute.xlu0 %4030
        %4034 = vset.pattern.permute.xlu0 0
        %4035 = vperm.xlu0 %4034, %v3925
        %v4036 = vpop.permute.xlu0 %4035
        %4039 = vset.pattern.permute.xlu0 0
        %4040 = vperm.xlu0 %4039, %v3926
        %v4041 = vpop.permute.xlu0 %4040
        %4044 = vset.pattern.permute.xlu0 0
        %4045 = vperm.xlu0 %4044, %v3927
        %v4046 = vpop.permute.xlu0 %4045
        %4049 = vset.pattern.permute.xlu0 0
        %4050 = vperm.xlu0 %4049, %v3928
        %v4051 = vpop.permute.xlu0 %4050
        %4054 = vset.pattern.permute.xlu0 0
        %4055 = vperm.xlu0 %4054, %v3929
        %v4056 = vpop.permute.xlu0 %4055
        %v4058 = vsub.f32 %v3849, %v3981
        %v4059 = vsub.f32 %v3850, %v3986
        %v4060 = vsub.f32 %v3851, %v3991
        %v4061 = vsub.f32 %v3852, %v3996
        %v4062 = vsub.f32 %v3853, %v4001
        %v4063 = vsub.f32 %v3854, %v4006
        %v4064 = vsub.f32 %v3855, %v4011
        %v4065 = vsub.f32 %v3856, %v4016
        %v4066 = vsub.f32 %v3857, %v4021
        %v4067 = vsub.f32 %v3858, %v4026
        %v4068 = vsub.f32 %v3859, %v4031
        %v4069 = vsub.f32 %v3860, %v4036
        %v4070 = vsub.f32 %v3861, %v4041
        %v4071 = vsub.f32 %v3862, %v4046
        %v4072 = vsub.f32 %v3863, %v4051
        %v4073 = vsub.f32 %v3864, %v4056
        %v4074 = vmul.f32 %v4058, 1.442695
        %v4075 = vpow.pop %v4074
        %v4076 = vmul.f32 %v4059, 1.442695
        %v4077 = vpow.pop %v4076
        %v4078 = vmul.f32 %v4060, 1.442695
        %v4079 = vpow.pop %v4078
        %v4080 = vmul.f32 %v4061, 1.442695
        %v4081 = vpow.pop %v4080
        %v4082 = vmul.f32 %v4062, 1.442695
        %v4083 = vpow.pop %v4082
        %v4084 = vmul.f32 %v4063, 1.442695
        %v4085 = vpow.pop %v4084
        %v4086 = vmul.f32 %v4064, 1.442695
        %v4087 = vpow.pop %v4086
        %v4088 = vmul.f32 %v4065, 1.442695
        %v4089 = vpow.pop %v4088
        %v4090 = vmul.f32 %v4066, 1.442695
        %v4091 = vpow.pop %v4090
        %v4092 = vmul.f32 %v4067, 1.442695
        %v4093 = vpow.pop %v4092
        %v4094 = vmul.f32 %v4068, 1.442695
        %v4095 = vpow.pop %v4094
        %v4096 = vmul.f32 %v4069, 1.442695
        %v4097 = vpow.pop %v4096
        %v4098 = vmul.f32 %v4070, 1.442695
        %v4099 = vpow.pop %v4098
        %v4100 = vmul.f32 %v4071, 1.442695
        %v4101 = vpow.pop %v4100
        %v4102 = vmul.f32 %v4072, 1.442695
        %v4103 = vpow.pop %v4102
        %v4104 = vmul.f32 %v4073, 1.442695
        %v4105 = vpow.pop %v4104
        %v4106 = vsel %vm1288, %v4075, 0.0
        %v4107 = vsel %vm1288, %v4077, 0.0
        %v4108 = vsel %vm1288, %v4079, 0.0
        %v4109 = vsel %vm1288, %v4081, 0.0
        %v4110 = vsel %vm1288, %v4083, 0.0
        %v4111 = vsel %vm1288, %v4085, 0.0
        %v4112 = vsel %vm1288, %v4087, 0.0
        %v4113 = vsel %vm1288, %v4089, 0.0
        %v4114 = vsel %vm1288, %v4091, 0.0
        %v4115 = vsel %vm1288, %v4093, 0.0
        %v4116 = vsel %vm1288, %v4095, 0.0
        %v4117 = vsel %vm1288, %v4097, 0.0
        %v4118 = vsel %vm1288, %v4099, 0.0
        %v4119 = vsel %vm1288, %v4101, 0.0
        %v4120 = vsel %vm1288, %v4103, 0.0
        %v4121 = vsel %vm1288, %v4105, 0.0
        %s4122 = scalar_lea.vmem [#allocation3], 384
        %v4123 = vld [vmem:[%s4122] sm:$0xff]
        %v4124 = vld [vmem:[%s4122 + $0x8] sm:$0xff]
        %v4125 = vld [vmem:[%s4122 + $0x10] sm:$0xff]
        %v4126 = vld [vmem:[%s4122 + $0x18] sm:$0xff]
        %v4127 = vld [vmem:[%s4122 + $0x20] sm:$0xff]
        %v4128 = vld [vmem:[%s4122 + $0x28] sm:$0xff]
        %v4129 = vld [vmem:[%s4122 + $0x30] sm:$0xff]
        %v4130 = vld [vmem:[%s4122 + $0x38] sm:$0xff]
        %v4131 = vld [vmem:[%s4122 + $0x40] sm:$0xff]
        %v4132 = vld [vmem:[%s4122 + $0x48] sm:$0xff]
        %v4133 = vld [vmem:[%s4122 + $0x50] sm:$0xff]
        %v4134 = vld [vmem:[%s4122 + $0x58] sm:$0xff]
        %v4135 = vld [vmem:[%s4122 + $0x60] sm:$0xff]
        %v4136 = vld [vmem:[%s4122 + $0x68] sm:$0xff]
        %v4137 = vld [vmem:[%s4122 + $0x70] sm:$0xff]
        %v4138 = vld [vmem:[%s4122 + $0x78] sm:$0xff]
        %v4139 = vmul.f32 %v3947, %v4123
        %v4140 = vmul.f32 %v3949, %v4124
        %v4141 = vmul.f32 %v3951, %v4125
        %v4142 = vmul.f32 %v3953, %v4126
        %v4143 = vmul.f32 %v3955, %v4127
        %v4144 = vmul.f32 %v3957, %v4128
        %v4145 = vmul.f32 %v3959, %v4129
        %v4146 = vmul.f32 %v3961, %v4130
        %v4147 = vmul.f32 %v3963, %v4131
        %v4148 = vmul.f32 %v3965, %v4132
        %v4149 = vmul.f32 %v3967, %v4133
        %v4150 = vmul.f32 %v3969, %v4134
        %v4151 = vmul.f32 %v3971, %v4135
        %v4152 = vmul.f32 %v3973, %v4136
        %v4153 = vmul.f32 %v3975, %v4137
        %v4154 = vmul.f32 %v3977, %v4138
        %4155 = vadd.xlane.f32.xlu0 %v4106
        %v4156 = vpop.xlane.xlu0 %4155
        %4157 = vadd.xlane.f32.xlu0 %v4107
        %v4158 = vpop.xlane.xlu0 %4157
        %4159 = vadd.xlane.f32.xlu0 %v4108
        %v4160 = vpop.xlane.xlu0 %4159
        %4161 = vadd.xlane.f32.xlu0 %v4109
        %v4162 = vpop.xlane.xlu0 %4161
        %4163 = vadd.xlane.f32.xlu0 %v4110
        %v4164 = vpop.xlane.xlu0 %4163
        %4165 = vadd.xlane.f32.xlu0 %v4111
        %v4166 = vpop.xlane.xlu0 %4165
        %4167 = vadd.xlane.f32.xlu0 %v4112
        %v4168 = vpop.xlane.xlu0 %4167
        %4169 = vadd.xlane.f32.xlu0 %v4113
        %v4170 = vpop.xlane.xlu0 %4169
        %4171 = vadd.xlane.f32.xlu0 %v4114
        %v4172 = vpop.xlane.xlu0 %4171
        %4173 = vadd.xlane.f32.xlu0 %v4115
        %v4174 = vpop.xlane.xlu0 %4173
        %4175 = vadd.xlane.f32.xlu0 %v4116
        %v4176 = vpop.xlane.xlu0 %4175
        %4177 = vadd.xlane.f32.xlu0 %v4117
        %v4178 = vpop.xlane.xlu0 %4177
        %4179 = vadd.xlane.f32.xlu0 %v4118
        %v4180 = vpop.xlane.xlu0 %4179
        %4181 = vadd.xlane.f32.xlu0 %v4119
        %v4182 = vpop.xlane.xlu0 %4181
        %4183 = vadd.xlane.f32.xlu0 %v4120
        %v4184 = vpop.xlane.xlu0 %4183
        %4185 = vadd.xlane.f32.xlu0 %v4121
        %v4186 = vpop.xlane.xlu0 %4185
        %v4187 = vadd.f32 %v4139, %v4156
        %v4188 = vadd.f32 %v4140, %v4158
        %v4189 = vadd.f32 %v4141, %v4160
        %v4190 = vadd.f32 %v4142, %v4162
        %v4191 = vadd.f32 %v4143, %v4164
        %v4192 = vadd.f32 %v4144, %v4166
        %v4193 = vadd.f32 %v4145, %v4168
        %v4194 = vadd.f32 %v4146, %v4170
        %v4195 = vadd.f32 %v4147, %v4172
        %v4196 = vadd.f32 %v4148, %v4174
        %v4197 = vadd.f32 %v4149, %v4176
        %v4198 = vadd.f32 %v4150, %v4178
        %v4199 = vadd.f32 %v4151, %v4180
        %v4200 = vadd.f32 %v4152, %v4182
        %v4201 = vadd.f32 %v4153, %v4184
        %v4202 = vadd.f32 %v4154, %v4186
        %4203 = vst.msk [vmem:[%s4122] sm:$0xff] %vm1803, %v4187
        %4204 = vst.msk [vmem:[%s4122 + $0x8] sm:$0xff] %vm1803, %v4188
        %4205 = vst.msk [vmem:[%s4122 + $0x10] sm:$0xff] %vm1803, %v4189
        %4206 = vst.msk [vmem:[%s4122 + $0x18] sm:$0xff] %vm1803, %v4190
        %4207 = vst.msk [vmem:[%s4122 + $0x20] sm:$0xff] %vm1803, %v4191
        %4208 = vst.msk [vmem:[%s4122 + $0x28] sm:$0xff] %vm1803, %v4192
        %4209 = vst.msk [vmem:[%s4122 + $0x30] sm:$0xff] %vm1803, %v4193
        %4210 = vst.msk [vmem:[%s4122 + $0x38] sm:$0xff] %vm1803, %v4194
        %4211 = vst.msk [vmem:[%s4122 + $0x40] sm:$0xff] %vm1803, %v4195
        %4212 = vst.msk [vmem:[%s4122 + $0x48] sm:$0xff] %vm1803, %v4196
        %4213 = vst.msk [vmem:[%s4122 + $0x50] sm:$0xff] %vm1803, %v4197
        %4214 = vst.msk [vmem:[%s4122 + $0x58] sm:$0xff] %vm1803, %v4198
        %4215 = vst.msk [vmem:[%s4122 + $0x60] sm:$0xff] %vm1803, %v4199
        %4216 = vst.msk [vmem:[%s4122 + $0x68] sm:$0xff] %vm1803, %v4200
        %4217 = vst.msk [vmem:[%s4122 + $0x70] sm:$0xff] %vm1803, %v4201
        %4218 = vst.msk [vmem:[%s4122 + $0x78] sm:$0xff] %vm1803, %v4202
        %s4219 = scalar_lea.vmem [#allocation4], 384
        %v4220 = vld [vmem:[%s4219] sm:$0xff]
        %v4221 = vld [vmem:[%s4219 + $0x8] sm:$0xff]
        %v4222 = vld [vmem:[%s4219 + $0x10] sm:$0xff]
        %v4223 = vld [vmem:[%s4219 + $0x18] sm:$0xff]
        %v4224 = vld [vmem:[%s4219 + $0x20] sm:$0xff]
        %v4225 = vld [vmem:[%s4219 + $0x28] sm:$0xff]
        %v4226 = vld [vmem:[%s4219 + $0x30] sm:$0xff]
        %v4227 = vld [vmem:[%s4219 + $0x38] sm:$0xff]
        %v4228 = vld [vmem:[%s4219 + $0x40] sm:$0xff]
        %v4229 = vld [vmem:[%s4219 + $0x48] sm:$0xff]
        %v4230 = vld [vmem:[%s4219 + $0x50] sm:$0xff]
        %v4231 = vld [vmem:[%s4219 + $0x58] sm:$0xff]
        %v4232 = vld [vmem:[%s4219 + $0x60] sm:$0xff]
        %v4233 = vld [vmem:[%s4219 + $0x68] sm:$0xff]
        %v4234 = vld [vmem:[%s4219 + $0x70] sm:$0xff]
        %v4235 = vld [vmem:[%s4219 + $0x78] sm:$0xff]
        %4237 = vset.pattern.permute.xlu0 0
        %4238 = vperm.xlu0 %4237, %v3947
        %v4239 = vpop.permute.xlu0 %4238
        %4242 = vset.pattern.permute.xlu0 0
        %4243 = vperm.xlu0 %4242, %v3949
        %v4244 = vpop.permute.xlu0 %4243
        %4247 = vset.pattern.permute.xlu0 0
        %4248 = vperm.xlu0 %4247, %v3951
        %v4249 = vpop.permute.xlu0 %4248
        %4252 = vset.pattern.permute.xlu0 0
        %4253 = vperm.xlu0 %4252, %v3953
        %v4254 = vpop.permute.xlu0 %4253
        %4257 = vset.pattern.permute.xlu0 0
        %4258 = vperm.xlu0 %4257, %v3955
        %v4259 = vpop.permute.xlu0 %4258
        %4262 = vset.pattern.permute.xlu0 0
        %4263 = vperm.xlu0 %4262, %v3957
        %v4264 = vpop.permute.xlu0 %4263
        %4267 = vset.pattern.permute.xlu0 0
        %4268 = vperm.xlu0 %4267, %v3959
        %v4269 = vpop.permute.xlu0 %4268
        %4272 = vset.pattern.permute.xlu0 0
        %4273 = vperm.xlu0 %4272, %v3961
        %v4274 = vpop.permute.xlu0 %4273
        %4277 = vset.pattern.permute.xlu0 0
        %4278 = vperm.xlu0 %4277, %v3963
        %v4279 = vpop.permute.xlu0 %4278
        %4282 = vset.pattern.permute.xlu0 0
        %4283 = vperm.xlu0 %4282, %v3965
        %v4284 = vpop.permute.xlu0 %4283
        %4287 = vset.pattern.permute.xlu0 0
        %4288 = vperm.xlu0 %4287, %v3967
        %v4289 = vpop.permute.xlu0 %4288
        %4292 = vset.pattern.permute.xlu0 0
        %4293 = vperm.xlu0 %4292, %v3969
        %v4294 = vpop.permute.xlu0 %4293
        %4297 = vset.pattern.permute.xlu0 0
        %4298 = vperm.xlu0 %4297, %v3971
        %v4299 = vpop.permute.xlu0 %4298
        %4302 = vset.pattern.permute.xlu0 0
        %4303 = vperm.xlu0 %4302, %v3973
        %v4304 = vpop.permute.xlu0 %4303
        %4307 = vset.pattern.permute.xlu0 0
        %4308 = vperm.xlu0 %4307, %v3975
        %v4309 = vpop.permute.xlu0 %4308
        %4312 = vset.pattern.permute.xlu0 0
        %4313 = vperm.xlu0 %4312, %v3977
        %v4314 = vpop.permute.xlu0 %4313
        %v4316 = vmul.f32 %v4239, %v4220
        %v4317 = vmul.f32 %v4244, %v4221
        %v4318 = vmul.f32 %v4249, %v4222
        %v4319 = vmul.f32 %v4254, %v4223
        %v4320 = vmul.f32 %v4259, %v4224
        %v4321 = vmul.f32 %v4264, %v4225
        %v4322 = vmul.f32 %v4269, %v4226
        %v4323 = vmul.f32 %v4274, %v4227
        %v4324 = vmul.f32 %v4279, %v4228
        %v4325 = vmul.f32 %v4284, %v4229
        %v4326 = vmul.f32 %v4289, %v4230
        %v4327 = vmul.f32 %v4294, %v4231
        %v4328 = vmul.f32 %v4299, %v4232
        %v4329 = vmul.f32 %v4304, %v4233
        %v4330 = vmul.f32 %v4309, %v4234
        %v4331 = vmul.f32 %v4314, %v4235
        %v4332 = vpack.c.bf16 %v4107, %v4106
        %v4333 = vpack.c.bf16 %v4109, %v4108
        %v4334 = vpack.c.bf16 %v4111, %v4110
        %v4335 = vpack.c.bf16 %v4113, %v4112
        %v4336 = vpack.c.bf16 %v4115, %v4114
        %v4337 = vpack.c.bf16 %v4117, %v4116
        %v4338 = vpack.c.bf16 %v4119, %v4118
        %v4339 = vpack.c.bf16 %v4121, %v4120
        %v4356 = vunpack.c.l.b16 %v3708
        %v4357 = vunpack.c.l.b16 %v3709
        %v4358 = vunpack.c.l.b16 %v3710
        %v4359 = vunpack.c.l.b16 %v3711
        %v4360 = vunpack.c.l.b16 %v3712
        %v4361 = vunpack.c.l.b16 %v3713
        %v4362 = vunpack.c.l.b16 %v3714
        %v4363 = vunpack.c.l.b16 %v3715
        %v4364 = vunpack.c.l.b16 %v3716
        %v4365 = vunpack.c.l.b16 %v3717
        %v4366 = vunpack.c.l.b16 %v3718
        %v4367 = vunpack.c.l.b16 %v3719
        %v4368 = vunpack.c.l.b16 %v3720
        %v4369 = vunpack.c.l.b16 %v3721
        %v4370 = vunpack.c.l.b16 %v3722
        %v4371 = vunpack.c.l.b16 %v3723
        %v4372 = vpack.c.b16 %v4357, %v4356
        %v4373 = vpack.c.b16 %v4359, %v4358
        %v4374 = vpack.c.b16 %v4361, %v4360
        %v4375 = vpack.c.b16 %v4363, %v4362
        %v4376 = vpack.c.b16 %v4365, %v4364
        %v4377 = vpack.c.b16 %v4367, %v4366
        %v4378 = vpack.c.b16 %v4369, %v4368
        %v4379 = vpack.c.b16 %v4371, %v4370
        %4388 = vmatpush.bf16.msra.mxu0 %v4379
        %4389 = vmatpush.bf16.msra.mxu0 %v4378
        %4390 = vmatpush.bf16.msra.mxu0 %v4377
        %4391 = vmatpush.bf16.msra.mxu0 %v4376
        %4392 = vmatpush.bf16.msra.mxu0 %v4375
        %4393 = vmatpush.bf16.msra.mxu0 %v4374
        %4394 = vmatpush.bf16.msra.mxu0 %v4373
        %4395 = vmatpush.bf16.msra.mxu0 %v4372
        %4396 = vmatmul.bf16.gmra.mxu0 %v4332
        %v4397 = vpop.f32.mrf.mxu0
        %v4398 = vadd.f32 0.0, %v4397
        %v4399 = vpop.f32.mrf.mxu0
        %v4400 = vadd.f32 0.0, %v4399
        %4401 = vmatmul.bf16.gmra.mxu0 %v4333
        %v4402 = vpop.f32.mrf.mxu0
        %v4403 = vadd.f32 0.0, %v4402
        %v4404 = vpop.f32.mrf.mxu0
        %v4405 = vadd.f32 0.0, %v4404
        %4406 = vmatmul.bf16.gmra.mxu0 %v4334
        %v4407 = vpop.f32.mrf.mxu0
        %v4408 = vadd.f32 0.0, %v4407
        %v4409 = vpop.f32.mrf.mxu0
        %v4410 = vadd.f32 0.0, %v4409
        %4411 = vmatmul.bf16.gmra.mxu0 %v4335
        %v4412 = vpop.f32.mrf.mxu0
        %v4413 = vadd.f32 0.0, %v4412
        %v4414 = vpop.f32.mrf.mxu0
        %v4415 = vadd.f32 0.0, %v4414
        %4416 = vmatmul.bf16.gmra.mxu0 %v4336
        %v4417 = vpop.f32.mrf.mxu0
        %v4418 = vadd.f32 0.0, %v4417
        %v4419 = vpop.f32.mrf.mxu0
        %v4420 = vadd.f32 0.0, %v4419
        %4421 = vmatmul.bf16.gmra.mxu0 %v4337
        %v4422 = vpop.f32.mrf.mxu0
        %v4423 = vadd.f32 0.0, %v4422
        %v4424 = vpop.f32.mrf.mxu0
        %v4425 = vadd.f32 0.0, %v4424
        %4426 = vmatmul.bf16.gmra.mxu0 %v4338
        %v4427 = vpop.f32.mrf.mxu0
        %v4428 = vadd.f32 0.0, %v4427
        %v4429 = vpop.f32.mrf.mxu0
        %v4430 = vadd.f32 0.0, %v4429
        %4431 = vmatmul.bf16.gmra.mxu0 %v4339
        %v4432 = vpop.f32.mrf.mxu0
        %v4433 = vadd.f32 0.0, %v4432
        %v4434 = vpop.f32.mrf.mxu0
        %v4435 = vadd.f32 0.0, %v4434
        %4436 = vdwg.mxu0
        %v4437 = vadd.f32 %v4316, %v4398
        %v4438 = vadd.f32 %v4317, %v4400
        %v4439 = vadd.f32 %v4318, %v4403
        %v4440 = vadd.f32 %v4319, %v4405
        %v4441 = vadd.f32 %v4320, %v4408
        %v4442 = vadd.f32 %v4321, %v4410
        %v4443 = vadd.f32 %v4322, %v4413
        %v4444 = vadd.f32 %v4323, %v4415
        %v4445 = vadd.f32 %v4324, %v4418
        %v4446 = vadd.f32 %v4325, %v4420
        %v4447 = vadd.f32 %v4326, %v4423
        %v4448 = vadd.f32 %v4327, %v4425
        %v4449 = vadd.f32 %v4328, %v4428
        %v4450 = vadd.f32 %v4329, %v4430
        %v4451 = vadd.f32 %v4330, %v4433
        %v4452 = vadd.f32 %v4331, %v4435
        %4453 = vst.msk [vmem:[%s4219] sm:$0xff] %vm1377, %v4437
        %4454 = vst.msk [vmem:[%s4219 + $0x8] sm:$0xff] %vm1377, %v4438
        %4455 = vst.msk [vmem:[%s4219 + $0x10] sm:$0xff] %vm1377, %v4439
        %4456 = vst.msk [vmem:[%s4219 + $0x18] sm:$0xff] %vm1377, %v4440
        %4457 = vst.msk [vmem:[%s4219 + $0x20] sm:$0xff] %vm1377, %v4441
        %4458 = vst.msk [vmem:[%s4219 + $0x28] sm:$0xff] %vm1377, %v4442
        %4459 = vst.msk [vmem:[%s4219 + $0x30] sm:$0xff] %vm1377, %v4443
        %4460 = vst.msk [vmem:[%s4219 + $0x38] sm:$0xff] %vm1377, %v4444
        %4461 = vst.msk [vmem:[%s4219 + $0x40] sm:$0xff] %vm1377, %v4445
        %4462 = vst.msk [vmem:[%s4219 + $0x48] sm:$0xff] %vm1377, %v4446
        %4463 = vst.msk [vmem:[%s4219 + $0x50] sm:$0xff] %vm1377, %v4447
        %4464 = vst.msk [vmem:[%s4219 + $0x58] sm:$0xff] %vm1377, %v4448
        %4465 = vst.msk [vmem:[%s4219 + $0x60] sm:$0xff] %vm1377, %v4449
        %4466 = vst.msk [vmem:[%s4219 + $0x68] sm:$0xff] %vm1377, %v4450
        %4467 = vst.msk [vmem:[%s4219 + $0x70] sm:$0xff] %vm1377, %v4451
        %4468 = vst.msk [vmem:[%s4219 + $0x78] sm:$0xff] %vm1377, %v4452
        %4469 = vst.msk [vmem:[%s3865] sm:$0xff] %vm1803, %v3914
        %4470 = vst.msk [vmem:[%s3865 + $0x8] sm:$0xff] %vm1803, %v3915
        %4471 = vst.msk [vmem:[%s3865 + $0x10] sm:$0xff] %vm1803, %v3916
        %4472 = vst.msk [vmem:[%s3865 + $0x18] sm:$0xff] %vm1803, %v3917
        %4473 = vst.msk [vmem:[%s3865 + $0x20] sm:$0xff] %vm1803, %v3918
        %4474 = vst.msk [vmem:[%s3865 + $0x28] sm:$0xff] %vm1803, %v3919
        %4475 = vst.msk [vmem:[%s3865 + $0x30] sm:$0xff] %vm1803, %v3920
        %4476 = vst.msk [vmem:[%s3865 + $0x38] sm:$0xff] %vm1803, %v3921
        %4477 = vst.msk [vmem:[%s3865 + $0x40] sm:$0xff] %vm1803, %v3922
        %4478 = vst.msk [vmem:[%s3865 + $0x48] sm:$0xff] %vm1803, %v3923
        %4479 = vst.msk [vmem:[%s3865 + $0x50] sm:$0xff] %vm1803, %v3924
        %4480 = vst.msk [vmem:[%s3865 + $0x58] sm:$0xff] %vm1803, %v3925
        %4481 = vst.msk [vmem:[%s3865 + $0x60] sm:$0xff] %vm1803, %v3926
        %4482 = vst.msk [vmem:[%s3865 + $0x68] sm:$0xff] %vm1803, %v3927
        %4483 = vst.msk [vmem:[%s3865 + $0x70] sm:$0xff] %vm1803, %v3928
        %4484 = vst.msk [vmem:[%s3865 + $0x78] sm:$0xff] %vm1803, %v3929
        %p4485 = scmp.eq.s32.totalorder %s28, 1
        // Predicated region
        $region176: #{tpu_custom_call.1} parent=158 // pred_check
          %p4486 = pneg %p4485
        $region177: #{tpu_custom_call.1} parent=158 // pred_check_branch
          %4488 = sbr.rel (%p4486) target = $region179
        $region178: #{tpu_custom_call.1} parent=158 // pred_region
          %v4489 = vld [vmem:[#allocation3] sm:$0xff]
          %v4490 = vld [vmem:[#allocation3 + $0x8] sm:$0xff]
          %v4491 = vld [vmem:[#allocation3 + $0x10] sm:$0xff]
          %v4492 = vld [vmem:[#allocation3 + $0x18] sm:$0xff]
          %v4493 = vld [vmem:[#allocation3 + $0x20] sm:$0xff]
          %v4494 = vld [vmem:[#allocation3 + $0x28] sm:$0xff]
          %v4495 = vld [vmem:[#allocation3 + $0x30] sm:$0xff]
          %v4496 = vld [vmem:[#allocation3 + $0x38] sm:$0xff]
          %v4497 = vld [vmem:[#allocation3 + $0x40] sm:$0xff]
          %v4498 = vld [vmem:[#allocation3 + $0x48] sm:$0xff]
          %v4499 = vld [vmem:[#allocation3 + $0x50] sm:$0xff]
          %v4500 = vld [vmem:[#allocation3 + $0x58] sm:$0xff]
          %v4501 = vld [vmem:[#allocation3 + $0x60] sm:$0xff]
          %v4502 = vld [vmem:[#allocation3 + $0x68] sm:$0xff]
          %v4503 = vld [vmem:[#allocation3 + $0x70] sm:$0xff]
          %v4504 = vld [vmem:[#allocation3 + $0x78] sm:$0xff]
          %v4505 = vrcp.pop %v4489
          %v4506 = vrcp.pop %v4490
          %v4507 = vrcp.pop %v4491
          %v4508 = vrcp.pop %v4492
          %v4509 = vrcp.pop %v4493
          %v4510 = vrcp.pop %v4494
          %v4511 = vrcp.pop %v4495
          %v4512 = vrcp.pop %v4496
          %v4513 = vrcp.pop %v4497
          %v4514 = vrcp.pop %v4498
          %v4515 = vrcp.pop %v4499
          %v4516 = vrcp.pop %v4500
          %v4517 = vrcp.pop %v4501
          %v4518 = vrcp.pop %v4502
          %v4519 = vrcp.pop %v4503
          %v4520 = vrcp.pop %v4504
          %v4521 = vld [vmem:[#allocation4] sm:$0xff]
          %v4522 = vld [vmem:[#allocation4 + $0x8] sm:$0xff]
          %v4523 = vld [vmem:[#allocation4 + $0x10] sm:$0xff]
          %v4524 = vld [vmem:[#allocation4 + $0x18] sm:$0xff]
          %v4525 = vld [vmem:[#allocation4 + $0x20] sm:$0xff]
          %v4526 = vld [vmem:[#allocation4 + $0x28] sm:$0xff]
          %v4527 = vld [vmem:[#allocation4 + $0x30] sm:$0xff]
          %v4528 = vld [vmem:[#allocation4 + $0x38] sm:$0xff]
          %v4529 = vld [vmem:[#allocation4 + $0x40] sm:$0xff]
          %v4530 = vld [vmem:[#allocation4 + $0x48] sm:$0xff]
          %v4531 = vld [vmem:[#allocation4 + $0x50] sm:$0xff]
          %v4532 = vld [vmem:[#allocation4 + $0x58] sm:$0xff]
          %v4533 = vld [vmem:[#allocation4 + $0x60] sm:$0xff]
          %v4534 = vld [vmem:[#allocation4 + $0x68] sm:$0xff]
          %v4535 = vld [vmem:[#allocation4 + $0x70] sm:$0xff]
          %v4536 = vld [vmem:[#allocation4 + $0x78] sm:$0xff]
          %4538 = vset.pattern.permute.xlu0 0
          %4539 = vperm.xlu0 %4538, %v4505
          %v4540 = vpop.permute.xlu0 %4539
          %4543 = vset.pattern.permute.xlu0 0
          %4544 = vperm.xlu0 %4543, %v4506
          %v4545 = vpop.permute.xlu0 %4544
          %4548 = vset.pattern.permute.xlu0 0
          %4549 = vperm.xlu0 %4548, %v4507
          %v4550 = vpop.permute.xlu0 %4549
          %4553 = vset.pattern.permute.xlu0 0
          %4554 = vperm.xlu0 %4553, %v4508
          %v4555 = vpop.permute.xlu0 %4554
          %4558 = vset.pattern.permute.xlu0 0
          %4559 = vperm.xlu0 %4558, %v4509
          %v4560 = vpop.permute.xlu0 %4559
          %4563 = vset.pattern.permute.xlu0 0
          %4564 = vperm.xlu0 %4563, %v4510
          %v4565 = vpop.permute.xlu0 %4564
          %4568 = vset.pattern.permute.xlu0 0
          %4569 = vperm.xlu0 %4568, %v4511
          %v4570 = vpop.permute.xlu0 %4569
          %4573 = vset.pattern.permute.xlu0 0
          %4574 = vperm.xlu0 %4573, %v4512
          %v4575 = vpop.permute.xlu0 %4574
          %4578 = vset.pattern.permute.xlu0 0
          %4579 = vperm.xlu0 %4578, %v4513
          %v4580 = vpop.permute.xlu0 %4579
          %4583 = vset.pattern.permute.xlu0 0
          %4584 = vperm.xlu0 %4583, %v4514
          %v4585 = vpop.permute.xlu0 %4584
          %4588 = vset.pattern.permute.xlu0 0
          %4589 = vperm.xlu0 %4588, %v4515
          %v4590 = vpop.permute.xlu0 %4589
          %4593 = vset.pattern.permute.xlu0 0
          %4594 = vperm.xlu0 %4593, %v4516
          %v4595 = vpop.permute.xlu0 %4594
          %4598 = vset.pattern.permute.xlu0 0
          %4599 = vperm.xlu0 %4598, %v4517
          %v4600 = vpop.permute.xlu0 %4599
          %4603 = vset.pattern.permute.xlu0 0
          %4604 = vperm.xlu0 %4603, %v4518
          %v4605 = vpop.permute.xlu0 %4604
          %4608 = vset.pattern.permute.xlu0 0
          %4609 = vperm.xlu0 %4608, %v4519
          %v4610 = vpop.permute.xlu0 %4609
          %4613 = vset.pattern.permute.xlu0 0
          %4614 = vperm.xlu0 %4613, %v4520
          %v4615 = vpop.permute.xlu0 %4614
          %v4617 = vmul.f32 %v4521, %v4540
          %v4618 = vmul.f32 %v4522, %v4545
          %v4619 = vmul.f32 %v4523, %v4550
          %v4620 = vmul.f32 %v4524, %v4555
          %v4621 = vmul.f32 %v4525, %v4560
          %v4622 = vmul.f32 %v4526, %v4565
          %v4623 = vmul.f32 %v4527, %v4570
          %v4624 = vmul.f32 %v4528, %v4575
          %v4625 = vmul.f32 %v4529, %v4580
          %v4626 = vmul.f32 %v4530, %v4585
          %v4627 = vmul.f32 %v4531, %v4590
          %v4628 = vmul.f32 %v4532, %v4595
          %v4629 = vmul.f32 %v4533, %v4600
          %v4630 = vmul.f32 %v4534, %v4605
          %v4631 = vmul.f32 %v4535, %v4610
          %v4632 = vmul.f32 %v4536, %v4615
          %v4633 = vpack.c.bf16 %v4617, %v4617
          %v4634 = vpack.c.bf16 %v4618, %v4618
          %v4635 = vpack.c.bf16 %v4619, %v4619
          %v4636 = vpack.c.bf16 %v4620, %v4620
          %v4637 = vpack.c.bf16 %v4621, %v4621
          %v4638 = vpack.c.bf16 %v4622, %v4622
          %v4639 = vpack.c.bf16 %v4623, %v4623
          %v4640 = vpack.c.bf16 %v4624, %v4624
          %v4641 = vpack.c.bf16 %v4625, %v4625
          %v4642 = vpack.c.bf16 %v4626, %v4626
          %v4643 = vpack.c.bf16 %v4627, %v4627
          %v4644 = vpack.c.bf16 %v4628, %v4628
          %v4645 = vpack.c.bf16 %v4629, %v4629
          %v4646 = vpack.c.bf16 %v4630, %v4630
          %v4647 = vpack.c.bf16 %v4631, %v4631
          %v4648 = vpack.c.bf16 %v4632, %v4632
          %v4649 = vld [vmem:[%s2522] sm:$0xff]
          %v4650 = vld [vmem:[%s2522 + $0x8] sm:$0xff]
          %v4651 = vld [vmem:[%s2522 + $0x10] sm:$0xff]
          %v4652 = vld [vmem:[%s2522 + $0x18] sm:$0xff]
          %v4653 = vld [vmem:[%s2522 + $0x20] sm:$0xff]
          %v4654 = vld [vmem:[%s2522 + $0x28] sm:$0xff]
          %v4655 = vld [vmem:[%s2522 + $0x30] sm:$0xff]
          %v4656 = vld [vmem:[%s2522 + $0x38] sm:$0xff]
          %v4657 = vld [vmem:[%s2522 + $0x40] sm:$0xff]
          %v4658 = vld [vmem:[%s2522 + $0x48] sm:$0xff]
          %v4659 = vld [vmem:[%s2522 + $0x50] sm:$0xff]
          %v4660 = vld [vmem:[%s2522 + $0x58] sm:$0xff]
          %v4661 = vld [vmem:[%s2522 + $0x60] sm:$0xff]
          %v4662 = vld [vmem:[%s2522 + $0x68] sm:$0xff]
          %v4663 = vld [vmem:[%s2522 + $0x70] sm:$0xff]
          %v4664 = vld [vmem:[%s2522 + $0x78] sm:$0xff]
          %v4665 = vrcp.pop %v4649
          %v4666 = vrcp.pop %v4650
          %v4667 = vrcp.pop %v4651
          %v4668 = vrcp.pop %v4652
          %v4669 = vrcp.pop %v4653
          %v4670 = vrcp.pop %v4654
          %v4671 = vrcp.pop %v4655
          %v4672 = vrcp.pop %v4656
          %v4673 = vrcp.pop %v4657
          %v4674 = vrcp.pop %v4658
          %v4675 = vrcp.pop %v4659
          %v4676 = vrcp.pop %v4660
          %v4677 = vrcp.pop %v4661
          %v4678 = vrcp.pop %v4662
          %v4679 = vrcp.pop %v4663
          %v4680 = vrcp.pop %v4664
          %v4681 = vld [vmem:[%s2619] sm:$0xff]
          %v4682 = vld [vmem:[%s2619 + $0x8] sm:$0xff]
          %v4683 = vld [vmem:[%s2619 + $0x10] sm:$0xff]
          %v4684 = vld [vmem:[%s2619 + $0x18] sm:$0xff]
          %v4685 = vld [vmem:[%s2619 + $0x20] sm:$0xff]
          %v4686 = vld [vmem:[%s2619 + $0x28] sm:$0xff]
          %v4687 = vld [vmem:[%s2619 + $0x30] sm:$0xff]
          %v4688 = vld [vmem:[%s2619 + $0x38] sm:$0xff]
          %v4689 = vld [vmem:[%s2619 + $0x40] sm:$0xff]
          %v4690 = vld [vmem:[%s2619 + $0x48] sm:$0xff]
          %v4691 = vld [vmem:[%s2619 + $0x50] sm:$0xff]
          %v4692 = vld [vmem:[%s2619 + $0x58] sm:$0xff]
          %v4693 = vld [vmem:[%s2619 + $0x60] sm:$0xff]
          %v4694 = vld [vmem:[%s2619 + $0x68] sm:$0xff]
          %v4695 = vld [vmem:[%s2619 + $0x70] sm:$0xff]
          %v4696 = vld [vmem:[%s2619 + $0x78] sm:$0xff]
          %4698 = vset.pattern.permute.xlu0 0
          %4699 = vperm.xlu0 %4698, %v4665
          %v4700 = vpop.permute.xlu0 %4699
          %4703 = vset.pattern.permute.xlu0 0
          %4704 = vperm.xlu0 %4703, %v4666
          %v4705 = vpop.permute.xlu0 %4704
          %4708 = vset.pattern.permute.xlu0 0
          %4709 = vperm.xlu0 %4708, %v4667
          %v4710 = vpop.permute.xlu0 %4709
          %4713 = vset.pattern.permute.xlu0 0
          %4714 = vperm.xlu0 %4713, %v4668
          %v4715 = vpop.permute.xlu0 %4714
          %4718 = vset.pattern.permute.xlu0 0
          %4719 = vperm.xlu0 %4718, %v4669
          %v4720 = vpop.permute.xlu0 %4719
          %4723 = vset.pattern.permute.xlu0 0
          %4724 = vperm.xlu0 %4723, %v4670
          %v4725 = vpop.permute.xlu0 %4724
          %4728 = vset.pattern.permute.xlu0 0
          %4729 = vperm.xlu0 %4728, %v4671
          %v4730 = vpop.permute.xlu0 %4729
          %4733 = vset.pattern.permute.xlu0 0
          %4734 = vperm.xlu0 %4733, %v4672
          %v4735 = vpop.permute.xlu0 %4734
          %4738 = vset.pattern.permute.xlu0 0
          %4739 = vperm.xlu0 %4738, %v4673
          %v4740 = vpop.permute.xlu0 %4739
          %4743 = vset.pattern.permute.xlu0 0
          %4744 = vperm.xlu0 %4743, %v4674
          %v4745 = vpop.permute.xlu0 %4744
          %4748 = vset.pattern.permute.xlu0 0
          %4749 = vperm.xlu0 %4748, %v4675
          %v4750 = vpop.permute.xlu0 %4749
          %4753 = vset.pattern.permute.xlu0 0
          %4754 = vperm.xlu0 %4753, %v4676
          %v4755 = vpop.permute.xlu0 %4754
          %4758 = vset.pattern.permute.xlu0 0
          %4759 = vperm.xlu0 %4758, %v4677
          %v4760 = vpop.permute.xlu0 %4759
          %4763 = vset.pattern.permute.xlu0 0
          %4764 = vperm.xlu0 %4763, %v4678
          %v4765 = vpop.permute.xlu0 %4764
          %4768 = vset.pattern.permute.xlu0 0
          %4769 = vperm.xlu0 %4768, %v4679
          %v4770 = vpop.permute.xlu0 %4769
          %4773 = vset.pattern.permute.xlu0 0
          %4774 = vperm.xlu0 %4773, %v4680
          %v4775 = vpop.permute.xlu0 %4774
          %v4777 = vmul.f32 %v4681, %v4700
          %v4778 = vmul.f32 %v4682, %v4705
          %v4779 = vmul.f32 %v4683, %v4710
          %v4780 = vmul.f32 %v4684, %v4715
          %v4781 = vmul.f32 %v4685, %v4720
          %v4782 = vmul.f32 %v4686, %v4725
          %v4783 = vmul.f32 %v4687, %v4730
          %v4784 = vmul.f32 %v4688, %v4735
          %v4785 = vmul.f32 %v4689, %v4740
          %v4786 = vmul.f32 %v4690, %v4745
          %v4787 = vmul.f32 %v4691, %v4750
          %v4788 = vmul.f32 %v4692, %v4755
          %v4789 = vmul.f32 %v4693, %v4760
          %v4790 = vmul.f32 %v4694, %v4765
          %v4791 = vmul.f32 %v4695, %v4770
          %v4792 = vmul.f32 %v4696, %v4775
          %v4793 = vpack.c.bf16 %v4777, %v4777
          %v4794 = vpack.c.bf16 %v4778, %v4778
          %v4795 = vpack.c.bf16 %v4779, %v4779
          %v4796 = vpack.c.bf16 %v4780, %v4780
          %v4797 = vpack.c.bf16 %v4781, %v4781
          %v4798 = vpack.c.bf16 %v4782, %v4782
          %v4799 = vpack.c.bf16 %v4783, %v4783
          %v4800 = vpack.c.bf16 %v4784, %v4784
          %v4801 = vpack.c.bf16 %v4785, %v4785
          %v4802 = vpack.c.bf16 %v4786, %v4786
          %v4803 = vpack.c.bf16 %v4787, %v4787
          %v4804 = vpack.c.bf16 %v4788, %v4788
          %v4805 = vpack.c.bf16 %v4789, %v4789
          %v4806 = vpack.c.bf16 %v4790, %v4790
          %v4807 = vpack.c.bf16 %v4791, %v4791
          %v4808 = vpack.c.bf16 %v4792, %v4792
          %v4809 = vld [vmem:[%s3322] sm:$0xff]
          %v4810 = vld [vmem:[%s3322 + $0x8] sm:$0xff]
          %v4811 = vld [vmem:[%s3322 + $0x10] sm:$0xff]
          %v4812 = vld [vmem:[%s3322 + $0x18] sm:$0xff]
          %v4813 = vld [vmem:[%s3322 + $0x20] sm:$0xff]
          %v4814 = vld [vmem:[%s3322 + $0x28] sm:$0xff]
          %v4815 = vld [vmem:[%s3322 + $0x30] sm:$0xff]
          %v4816 = vld [vmem:[%s3322 + $0x38] sm:$0xff]
          %v4817 = vld [vmem:[%s3322 + $0x40] sm:$0xff]
          %v4818 = vld [vmem:[%s3322 + $0x48] sm:$0xff]
          %v4819 = vld [vmem:[%s3322 + $0x50] sm:$0xff]
          %v4820 = vld [vmem:[%s3322 + $0x58] sm:$0xff]
          %v4821 = vld [vmem:[%s3322 + $0x60] sm:$0xff]
          %v4822 = vld [vmem:[%s3322 + $0x68] sm:$0xff]
          %v4823 = vld [vmem:[%s3322 + $0x70] sm:$0xff]
          %v4824 = vld [vmem:[%s3322 + $0x78] sm:$0xff]
          %v4825 = vrcp.pop %v4809
          %v4826 = vrcp.pop %v4810
          %v4827 = vrcp.pop %v4811
          %v4828 = vrcp.pop %v4812
          %v4829 = vrcp.pop %v4813
          %v4830 = vrcp.pop %v4814
          %v4831 = vrcp.pop %v4815
          %v4832 = vrcp.pop %v4816
          %v4833 = vrcp.pop %v4817
          %v4834 = vrcp.pop %v4818
          %v4835 = vrcp.pop %v4819
          %v4836 = vrcp.pop %v4820
          %v4837 = vrcp.pop %v4821
          %v4838 = vrcp.pop %v4822
          %v4839 = vrcp.pop %v4823
          %v4840 = vrcp.pop %v4824
          %v4841 = vld [vmem:[%s3419] sm:$0xff]
          %v4842 = vld [vmem:[%s3419 + $0x8] sm:$0xff]
          %v4843 = vld [vmem:[%s3419 + $0x10] sm:$0xff]
          %v4844 = vld [vmem:[%s3419 + $0x18] sm:$0xff]
          %v4845 = vld [vmem:[%s3419 + $0x20] sm:$0xff]
          %v4846 = vld [vmem:[%s3419 + $0x28] sm:$0xff]
          %v4847 = vld [vmem:[%s3419 + $0x30] sm:$0xff]
          %v4848 = vld [vmem:[%s3419 + $0x38] sm:$0xff]
          %v4849 = vld [vmem:[%s3419 + $0x40] sm:$0xff]
          %v4850 = vld [vmem:[%s3419 + $0x48] sm:$0xff]
          %v4851 = vld [vmem:[%s3419 + $0x50] sm:$0xff]
          %v4852 = vld [vmem:[%s3419 + $0x58] sm:$0xff]
          %v4853 = vld [vmem:[%s3419 + $0x60] sm:$0xff]
          %v4854 = vld [vmem:[%s3419 + $0x68] sm:$0xff]
          %v4855 = vld [vmem:[%s3419 + $0x70] sm:$0xff]
          %v4856 = vld [vmem:[%s3419 + $0x78] sm:$0xff]
          %4858 = vset.pattern.permute.xlu0 0
          %4859 = vperm.xlu0 %4858, %v4825
          %v4860 = vpop.permute.xlu0 %4859
          %4863 = vset.pattern.permute.xlu0 0
          %4864 = vperm.xlu0 %4863, %v4826
          %v4865 = vpop.permute.xlu0 %4864
          %4868 = vset.pattern.permute.xlu0 0
          %4869 = vperm.xlu0 %4868, %v4827
          %v4870 = vpop.permute.xlu0 %4869
          %4873 = vset.pattern.permute.xlu0 0
          %4874 = vperm.xlu0 %4873, %v4828
          %v4875 = vpop.permute.xlu0 %4874
          %4878 = vset.pattern.permute.xlu0 0
          %4879 = vperm.xlu0 %4878, %v4829
          %v4880 = vpop.permute.xlu0 %4879
          %4883 = vset.pattern.permute.xlu0 0
          %4884 = vperm.xlu0 %4883, %v4830
          %v4885 = vpop.permute.xlu0 %4884
          %4888 = vset.pattern.permute.xlu0 0
          %4889 = vperm.xlu0 %4888, %v4831
          %v4890 = vpop.permute.xlu0 %4889
          %4893 = vset.pattern.permute.xlu0 0
          %4894 = vperm.xlu0 %4893, %v4832
          %v4895 = vpop.permute.xlu0 %4894
          %4898 = vset.pattern.permute.xlu0 0
          %4899 = vperm.xlu0 %4898, %v4833
          %v4900 = vpop.permute.xlu0 %4899
          %4903 = vset.pattern.permute.xlu0 0
          %4904 = vperm.xlu0 %4903, %v4834
          %v4905 = vpop.permute.xlu0 %4904
          %4908 = vset.pattern.permute.xlu0 0
          %4909 = vperm.xlu0 %4908, %v4835
          %v4910 = vpop.permute.xlu0 %4909
          %4913 = vset.pattern.permute.xlu0 0
          %4914 = vperm.xlu0 %4913, %v4836
          %v4915 = vpop.permute.xlu0 %4914
          %4918 = vset.pattern.permute.xlu0 0
          %4919 = vperm.xlu0 %4918, %v4837
          %v4920 = vpop.permute.xlu0 %4919
          %4923 = vset.pattern.permute.xlu0 0
          %4924 = vperm.xlu0 %4923, %v4838
          %v4925 = vpop.permute.xlu0 %4924
          %4928 = vset.pattern.permute.xlu0 0
          %4929 = vperm.xlu0 %4928, %v4839
          %v4930 = vpop.permute.xlu0 %4929
          %4933 = vset.pattern.permute.xlu0 0
          %4934 = vperm.xlu0 %4933, %v4840
          %v4935 = vpop.permute.xlu0 %4934
          %v4937 = vmul.f32 %v4841, %v4860
          %v4938 = vmul.f32 %v4842, %v4865
          %v4939 = vmul.f32 %v4843, %v4870
          %v4940 = vmul.f32 %v4844, %v4875
          %v4941 = vmul.f32 %v4845, %v4880
          %v4942 = vmul.f32 %v4846, %v4885
          %v4943 = vmul.f32 %v4847, %v4890
          %v4944 = vmul.f32 %v4848, %v4895
          %v4945 = vmul.f32 %v4849, %v4900
          %v4946 = vmul.f32 %v4850, %v4905
          %v4947 = vmul.f32 %v4851, %v4910
          %v4948 = vmul.f32 %v4852, %v4915
          %v4949 = vmul.f32 %v4853, %v4920
          %v4950 = vmul.f32 %v4854, %v4925
          %v4951 = vmul.f32 %v4855, %v4930
          %v4952 = vmul.f32 %v4856, %v4935
          %v4953 = vpack.c.bf16 %v4937, %v4937
          %v4954 = vpack.c.bf16 %v4938, %v4938
          %v4955 = vpack.c.bf16 %v4939, %v4939
          %v4956 = vpack.c.bf16 %v4940, %v4940
          %v4957 = vpack.c.bf16 %v4941, %v4941
          %v4958 = vpack.c.bf16 %v4942, %v4942
          %v4959 = vpack.c.bf16 %v4943, %v4943
          %v4960 = vpack.c.bf16 %v4944, %v4944
          %v4961 = vpack.c.bf16 %v4945, %v4945
          %v4962 = vpack.c.bf16 %v4946, %v4946
          %v4963 = vpack.c.bf16 %v4947, %v4947
          %v4964 = vpack.c.bf16 %v4948, %v4948
          %v4965 = vpack.c.bf16 %v4949, %v4949
          %v4966 = vpack.c.bf16 %v4950, %v4950
          %v4967 = vpack.c.bf16 %v4951, %v4951
          %v4968 = vpack.c.bf16 %v4952, %v4952
          %v4969 = vld [vmem:[%s4122] sm:$0xff]
          %v4970 = vld [vmem:[%s4122 + $0x8] sm:$0xff]
          %v4971 = vld [vmem:[%s4122 + $0x10] sm:$0xff]
          %v4972 = vld [vmem:[%s4122 + $0x18] sm:$0xff]
          %v4973 = vld [vmem:[%s4122 + $0x20] sm:$0xff]
          %v4974 = vld [vmem:[%s4122 + $0x28] sm:$0xff]
          %v4975 = vld [vmem:[%s4122 + $0x30] sm:$0xff]
          %v4976 = vld [vmem:[%s4122 + $0x38] sm:$0xff]
          %v4977 = vld [vmem:[%s4122 + $0x40] sm:$0xff]
          %v4978 = vld [vmem:[%s4122 + $0x48] sm:$0xff]
          %v4979 = vld [vmem:[%s4122 + $0x50] sm:$0xff]
          %v4980 = vld [vmem:[%s4122 + $0x58] sm:$0xff]
          %v4981 = vld [vmem:[%s4122 + $0x60] sm:$0xff]
          %v4982 = vld [vmem:[%s4122 + $0x68] sm:$0xff]
          %v4983 = vld [vmem:[%s4122 + $0x70] sm:$0xff]
          %v4984 = vld [vmem:[%s4122 + $0x78] sm:$0xff]
          %v4985 = vrcp.pop %v4969
          %v4986 = vrcp.pop %v4970
          %v4987 = vrcp.pop %v4971
          %v4988 = vrcp.pop %v4972
          %v4989 = vrcp.pop %v4973
          %v4990 = vrcp.pop %v4974
          %v4991 = vrcp.pop %v4975
          %v4992 = vrcp.pop %v4976
          %v4993 = vrcp.pop %v4977
          %v4994 = vrcp.pop %v4978
          %v4995 = vrcp.pop %v4979
          %v4996 = vrcp.pop %v4980
          %v4997 = vrcp.pop %v4981
          %v4998 = vrcp.pop %v4982
          %v4999 = vrcp.pop %v4983
          %v5000 = vrcp.pop %v4984
          %v5001 = vld [vmem:[%s4219] sm:$0xff]
          %v5002 = vld [vmem:[%s4219 + $0x8] sm:$0xff]
          %v5003 = vld [vmem:[%s4219 + $0x10] sm:$0xff]
          %v5004 = vld [vmem:[%s4219 + $0x18] sm:$0xff]
          %v5005 = vld [vmem:[%s4219 + $0x20] sm:$0xff]
          %v5006 = vld [vmem:[%s4219 + $0x28] sm:$0xff]
          %v5007 = vld [vmem:[%s4219 + $0x30] sm:$0xff]
          %v5008 = vld [vmem:[%s4219 + $0x38] sm:$0xff]
          %v5009 = vld [vmem:[%s4219 + $0x40] sm:$0xff]
          %v5010 = vld [vmem:[%s4219 + $0x48] sm:$0xff]
          %v5011 = vld [vmem:[%s4219 + $0x50] sm:$0xff]
          %v5012 = vld [vmem:[%s4219 + $0x58] sm:$0xff]
          %v5013 = vld [vmem:[%s4219 + $0x60] sm:$0xff]
          %v5014 = vld [vmem:[%s4219 + $0x68] sm:$0xff]
          %v5015 = vld [vmem:[%s4219 + $0x70] sm:$0xff]
          %v5016 = vld [vmem:[%s4219 + $0x78] sm:$0xff]
          %5018 = vset.pattern.permute.xlu0 0
          %5019 = vperm.xlu0 %5018, %v4985
          %v5020 = vpop.permute.xlu0 %5019
          %5023 = vset.pattern.permute.xlu0 0
          %5024 = vperm.xlu0 %5023, %v4986
          %v5025 = vpop.permute.xlu0 %5024
          %5028 = vset.pattern.permute.xlu0 0
          %5029 = vperm.xlu0 %5028, %v4987
          %v5030 = vpop.permute.xlu0 %5029
          %5033 = vset.pattern.permute.xlu0 0
          %5034 = vperm.xlu0 %5033, %v4988
          %v5035 = vpop.permute.xlu0 %5034
          %5038 = vset.pattern.permute.xlu0 0
          %5039 = vperm.xlu0 %5038, %v4989
          %v5040 = vpop.permute.xlu0 %5039
          %5043 = vset.pattern.permute.xlu0 0
          %5044 = vperm.xlu0 %5043, %v4990
          %v5045 = vpop.permute.xlu0 %5044
          %5048 = vset.pattern.permute.xlu0 0
          %5049 = vperm.xlu0 %5048, %v4991
          %v5050 = vpop.permute.xlu0 %5049
          %5053 = vset.pattern.permute.xlu0 0
          %5054 = vperm.xlu0 %5053, %v4992
          %v5055 = vpop.permute.xlu0 %5054
          %5058 = vset.pattern.permute.xlu0 0
          %5059 = vperm.xlu0 %5058, %v4993
          %v5060 = vpop.permute.xlu0 %5059
          %5063 = vset.pattern.permute.xlu0 0
          %5064 = vperm.xlu0 %5063, %v4994
          %v5065 = vpop.permute.xlu0 %5064
          %5068 = vset.pattern.permute.xlu0 0
          %5069 = vperm.xlu0 %5068, %v4995
          %v5070 = vpop.permute.xlu0 %5069
          %5073 = vset.pattern.permute.xlu0 0
          %5074 = vperm.xlu0 %5073, %v4996
          %v5075 = vpop.permute.xlu0 %5074
          %5078 = vset.pattern.permute.xlu0 0
          %5079 = vperm.xlu0 %5078, %v4997
          %v5080 = vpop.permute.xlu0 %5079
          %5083 = vset.pattern.permute.xlu0 0
          %5084 = vperm.xlu0 %5083, %v4998
          %v5085 = vpop.permute.xlu0 %5084
          %5088 = vset.pattern.permute.xlu0 0
          %5089 = vperm.xlu0 %5088, %v4999
          %v5090 = vpop.permute.xlu0 %5089
          %5093 = vset.pattern.permute.xlu0 0
          %5094 = vperm.xlu0 %5093, %v5000
          %v5095 = vpop.permute.xlu0 %5094
          %v5097 = vmul.f32 %v5001, %v5020
          %v5098 = vmul.f32 %v5002, %v5025
          %v5099 = vmul.f32 %v5003, %v5030
          %v5100 = vmul.f32 %v5004, %v5035
          %v5101 = vmul.f32 %v5005, %v5040
          %v5102 = vmul.f32 %v5006, %v5045
          %v5103 = vmul.f32 %v5007, %v5050
          %v5104 = vmul.f32 %v5008, %v5055
          %v5105 = vmul.f32 %v5009, %v5060
          %v5106 = vmul.f32 %v5010, %v5065
          %v5107 = vmul.f32 %v5011, %v5070
          %v5108 = vmul.f32 %v5012, %v5075
          %v5109 = vmul.f32 %v5013, %v5080
          %v5110 = vmul.f32 %v5014, %v5085
          %v5111 = vmul.f32 %v5015, %v5090
          %v5112 = vmul.f32 %v5016, %v5095
          %v5113 = vpack.c.bf16 %v5097, %v5097
          %v5114 = vpack.c.bf16 %v5098, %v5098
          %v5115 = vpack.c.bf16 %v5099, %v5099
          %v5116 = vpack.c.bf16 %v5100, %v5100
          %v5117 = vpack.c.bf16 %v5101, %v5101
          %v5118 = vpack.c.bf16 %v5102, %v5102
          %v5119 = vpack.c.bf16 %v5103, %v5103
          %v5120 = vpack.c.bf16 %v5104, %v5104
          %v5121 = vpack.c.bf16 %v5105, %v5105
          %v5122 = vpack.c.bf16 %v5106, %v5106
          %v5123 = vpack.c.bf16 %v5107, %v5107
          %v5124 = vpack.c.bf16 %v5108, %v5108
          %v5125 = vpack.c.bf16 %v5109, %v5109
          %v5126 = vpack.c.bf16 %v5110, %v5110
          %v5127 = vpack.c.bf16 %v5111, %v5111
          %v5128 = vpack.c.bf16 %v5112, %v5112
          %v5145 = vunpack.c.l.b16 %v4633
          %v5146 = vunpack.c.l.b16 %v4634
          %v5147 = vunpack.c.l.b16 %v4635
          %v5148 = vunpack.c.l.b16 %v4636
          %v5149 = vunpack.c.l.b16 %v4637
          %v5150 = vunpack.c.l.b16 %v4638
          %v5151 = vunpack.c.l.b16 %v4639
          %v5152 = vunpack.c.l.b16 %v4640
          %v5153 = vunpack.c.l.b16 %v4641
          %v5154 = vunpack.c.l.b16 %v4642
          %v5155 = vunpack.c.l.b16 %v4643
          %v5156 = vunpack.c.l.b16 %v4644
          %v5157 = vunpack.c.l.b16 %v4645
          %v5158 = vunpack.c.l.b16 %v4646
          %v5159 = vunpack.c.l.b16 %v4647
          %v5160 = vunpack.c.l.b16 %v4648
          %v5161 = vpack.c.b16 %v5146, %v5145
          %v5162 = vpack.c.b16 %v5148, %v5147
          %v5163 = vpack.c.b16 %v5150, %v5149
          %v5164 = vpack.c.b16 %v5152, %v5151
          %v5165 = vpack.c.b16 %v5154, %v5153
          %v5166 = vpack.c.b16 %v5156, %v5155
          %v5167 = vpack.c.b16 %v5158, %v5157
          %v5168 = vpack.c.b16 %v5160, %v5159
          %v5185 = vunpack.c.l.b16 %v4793
          %v5186 = vunpack.c.l.b16 %v4794
          %v5187 = vunpack.c.l.b16 %v4795
          %v5188 = vunpack.c.l.b16 %v4796
          %v5189 = vunpack.c.l.b16 %v4797
          %v5190 = vunpack.c.l.b16 %v4798
          %v5191 = vunpack.c.l.b16 %v4799
          %v5192 = vunpack.c.l.b16 %v4800
          %v5193 = vunpack.c.l.b16 %v4801
          %v5194 = vunpack.c.l.b16 %v4802
          %v5195 = vunpack.c.l.b16 %v4803
          %v5196 = vunpack.c.l.b16 %v4804
          %v5197 = vunpack.c.l.b16 %v4805
          %v5198 = vunpack.c.l.b16 %v4806
          %v5199 = vunpack.c.l.b16 %v4807
          %v5200 = vunpack.c.l.b16 %v4808
          %v5201 = vpack.c.b16 %v5186, %v5185
          %v5202 = vpack.c.b16 %v5188, %v5187
          %v5203 = vpack.c.b16 %v5190, %v5189
          %v5204 = vpack.c.b16 %v5192, %v5191
          %v5205 = vpack.c.b16 %v5194, %v5193
          %v5206 = vpack.c.b16 %v5196, %v5195
          %v5207 = vpack.c.b16 %v5198, %v5197
          %v5208 = vpack.c.b16 %v5200, %v5199
          %5209 = vrot.lane.b32.xlu0 %v5201, 32
          %v5210 = vpop.permute.xlu0 %5209
          %5211 = vrot.lane.b32.xlu0 %v5202, 32
          %v5212 = vpop.permute.xlu0 %5211
          %5213 = vrot.lane.b32.xlu0 %v5203, 32
          %v5214 = vpop.permute.xlu0 %5213
          %5215 = vrot.lane.b32.xlu0 %v5204, 32
          %v5216 = vpop.permute.xlu0 %5215
          %5217 = vrot.lane.b32.xlu0 %v5205, 32
          %v5218 = vpop.permute.xlu0 %5217
          %5219 = vrot.lane.b32.xlu0 %v5206, 32
          %v5220 = vpop.permute.xlu0 %5219
          %5221 = vrot.lane.b32.xlu0 %v5207, 32
          %v5222 = vpop.permute.xlu0 %5221
          %5223 = vrot.lane.b32.xlu0 %v5208, 32
          %v5224 = vpop.permute.xlu0 %5223
          %v5241 = vunpack.c.l.b16 %v4953
          %v5242 = vunpack.c.l.b16 %v4954
          %v5243 = vunpack.c.l.b16 %v4955
          %v5244 = vunpack.c.l.b16 %v4956
          %v5245 = vunpack.c.l.b16 %v4957
          %v5246 = vunpack.c.l.b16 %v4958
          %v5247 = vunpack.c.l.b16 %v4959
          %v5248 = vunpack.c.l.b16 %v4960
          %v5249 = vunpack.c.l.b16 %v4961
          %v5250 = vunpack.c.l.b16 %v4962
          %v5251 = vunpack.c.l.b16 %v4963
          %v5252 = vunpack.c.l.b16 %v4964
          %v5253 = vunpack.c.l.b16 %v4965
          %v5254 = vunpack.c.l.b16 %v4966
          %v5255 = vunpack.c.l.b16 %v4967
          %v5256 = vunpack.c.l.b16 %v4968
          %v5257 = vpack.c.b16 %v5242, %v5241
          %v5258 = vpack.c.b16 %v5244, %v5243
          %v5259 = vpack.c.b16 %v5246, %v5245
          %v5260 = vpack.c.b16 %v5248, %v5247
          %v5261 = vpack.c.b16 %v5250, %v5249
          %v5262 = vpack.c.b16 %v5252, %v5251
          %v5263 = vpack.c.b16 %v5254, %v5253
          %v5264 = vpack.c.b16 %v5256, %v5255
          %5265 = vrot.lane.b32.xlu0 %v5257, 64
          %v5266 = vpop.permute.xlu0 %5265
          %5267 = vrot.lane.b32.xlu0 %v5258, 64
          %v5268 = vpop.permute.xlu0 %5267
          %5269 = vrot.lane.b32.xlu0 %v5259, 64
          %v5270 = vpop.permute.xlu0 %5269
          %5271 = vrot.lane.b32.xlu0 %v5260, 64
          %v5272 = vpop.permute.xlu0 %5271
          %5273 = vrot.lane.b32.xlu0 %v5261, 64
          %v5274 = vpop.permute.xlu0 %5273
          %5275 = vrot.lane.b32.xlu0 %v5262, 64
          %v5276 = vpop.permute.xlu0 %5275
          %5277 = vrot.lane.b32.xlu0 %v5263, 64
          %v5278 = vpop.permute.xlu0 %5277
          %5279 = vrot.lane.b32.xlu0 %v5264, 64
          %v5280 = vpop.permute.xlu0 %5279
          %v5297 = vunpack.c.l.b16 %v5113
          %v5298 = vunpack.c.l.b16 %v5114
          %v5299 = vunpack.c.l.b16 %v5115
          %v5300 = vunpack.c.l.b16 %v5116
          %v5301 = vunpack.c.l.b16 %v5117
          %v5302 = vunpack.c.l.b16 %v5118
          %v5303 = vunpack.c.l.b16 %v5119
          %v5304 = vunpack.c.l.b16 %v5120
          %v5305 = vunpack.c.l.b16 %v5121
          %v5306 = vunpack.c.l.b16 %v5122
          %v5307 = vunpack.c.l.b16 %v5123
          %v5308 = vunpack.c.l.b16 %v5124
          %v5309 = vunpack.c.l.b16 %v5125
          %v5310 = vunpack.c.l.b16 %v5126
          %v5311 = vunpack.c.l.b16 %v5127
          %v5312 = vunpack.c.l.b16 %v5128
          %v5313 = vpack.c.b16 %v5298, %v5297
          %v5314 = vpack.c.b16 %v5300, %v5299
          %v5315 = vpack.c.b16 %v5302, %v5301
          %v5316 = vpack.c.b16 %v5304, %v5303
          %v5317 = vpack.c.b16 %v5306, %v5305
          %v5318 = vpack.c.b16 %v5308, %v5307
          %v5319 = vpack.c.b16 %v5310, %v5309
          %v5320 = vpack.c.b16 %v5312, %v5311
          %5321 = vrot.lane.b32.xlu0 %v5313, 96
          %v5322 = vpop.permute.xlu0 %5321
          %5323 = vrot.lane.b32.xlu0 %v5314, 96
          %v5324 = vpop.permute.xlu0 %5323
          %5325 = vrot.lane.b32.xlu0 %v5315, 96
          %v5326 = vpop.permute.xlu0 %5325
          %5327 = vrot.lane.b32.xlu0 %v5316, 96
          %v5328 = vpop.permute.xlu0 %5327
          %5329 = vrot.lane.b32.xlu0 %v5317, 96
          %v5330 = vpop.permute.xlu0 %5329
          %5331 = vrot.lane.b32.xlu0 %v5318, 96
          %v5332 = vpop.permute.xlu0 %5331
          %5333 = vrot.lane.b32.xlu0 %v5319, 96
          %v5334 = vpop.permute.xlu0 %5333
          %5335 = vrot.lane.b32.xlu0 %v5320, 96
          %v5336 = vpop.permute.xlu0 %5335
          %v5339 = vsel %vm1377, %v5161, %v5210
          %v5342 = vsel %vm1377, %v5162, %v5212
          %v5345 = vsel %vm1377, %v5163, %v5214
          %v5348 = vsel %vm1377, %v5164, %v5216
          %v5351 = vsel %vm1377, %v5165, %v5218
          %v5354 = vsel %vm1377, %v5166, %v5220
          %v5357 = vsel %vm1377, %v5167, %v5222
          %v5360 = vsel %vm1377, %v5168, %v5224
          %vm5361 = vcmask 523264
          %v5363 = vsel %vm5361, %v5339, %v5266
          %v5365 = vsel %vm5361, %v5342, %v5268
          %v5367 = vsel %vm5361, %v5345, %v5270
          %v5369 = vsel %vm5361, %v5348, %v5272
          %v5371 = vsel %vm5361, %v5351, %v5274
          %v5373 = vsel %vm5361, %v5354, %v5276
          %v5375 = vsel %vm5361, %v5357, %v5278
          %v5377 = vsel %vm5361, %v5360, %v5280
          %vm5378 = vcmask 785408
          %v5380 = vsel %vm5378, %v5363, %v5322
          %v5383 = vsel %vm5378, %v5365, %v5324
          %v5386 = vsel %vm5378, %v5367, %v5326
          %v5389 = vsel %vm5378, %v5369, %v5328
          %v5392 = vsel %vm5378, %v5371, %v5330
          %v5395 = vsel %vm5378, %v5373, %v5332
          %v5398 = vsel %vm5378, %v5375, %v5334
          %v5401 = vsel %vm5378, %v5377, %v5336
          %v5403 = vld [vmem:[%s1079] sm:$0xff]
          %v5404 = vld [vmem:[%s1079 + $0x8] sm:$0xff]
          %v5405 = vld [vmem:[%s1079 + $0x10] sm:$0xff]
          %v5406 = vld [vmem:[%s1079 + $0x18] sm:$0xff]
          %v5407 = vld [vmem:[%s1079 + $0x20] sm:$0xff]
          %v5408 = vld [vmem:[%s1079 + $0x28] sm:$0xff]
          %v5409 = vld [vmem:[%s1079 + $0x30] sm:$0xff]
          %v5410 = vld [vmem:[%s1079 + $0x38] sm:$0xff]
          %v5411 = vld [vmem:[%s1079 + $0x40] sm:$0xff]
          %v5412 = vld [vmem:[%s1079 + $0x48] sm:$0xff]
          %v5413 = vld [vmem:[%s1079 + $0x50] sm:$0xff]
          %v5414 = vld [vmem:[%s1079 + $0x58] sm:$0xff]
          %v5415 = vld [vmem:[%s1079 + $0x60] sm:$0xff]
          %v5416 = vld [vmem:[%s1079 + $0x68] sm:$0xff]
          %v5417 = vld [vmem:[%s1079 + $0x70] sm:$0xff]
          %v5418 = vld [vmem:[%s1079 + $0x78] sm:$0xff]
          %v5419 = vld [vmem:[%s4] sm:$0xf]
          %v5420 = vld [vmem:[%s4 + $0x4] sm:$0xf]
          %v5421 = vld [vmem:[%s4 + $0x8] sm:$0xf]
          %v5422 = vld [vmem:[%s4 + $0xc] sm:$0xf]
          %v5423 = vld [vmem:[%s4 + $0x10] sm:$0xf]
          %v5424 = vld [vmem:[%s4 + $0x14] sm:$0xf]
          %v5425 = vld [vmem:[%s4 + $0x18] sm:$0xf]
          %v5426 = vld [vmem:[%s4 + $0x1c] sm:$0xf]
          %v5427 = vld [vmem:[%s4 + $0x20] sm:$0xf]
          %v5428 = vld [vmem:[%s4 + $0x24] sm:$0xf]
          %v5429 = vld [vmem:[%s4 + $0x28] sm:$0xf]
          %v5430 = vld [vmem:[%s4 + $0x2c] sm:$0xf]
          %v5431 = vld [vmem:[%s4 + $0x30] sm:$0xf]
          %v5432 = vld [vmem:[%s4 + $0x34] sm:$0xf]
          %v5433 = vld [vmem:[%s4 + $0x38] sm:$0xf]
          %v5434 = vld [vmem:[%s4 + $0x3c] sm:$0xf]
          %v5451 = vunpack.c.l.b16 %v5419
          %v5452 = vunpack.c.l.b16 %v5420
          %v5453 = vunpack.c.l.b16 %v5421
          %v5454 = vunpack.c.l.b16 %v5422
          %v5455 = vunpack.c.l.b16 %v5423
          %v5456 = vunpack.c.l.b16 %v5424
          %v5457 = vunpack.c.l.b16 %v5425
          %v5458 = vunpack.c.l.b16 %v5426
          %v5459 = vunpack.c.l.b16 %v5427
          %v5460 = vunpack.c.l.b16 %v5428
          %v5461 = vunpack.c.l.b16 %v5429
          %v5462 = vunpack.c.l.b16 %v5430
          %v5463 = vunpack.c.l.b16 %v5431
          %v5464 = vunpack.c.l.b16 %v5432
          %v5465 = vunpack.c.l.b16 %v5433
          %v5466 = vunpack.c.l.b16 %v5434
          %v5467 = vpack.c.b16 %v5452, %v5451
          %v5468 = vpack.c.b16 %v5454, %v5453
          %v5469 = vpack.c.b16 %v5456, %v5455
          %v5470 = vpack.c.b16 %v5458, %v5457
          %v5471 = vpack.c.b16 %v5460, %v5459
          %v5472 = vpack.c.b16 %v5462, %v5461
          %v5473 = vpack.c.b16 %v5464, %v5463
          %v5474 = vpack.c.b16 %v5466, %v5465
          %5483 = vmatpush.bf16.msra.mxu0 %v5474
          %5484 = vmatpush.bf16.msra.mxu0 %v5473
          %5485 = vmatpush.bf16.msra.mxu0 %v5472
          %5486 = vmatpush.bf16.msra.mxu0 %v5471
          %5487 = vmatpush.bf16.msra.mxu0 %v5470
          %5488 = vmatpush.bf16.msra.mxu0 %v5469
          %5489 = vmatpush.bf16.msra.mxu0 %v5468
          %5490 = vmatpush.bf16.msra.mxu0 %v5467
          %5491 = vmatmul.bf16.gmra.mxu0 %v5380
          %v5492 = vpop.f32.mrf.mxu0
          %v5493 = vadd.f32 0.0, %v5492
          %v5494 = vpop.f32.mrf.mxu0
          %v5495 = vadd.f32 0.0, %v5494
          %5496 = vmatmul.bf16.gmra.mxu0 %v5383
          %v5497 = vpop.f32.mrf.mxu0
          %v5498 = vadd.f32 0.0, %v5497
          %v5499 = vpop.f32.mrf.mxu0
          %v5500 = vadd.f32 0.0, %v5499
          %5501 = vmatmul.bf16.gmra.mxu0 %v5386
          %v5502 = vpop.f32.mrf.mxu0
          %v5503 = vadd.f32 0.0, %v5502
          %v5504 = vpop.f32.mrf.mxu0
          %v5505 = vadd.f32 0.0, %v5504
          %5506 = vmatmul.bf16.gmra.mxu0 %v5389
          %v5507 = vpop.f32.mrf.mxu0
          %v5508 = vadd.f32 0.0, %v5507
          %v5509 = vpop.f32.mrf.mxu0
          %v5510 = vadd.f32 0.0, %v5509
          %5511 = vmatmul.bf16.gmra.mxu0 %v5392
          %v5512 = vpop.f32.mrf.mxu0
          %v5513 = vadd.f32 0.0, %v5512
          %v5514 = vpop.f32.mrf.mxu0
          %v5515 = vadd.f32 0.0, %v5514
          %5516 = vmatmul.bf16.gmra.mxu0 %v5395
          %v5517 = vpop.f32.mrf.mxu0
          %v5518 = vadd.f32 0.0, %v5517
          %v5519 = vpop.f32.mrf.mxu0
          %v5520 = vadd.f32 0.0, %v5519
          %5521 = vmatmul.bf16.gmra.mxu0 %v5398
          %v5522 = vpop.f32.mrf.mxu0
          %v5523 = vadd.f32 0.0, %v5522
          %v5524 = vpop.f32.mrf.mxu0
          %v5525 = vadd.f32 0.0, %v5524
          %5526 = vmatmul.bf16.gmra.mxu0 %v5401
          %v5527 = vpop.f32.mrf.mxu0
          %v5528 = vadd.f32 0.0, %v5527
          %v5529 = vpop.f32.mrf.mxu0
          %v5530 = vadd.f32 0.0, %v5529
          %5531 = vdwg.mxu0
          %v5532 = vadd.f32 %v5403, %v5493
          %v5533 = vadd.f32 %v5404, %v5495
          %v5534 = vadd.f32 %v5405, %v5498
          %v5535 = vadd.f32 %v5406, %v5500
          %v5536 = vadd.f32 %v5407, %v5503
          %v5537 = vadd.f32 %v5408, %v5505
          %v5538 = vadd.f32 %v5409, %v5508
          %v5539 = vadd.f32 %v5410, %v5510
          %v5540 = vadd.f32 %v5411, %v5513
          %v5541 = vadd.f32 %v5412, %v5515
          %v5542 = vadd.f32 %v5413, %v5518
          %v5543 = vadd.f32 %v5414, %v5520
          %v5544 = vadd.f32 %v5415, %v5523
          %v5545 = vadd.f32 %v5416, %v5525
          %v5546 = vadd.f32 %v5417, %v5528
          %v5547 = vadd.f32 %v5418, %v5530
          %5548 = vadd.xlane.f32.xlu0 %v5532
          %v5549 = vpop.xlane.xlu0 %5548
          %5550 = vadd.xlane.f32.xlu0 %v5533
          %v5551 = vpop.xlane.xlu0 %5550
          %5552 = vadd.xlane.f32.xlu0 %v5534
          %v5553 = vpop.xlane.xlu0 %5552
          %5554 = vadd.xlane.f32.xlu0 %v5535
          %v5555 = vpop.xlane.xlu0 %5554
          %5556 = vadd.xlane.f32.xlu0 %v5536
          %v5557 = vpop.xlane.xlu0 %5556
          %5558 = vadd.xlane.f32.xlu0 %v5537
          %v5559 = vpop.xlane.xlu0 %5558
          %5560 = vadd.xlane.f32.xlu0 %v5538
          %v5561 = vpop.xlane.xlu0 %5560
          %5562 = vadd.xlane.f32.xlu0 %v5539
          %v5563 = vpop.xlane.xlu0 %5562
          %5564 = vadd.xlane.f32.xlu0 %v5540
          %v5565 = vpop.xlane.xlu0 %5564
          %5566 = vadd.xlane.f32.xlu0 %v5541
          %v5567 = vpop.xlane.xlu0 %5566
          %5568 = vadd.xlane.f32.xlu0 %v5542
          %v5569 = vpop.xlane.xlu0 %5568
          %5570 = vadd.xlane.f32.xlu0 %v5543
          %v5571 = vpop.xlane.xlu0 %5570
          %5572 = vadd.xlane.f32.xlu0 %v5544
          %v5573 = vpop.xlane.xlu0 %5572
          %5574 = vadd.xlane.f32.xlu0 %v5545
          %v5575 = vpop.xlane.xlu0 %5574
          %5576 = vadd.xlane.f32.xlu0 %v5546
          %v5577 = vpop.xlane.xlu0 %5576
          %5578 = vadd.xlane.f32.xlu0 %v5547
          %v5579 = vpop.xlane.xlu0 %5578
          %v5580 = vrcp.pop 128.0
          %v5581 = vmul.f32 128.0, %v5580
          %v5582 = vsub.f32 1.0, %v5581
          %v5583 = vmul.f32 %v5580, %v5582
          %v5584 = vadd.f32 %v5580, %v5583
          %vm5585 = vweird.f32 %v5580
          %v5586 = vsel %vm5585, %v5580, %v5584
          %v5587 = vmul.f32 %v5549, %v5586
          %v5588 = vmul.f32 %v5551, %v5586
          %v5589 = vmul.f32 %v5553, %v5586
          %v5590 = vmul.f32 %v5555, %v5586
          %v5591 = vmul.f32 %v5557, %v5586
          %v5592 = vmul.f32 %v5559, %v5586
          %v5593 = vmul.f32 %v5561, %v5586
          %v5594 = vmul.f32 %v5563, %v5586
          %v5595 = vmul.f32 %v5565, %v5586
          %v5596 = vmul.f32 %v5567, %v5586
          %v5597 = vmul.f32 %v5569, %v5586
          %v5598 = vmul.f32 %v5571, %v5586
          %v5599 = vmul.f32 %v5573, %v5586
          %v5600 = vmul.f32 %v5575, %v5586
          %v5601 = vmul.f32 %v5577, %v5586
          %v5602 = vmul.f32 %v5579, %v5586
          %v5603 = vsub.f32 %v5532, %v5587
          %v5604 = vsub.f32 %v5533, %v5588
          %v5605 = vsub.f32 %v5534, %v5589
          %v5606 = vsub.f32 %v5535, %v5590
          %v5607 = vsub.f32 %v5536, %v5591
          %v5608 = vsub.f32 %v5537, %v5592
          %v5609 = vsub.f32 %v5538, %v5593
          %v5610 = vsub.f32 %v5539, %v5594
          %v5611 = vsub.f32 %v5540, %v5595
          %v5612 = vsub.f32 %v5541, %v5596
          %v5613 = vsub.f32 %v5542, %v5597
          %v5614 = vsub.f32 %v5543, %v5598
          %v5615 = vsub.f32 %v5544, %v5599
          %v5616 = vsub.f32 %v5545, %v5600
          %v5617 = vsub.f32 %v5546, %v5601
          %v5618 = vsub.f32 %v5547, %v5602
          %v5619 = vmul.f32 %v5603, %v5603
          %v5620 = vmul.f32 %v5604, %v5604
          %v5621 = vmul.f32 %v5605, %v5605
          %v5622 = vmul.f32 %v5606, %v5606
          %v5623 = vmul.f32 %v5607, %v5607
          %v5624 = vmul.f32 %v5608, %v5608
          %v5625 = vmul.f32 %v5609, %v5609
          %v5626 = vmul.f32 %v5610, %v5610
          %v5627 = vmul.f32 %v5611, %v5611
          %v5628 = vmul.f32 %v5612, %v5612
          %v5629 = vmul.f32 %v5613, %v5613
          %v5630 = vmul.f32 %v5614, %v5614
          %v5631 = vmul.f32 %v5615, %v5615
          %v5632 = vmul.f32 %v5616, %v5616
          %v5633 = vmul.f32 %v5617, %v5617
          %v5634 = vmul.f32 %v5618, %v5618
          %5635 = vadd.xlane.f32.xlu0 %v5619
          %v5636 = vpop.xlane.xlu0 %5635
          %5637 = vadd.xlane.f32.xlu0 %v5620
          %v5638 = vpop.xlane.xlu0 %5637
          %5639 = vadd.xlane.f32.xlu0 %v5621
          %v5640 = vpop.xlane.xlu0 %5639
          %5641 = vadd.xlane.f32.xlu0 %v5622
          %v5642 = vpop.xlane.xlu0 %5641
          %5643 = vadd.xlane.f32.xlu0 %v5623
          %v5644 = vpop.xlane.xlu0 %5643
          %5645 = vadd.xlane.f32.xlu0 %v5624
          %v5646 = vpop.xlane.xlu0 %5645
          %5647 = vadd.xlane.f32.xlu0 %v5625
          %v5648 = vpop.xlane.xlu0 %5647
          %5649 = vadd.xlane.f32.xlu0 %v5626
          %v5650 = vpop.xlane.xlu0 %5649
          %5651 = vadd.xlane.f32.xlu0 %v5627
          %v5652 = vpop.xlane.xlu0 %5651
          %5653 = vadd.xlane.f32.xlu0 %v5628
          %v5654 = vpop.xlane.xlu0 %5653
          %5655 = vadd.xlane.f32.xlu0 %v5629
          %v5656 = vpop.xlane.xlu0 %5655
          %5657 = vadd.xlane.f32.xlu0 %v5630
          %v5658 = vpop.xlane.xlu0 %5657
          %5659 = vadd.xlane.f32.xlu0 %v5631
          %v5660 = vpop.xlane.xlu0 %5659
          %5661 = vadd.xlane.f32.xlu0 %v5632
          %v5662 = vpop.xlane.xlu0 %5661
          %5663 = vadd.xlane.f32.xlu0 %v5633
          %v5664 = vpop.xlane.xlu0 %5663
          %5665 = vadd.xlane.f32.xlu0 %v5634
          %v5666 = vpop.xlane.xlu0 %5665
          %v5667 = vmul.f32 %v5636, %v5586
          %v5668 = vmul.f32 %v5638, %v5586
          %v5669 = vmul.f32 %v5640, %v5586
          %v5670 = vmul.f32 %v5642, %v5586
          %v5671 = vmul.f32 %v5644, %v5586
          %v5672 = vmul.f32 %v5646, %v5586
          %v5673 = vmul.f32 %v5648, %v5586
          %v5674 = vmul.f32 %v5650, %v5586
          %v5675 = vmul.f32 %v5652, %v5586
          %v5676 = vmul.f32 %v5654, %v5586
          %v5677 = vmul.f32 %v5656, %v5586
          %v5678 = vmul.f32 %v5658, %v5586
          %v5679 = vmul.f32 %v5660, %v5586
          %v5680 = vmul.f32 %v5662, %v5586
          %v5681 = vmul.f32 %v5664, %v5586
          %v5682 = vmul.f32 %v5666, %v5586
          %v5683 = vadd.f32 %v5667, 1e-06
          %v5684 = vadd.f32 %v5668, 1e-06
          %v5685 = vadd.f32 %v5669, 1e-06
          %v5686 = vadd.f32 %v5670, 1e-06
          %v5687 = vadd.f32 %v5671, 1e-06
          %v5688 = vadd.f32 %v5672, 1e-06
          %v5689 = vadd.f32 %v5673, 1e-06
          %v5690 = vadd.f32 %v5674, 1e-06
          %v5691 = vadd.f32 %v5675, 1e-06
          %v5692 = vadd.f32 %v5676, 1e-06
          %v5693 = vadd.f32 %v5677, 1e-06
          %v5694 = vadd.f32 %v5678, 1e-06
          %v5695 = vadd.f32 %v5679, 1e-06
          %v5696 = vadd.f32 %v5680, 1e-06
          %v5697 = vadd.f32 %v5681, 1e-06
          %v5698 = vadd.f32 %v5682, 1e-06
          %v5699 = vrsqrt.pop %v5683
          %v5700 = vmul.f32 %v5699, %v5683
          %v5701 = vmul.f32 %v5700, %v5699
          %v5702 = vmul.f32 0.5, %v5701
          %v5703 = vsub.f32 1.5, %v5702
          %v5704 = vmul.f32 %v5699, %v5703
          %vm5705 = vweird.f32 %v5683
          %vm5706 = vweird.f32 %v5699
          %vm5707 = vmor %vm5705, %vm5706
          %v5708 = vsel %vm5707, %v5699, %v5704
          %v5709 = vrsqrt.pop %v5684
          %v5710 = vmul.f32 %v5709, %v5684
          %v5711 = vmul.f32 %v5710, %v5709
          %v5712 = vmul.f32 0.5, %v5711
          %v5713 = vsub.f32 1.5, %v5712
          %v5714 = vmul.f32 %v5709, %v5713
          %vm5715 = vweird.f32 %v5684
          %vm5716 = vweird.f32 %v5709
          %vm5717 = vmor %vm5715, %vm5716
          %v5718 = vsel %vm5717, %v5709, %v5714
          %v5719 = vrsqrt.pop %v5685
          %v5720 = vmul.f32 %v5719, %v5685
          %v5721 = vmul.f32 %v5720, %v5719
          %v5722 = vmul.f32 0.5, %v5721
          %v5723 = vsub.f32 1.5, %v5722
          %v5724 = vmul.f32 %v5719, %v5723
          %vm5725 = vweird.f32 %v5685
          %vm5726 = vweird.f32 %v5719
          %vm5727 = vmor %vm5725, %vm5726
          %v5728 = vsel %vm5727, %v5719, %v5724
          %v5729 = vrsqrt.pop %v5686
          %v5730 = vmul.f32 %v5729, %v5686
          %v5731 = vmul.f32 %v5730, %v5729
          %v5732 = vmul.f32 0.5, %v5731
          %v5733 = vsub.f32 1.5, %v5732
          %v5734 = vmul.f32 %v5729, %v5733
          %vm5735 = vweird.f32 %v5686
          %vm5736 = vweird.f32 %v5729
          %vm5737 = vmor %vm5735, %vm5736
          %v5738 = vsel %vm5737, %v5729, %v5734
          %v5739 = vrsqrt.pop %v5687
          %v5740 = vmul.f32 %v5739, %v5687
          %v5741 = vmul.f32 %v5740, %v5739
          %v5742 = vmul.f32 0.5, %v5741
          %v5743 = vsub.f32 1.5, %v5742
          %v5744 = vmul.f32 %v5739, %v5743
          %vm5745 = vweird.f32 %v5687
          %vm5746 = vweird.f32 %v5739
          %vm5747 = vmor %vm5745, %vm5746
          %v5748 = vsel %vm5747, %v5739, %v5744
          %v5749 = vrsqrt.pop %v5688
          %v5750 = vmul.f32 %v5749, %v5688
          %v5751 = vmul.f32 %v5750, %v5749
          %v5752 = vmul.f32 0.5, %v5751
          %v5753 = vsub.f32 1.5, %v5752
          %v5754 = vmul.f32 %v5749, %v5753
          %vm5755 = vweird.f32 %v5688
          %vm5756 = vweird.f32 %v5749
          %vm5757 = vmor %vm5755, %vm5756
          %v5758 = vsel %vm5757, %v5749, %v5754
          %v5759 = vrsqrt.pop %v5689
          %v5760 = vmul.f32 %v5759, %v5689
          %v5761 = vmul.f32 %v5760, %v5759
          %v5762 = vmul.f32 0.5, %v5761
          %v5763 = vsub.f32 1.5, %v5762
          %v5764 = vmul.f32 %v5759, %v5763
          %vm5765 = vweird.f32 %v5689
          %vm5766 = vweird.f32 %v5759
          %vm5767 = vmor %vm5765, %vm5766
          %v5768 = vsel %vm5767, %v5759, %v5764
          %v5769 = vrsqrt.pop %v5690
          %v5770 = vmul.f32 %v5769, %v5690
          %v5771 = vmul.f32 %v5770, %v5769
          %v5772 = vmul.f32 0.5, %v5771
          %v5773 = vsub.f32 1.5, %v5772
          %v5774 = vmul.f32 %v5769, %v5773
          %vm5775 = vweird.f32 %v5690
          %vm5776 = vweird.f32 %v5769
          %vm5777 = vmor %vm5775, %vm5776
          %v5778 = vsel %vm5777, %v5769, %v5774
          %v5779 = vrsqrt.pop %v5691
          %v5780 = vmul.f32 %v5779, %v5691
          %v5781 = vmul.f32 %v5780, %v5779
          %v5782 = vmul.f32 0.5, %v5781
          %v5783 = vsub.f32 1.5, %v5782
          %v5784 = vmul.f32 %v5779, %v5783
          %vm5785 = vweird.f32 %v5691
          %vm5786 = vweird.f32 %v5779
          %vm5787 = vmor %vm5785, %vm5786
          %v5788 = vsel %vm5787, %v5779, %v5784
          %v5789 = vrsqrt.pop %v5692
          %v5790 = vmul.f32 %v5789, %v5692
          %v5791 = vmul.f32 %v5790, %v5789
          %v5792 = vmul.f32 0.5, %v5791
          %v5793 = vsub.f32 1.5, %v5792
          %v5794 = vmul.f32 %v5789, %v5793
          %vm5795 = vweird.f32 %v5692
          %vm5796 = vweird.f32 %v5789
          %vm5797 = vmor %vm5795, %vm5796
          %v5798 = vsel %vm5797, %v5789, %v5794
          %v5799 = vrsqrt.pop %v5693
          %v5800 = vmul.f32 %v5799, %v5693
          %v5801 = vmul.f32 %v5800, %v5799
          %v5802 = vmul.f32 0.5, %v5801
          %v5803 = vsub.f32 1.5, %v5802
          %v5804 = vmul.f32 %v5799, %v5803
          %vm5805 = vweird.f32 %v5693
          %vm5806 = vweird.f32 %v5799
          %vm5807 = vmor %vm5805, %vm5806
          %v5808 = vsel %vm5807, %v5799, %v5804
          %v5809 = vrsqrt.pop %v5694
          %v5810 = vmul.f32 %v5809, %v5694
          %v5811 = vmul.f32 %v5810, %v5809
          %v5812 = vmul.f32 0.5, %v5811
          %v5813 = vsub.f32 1.5, %v5812
          %v5814 = vmul.f32 %v5809, %v5813
          %vm5815 = vweird.f32 %v5694
          %vm5816 = vweird.f32 %v5809
          %vm5817 = vmor %vm5815, %vm5816
          %v5818 = vsel %vm5817, %v5809, %v5814
          %v5819 = vrsqrt.pop %v5695
          %v5820 = vmul.f32 %v5819, %v5695
          %v5821 = vmul.f32 %v5820, %v5819
          %v5822 = vmul.f32 0.5, %v5821
          %v5823 = vsub.f32 1.5, %v5822
          %v5824 = vmul.f32 %v5819, %v5823
          %vm5825 = vweird.f32 %v5695
          %vm5826 = vweird.f32 %v5819
          %vm5827 = vmor %vm5825, %vm5826
          %v5828 = vsel %vm5827, %v5819, %v5824
          %v5829 = vrsqrt.pop %v5696
          %v5830 = vmul.f32 %v5829, %v5696
          %v5831 = vmul.f32 %v5830, %v5829
          %v5832 = vmul.f32 0.5, %v5831
          %v5833 = vsub.f32 1.5, %v5832
          %v5834 = vmul.f32 %v5829, %v5833
          %vm5835 = vweird.f32 %v5696
          %vm5836 = vweird.f32 %v5829
          %vm5837 = vmor %vm5835, %vm5836
          %v5838 = vsel %vm5837, %v5829, %v5834
          %v5839 = vrsqrt.pop %v5697
          %v5840 = vmul.f32 %v5839, %v5697
          %v5841 = vmul.f32 %v5840, %v5839
          %v5842 = vmul.f32 0.5, %v5841
          %v5843 = vsub.f32 1.5, %v5842
          %v5844 = vmul.f32 %v5839, %v5843
          %vm5845 = vweird.f32 %v5697
          %vm5846 = vweird.f32 %v5839
          %vm5847 = vmor %vm5845, %vm5846
          %v5848 = vsel %vm5847, %v5839, %v5844
          %v5849 = vrsqrt.pop %v5698
          %v5850 = vmul.f32 %v5849, %v5698
          %v5851 = vmul.f32 %v5850, %v5849
          %v5852 = vmul.f32 0.5, %v5851
          %v5853 = vsub.f32 1.5, %v5852
          %v5854 = vmul.f32 %v5849, %v5853
          %vm5855 = vweird.f32 %v5698
          %vm5856 = vweird.f32 %v5849
          %vm5857 = vmor %vm5855, %vm5856
          %v5858 = vsel %vm5857, %v5849, %v5854
          %v5859 = vmul.f32 %v5603, %v5708
          %v5860 = vmul.f32 %v5604, %v5718
          %v5861 = vmul.f32 %v5605, %v5728
          %v5862 = vmul.f32 %v5606, %v5738
          %v5863 = vmul.f32 %v5607, %v5748
          %v5864 = vmul.f32 %v5608, %v5758
          %v5865 = vmul.f32 %v5609, %v5768
          %v5866 = vmul.f32 %v5610, %v5778
          %v5867 = vmul.f32 %v5611, %v5788
          %v5868 = vmul.f32 %v5612, %v5798
          %v5869 = vmul.f32 %v5613, %v5808
          %v5870 = vmul.f32 %v5614, %v5818
          %v5871 = vmul.f32 %v5615, %v5828
          %v5872 = vmul.f32 %v5616, %v5838
          %v5873 = vmul.f32 %v5617, %v5848
          %v5874 = vmul.f32 %v5618, %v5858
          %v5875 = vld [vmem:[%s5] sm:$0x1]
          %v5877 = vperm.slane %v5875, 0
          %v5879 = vmul.f32 %v5859, %v5877
          %v5880 = vmul.f32 %v5860, %v5877
          %v5881 = vmul.f32 %v5861, %v5877
          %v5882 = vmul.f32 %v5862, %v5877
          %v5883 = vmul.f32 %v5863, %v5877
          %v5884 = vmul.f32 %v5864, %v5877
          %v5885 = vmul.f32 %v5865, %v5877
          %v5886 = vmul.f32 %v5866, %v5877
          %v5887 = vmul.f32 %v5867, %v5877
          %v5888 = vmul.f32 %v5868, %v5877
          %v5889 = vmul.f32 %v5869, %v5877
          %v5890 = vmul.f32 %v5870, %v5877
          %v5891 = vmul.f32 %v5871, %v5877
          %v5892 = vmul.f32 %v5872, %v5877
          %v5893 = vmul.f32 %v5873, %v5877
          %v5894 = vmul.f32 %v5874, %v5877
          %v5895 = vld [vmem:[%s6] sm:$0x1]
          %v5897 = vperm.slane %v5895, 0
          %v5899 = vadd.f32 %v5879, %v5897
          %v5900 = vadd.f32 %v5880, %v5897
          %v5901 = vadd.f32 %v5881, %v5897
          %v5902 = vadd.f32 %v5882, %v5897
          %v5903 = vadd.f32 %v5883, %v5897
          %v5904 = vadd.f32 %v5884, %v5897
          %v5905 = vadd.f32 %v5885, %v5897
          %v5906 = vadd.f32 %v5886, %v5897
          %v5907 = vadd.f32 %v5887, %v5897
          %v5908 = vadd.f32 %v5888, %v5897
          %v5909 = vadd.f32 %v5889, %v5897
          %v5910 = vadd.f32 %v5890, %v5897
          %v5911 = vadd.f32 %v5891, %v5897
          %v5912 = vadd.f32 %v5892, %v5897
          %v5913 = vadd.f32 %v5893, %v5897
          %v5914 = vadd.f32 %v5894, %v5897
          %5915 = vst [vmem:[%s1070] sm:$0xff] %v5899
          %5916 = vst [vmem:[%s1070 + $0x8] sm:$0xff] %v5900
          %5917 = vst [vmem:[%s1070 + $0x10] sm:$0xff] %v5901
          %5918 = vst [vmem:[%s1070 + $0x18] sm:$0xff] %v5902
          %5919 = vst [vmem:[%s1070 + $0x20] sm:$0xff] %v5903
          %5920 = vst [vmem:[%s1070 + $0x28] sm:$0xff] %v5904
          %5921 = vst [vmem:[%s1070 + $0x30] sm:$0xff] %v5905
          %5922 = vst [vmem:[%s1070 + $0x38] sm:$0xff] %v5906
          %5923 = vst [vmem:[%s1070 + $0x40] sm:$0xff] %v5907
          %5924 = vst [vmem:[%s1070 + $0x48] sm:$0xff] %v5908
          %5925 = vst [vmem:[%s1070 + $0x50] sm:$0xff] %v5909
          %5926 = vst [vmem:[%s1070 + $0x58] sm:$0xff] %v5910
          %5927 = vst [vmem:[%s1070 + $0x60] sm:$0xff] %v5911
          %5928 = vst [vmem:[%s1070 + $0x68] sm:$0xff] %v5912
          %5929 = vst [vmem:[%s1070 + $0x70] sm:$0xff] %v5913
          %5930 = vst [vmem:[%s1070 + $0x78] sm:$0xff] %v5914
        $region179: #{tpu_custom_call.1} parent=158 // pred_fallthru
          _
        %s5931 = sand.u32 %s225, 1
        %s5932 = scalar_lea.sflag [#allocation9], %s5931
        %s5933 = sand.u32 %s225, 1
        %s5934 = smul.addr %s5933, 128
        %s5935 = scalar_lea.vmem [#allocation8], %s5934
        // Predicated region
        $region180: #{tpu_custom_call.1} parent=158 // pred_check
          %p5936 = pneg %p235
        $region181: #{tpu_custom_call.1} parent=158 // pred_check_branch
          %5938 = sbr.rel (%p5936) target = $region183
        $region182: #{tpu_custom_call.1} parent=158 // pred_region
          %s5939 = smul.u32 16, %s27
          %5941 = vsyncadd %s5932, 0
          %s5942 = smul.addr %s26, 32
          %s5943 = sadd.s32 %s5939, %s5942
          %s5944 = smul.addr %s5943, 8
          %s5945 = scalar_lea.hbm %s7, %s5944
          %s5946 = sshll.u32 %s5935, 4
          %s5947 = int_to_ptr.vmem [resolvable:$true] %s5946
          %s5948 = sshll.u32 %s5945, 4
          %s5949 = int_to_ptr.hbm [resolvable:$true] %s5948
          %5954 = dma.vmem_to_hbm [thread:$0]  %s5947, 2048, %s5949, %s5932, 128, 128, 8
        $region183: #{tpu_custom_call.1} parent=158 // pred_fallthru
          _
      $region159: #{tpu_custom_call.1} parent=5 // pred_fallthru
        _
      %p5955 = scmp.le.s32.totalorder 2, %s16
      // Predicated region
      $region184: #{tpu_custom_call.1} parent=5 // pred_check
        %p5956 = pneg %p5955
      $region185: #{tpu_custom_call.1} parent=5 // pred_check_branch
        %5958 = sbr.rel (%p5956) target = $region187
      $region186: #{tpu_custom_call.1} parent=5 // pred_region
        %s5959 = ssub.s32 %s16, 2
        // Predicated region
        $region188: #{tpu_custom_call.1} parent=186 // pred_check
          %p5960 = pneg %p241
        $region189: #{tpu_custom_call.1} parent=186 // pred_check_branch
          %5962 = sbr.rel (%p5960) target = $region191
        $region190: #{tpu_custom_call.1} parent=186 // pred_region
          %s5963 = sand.u32 %s226, 1
          %s5964 = scalar_lea.sflag [#allocation9], %s5963
          %s5965 = sand.u32 %s226, 1
          %s5966 = smul.addr %s5965, 128
          %s5967 = scalar_lea.vmem [#allocation8], %s5966
          %5969 = dma.done %s5964, 2048
        $region191: #{tpu_custom_call.1} parent=186 // pred_fallthru
          _
      $region187: #{tpu_custom_call.1} parent=5 // pred_fallthru
        _
    $region6: #{tpu_custom_call.1} parent=1 // loop_footer
      %s20 = sadd.s32 1, %s16
    $region7: #{tpu_custom_call.1} parent=1 // loop_footer_branch
      %15 = sbr.rel target = $region3
    $region8: #{tpu_custom_call.1} parent=1 // loop_exit
      _
    %5970 = vsyncpa [#allocation9], 1
    %s5971 = scalar_lea.sflag [#allocation9], 1
    %5972 = vsyncpa %s5971, 1

</llo_original>
